<compile_context>
chip_gen: v7x
topology: tpu7x:2x2x1
jax: 0.10.0
libtpu: 0.0.40
codegen_flags: <defaults>
</compile_context>

<pallas_src>
import functools

import jax
import jax.numpy as jnp
from jax.experimental import pallas as pl
from jax.experimental.pallas import tpu as pltpu

PAD = 3  # padding of the 7x7 branch; smaller kernels are placed with an offset
KTAPS = 7  # fused tap grid is 7x7


def _msfe_kernel(x_ref, w_ref, b_ref, o_ref, *, H, W, Wp, Cin, Cout):
    """x_ref: (1, Cin, Lin)  flattened, zero-padded input (channels-first,
                             spatial flattened into the lane dimension).
       w_ref: (49, 3*Cout, Cin) packed per-tap weights (3x3/5x5/7x7 fused).
       b_ref: (3*Cout, 1)       packed biases.
       o_ref: (1, Cout, H*Wp)   lane-dense output incl. padded columns
                                (trimmed in the wrapper)."""
    HWp = H * Wp
    x = x_ref[0]  # (Cin, Lin) -- a handful of vregs; loaded once.

    acc = jnp.zeros((3 * Cout, HWp), dtype=jnp.float32)
    for ky in range(KTAPS):
        for kx in range(KTAPS):
            t = ky * KTAPS + kx
            off = ky * Wp + kx  # static lane offset for this tap
            xs = x[:, off:off + HWp]  # (Cin, H*Wp) contiguous lane-offset view
            acc = acc + jnp.dot(w_ref[t], xs, preferred_element_type=jnp.float32)

    acc = jnp.maximum(acc + b_ref[...], 0.0)  # per-branch bias + ReLU
    out = acc[0:Cout] + acc[Cout:2 * Cout] + acc[2 * Cout:3 * Cout]
    o_ref[...] = out[None, :, :].astype(o_ref.dtype)


@functools.partial(jax.jit, static_argnames=("use_bf16",))
def multi_scale_feature_extractor(x_nchw, params, use_bf16=False):
    """x_nchw: (N, Cin, H, W) f32.  params: PyTorch-layout weights
    (w3,b3,w5,b5,w7,b7; w* in OIHW).  Returns (N, Cout, H, W) f32."""
    N, Cin, H, W = x_nchw.shape
    Cout = params["w3"].shape[0]
    Wp = W + 2 * PAD
    HWp = H * Wp
    # Pad top/left/right by 3, bottom by 4 (one extra zero row so the largest
    # tap offset stays in bounds for the throwaway padded columns).
    xp = jnp.pad(x_nchw.astype(jnp.float32),
                 ((0, 0), (0, 0), (PAD, PAD + 1), (PAD, PAD)))
    Lin = (H + 2 * PAD + 1) * Wp
    x_flat = xp.reshape(N, Cin, Lin)  # spatial flattened into the lane dim

    # Pack per-tap weights: (49, 3*Cout, Cin); zero where a branch has no tap.
    def to_taps(w):  # OIHW -> (kh, kw, O, I)
        return jnp.transpose(w.astype(jnp.float32), (2, 3, 0, 1))

    w_pack = jnp.zeros((KTAPS, KTAPS, 3 * Cout, Cin), dtype=jnp.float32)
    w_pack = w_pack.at[2:5, 2:5, 0:Cout, :].set(to_taps(params["w3"]))
    w_pack = w_pack.at[1:6, 1:6, Cout:2 * Cout, :].set(to_taps(params["w5"]))
    w_pack = w_pack.at[0:7, 0:7, 2 * Cout:3 * Cout, :].set(to_taps(params["w7"]))
    w_pack = w_pack.reshape(KTAPS * KTAPS, 3 * Cout, Cin)

    b_pack = jnp.concatenate(
        [params["b3"], params["b5"], params["b7"]]).astype(jnp.float32)
    b_pack = b_pack.reshape(3 * Cout, 1)

    if use_bf16:  # optional: bf16 MXU inputs on v6e/v7x (f32 accumulation kept)
        x_flat = x_flat.astype(jnp.bfloat16)
        w_pack = w_pack.astype(jnp.bfloat16)

    kernel = functools.partial(_msfe_kernel, H=H, W=W, Wp=Wp, Cin=Cin, Cout=Cout)

    # TODO(synk): for large H/W on v7x (64 MiB VMEM), add a row-tile grid axis
    # (with a 6-row halo) marked "parallel" and set vmem_limit_bytes.
    out_flat = pl.pallas_call(
        kernel,
        out_shape=jax.ShapeDtypeStruct((N, Cout, HWp), jnp.float32),
        grid_spec=pltpu.PrefetchScalarGridSpec(
            num_scalar_prefetch=0,
            grid=(N,),
            in_specs=[
                pl.BlockSpec((1, Cin, Lin), lambda n: (n, 0, 0)),
                pl.BlockSpec((KTAPS * KTAPS, 3 * Cout, Cin), lambda n: (0, 0, 0)),
                pl.BlockSpec((3 * Cout, 1), lambda n: (0, 0)),
            ],
            out_specs=pl.BlockSpec((1, Cout, HWp), lambda n: (n, 0, 0)),
        ),
        compiler_params=pltpu.CompilerParams(dimension_semantics=("parallel",)),
    )(x_flat, w_pack, b_pack)

    # Drop the 2*PAD throwaway columns per row; stay channels-first (NCHW).
    return out_flat.reshape(N, Cout, H, Wp)[:, :, :, :W]


def _reference(x_nchw, params):
    """Pure-JAX reference (lax conv) matching the PyTorch forward."""
    def conv(x, w, b, pad):
        y = jax.lax.conv_general_dilated(
            x, w, window_strides=(1, 1), padding=[(pad, pad), (pad, pad)],
            dimension_numbers=("NCHW", "OIHW", "NCHW"))
        return jnp.maximum(y + b.reshape(1, -1, 1, 1), 0.0)

    return (conv(x_nchw, params["w3"], params["b3"], 1)
            + conv(x_nchw, params["w5"], params["b5"], 2)
            + conv(x_nchw, params["w7"], params["b7"], 3))


if __name__ == "__main__":
    key = jax.random.PRNGKey(0)
    N, Cin, H, W = 2, 4, 16, 16
    Cout = 8

    keys = jax.random.split(key, 7)
    x = jax.random.normal(keys[0], (N, Cin, H, W), dtype=jnp.float32)
    params = {
        "w3": 0.1 * jax.random.normal(keys[1], (Cout, Cin, 3, 3), dtype=jnp.float32),
        "b3": 0.1 * jax.random.normal(keys[2], (Cout,), dtype=jnp.float32),
        "w5": 0.1 * jax.random.normal(keys[3], (Cout, Cin, 5, 5), dtype=jnp.float32),
        "b5": 0.1 * jax.random.normal(keys[4], (Cout,), dtype=jnp.float32),
        "w7": 0.1 * jax.random.normal(keys[5], (Cout, Cin, 7, 7), dtype=jnp.float32),
        "b7": 0.1 * jax.random.normal(keys[6], (Cout,), dtype=jnp.float32),
    }

    out = multi_scale_feature_extractor(x, params, use_bf16=False)
    out = jax.block_until_ready(out)

    ref = jax.block_until_ready(_reference(x, params))
    assert out.shape == (N, Cout, H, W)
    assert jnp.allclose(out, ref, atol=1e-4, rtol=1e-4), "mismatch vs reference"

    print("KERNEL_OK")
</pallas_src>

<mosaic_0001>
module attributes {stable_mosaic.version = 11 : i64} {
  func.func @_msfe_kernel(%arg0: i32, %arg1: memref<1x4x506xf32, #tpu.memory_space<vmem>>, %arg2: memref<49x24x4xf32, #tpu.memory_space<vmem>>, %arg3: memref<24x1xf32, #tpu.memory_space<vmem>>, %arg4: memref<1x8x352xf32, #tpu.memory_space<vmem>>) attributes {dimension_semantics = [#tpu.dimension_semantics<parallel>], iteration_bounds = array<i64: 2>, scalar_prefetch = 0 : i64, scratch_operands = 0 : i64, tpu.core_type = #tpu.core_type<tc>, window_params = [{transform_indices = @transform_0, window_bounds = array<i64: 1, 4, 506>}, {pipeline_mode = #tpu.pipeline_mode<synchronous>, transform_indices = @transform_1, window_bounds = array<i64: 49, 24, 4>}, {pipeline_mode = #tpu.pipeline_mode<synchronous>, transform_indices = @transform_2, window_bounds = array<i64: 24, 1>}, {transform_indices = @transform_3, window_bounds = array<i64: 1, 8, 352>}]} {
    %c0 = arith.constant 0 : index
    %c0_0 = arith.constant 0 : index
    %c0_1 = arith.constant 0 : index
    %0 = vector.load %arg1[%c0, %c0_0, %c0_1] : memref<1x4x506xf32, #tpu.memory_space<vmem>>, vector<1x4x506xf32>
    %1 = vector.shape_cast %0 : vector<1x4x506xf32> to vector<4x506xf32>
    %cst = arith.constant 0.000000e+00 : f32
    %2 = vector.broadcast %cst : f32 to vector<24x352xf32>
    %3 = vector.extract_strided_slice %1 {offsets = [0, 0], sizes = [4, 352], strides = [1, 1]} : vector<4x506xf32> to vector<4x352xf32>
    %c0_2 = arith.constant 0 : index
    %c0_3 = arith.constant 0 : index
    %c0_4 = arith.constant 0 : index
    %4 = vector.load %arg2[%c0_2, %c0_3, %c0_4] : memref<49x24x4xf32, #tpu.memory_space<vmem>>, vector<1x24x4xf32>
    %5 = vector.shape_cast %4 : vector<1x24x4xf32> to vector<24x4xf32>
    %cst_5 = arith.constant dense<0.000000e+00> : vector<24x352xf32>
    %6 = tpu.matmul %5, %3, %cst_5 {dimension_numbers = #tpu.dot_dimension_numbers<[1], [0], [0], [1], [0, 0, 1, 1], [], []>} : vector<24x4xf32>, vector<4x352xf32>, vector<24x352xf32> -> vector<24x352xf32>
    %7 = arith.addf %2, %6 : vector<24x352xf32>
    %8 = vector.extract_strided_slice %1 {offsets = [0, 1], sizes = [4, 352], strides = [1, 1]} : vector<4x506xf32> to vector<4x352xf32>
    %c1 = arith.constant 1 : index
    %c0_6 = arith.constant 0 : index
    %c0_7 = arith.constant 0 : index
    %9 = vector.load %arg2[%c1, %c0_6, %c0_7] : memref<49x24x4xf32, #tpu.memory_space<vmem>>, vector<1x24x4xf32>
    %10 = vector.shape_cast %9 : vector<1x24x4xf32> to vector<24x4xf32>
    %cst_8 = arith.constant dense<0.000000e+00> : vector<24x352xf32>
    %11 = tpu.matmul %10, %8, %cst_8 {dimension_numbers = #tpu.dot_dimension_numbers<[1], [0], [0], [1], [0, 0, 1, 1], [], []>} : vector<24x4xf32>, vector<4x352xf32>, vector<24x352xf32> -> vector<24x352xf32>
    %12 = arith.addf %7, %11 : vector<24x352xf32>
    %13 = vector.extract_strided_slice %1 {offsets = [0, 2], sizes = [4, 352], strides = [1, 1]} : vector<4x506xf32> to vector<4x352xf32>
    %c2 = arith.constant 2 : index
    %c0_9 = arith.constant 0 : index
    %c0_10 = arith.constant 0 : index
    %14 = vector.load %arg2[%c2, %c0_9, %c0_10] : memref<49x24x4xf32, #tpu.memory_space<vmem>>, vector<1x24x4xf32>
    %15 = vector.shape_cast %14 : vector<1x24x4xf32> to vector<24x4xf32>
    %cst_11 = arith.constant dense<0.000000e+00> : vector<24x352xf32>
    %16 = tpu.matmul %15, %13, %cst_11 {dimension_numbers = #tpu.dot_dimension_numbers<[1], [0], [0], [1], [0, 0, 1, 1], [], []>} : vector<24x4xf32>, vector<4x352xf32>, vector<24x352xf32> -> vector<24x352xf32>
    %17 = arith.addf %12, %16 : vector<24x352xf32>
    %18 = vector.extract_strided_slice %1 {offsets = [0, 3], sizes = [4, 352], strides = [1, 1]} : vector<4x506xf32> to vector<4x352xf32>
    %c3 = arith.constant 3 : index
    %c0_12 = arith.constant 0 : index
    %c0_13 = arith.constant 0 : index
    %19 = vector.load %arg2[%c3, %c0_12, %c0_13] : memref<49x24x4xf32, #tpu.memory_space<vmem>>, vector<1x24x4xf32>
    %20 = vector.shape_cast %19 : vector<1x24x4xf32> to vector<24x4xf32>
    %cst_14 = arith.constant dense<0.000000e+00> : vector<24x352xf32>
    %21 = tpu.matmul %20, %18, %cst_14 {dimension_numbers = #tpu.dot_dimension_numbers<[1], [0], [0], [1], [0, 0, 1, 1], [], []>} : vector<24x4xf32>, vector<4x352xf32>, vector<24x352xf32> -> vector<24x352xf32>
    %22 = arith.addf %17, %21 : vector<24x352xf32>
    %23 = vector.extract_strided_slice %1 {offsets = [0, 4], sizes = [4, 352], strides = [1, 1]} : vector<4x506xf32> to vector<4x352xf32>
    %c4 = arith.constant 4 : index
    %c0_15 = arith.constant 0 : index
    %c0_16 = arith.constant 0 : index
    %24 = vector.load %arg2[%c4, %c0_15, %c0_16] : memref<49x24x4xf32, #tpu.memory_space<vmem>>, vector<1x24x4xf32>
    %25 = vector.shape_cast %24 : vector<1x24x4xf32> to vector<24x4xf32>
    %cst_17 = arith.constant dense<0.000000e+00> : vector<24x352xf32>
    %26 = tpu.matmul %25, %23, %cst_17 {dimension_numbers = #tpu.dot_dimension_numbers<[1], [0], [0], [1], [0, 0, 1, 1], [], []>} : vector<24x4xf32>, vector<4x352xf32>, vector<24x352xf32> -> vector<24x352xf32>
    %27 = arith.addf %22, %26 : vector<24x352xf32>
    %28 = vector.extract_strided_slice %1 {offsets = [0, 5], sizes = [4, 352], strides = [1, 1]} : vector<4x506xf32> to vector<4x352xf32>
    %c5 = arith.constant 5 : index
    %c0_18 = arith.constant 0 : index
    %c0_19 = arith.constant 0 : index
    %29 = vector.load %arg2[%c5, %c0_18, %c0_19] : memref<49x24x4xf32, #tpu.memory_space<vmem>>, vector<1x24x4xf32>
    %30 = vector.shape_cast %29 : vector<1x24x4xf32> to vector<24x4xf32>
    %cst_20 = arith.constant dense<0.000000e+00> : vector<24x352xf32>
    %31 = tpu.matmul %30, %28, %cst_20 {dimension_numbers = #tpu.dot_dimension_numbers<[1], [0], [0], [1], [0, 0, 1, 1], [], []>} : vector<24x4xf32>, vector<4x352xf32>, vector<24x352xf32> -> vector<24x352xf32>
    %32 = arith.addf %27, %31 : vector<24x352xf32>
    %33 = vector.extract_strided_slice %1 {offsets = [0, 6], sizes = [4, 352], strides = [1, 1]} : vector<4x506xf32> to vector<4x352xf32>
    %c6 = arith.constant 6 : index
    %c0_21 = arith.constant 0 : index
    %c0_22 = arith.constant 0 : index
    %34 = vector.load %arg2[%c6, %c0_21, %c0_22] : memref<49x24x4xf32, #tpu.memory_space<vmem>>, vector<1x24x4xf32>
    %35 = vector.shape_cast %34 : vector<1x24x4xf32> to vector<24x4xf32>
    %cst_23 = arith.constant dense<0.000000e+00> : vector<24x352xf32>
    %36 = tpu.matmul %35, %33, %cst_23 {dimension_numbers = #tpu.dot_dimension_numbers<[1], [0], [0], [1], [0, 0, 1, 1], [], []>} : vector<24x4xf32>, vector<4x352xf32>, vector<24x352xf32> -> vector<24x352xf32>
    %37 = arith.addf %32, %36 : vector<24x352xf32>
    %38 = vector.extract_strided_slice %1 {offsets = [0, 22], sizes = [4, 352], strides = [1, 1]} : vector<4x506xf32> to vector<4x352xf32>
    %c7 = arith.constant 7 : index
    %c0_24 = arith.constant 0 : index
    %c0_25 = arith.constant 0 : index
    %39 = vector.load %arg2[%c7, %c0_24, %c0_25] : memref<49x24x4xf32, #tpu.memory_space<vmem>>, vector<1x24x4xf32>
    %40 = vector.shape_cast %39 : vector<1x24x4xf32> to vector<24x4xf32>
    %cst_26 = arith.constant dense<0.000000e+00> : vector<24x352xf32>
    %41 = tpu.matmul %40, %38, %cst_26 {dimension_numbers = #tpu.dot_dimension_numbers<[1], [0], [0], [1], [0, 0, 1, 1], [], []>} : vector<24x4xf32>, vector<4x352xf32>, vector<24x352xf32> -> vector<24x352xf32>
    %42 = arith.addf %37, %41 : vector<24x352xf32>
    %43 = vector.extract_strided_slice %1 {offsets = [0, 23], sizes = [4, 352], strides = [1, 1]} : vector<4x506xf32> to vector<4x352xf32>
    %c8 = arith.constant 8 : index
    %c0_27 = arith.constant 0 : index
    %c0_28 = arith.constant 0 : index
    %44 = vector.load %arg2[%c8, %c0_27, %c0_28] : memref<49x24x4xf32, #tpu.memory_space<vmem>>, vector<1x24x4xf32>
    %45 = vector.shape_cast %44 : vector<1x24x4xf32> to vector<24x4xf32>
    %cst_29 = arith.constant dense<0.000000e+00> : vector<24x352xf32>
    %46 = tpu.matmul %45, %43, %cst_29 {dimension_numbers = #tpu.dot_dimension_numbers<[1], [0], [0], [1], [0, 0, 1, 1], [], []>} : vector<24x4xf32>, vector<4x352xf32>, vector<24x352xf32> -> vector<24x352xf32>
    %47 = arith.addf %42, %46 : vector<24x352xf32>
    %48 = vector.extract_strided_slice %1 {offsets = [0, 24], sizes = [4, 352], strides = [1, 1]} : vector<4x506xf32> to vector<4x352xf32>
    %c9 = arith.constant 9 : index
    %c0_30 = arith.constant 0 : index
    %c0_31 = arith.constant 0 : index
    %49 = vector.load %arg2[%c9, %c0_30, %c0_31] : memref<49x24x4xf32, #tpu.memory_space<vmem>>, vector<1x24x4xf32>
    %50 = vector.shape_cast %49 : vector<1x24x4xf32> to vector<24x4xf32>
    %cst_32 = arith.constant dense<0.000000e+00> : vector<24x352xf32>
    %51 = tpu.matmul %50, %48, %cst_32 {dimension_numbers = #tpu.dot_dimension_numbers<[1], [0], [0], [1], [0, 0, 1, 1], [], []>} : vector<24x4xf32>, vector<4x352xf32>, vector<24x352xf32> -> vector<24x352xf32>
    %52 = arith.addf %47, %51 : vector<24x352xf32>
    %53 = vector.extract_strided_slice %1 {offsets = [0, 25], sizes = [4, 352], strides = [1, 1]} : vector<4x506xf32> to vector<4x352xf32>
    %c10 = arith.constant 10 : index
    %c0_33 = arith.constant 0 : index
    %c0_34 = arith.constant 0 : index
    %54 = vector.load %arg2[%c10, %c0_33, %c0_34] : memref<49x24x4xf32, #tpu.memory_space<vmem>>, vector<1x24x4xf32>
    %55 = vector.shape_cast %54 : vector<1x24x4xf32> to vector<24x4xf32>
    %cst_35 = arith.constant dense<0.000000e+00> : vector<24x352xf32>
    %56 = tpu.matmul %55, %53, %cst_35 {dimension_numbers = #tpu.dot_dimension_numbers<[1], [0], [0], [1], [0, 0, 1, 1], [], []>} : vector<24x4xf32>, vector<4x352xf32>, vector<24x352xf32> -> vector<24x352xf32>
    %57 = arith.addf %52, %56 : vector<24x352xf32>
    %58 = vector.extract_strided_slice %1 {offsets = [0, 26], sizes = [4, 352], strides = [1, 1]} : vector<4x506xf32> to vector<4x352xf32>
    %c11 = arith.constant 11 : index
    %c0_36 = arith.constant 0 : index
    %c0_37 = arith.constant 0 : index
    %59 = vector.load %arg2[%c11, %c0_36, %c0_37] : memref<49x24x4xf32, #tpu.memory_space<vmem>>, vector<1x24x4xf32>
    %60 = vector.shape_cast %59 : vector<1x24x4xf32> to vector<24x4xf32>
    %cst_38 = arith.constant dense<0.000000e+00> : vector<24x352xf32>
    %61 = tpu.matmul %60, %58, %cst_38 {dimension_numbers = #tpu.dot_dimension_numbers<[1], [0], [0], [1], [0, 0, 1, 1], [], []>} : vector<24x4xf32>, vector<4x352xf32>, vector<24x352xf32> -> vector<24x352xf32>
    %62 = arith.addf %57, %61 : vector<24x352xf32>
    %63 = vector.extract_strided_slice %1 {offsets = [0, 27], sizes = [4, 352], strides = [1, 1]} : vector<4x506xf32> to vector<4x352xf32>
    %c12 = arith.constant 12 : index
    %c0_39 = arith.constant 0 : index
    %c0_40 = arith.constant 0 : index
    %64 = vector.load %arg2[%c12, %c0_39, %c0_40] : memref<49x24x4xf32, #tpu.memory_space<vmem>>, vector<1x24x4xf32>
    %65 = vector.shape_cast %64 : vector<1x24x4xf32> to vector<24x4xf32>
    %cst_41 = arith.constant dense<0.000000e+00> : vector<24x352xf32>
    %66 = tpu.matmul %65, %63, %cst_41 {dimension_numbers = #tpu.dot_dimension_numbers<[1], [0], [0], [1], [0, 0, 1, 1], [], []>} : vector<24x4xf32>, vector<4x352xf32>, vector<24x352xf32> -> vector<24x352xf32>
    %67 = arith.addf %62, %66 : vector<24x352xf32>
    %68 = vector.extract_strided_slice %1 {offsets = [0, 28], sizes = [4, 352], strides = [1, 1]} : vector<4x506xf32> to vector<4x352xf32>
    %c13 = arith.constant 13 : index
    %c0_42 = arith.constant 0 : index
    %c0_43 = arith.constant 0 : index
    %69 = vector.load %arg2[%c13, %c0_42, %c0_43] : memref<49x24x4xf32, #tpu.memory_space<vmem>>, vector<1x24x4xf32>
    %70 = vector.shape_cast %69 : vector<1x24x4xf32> to vector<24x4xf32>
    %cst_44 = arith.constant dense<0.000000e+00> : vector<24x352xf32>
    %71 = tpu.matmul %70, %68, %cst_44 {dimension_numbers = #tpu.dot_dimension_numbers<[1], [0], [0], [1], [0, 0, 1, 1], [], []>} : vector<24x4xf32>, vector<4x352xf32>, vector<24x352xf32> -> vector<24x352xf32>
    %72 = arith.addf %67, %71 : vector<24x352xf32>
    %73 = vector.extract_strided_slice %1 {offsets = [0, 44], sizes = [4, 352], strides = [1, 1]} : vector<4x506xf32> to vector<4x352xf32>
    %c14 = arith.constant 14 : index
    %c0_45 = arith.constant 0 : index
    %c0_46 = arith.constant 0 : index
    %74 = vector.load %arg2[%c14, %c0_45, %c0_46] : memref<49x24x4xf32, #tpu.memory_space<vmem>>, vector<1x24x4xf32>
    %75 = vector.shape_cast %74 : vector<1x24x4xf32> to vector<24x4xf32>
    %cst_47 = arith.constant dense<0.000000e+00> : vector<24x352xf32>
    %76 = tpu.matmul %75, %73, %cst_47 {dimension_numbers = #tpu.dot_dimension_numbers<[1], [0], [0], [1], [0, 0, 1, 1], [], []>} : vector<24x4xf32>, vector<4x352xf32>, vector<24x352xf32> -> vector<24x352xf32>
    %77 = arith.addf %72, %76 : vector<24x352xf32>
    %78 = vector.extract_strided_slice %1 {offsets = [0, 45], sizes = [4, 352], strides = [1, 1]} : vector<4x506xf32> to vector<4x352xf32>
    %c15 = arith.constant 15 : index
    %c0_48 = arith.constant 0 : index
    %c0_49 = arith.constant 0 : index
    %79 = vector.load %arg2[%c15, %c0_48, %c0_49] : memref<49x24x4xf32, #tpu.memory_space<vmem>>, vector<1x24x4xf32>
    %80 = vector.shape_cast %79 : vector<1x24x4xf32> to vector<24x4xf32>
    %cst_50 = arith.constant dense<0.000000e+00> : vector<24x352xf32>
    %81 = tpu.matmul %80, %78, %cst_50 {dimension_numbers = #tpu.dot_dimension_numbers<[1], [0], [0], [1], [0, 0, 1, 1], [], []>} : vector<24x4xf32>, vector<4x352xf32>, vector<24x352xf32> -> vector<24x352xf32>
    %82 = arith.addf %77, %81 : vector<24x352xf32>
    %83 = vector.extract_strided_slice %1 {offsets = [0, 46], sizes = [4, 352], strides = [1, 1]} : vector<4x506xf32> to vector<4x352xf32>
    %c16 = arith.constant 16 : index
    %c0_51 = arith.constant 0 : index
    %c0_52 = arith.constant 0 : index
    %84 = vector.load %arg2[%c16, %c0_51, %c0_52] : memref<49x24x4xf32, #tpu.memory_space<vmem>>, vector<1x24x4xf32>
    %85 = vector.shape_cast %84 : vector<1x24x4xf32> to vector<24x4xf32>
    %cst_53 = arith.constant dense<0.000000e+00> : vector<24x352xf32>
    %86 = tpu.matmul %85, %83, %cst_53 {dimension_numbers = #tpu.dot_dimension_numbers<[1], [0], [0], [1], [0, 0, 1, 1], [], []>} : vector<24x4xf32>, vector<4x352xf32>, vector<24x352xf32> -> vector<24x352xf32>
    %87 = arith.addf %82, %86 : vector<24x352xf32>
    %88 = vector.extract_strided_slice %1 {offsets = [0, 47], sizes = [4, 352], strides = [1, 1]} : vector<4x506xf32> to vector<4x352xf32>
    %c17 = arith.constant 17 : index
    %c0_54 = arith.constant 0 : index
    %c0_55 = arith.constant 0 : index
    %89 = vector.load %arg2[%c17, %c0_54, %c0_55] : memref<49x24x4xf32, #tpu.memory_space<vmem>>, vector<1x24x4xf32>
    %90 = vector.shape_cast %89 : vector<1x24x4xf32> to vector<24x4xf32>
    %cst_56 = arith.constant dense<0.000000e+00> : vector<24x352xf32>
    %91 = tpu.matmul %90, %88, %cst_56 {dimension_numbers = #tpu.dot_dimension_numbers<[1], [0], [0], [1], [0, 0, 1, 1], [], []>} : vector<24x4xf32>, vector<4x352xf32>, vector<24x352xf32> -> vector<24x352xf32>
    %92 = arith.addf %87, %91 : vector<24x352xf32>
    %93 = vector.extract_strided_slice %1 {offsets = [0, 48], sizes = [4, 352], strides = [1, 1]} : vector<4x506xf32> to vector<4x352xf32>
    %c18 = arith.constant 18 : index
    %c0_57 = arith.constant 0 : index
    %c0_58 = arith.constant 0 : index
    %94 = vector.load %arg2[%c18, %c0_57, %c0_58] : memref<49x24x4xf32, #tpu.memory_space<vmem>>, vector<1x24x4xf32>
    %95 = vector.shape_cast %94 : vector<1x24x4xf32> to vector<24x4xf32>
    %cst_59 = arith.constant dense<0.000000e+00> : vector<24x352xf32>
    %96 = tpu.matmul %95, %93, %cst_59 {dimension_numbers = #tpu.dot_dimension_numbers<[1], [0], [0], [1], [0, 0, 1, 1], [], []>} : vector<24x4xf32>, vector<4x352xf32>, vector<24x352xf32> -> vector<24x352xf32>
    %97 = arith.addf %92, %96 : vector<24x352xf32>
    %98 = vector.extract_strided_slice %1 {offsets = [0, 49], sizes = [4, 352], strides = [1, 1]} : vector<4x506xf32> to vector<4x352xf32>
    %c19 = arith.constant 19 : index
    %c0_60 = arith.constant 0 : index
    %c0_61 = arith.constant 0 : index
    %99 = vector.load %arg2[%c19, %c0_60, %c0_61] : memref<49x24x4xf32, #tpu.memory_space<vmem>>, vector<1x24x4xf32>
    %100 = vector.shape_cast %99 : vector<1x24x4xf32> to vector<24x4xf32>
    %cst_62 = arith.constant dense<0.000000e+00> : vector<24x352xf32>
    %101 = tpu.matmul %100, %98, %cst_62 {dimension_numbers = #tpu.dot_dimension_numbers<[1], [0], [0], [1], [0, 0, 1, 1], [], []>} : vector<24x4xf32>, vector<4x352xf32>, vector<24x352xf32> -> vector<24x352xf32>
    %102 = arith.addf %97, %101 : vector<24x352xf32>
    %103 = vector.extract_strided_slice %1 {offsets = [0, 50], sizes = [4, 352], strides = [1, 1]} : vector<4x506xf32> to vector<4x352xf32>
    %c20 = arith.constant 20 : index
    %c0_63 = arith.constant 0 : index
    %c0_64 = arith.constant 0 : index
    %104 = vector.load %arg2[%c20, %c0_63, %c0_64] : memref<49x24x4xf32, #tpu.memory_space<vmem>>, vector<1x24x4xf32>
    %105 = vector.shape_cast %104 : vector<1x24x4xf32> to vector<24x4xf32>
    %cst_65 = arith.constant dense<0.000000e+00> : vector<24x352xf32>
    %106 = tpu.matmul %105, %103, %cst_65 {dimension_numbers = #tpu.dot_dimension_numbers<[1], [0], [0], [1], [0, 0, 1, 1], [], []>} : vector<24x4xf32>, vector<4x352xf32>, vector<24x352xf32> -> vector<24x352xf32>
    %107 = arith.addf %102, %106 : vector<24x352xf32>
    %108 = vector.extract_strided_slice %1 {offsets = [0, 66], sizes = [4, 352], strides = [1, 1]} : vector<4x506xf32> to vector<4x352xf32>
    %c21 = arith.constant 21 : index
    %c0_66 = arith.constant 0 : index
    %c0_67 = arith.constant 0 : index
    %109 = vector.load %arg2[%c21, %c0_66, %c0_67] : memref<49x24x4xf32, #tpu.memory_space<vmem>>, vector<1x24x4xf32>
    %110 = vector.shape_cast %109 : vector<1x24x4xf32> to vector<24x4xf32>
    %cst_68 = arith.constant dense<0.000000e+00> : vector<24x352xf32>
    %111 = tpu.matmul %110, %108, %cst_68 {dimension_numbers = #tpu.dot_dimension_numbers<[1], [0], [0], [1], [0, 0, 1, 1], [], []>} : vector<24x4xf32>, vector<4x352xf32>, vector<24x352xf32> -> vector<24x352xf32>
    %112 = arith.addf %107, %111 : vector<24x352xf32>
    %113 = vector.extract_strided_slice %1 {offsets = [0, 67], sizes = [4, 352], strides = [1, 1]} : vector<4x506xf32> to vector<4x352xf32>
    %c22 = arith.constant 22 : index
    %c0_69 = arith.constant 0 : index
    %c0_70 = arith.constant 0 : index
    %114 = vector.load %arg2[%c22, %c0_69, %c0_70] : memref<49x24x4xf32, #tpu.memory_space<vmem>>, vector<1x24x4xf32>
    %115 = vector.shape_cast %114 : vector<1x24x4xf32> to vector<24x4xf32>
    %cst_71 = arith.constant dense<0.000000e+00> : vector<24x352xf32>
    %116 = tpu.matmul %115, %113, %cst_71 {dimension_numbers = #tpu.dot_dimension_numbers<[1], [0], [0], [1], [0, 0, 1, 1], [], []>} : vector<24x4xf32>, vector<4x352xf32>, vector<24x352xf32> -> vector<24x352xf32>
    %117 = arith.addf %112, %116 : vector<24x352xf32>
    %118 = vector.extract_strided_slice %1 {offsets = [0, 68], sizes = [4, 352], strides = [1, 1]} : vector<4x506xf32> to vector<4x352xf32>
    %c23 = arith.constant 23 : index
    %c0_72 = arith.constant 0 : index
    %c0_73 = arith.constant 0 : index
    %119 = vector.load %arg2[%c23, %c0_72, %c0_73] : memref<49x24x4xf32, #tpu.memory_space<vmem>>, vector<1x24x4xf32>
    %120 = vector.shape_cast %119 : vector<1x24x4xf32> to vector<24x4xf32>
    %cst_74 = arith.constant dense<0.000000e+00> : vector<24x352xf32>
    %121 = tpu.matmul %120, %118, %cst_74 {dimension_numbers = #tpu.dot_dimension_numbers<[1], [0], [0], [1], [0, 0, 1, 1], [], []>} : vector<24x4xf32>, vector<4x352xf32>, vector<24x352xf32> -> vector<24x352xf32>
    %122 = arith.addf %117, %121 : vector<24x352xf32>
    %123 = vector.extract_strided_slice %1 {offsets = [0, 69], sizes = [4, 352], strides = [1, 1]} : vector<4x506xf32> to vector<4x352xf32>
    %c24 = arith.constant 24 : index
    %c0_75 = arith.constant 0 : index
    %c0_76 = arith.constant 0 : index
    %124 = vector.load %arg2[%c24, %c0_75, %c0_76] : memref<49x24x4xf32, #tpu.memory_space<vmem>>, vector<1x24x4xf32>
    %125 = vector.shape_cast %124 : vector<1x24x4xf32> to vector<24x4xf32>
    %cst_77 = arith.constant dense<0.000000e+00> : vector<24x352xf32>
    %126 = tpu.matmul %125, %123, %cst_77 {dimension_numbers = #tpu.dot_dimension_numbers<[1], [0], [0], [1], [0, 0, 1, 1], [], []>} : vector<24x4xf32>, vector<4x352xf32>, vector<24x352xf32> -> vector<24x352xf32>
    %127 = arith.addf %122, %126 : vector<24x352xf32>
    %128 = vector.extract_strided_slice %1 {offsets = [0, 70], sizes = [4, 352], strides = [1, 1]} : vector<4x506xf32> to vector<4x352xf32>
    %c25 = arith.constant 25 : index
    %c0_78 = arith.constant 0 : index
    %c0_79 = arith.constant 0 : index
    %129 = vector.load %arg2[%c25, %c0_78, %c0_79] : memref<49x24x4xf32, #tpu.memory_space<vmem>>, vector<1x24x4xf32>
    %130 = vector.shape_cast %129 : vector<1x24x4xf32> to vector<24x4xf32>
    %cst_80 = arith.constant dense<0.000000e+00> : vector<24x352xf32>
    %131 = tpu.matmul %130, %128, %cst_80 {dimension_numbers = #tpu.dot_dimension_numbers<[1], [0], [0], [1], [0, 0, 1, 1], [], []>} : vector<24x4xf32>, vector<4x352xf32>, vector<24x352xf32> -> vector<24x352xf32>
    %132 = arith.addf %127, %131 : vector<24x352xf32>
    %133 = vector.extract_strided_slice %1 {offsets = [0, 71], sizes = [4, 352], strides = [1, 1]} : vector<4x506xf32> to vector<4x352xf32>
    %c26 = arith.constant 26 : index
    %c0_81 = arith.constant 0 : index
    %c0_82 = arith.constant 0 : index
    %134 = vector.load %arg2[%c26, %c0_81, %c0_82] : memref<49x24x4xf32, #tpu.memory_space<vmem>>, vector<1x24x4xf32>
    %135 = vector.shape_cast %134 : vector<1x24x4xf32> to vector<24x4xf32>
    %cst_83 = arith.constant dense<0.000000e+00> : vector<24x352xf32>
    %136 = tpu.matmul %135, %133, %cst_83 {dimension_numbers = #tpu.dot_dimension_numbers<[1], [0], [0], [1], [0, 0, 1, 1], [], []>} : vector<24x4xf32>, vector<4x352xf32>, vector<24x352xf32> -> vector<24x352xf32>
    %137 = arith.addf %132, %136 : vector<24x352xf32>
    %138 = vector.extract_strided_slice %1 {offsets = [0, 72], sizes = [4, 352], strides = [1, 1]} : vector<4x506xf32> to vector<4x352xf32>
    %c27 = arith.constant 27 : index
    %c0_84 = arith.constant 0 : index
    %c0_85 = arith.constant 0 : index
    %139 = vector.load %arg2[%c27, %c0_84, %c0_85] : memref<49x24x4xf32, #tpu.memory_space<vmem>>, vector<1x24x4xf32>
    %140 = vector.shape_cast %139 : vector<1x24x4xf32> to vector<24x4xf32>
    %cst_86 = arith.constant dense<0.000000e+00> : vector<24x352xf32>
    %141 = tpu.matmul %140, %138, %cst_86 {dimension_numbers = #tpu.dot_dimension_numbers<[1], [0], [0], [1], [0, 0, 1, 1], [], []>} : vector<24x4xf32>, vector<4x352xf32>, vector<24x352xf32> -> vector<24x352xf32>
    %142 = arith.addf %137, %141 : vector<24x352xf32>
    %143 = vector.extract_strided_slice %1 {offsets = [0, 88], sizes = [4, 352], strides = [1, 1]} : vector<4x506xf32> to vector<4x352xf32>
    %c28 = arith.constant 28 : index
    %c0_87 = arith.constant 0 : index
    %c0_88 = arith.constant 0 : index
    %144 = vector.load %arg2[%c28, %c0_87, %c0_88] : memref<49x24x4xf32, #tpu.memory_space<vmem>>, vector<1x24x4xf32>
    %145 = vector.shape_cast %144 : vector<1x24x4xf32> to vector<24x4xf32>
    %cst_89 = arith.constant dense<0.000000e+00> : vector<24x352xf32>
    %146 = tpu.matmul %145, %143, %cst_89 {dimension_numbers = #tpu.dot_dimension_numbers<[1], [0], [0], [1], [0, 0, 1, 1], [], []>} : vector<24x4xf32>, vector<4x352xf32>, vector<24x352xf32> -> vector<24x352xf32>
    %147 = arith.addf %142, %146 : vector<24x352xf32>
    %148 = vector.extract_strided_slice %1 {offsets = [0, 89], sizes = [4, 352], strides = [1, 1]} : vector<4x506xf32> to vector<4x352xf32>
    %c29 = arith.constant 29 : index
    %c0_90 = arith.constant 0 : index
    %c0_91 = arith.constant 0 : index
    %149 = vector.load %arg2[%c29, %c0_90, %c0_91] : memref<49x24x4xf32, #tpu.memory_space<vmem>>, vector<1x24x4xf32>
    %150 = vector.shape_cast %149 : vector<1x24x4xf32> to vector<24x4xf32>
    %cst_92 = arith.constant dense<0.000000e+00> : vector<24x352xf32>
    %151 = tpu.matmul %150, %148, %cst_92 {dimension_numbers = #tpu.dot_dimension_numbers<[1], [0], [0], [1], [0, 0, 1, 1], [], []>} : vector<24x4xf32>, vector<4x352xf32>, vector<24x352xf32> -> vector<24x352xf32>
    %152 = arith.addf %147, %151 : vector<24x352xf32>
    %153 = vector.extract_strided_slice %1 {offsets = [0, 90], sizes = [4, 352], strides = [1, 1]} : vector<4x506xf32> to vector<4x352xf32>
    %c30 = arith.constant 30 : index
    %c0_93 = arith.constant 0 : index
    %c0_94 = arith.constant 0 : index
    %154 = vector.load %arg2[%c30, %c0_93, %c0_94] : memref<49x24x4xf32, #tpu.memory_space<vmem>>, vector<1x24x4xf32>
    %155 = vector.shape_cast %154 : vector<1x24x4xf32> to vector<24x4xf32>
    %cst_95 = arith.constant dense<0.000000e+00> : vector<24x352xf32>
    %156 = tpu.matmul %155, %153, %cst_95 {dimension_numbers = #tpu.dot_dimension_numbers<[1], [0], [0], [1], [0, 0, 1, 1], [], []>} : vector<24x4xf32>, vector<4x352xf32>, vector<24x352xf32> -> vector<24x352xf32>
    %157 = arith.addf %152, %156 : vector<24x352xf32>
    %158 = vector.extract_strided_slice %1 {offsets = [0, 91], sizes = [4, 352], strides = [1, 1]} : vector<4x506xf32> to vector<4x352xf32>
    %c31 = arith.constant 31 : index
    %c0_96 = arith.constant 0 : index
    %c0_97 = arith.constant 0 : index
    %159 = vector.load %arg2[%c31, %c0_96, %c0_97] : memref<49x24x4xf32, #tpu.memory_space<vmem>>, vector<1x24x4xf32>
    %160 = vector.shape_cast %159 : vector<1x24x4xf32> to vector<24x4xf32>
    %cst_98 = arith.constant dense<0.000000e+00> : vector<24x352xf32>
    %161 = tpu.matmul %160, %158, %cst_98 {dimension_numbers = #tpu.dot_dimension_numbers<[1], [0], [0], [1], [0, 0, 1, 1], [], []>} : vector<24x4xf32>, vector<4x352xf32>, vector<24x352xf32> -> vector<24x352xf32>
    %162 = arith.addf %157, %161 : vector<24x352xf32>
    %163 = vector.extract_strided_slice %1 {offsets = [0, 92], sizes = [4, 352], strides = [1, 1]} : vector<4x506xf32> to vector<4x352xf32>
    %c32 = arith.constant 32 : index
    %c0_99 = arith.constant 0 : index
    %c0_100 = arith.constant 0 : index
    %164 = vector.load %arg2[%c32, %c0_99, %c0_100] : memref<49x24x4xf32, #tpu.memory_space<vmem>>, vector<1x24x4xf32>
    %165 = vector.shape_cast %164 : vector<1x24x4xf32> to vector<24x4xf32>
    %cst_101 = arith.constant dense<0.000000e+00> : vector<24x352xf32>
    %166 = tpu.matmul %165, %163, %cst_101 {dimension_numbers = #tpu.dot_dimension_numbers<[1], [0], [0], [1], [0, 0, 1, 1], [], []>} : vector<24x4xf32>, vector<4x352xf32>, vector<24x352xf32> -> vector<24x352xf32>
    %167 = arith.addf %162, %166 : vector<24x352xf32>
    %168 = vector.extract_strided_slice %1 {offsets = [0, 93], sizes = [4, 352], strides = [1, 1]} : vector<4x506xf32> to vector<4x352xf32>
    %c33 = arith.constant 33 : index
    %c0_102 = arith.constant 0 : index
    %c0_103 = arith.constant 0 : index
    %169 = vector.load %arg2[%c33, %c0_102, %c0_103] : memref<49x24x4xf32, #tpu.memory_space<vmem>>, vector<1x24x4xf32>
    %170 = vector.shape_cast %169 : vector<1x24x4xf32> to vector<24x4xf32>
    %cst_104 = arith.constant dense<0.000000e+00> : vector<24x352xf32>
    %171 = tpu.matmul %170, %168, %cst_104 {dimension_numbers = #tpu.dot_dimension_numbers<[1], [0], [0], [1], [0, 0, 1, 1], [], []>} : vector<24x4xf32>, vector<4x352xf32>, vector<24x352xf32> -> vector<24x352xf32>
    %172 = arith.addf %167, %171 : vector<24x352xf32>
    %173 = vector.extract_strided_slice %1 {offsets = [0, 94], sizes = [4, 352], strides = [1, 1]} : vector<4x506xf32> to vector<4x352xf32>
    %c34 = arith.constant 34 : index
    %c0_105 = arith.constant 0 : index
    %c0_106 = arith.constant 0 : index
    %174 = vector.load %arg2[%c34, %c0_105, %c0_106] : memref<49x24x4xf32, #tpu.memory_space<vmem>>, vector<1x24x4xf32>
    %175 = vector.shape_cast %174 : vector<1x24x4xf32> to vector<24x4xf32>
    %cst_107 = arith.constant dense<0.000000e+00> : vector<24x352xf32>
    %176 = tpu.matmul %175, %173, %cst_107 {dimension_numbers = #tpu.dot_dimension_numbers<[1], [0], [0], [1], [0, 0, 1, 1], [], []>} : vector<24x4xf32>, vector<4x352xf32>, vector<24x352xf32> -> vector<24x352xf32>
    %177 = arith.addf %172, %176 : vector<24x352xf32>
    %178 = vector.extract_strided_slice %1 {offsets = [0, 110], sizes = [4, 352], strides = [1, 1]} : vector<4x506xf32> to vector<4x352xf32>
    %c35 = arith.constant 35 : index
    %c0_108 = arith.constant 0 : index
    %c0_109 = arith.constant 0 : index
    %179 = vector.load %arg2[%c35, %c0_108, %c0_109] : memref<49x24x4xf32, #tpu.memory_space<vmem>>, vector<1x24x4xf32>
    %180 = vector.shape_cast %179 : vector<1x24x4xf32> to vector<24x4xf32>
    %cst_110 = arith.constant dense<0.000000e+00> : vector<24x352xf32>
    %181 = tpu.matmul %180, %178, %cst_110 {dimension_numbers = #tpu.dot_dimension_numbers<[1], [0], [0], [1], [0, 0, 1, 1], [], []>} : vector<24x4xf32>, vector<4x352xf32>, vector<24x352xf32> -> vector<24x352xf32>
    %182 = arith.addf %177, %181 : vector<24x352xf32>
    %183 = vector.extract_strided_slice %1 {offsets = [0, 111], sizes = [4, 352], strides = [1, 1]} : vector<4x506xf32> to vector<4x352xf32>
    %c36 = arith.constant 36 : index
    %c0_111 = arith.constant 0 : index
    %c0_112 = arith.constant 0 : index
    %184 = vector.load %arg2[%c36, %c0_111, %c0_112] : memref<49x24x4xf32, #tpu.memory_space<vmem>>, vector<1x24x4xf32>
    %185 = vector.shape_cast %184 : vector<1x24x4xf32> to vector<24x4xf32>
    %cst_113 = arith.constant dense<0.000000e+00> : vector<24x352xf32>
    %186 = tpu.matmul %185, %183, %cst_113 {dimension_numbers = #tpu.dot_dimension_numbers<[1], [0], [0], [1], [0, 0, 1, 1], [], []>} : vector<24x4xf32>, vector<4x352xf32>, vector<24x352xf32> -> vector<24x352xf32>
    %187 = arith.addf %182, %186 : vector<24x352xf32>
    %188 = vector.extract_strided_slice %1 {offsets = [0, 112], sizes = [4, 352], strides = [1, 1]} : vector<4x506xf32> to vector<4x352xf32>
    %c37 = arith.constant 37 : index
    %c0_114 = arith.constant 0 : index
    %c0_115 = arith.constant 0 : index
    %189 = vector.load %arg2[%c37, %c0_114, %c0_115] : memref<49x24x4xf32, #tpu.memory_space<vmem>>, vector<1x24x4xf32>
    %190 = vector.shape_cast %189 : vector<1x24x4xf32> to vector<24x4xf32>
    %cst_116 = arith.constant dense<0.000000e+00> : vector<24x352xf32>
    %191 = tpu.matmul %190, %188, %cst_116 {dimension_numbers = #tpu.dot_dimension_numbers<[1], [0], [0], [1], [0, 0, 1, 1], [], []>} : vector<24x4xf32>, vector<4x352xf32>, vector<24x352xf32> -> vector<24x352xf32>
    %192 = arith.addf %187, %191 : vector<24x352xf32>
    %193 = vector.extract_strided_slice %1 {offsets = [0, 113], sizes = [4, 352], strides = [1, 1]} : vector<4x506xf32> to vector<4x352xf32>
    %c38 = arith.constant 38 : index
    %c0_117 = arith.constant 0 : index
    %c0_118 = arith.constant 0 : index
    %194 = vector.load %arg2[%c38, %c0_117, %c0_118] : memref<49x24x4xf32, #tpu.memory_space<vmem>>, vector<1x24x4xf32>
    %195 = vector.shape_cast %194 : vector<1x24x4xf32> to vector<24x4xf32>
    %cst_119 = arith.constant dense<0.000000e+00> : vector<24x352xf32>
    %196 = tpu.matmul %195, %193, %cst_119 {dimension_numbers = #tpu.dot_dimension_numbers<[1], [0], [0], [1], [0, 0, 1, 1], [], []>} : vector<24x4xf32>, vector<4x352xf32>, vector<24x352xf32> -> vector<24x352xf32>
    %197 = arith.addf %192, %196 : vector<24x352xf32>
    %198 = vector.extract_strided_slice %1 {offsets = [0, 114], sizes = [4, 352], strides = [1, 1]} : vector<4x506xf32> to vector<4x352xf32>
    %c39 = arith.constant 39 : index
    %c0_120 = arith.constant 0 : index
    %c0_121 = arith.constant 0 : index
    %199 = vector.load %arg2[%c39, %c0_120, %c0_121] : memref<49x24x4xf32, #tpu.memory_space<vmem>>, vector<1x24x4xf32>
    %200 = vector.shape_cast %199 : vector<1x24x4xf32> to vector<24x4xf32>
    %cst_122 = arith.constant dense<0.000000e+00> : vector<24x352xf32>
    %201 = tpu.matmul %200, %198, %cst_122 {dimension_numbers = #tpu.dot_dimension_numbers<[1], [0], [0], [1], [0, 0, 1, 1], [], []>} : vector<24x4xf32>, vector<4x352xf32>, vector<24x352xf32> -> vector<24x352xf32>
    %202 = arith.addf %197, %201 : vector<24x352xf32>
    %203 = vector.extract_strided_slice %1 {offsets = [0, 115], sizes = [4, 352], strides = [1, 1]} : vector<4x506xf32> to vector<4x352xf32>
    %c40 = arith.constant 40 : index
    %c0_123 = arith.constant 0 : index
    %c0_124 = arith.constant 0 : index
    %204 = vector.load %arg2[%c40, %c0_123, %c0_124] : memref<49x24x4xf32, #tpu.memory_space<vmem>>, vector<1x24x4xf32>
    %205 = vector.shape_cast %204 : vector<1x24x4xf32> to vector<24x4xf32>
    %cst_125 = arith.constant dense<0.000000e+00> : vector<24x352xf32>
    %206 = tpu.matmul %205, %203, %cst_125 {dimension_numbers = #tpu.dot_dimension_numbers<[1], [0], [0], [1], [0, 0, 1, 1], [], []>} : vector<24x4xf32>, vector<4x352xf32>, vector<24x352xf32> -> vector<24x352xf32>
    %207 = arith.addf %202, %206 : vector<24x352xf32>
    %208 = vector.extract_strided_slice %1 {offsets = [0, 116], sizes = [4, 352], strides = [1, 1]} : vector<4x506xf32> to vector<4x352xf32>
    %c41 = arith.constant 41 : index
    %c0_126 = arith.constant 0 : index
    %c0_127 = arith.constant 0 : index
    %209 = vector.load %arg2[%c41, %c0_126, %c0_127] : memref<49x24x4xf32, #tpu.memory_space<vmem>>, vector<1x24x4xf32>
    %210 = vector.shape_cast %209 : vector<1x24x4xf32> to vector<24x4xf32>
    %cst_128 = arith.constant dense<0.000000e+00> : vector<24x352xf32>
    %211 = tpu.matmul %210, %208, %cst_128 {dimension_numbers = #tpu.dot_dimension_numbers<[1], [0], [0], [1], [0, 0, 1, 1], [], []>} : vector<24x4xf32>, vector<4x352xf32>, vector<24x352xf32> -> vector<24x352xf32>
    %212 = arith.addf %207, %211 : vector<24x352xf32>
    %213 = vector.extract_strided_slice %1 {offsets = [0, 132], sizes = [4, 352], strides = [1, 1]} : vector<4x506xf32> to vector<4x352xf32>
    %c42 = arith.constant 42 : index
    %c0_129 = arith.constant 0 : index
    %c0_130 = arith.constant 0 : index
    %214 = vector.load %arg2[%c42, %c0_129, %c0_130] : memref<49x24x4xf32, #tpu.memory_space<vmem>>, vector<1x24x4xf32>
    %215 = vector.shape_cast %214 : vector<1x24x4xf32> to vector<24x4xf32>
    %cst_131 = arith.constant dense<0.000000e+00> : vector<24x352xf32>
    %216 = tpu.matmul %215, %213, %cst_131 {dimension_numbers = #tpu.dot_dimension_numbers<[1], [0], [0], [1], [0, 0, 1, 1], [], []>} : vector<24x4xf32>, vector<4x352xf32>, vector<24x352xf32> -> vector<24x352xf32>
    %217 = arith.addf %212, %216 : vector<24x352xf32>
    %218 = vector.extract_strided_slice %1 {offsets = [0, 133], sizes = [4, 352], strides = [1, 1]} : vector<4x506xf32> to vector<4x352xf32>
    %c43 = arith.constant 43 : index
    %c0_132 = arith.constant 0 : index
    %c0_133 = arith.constant 0 : index
    %219 = vector.load %arg2[%c43, %c0_132, %c0_133] : memref<49x24x4xf32, #tpu.memory_space<vmem>>, vector<1x24x4xf32>
    %220 = vector.shape_cast %219 : vector<1x24x4xf32> to vector<24x4xf32>
    %cst_134 = arith.constant dense<0.000000e+00> : vector<24x352xf32>
    %221 = tpu.matmul %220, %218, %cst_134 {dimension_numbers = #tpu.dot_dimension_numbers<[1], [0], [0], [1], [0, 0, 1, 1], [], []>} : vector<24x4xf32>, vector<4x352xf32>, vector<24x352xf32> -> vector<24x352xf32>
    %222 = arith.addf %217, %221 : vector<24x352xf32>
    %223 = vector.extract_strided_slice %1 {offsets = [0, 134], sizes = [4, 352], strides = [1, 1]} : vector<4x506xf32> to vector<4x352xf32>
    %c44 = arith.constant 44 : index
    %c0_135 = arith.constant 0 : index
    %c0_136 = arith.constant 0 : index
    %224 = vector.load %arg2[%c44, %c0_135, %c0_136] : memref<49x24x4xf32, #tpu.memory_space<vmem>>, vector<1x24x4xf32>
    %225 = vector.shape_cast %224 : vector<1x24x4xf32> to vector<24x4xf32>
    %cst_137 = arith.constant dense<0.000000e+00> : vector<24x352xf32>
    %226 = tpu.matmul %225, %223, %cst_137 {dimension_numbers = #tpu.dot_dimension_numbers<[1], [0], [0], [1], [0, 0, 1, 1], [], []>} : vector<24x4xf32>, vector<4x352xf32>, vector<24x352xf32> -> vector<24x352xf32>
    %227 = arith.addf %222, %226 : vector<24x352xf32>
    %228 = vector.extract_strided_slice %1 {offsets = [0, 135], sizes = [4, 352], strides = [1, 1]} : vector<4x506xf32> to vector<4x352xf32>
    %c45 = arith.constant 45 : index
    %c0_138 = arith.constant 0 : index
    %c0_139 = arith.constant 0 : index
    %229 = vector.load %arg2[%c45, %c0_138, %c0_139] : memref<49x24x4xf32, #tpu.memory_space<vmem>>, vector<1x24x4xf32>
    %230 = vector.shape_cast %229 : vector<1x24x4xf32> to vector<24x4xf32>
    %cst_140 = arith.constant dense<0.000000e+00> : vector<24x352xf32>
    %231 = tpu.matmul %230, %228, %cst_140 {dimension_numbers = #tpu.dot_dimension_numbers<[1], [0], [0], [1], [0, 0, 1, 1], [], []>} : vector<24x4xf32>, vector<4x352xf32>, vector<24x352xf32> -> vector<24x352xf32>
    %232 = arith.addf %227, %231 : vector<24x352xf32>
    %233 = vector.extract_strided_slice %1 {offsets = [0, 136], sizes = [4, 352], strides = [1, 1]} : vector<4x506xf32> to vector<4x352xf32>
    %c46 = arith.constant 46 : index
    %c0_141 = arith.constant 0 : index
    %c0_142 = arith.constant 0 : index
    %234 = vector.load %arg2[%c46, %c0_141, %c0_142] : memref<49x24x4xf32, #tpu.memory_space<vmem>>, vector<1x24x4xf32>
    %235 = vector.shape_cast %234 : vector<1x24x4xf32> to vector<24x4xf32>
    %cst_143 = arith.constant dense<0.000000e+00> : vector<24x352xf32>
    %236 = tpu.matmul %235, %233, %cst_143 {dimension_numbers = #tpu.dot_dimension_numbers<[1], [0], [0], [1], [0, 0, 1, 1], [], []>} : vector<24x4xf32>, vector<4x352xf32>, vector<24x352xf32> -> vector<24x352xf32>
    %237 = arith.addf %232, %236 : vector<24x352xf32>
    %238 = vector.extract_strided_slice %1 {offsets = [0, 137], sizes = [4, 352], strides = [1, 1]} : vector<4x506xf32> to vector<4x352xf32>
    %c47 = arith.constant 47 : index
    %c0_144 = arith.constant 0 : index
    %c0_145 = arith.constant 0 : index
    %239 = vector.load %arg2[%c47, %c0_144, %c0_145] : memref<49x24x4xf32, #tpu.memory_space<vmem>>, vector<1x24x4xf32>
    %240 = vector.shape_cast %239 : vector<1x24x4xf32> to vector<24x4xf32>
    %cst_146 = arith.constant dense<0.000000e+00> : vector<24x352xf32>
    %241 = tpu.matmul %240, %238, %cst_146 {dimension_numbers = #tpu.dot_dimension_numbers<[1], [0], [0], [1], [0, 0, 1, 1], [], []>} : vector<24x4xf32>, vector<4x352xf32>, vector<24x352xf32> -> vector<24x352xf32>
    %242 = arith.addf %237, %241 : vector<24x352xf32>
    %243 = vector.extract_strided_slice %1 {offsets = [0, 138], sizes = [4, 352], strides = [1, 1]} : vector<4x506xf32> to vector<4x352xf32>
    %c48 = arith.constant 48 : index
    %c0_147 = arith.constant 0 : index
    %c0_148 = arith.constant 0 : index
    %244 = vector.load %arg2[%c48, %c0_147, %c0_148] : memref<49x24x4xf32, #tpu.memory_space<vmem>>, vector<1x24x4xf32>
    %245 = vector.shape_cast %244 : vector<1x24x4xf32> to vector<24x4xf32>
    %cst_149 = arith.constant dense<0.000000e+00> : vector<24x352xf32>
    %246 = tpu.matmul %245, %243, %cst_149 {dimension_numbers = #tpu.dot_dimension_numbers<[1], [0], [0], [1], [0, 0, 1, 1], [], []>} : vector<24x4xf32>, vector<4x352xf32>, vector<24x352xf32> -> vector<24x352xf32>
    %247 = arith.addf %242, %246 : vector<24x352xf32>
    %c0_150 = arith.constant 0 : index
    %c0_151 = arith.constant 0 : index
    %248 = vector.load %arg3[%c0_150, %c0_151] : memref<24x1xf32, #tpu.memory_space<vmem>>, vector<24x1xf32>
    %249 = vector.broadcast %248 : vector<24x1xf32> to vector<24x352xf32>
    %250 = arith.addf %247, %249 : vector<24x352xf32>
    %cst_152 = arith.constant 0.000000e+00 : f32
    %251 = vector.broadcast %cst_152 : f32 to vector<24x352xf32>
    %252 = arith.maximumf %250, %251 : vector<24x352xf32>
    %253 = vector.extract_strided_slice %252 {offsets = [0, 0], sizes = [8, 352], strides = [1, 1]} : vector<24x352xf32> to vector<8x352xf32>
    %254 = vector.extract_strided_slice %252 {offsets = [8, 0], sizes = [8, 352], strides = [1, 1]} : vector<24x352xf32> to vector<8x352xf32>
    %255 = arith.addf %253, %254 : vector<8x352xf32>
    %256 = vector.extract_strided_slice %252 {offsets = [16, 0], sizes = [8, 352], strides = [1, 1]} : vector<24x352xf32> to vector<8x352xf32>
    %257 = arith.addf %255, %256 : vector<8x352xf32>
    %258 = vector.shape_cast %257 : vector<8x352xf32> to vector<1x8x352xf32>
    %c0_153 = arith.constant 0 : index
    %c0_154 = arith.constant 0 : index
    %c0_155 = arith.constant 0 : index
    %259 = vector.load %arg4[%c0_153, %c0_154, %c0_155] : memref<1x8x352xf32, #tpu.memory_space<vmem>>, vector<1x8x352xf32>
    tpu.vector_store %arg4[%c0_153, %c0_154, %c0_155], %258 {strides = array<i32>} : memref<1x8x352xf32, #tpu.memory_space<vmem>>, vector<1x8x352xf32>,
    return
  }
  func.func @transform_0(%arg0: i32) -> (i32, i32, i32) {
    %c0_i32 = arith.constant 0 : i32
    %c0_i32_0 = arith.constant 0 : i32
    %c0_i32_1 = arith.constant 0 : i32
    return %arg0, %c0_i32, %c0_i32_0 : i32, i32, i32
  }
  func.func @transform_1(%arg0: i32) -> (i32, i32, i32) {
    %c0_i32 = arith.constant 0 : i32
    %c0_i32_0 = arith.constant 0 : i32
    %c0_i32_1 = arith.constant 0 : i32
    %c0_i32_2 = arith.constant 0 : i32
    return %c0_i32, %c0_i32_0, %c0_i32_1 : i32, i32, i32
  }
  func.func @transform_2(%arg0: i32) -> (i32, i32) {
    %c0_i32 = arith.constant 0 : i32
    %c0_i32_0 = arith.constant 0 : i32
    %c0_i32_1 = arith.constant 0 : i32
    return %c0_i32, %c0_i32_0 : i32, i32
  }
  func.func @transform_3(%arg0: i32) -> (i32, i32, i32) {
    %c0_i32 = arith.constant 0 : i32
    %c0_i32_0 = arith.constant 0 : i32
    %c0_i32_1 = arith.constant 0 : i32
    return %arg0, %c0_i32, %c0_i32_0 : i32, i32, i32
  }
}

</mosaic_0001>

<llo_original>
// kernel: multi_scale_feature_extractor.1
$region0: #{multi_scale_feature_extractor.1}
  #allocation0 [shape = 'u32[]', space=smem, size = 0x4, offset = 0x4, fixed_abs, tag = 'smem constant byte address 0x4 - core index']
  #allocation1 [shape = 'u32[144,128]{1,0:T(1,128)}', space=vmem, size = 0x12000, scoped, tag = 'internal scratch']
  %s0 = inlined_call_operand.vmem [shape: f32[2,4,506], index: 0, kind: input, shape index: {}]
  %s1 = inlined_call_operand.vmem [shape: f32[49,24,4], index: 1, kind: input, shape index: {}]
  %s2 = inlined_call_operand.vmem [shape: f32[24,1], index: 2, kind: input, shape index: {}]
  %s3 = inlined_call_operand.vmem [shape: f32[2,8,352], index: 3, kind: output, shape index: {}]
  %s4 = sld [smem:[#allocation0]]
  $region45: #{multi_scale_feature_extractor.1} parent=0
    _
  %s6 = ssub.s32 1, %s4
  %s7 = scalar_select 0, %s6, %s4
  loop: start=0, step=1, limit=4
  $region2: #{multi_scale_feature_extractor.1} parent=0 // loop_pre_header
    _
  $region3: #{multi_scale_feature_extractor.1} parent=0 // loop_header
    %s9 = sphi 0, %s13
    %p10 = scmp.ge.s32.totalorder %s9, 4
    %s19 = sphi 0, %s21
    %s22 = sphi 0, %s19
    %s23 = sphi 0, %s22
    %s39 = sphi 0, %s23
    %s43 = sphi 0, %s43
    %s45 = sphi 0, %s43
    %s46 = sphi 0, %s45
    %s60 = sphi 0, %s46
    %s64 = sphi 0, %s64
    %s66 = sphi 0, %s64
    %s67 = sphi 0, %s66
    %s81 = sphi 0, %s67
    %s87 = sphi 0, %s89
    %s90 = sphi 0, %s87
    %s91 = sphi 0, %s90
    %s107 = sphi 0, %s91
  $region4: #{multi_scale_feature_extractor.1} parent=0 // loop_header_branch
    %12 = sbr.rel (%p10) target = $region8
  $region5: #{multi_scale_feature_extractor.1} parent=0 // loop_body
    %s14 = ssub.s32 %s9, 1
    %s15 = ssub.s32 %s9, 2
    %s16 = sadd.s32 %s9, 1
    %s17 = ssub.s32 %s9, %s16
    %p18 = scmp.eq.s32.totalorder %s17, 0
    %s20 = sadd.s32 %s19, 1
    %s21 = scalar_select %p18, %s19, %s20
    %p24 = pneg %p18
    %p25 = scmp.eq.s32.totalorder %s9, 1
    %p26 = por %p24, %p25
    %p27 = scmp.ne.s32.totalorder %s19, %s22
    %p28 = scmp.eq.s32.totalorder %s9, 0
    %p29 = por %p27, %p28
    %p30 = scmp.ne.s32.totalorder %s19, %s22
    %p31 = scmp.eq.s32.totalorder %s14, 1
    %p32 = por %p30, %p31
    %p33 = scmp.ne.s32.totalorder %s22, %s23
    %p34 = scmp.eq.s32.totalorder %s14, 0
    %p35 = por %p33, %p34
    %p36 = scmp.ne.s32.totalorder %s22, %s23
    %p37 = scmp.eq.s32.totalorder %s15, 1
    %p38 = por %p36, %p37
    %p40 = scmp.ne.s32.totalorder %s23, %s39
    %p41 = scmp.eq.s32.totalorder %s15, 0
    %p42 = por %p40, %p41
    %s44 = sadd.s32 %s43, 1
    %p47 = scmp.eq.s32.totalorder %s9, 1
    %p48 = scmp.ne.s32.totalorder %s43, %s45
    %p49 = scmp.eq.s32.totalorder %s9, 0
    %p50 = por %p48, %p49
    %p51 = scmp.ne.s32.totalorder %s43, %s45
    %p52 = scmp.eq.s32.totalorder %s14, 1
    %p53 = por %p51, %p52
    %p54 = scmp.ne.s32.totalorder %s45, %s46
    %p55 = scmp.eq.s32.totalorder %s14, 0
    %p56 = por %p54, %p55
    %p57 = scmp.ne.s32.totalorder %s45, %s46
    %p58 = scmp.eq.s32.totalorder %s15, 1
    %p59 = por %p57, %p58
    %p61 = scmp.ne.s32.totalorder %s46, %s60
    %p62 = scmp.eq.s32.totalorder %s15, 0
    %p63 = por %p61, %p62
    %s65 = sadd.s32 %s64, 1
    %p68 = scmp.eq.s32.totalorder %s9, 1
    %p69 = scmp.ne.s32.totalorder %s64, %s66
    %p70 = scmp.eq.s32.totalorder %s9, 0
    %p71 = por %p69, %p70
    %p72 = scmp.ne.s32.totalorder %s64, %s66
    %p73 = scmp.eq.s32.totalorder %s14, 1
    %p74 = por %p72, %p73
    %p75 = scmp.ne.s32.totalorder %s66, %s67
    %p76 = scmp.eq.s32.totalorder %s14, 0
    %p77 = por %p75, %p76
    %p78 = scmp.ne.s32.totalorder %s66, %s67
    %p79 = scmp.eq.s32.totalorder %s15, 1
    %p80 = por %p78, %p79
    %p82 = scmp.ne.s32.totalorder %s67, %s81
    %p83 = scmp.eq.s32.totalorder %s15, 0
    %p84 = por %p82, %p83
    %s85 = ssub.s32 %s9, %s16
    %p86 = scmp.eq.s32.totalorder %s85, 0
    %s88 = sadd.s32 %s87, 1
    %s89 = scalar_select %p86, %s87, %s88
    %p92 = pneg %p86
    %p93 = scmp.eq.s32.totalorder %s9, 1
    %p94 = por %p92, %p93
    %p95 = scmp.ne.s32.totalorder %s87, %s90
    %p96 = scmp.eq.s32.totalorder %s9, 0
    %p97 = por %p95, %p96
    %p98 = scmp.ne.s32.totalorder %s87, %s90
    %p99 = scmp.eq.s32.totalorder %s14, 1
    %p100 = por %p98, %p99
    %p101 = scmp.ne.s32.totalorder %s90, %s91
    %p102 = scmp.eq.s32.totalorder %s14, 0
    %p103 = por %p101, %p102
    %p104 = scmp.ne.s32.totalorder %s90, %s91
    %p105 = scmp.eq.s32.totalorder %s15, 1
    %p106 = por %p104, %p105
    %p108 = scmp.ne.s32.totalorder %s91, %s107
    %p109 = scmp.eq.s32.totalorder %s15, 0
    %p110 = por %p108, %p109
    %p111 = scmp.le.s32.totalorder 1, %s9
    %p112 = scmp.lt.s32.totalorder %s9, 3
    %p113 = pnand %p111, %p112
    %p114 = pneg %p113
    // Predicated region
    $region9: #{multi_scale_feature_extractor.1} parent=5 // pred_check
      _
    $region10: #{multi_scale_feature_extractor.1} parent=5 // pred_check_branch
      %116 = sbr.rel (%p113) target = $region12
    $region11: #{multi_scale_feature_extractor.1} parent=5 // pred_region
      %s117 = ssub.s32 %s9, 1
      // Predicated region
      $region13: #{multi_scale_feature_extractor.1} parent=11 // pred_check
        %p118 = pneg %p56
      $region14: #{multi_scale_feature_extractor.1} parent=11 // pred_check_branch
        %120 = sbr.rel (%p118) target = $region16
      $region15: #{multi_scale_feature_extractor.1} parent=11 // pred_region
        _
      $region16: #{multi_scale_feature_extractor.1} parent=11 // pred_fallthru
        _
      // Predicated region
      $region17: #{multi_scale_feature_extractor.1} parent=11 // pred_check
        %p121 = pneg %p77
      $region18: #{multi_scale_feature_extractor.1} parent=11 // pred_check_branch
        %123 = sbr.rel (%p121) target = $region20
      $region19: #{multi_scale_feature_extractor.1} parent=11 // pred_region
        _
      $region20: #{multi_scale_feature_extractor.1} parent=11 // pred_fallthru
        _
    $region12: #{multi_scale_feature_extractor.1} parent=5 // pred_fallthru
      _
    %p124 = scmp.lt.s32.totalorder %s9, 2
    // Predicated region
    $region21: #{multi_scale_feature_extractor.1} parent=5 // pred_check
      %p125 = pneg %p124
    $region22: #{multi_scale_feature_extractor.1} parent=5 // pred_check_branch
      %127 = sbr.rel (%p125) target = $region24
    $region23: #{multi_scale_feature_extractor.1} parent=5 // pred_region
      // Predicated region
      $region25: #{multi_scale_feature_extractor.1} parent=23 // pred_check
        %p128 = pneg %p29
      $region26: #{multi_scale_feature_extractor.1} parent=23 // pred_check_branch
        %130 = sbr.rel (%p128) target = $region28
      $region27: #{multi_scale_feature_extractor.1} parent=23 // pred_region
        %p131 = scmp.lt.s32.totalorder %s9, 1
        %s132 = scalar_select %p131, %s9, 1
        %s133 = smul.addr %s132, 4
        %s134 = smul.addr %s133, 4
        %s135 = scalar_lea.vmem %s0, %s134
      $region28: #{multi_scale_feature_extractor.1} parent=23 // pred_fallthru
        _
    $region24: #{multi_scale_feature_extractor.1} parent=5 // pred_fallthru
      _
    %p136 = scmp.le.s32.totalorder 1, %s9
    %p137 = scmp.lt.s32.totalorder %s9, 3
    %p138 = pnand %p136, %p137
    %p139 = pneg %p138
    // Predicated region
    $region29: #{multi_scale_feature_extractor.1} parent=5 // pred_check
      _
    $region30: #{multi_scale_feature_extractor.1} parent=5 // pred_check_branch
      %141 = sbr.rel (%p138) target = $region32
    $region31: #{multi_scale_feature_extractor.1} parent=5 // pred_region
      %s142 = ssub.s32 %s9, 1
      %p143 = scmp.lt.s32.totalorder %s14, 1
      %s144 = scalar_select %p143, %s14, 1
      %s145 = smul.addr %s144, 4
      %s146 = smul.addr %s145, 4
      %s147 = scalar_lea.vmem %s0, %s146
      %p148 = pneg %p35
      %p149 = pneg %p32
      %p150 = pneg %p56
      %p151 = pneg %p53
      %p152 = pneg %p77
      %p153 = pneg %p74
      %p154 = pneg %p103
      %p155 = pneg %p100
      %p156 = scmp.lt.s32.totalorder %s14, 1
      %s157 = scalar_select %p156, %s14, 1
      %s158 = smul.addr %s157, 3
      %s159 = smul.addr %s158, 8
      %s160 = scalar_lea.vmem %s3, %s159
      %p161 = scmp.lt.s32.totalorder %s14, 1
      %s162 = scalar_select %p161, %s14, 1
      %s163 = smul.addr %s162, 4
      %s164 = smul.addr %s163, 4
      %s165 = scalar_lea.vmem %s0, %s164
      %p166 = scmp.lt.s32.totalorder %s14, 1
      %s167 = scalar_select %p166, %s14, 1
      %s168 = smul.addr %s167, 3
      %s169 = smul.addr %s168, 8
      %s170 = scalar_lea.vmem %s3, %s169
      %v171 = vld [vmem:[%s165] sm:$0xff]
      %v172 = vld [vmem:[%s165 + $0x8] sm:$0xff]
      %v173 = vld [vmem:[%s1] sm:$0xff]
      %v174 = vld [vmem:[%s1 + $0x8] sm:$0xff]
      %v175 = vld [vmem:[%s1 + $0x10] sm:$0xff]
      %s176 = scalar_lea.vmem %s1, 24
      %v177 = vld [vmem:[%s176] sm:$0xff]
      %v178 = vld [vmem:[%s176 + $0x8] sm:$0xff]
      %v179 = vld [vmem:[%s176 + $0x10] sm:$0xff]
      %v182 = vcombine.high %v171, %v171
      %183 = vrot.lane.b32.xlu0 %v171, 127
      %v184 = vpop.permute.xlu0 %183
      %185 = vrot.lane.b32.xlu0 %v182, 127
      %v186 = vpop.permute.xlu0 %185
      %187 = vrot.lane.b32.xlu0 %v172, 127
      %v188 = vpop.permute.xlu0 %187
      %vm189 = vcmask 1039360
      %v190 = vsel %vm189, %v184, %v186
      %v191 = vsel %vm189, %v186, %v188
      %vm192 = vcmask 31744
      %v194 = vsel %vm192, %v177, 0
      %v197 = vsel %vm192, %v178, 0
      %v200 = vsel %vm192, %v179, 0
      %vm202 = vcmask 1043456
      %v203 = vsel %vm202, %v190, 0
      %v205 = vsel %vm202, %v191, 0
      %v207 = vsel %vm202, %v188, 0
      %209 = vmatprep.subr.mxu0 %v205
      %210 = vmatpush1.msra.mxu0 %v203
      %211 = vmatprep.subr.mxu0 0.0
      %212 = vmatpush1.msra.mxu0 0.0
      %213 = vmatprep.subr.mxu0 0.0
      %214 = vmatpush1.msra.mxu0 0.0
      %215 = vmatprep.subr.mxu0 0.0
      %216 = vmatpush1.msra.mxu0 0.0
      %217 = vmatprep.subr.mxu0 0.0
      %218 = vmatpush1.msra.mxu0 0.0
      %219 = vmatprep.subr.mxu0 0.0
      %220 = vmatpush1.msra.mxu0 0.0
      %221 = vmatprep.subr.mxu0 0.0
      %222 = vmatpush1.msra.mxu0 0.0
      %223 = vmatprep.subr.mxu0 0.0
      %224 = vmatpush1.msra.mxu0 0.0
      %225 = vmatprep.subr.mxu0 0.0
      %226 = vmatpush1.msra.mxu0 0.0
      %227 = vmatprep.subr.mxu0 0.0
      %228 = vmatpush1.msra.mxu0 0.0
      %229 = vmatprep.subr.mxu0 0.0
      %230 = vmatpush1.msra.mxu0 0.0
      %231 = vmatprep.subr.mxu0 0.0
      %232 = vmatpush1.msra.mxu0 0.0
      %233 = vmatprep.subr.mxu0 0.0
      %234 = vmatpush1.msra.mxu0 0.0
      %235 = vmatprep.subr.mxu0 0.0
      %236 = vmatpush1.msra.mxu0 0.0
      %237 = vmatprep.subr.mxu0 0.0
      %238 = vmatpush1.msra.mxu0 0.0
      %239 = vmatprep.subr.mxu0 0.0
      %240 = vmatpush1.msra.mxu0 0.0
      %241 = vmatprep.subr.mxu0 0.0
      %242 = vmatpush1.msra.mxu0 0.0
      %243 = vmatprep.subr.mxu0 0.0
      %244 = vmatpush1.msra.mxu0 0.0
      %245 = vmatprep.subr.mxu0 0.0
      %246 = vmatpush1.msra.mxu0 0.0
      %247 = vmatprep.subr.mxu0 0.0
      %248 = vmatpush1.msra.mxu0 0.0
      %249 = vmatprep.subr.mxu0 0.0
      %250 = vmatpush1.msra.mxu0 0.0
      %251 = vmatprep.subr.mxu0 0.0
      %252 = vmatpush1.msra.mxu0 0.0
      %253 = vmatprep.subr.mxu0 0.0
      %254 = vmatpush1.msra.mxu0 0.0
      %255 = vmatprep.subr.mxu0 0.0
      %256 = vmatpush1.msra.mxu0 0.0
      %257 = vmatprep.subr.mxu0 0.0
      %258 = vmatpush1.msra.mxu0 0.0
      %259 = vmatprep.subr.mxu0 0.0
      %260 = vmatpush1.msra.mxu0 0.0
      %261 = vmatprep.subr.mxu0 0.0
      %262 = vmatpush1.msra.mxu0 0.0
      %263 = vmatprep.subr.mxu0 0.0
      %264 = vmatpush1.msra.mxu0 0.0
      %265 = vmatprep.subr.mxu0 0.0
      %266 = vmatpush1.msra.mxu0 0.0
      %267 = vmatprep.subr.mxu0 0.0
      %268 = vmatpush1.msra.mxu0 0.0
      %269 = vmatprep.subr.mxu0 0.0
      %270 = vmatpush1.msra.mxu0 0.0
      %271 = vmatprep.subr.mxu0 0.0
      %272 = vmatpush1.msra.mxu0 0.0
      %273 = vmatprep.mubr.f32.mxu0 0.0
      %274 = vmatmul.mubr.f32.gmra.mrb[0].mxu0 %v194
      %v275 = vpop.f32.mrb[0].mxu0
      %v276 = vadd.f32 0.0, %v275
      %v277 = vpop.f32.mrb[0].mxu0
      %v278 = vadd.f32 0.0, %v277
      %279 = vmatprep.mubr.f32.mxu0 0.0
      %280 = vmatmul.mubr.f32.gmra.mrb[0].mxu0 %v197
      %v281 = vpop.f32.mrb[0].mxu0
      %v282 = vadd.f32 0.0, %v281
      %v283 = vpop.f32.mrb[0].mxu0
      %v284 = vadd.f32 0.0, %v283
      %285 = vmatprep.mubr.f32.mxu0 0.0
      %286 = vmatmul.mubr.f32.gmra.mrb[0].mxu0 %v200
      %v287 = vpop.f32.mrb[0].mxu0
      %v288 = vadd.f32 0.0, %v287
      %v289 = vpop.f32.mrb[0].mxu0
      %v290 = vadd.f32 0.0, %v289
      %291 = vdwg.mxu0
      %292 = vmatprep.subr.mxu0 0.0
      %293 = vmatpush1.msra.mxu0 %v207
      %294 = vmatprep.subr.mxu0 0.0
      %295 = vmatpush1.msra.mxu0 0.0
      %296 = vmatprep.subr.mxu0 0.0
      %297 = vmatpush1.msra.mxu0 0.0
      %298 = vmatprep.subr.mxu0 0.0
      %299 = vmatpush1.msra.mxu0 0.0
      %300 = vmatprep.subr.mxu0 0.0
      %301 = vmatpush1.msra.mxu0 0.0
      %302 = vmatprep.subr.mxu0 0.0
      %303 = vmatpush1.msra.mxu0 0.0
      %304 = vmatprep.subr.mxu0 0.0
      %305 = vmatpush1.msra.mxu0 0.0
      %306 = vmatprep.subr.mxu0 0.0
      %307 = vmatpush1.msra.mxu0 0.0
      %308 = vmatprep.subr.mxu0 0.0
      %309 = vmatpush1.msra.mxu0 0.0
      %310 = vmatprep.subr.mxu0 0.0
      %311 = vmatpush1.msra.mxu0 0.0
      %312 = vmatprep.subr.mxu0 0.0
      %313 = vmatpush1.msra.mxu0 0.0
      %314 = vmatprep.subr.mxu0 0.0
      %315 = vmatpush1.msra.mxu0 0.0
      %316 = vmatprep.subr.mxu0 0.0
      %317 = vmatpush1.msra.mxu0 0.0
      %318 = vmatprep.subr.mxu0 0.0
      %319 = vmatpush1.msra.mxu0 0.0
      %320 = vmatprep.subr.mxu0 0.0
      %321 = vmatpush1.msra.mxu0 0.0
      %322 = vmatprep.subr.mxu0 0.0
      %323 = vmatpush1.msra.mxu0 0.0
      %324 = vmatprep.subr.mxu0 0.0
      %325 = vmatpush1.msra.mxu0 0.0
      %326 = vmatprep.subr.mxu0 0.0
      %327 = vmatpush1.msra.mxu0 0.0
      %328 = vmatprep.subr.mxu0 0.0
      %329 = vmatpush1.msra.mxu0 0.0
      %330 = vmatprep.subr.mxu0 0.0
      %331 = vmatpush1.msra.mxu0 0.0
      %332 = vmatprep.subr.mxu0 0.0
      %333 = vmatpush1.msra.mxu0 0.0
      %334 = vmatprep.subr.mxu0 0.0
      %335 = vmatpush1.msra.mxu0 0.0
      %336 = vmatprep.subr.mxu0 0.0
      %337 = vmatpush1.msra.mxu0 0.0
      %338 = vmatprep.subr.mxu0 0.0
      %339 = vmatpush1.msra.mxu0 0.0
      %340 = vmatprep.subr.mxu0 0.0
      %341 = vmatpush1.msra.mxu0 0.0
      %342 = vmatprep.subr.mxu0 0.0
      %343 = vmatpush1.msra.mxu0 0.0
      %344 = vmatprep.subr.mxu0 0.0
      %345 = vmatpush1.msra.mxu0 0.0
      %346 = vmatprep.subr.mxu0 0.0
      %347 = vmatpush1.msra.mxu0 0.0
      %348 = vmatprep.subr.mxu0 0.0
      %349 = vmatpush1.msra.mxu0 0.0
      %350 = vmatprep.subr.mxu0 0.0
      %351 = vmatpush1.msra.mxu0 0.0
      %352 = vmatprep.subr.mxu0 0.0
      %353 = vmatpush1.msra.mxu0 0.0
      %354 = vmatprep.subr.mxu0 0.0
      %355 = vmatpush1.msra.mxu0 0.0
      %356 = vmatprep.mubr.f32.mxu0 0.0
      %357 = vmatmul.mubr.f32.gmra.mrb[0].mxu0 %v194
      %v358 = vpop.f32.mrb[0].mxu0
      %v359 = vadd.f32 0.0, %v358
      %v360 = vpop.f32.mrb[0].mxu0
      %361 = vmatprep.mubr.f32.mxu0 0.0
      %362 = vmatmul.mubr.f32.gmra.mrb[0].mxu0 %v197
      %v363 = vpop.f32.mrb[0].mxu0
      %v364 = vadd.f32 0.0, %v363
      %v365 = vpop.f32.mrb[0].mxu0
      %366 = vmatprep.mubr.f32.mxu0 0.0
      %367 = vmatmul.mubr.f32.gmra.mrb[0].mxu0 %v200
      %v368 = vpop.f32.mrb[0].mxu0
      %v369 = vadd.f32 0.0, %v368
      %v370 = vpop.f32.mrb[0].mxu0
      %371 = vdwg.mxu0
      %v373 = vsel %vm192, %v173, 0
      %v376 = vsel %vm192, %v174, 0
      %v379 = vsel %vm192, %v175, 0
      %v381 = vsel %vm202, %v171, 0
      %v383 = vsel %vm202, %v182, 0
      %v385 = vsel %vm202, %v172, 0
      %387 = vmatprep.subr.mxu0 %v383
      %388 = vmatpush1.msra.mxu0 %v381
      %389 = vmatprep.subr.mxu0 0.0
      %390 = vmatpush1.msra.mxu0 0.0
      %391 = vmatprep.subr.mxu0 0.0
      %392 = vmatpush1.msra.mxu0 0.0
      %393 = vmatprep.subr.mxu0 0.0
      %394 = vmatpush1.msra.mxu0 0.0
      %395 = vmatprep.subr.mxu0 0.0
      %396 = vmatpush1.msra.mxu0 0.0
      %397 = vmatprep.subr.mxu0 0.0
      %398 = vmatpush1.msra.mxu0 0.0
      %399 = vmatprep.subr.mxu0 0.0
      %400 = vmatpush1.msra.mxu0 0.0
      %401 = vmatprep.subr.mxu0 0.0
      %402 = vmatpush1.msra.mxu0 0.0
      %403 = vmatprep.subr.mxu0 0.0
      %404 = vmatpush1.msra.mxu0 0.0
      %405 = vmatprep.subr.mxu0 0.0
      %406 = vmatpush1.msra.mxu0 0.0
      %407 = vmatprep.subr.mxu0 0.0
      %408 = vmatpush1.msra.mxu0 0.0
      %409 = vmatprep.subr.mxu0 0.0
      %410 = vmatpush1.msra.mxu0 0.0
      %411 = vmatprep.subr.mxu0 0.0
      %412 = vmatpush1.msra.mxu0 0.0
      %413 = vmatprep.subr.mxu0 0.0
      %414 = vmatpush1.msra.mxu0 0.0
      %415 = vmatprep.subr.mxu0 0.0
      %416 = vmatpush1.msra.mxu0 0.0
      %417 = vmatprep.subr.mxu0 0.0
      %418 = vmatpush1.msra.mxu0 0.0
      %419 = vmatprep.subr.mxu0 0.0
      %420 = vmatpush1.msra.mxu0 0.0
      %421 = vmatprep.subr.mxu0 0.0
      %422 = vmatpush1.msra.mxu0 0.0
      %423 = vmatprep.subr.mxu0 0.0
      %424 = vmatpush1.msra.mxu0 0.0
      %425 = vmatprep.subr.mxu0 0.0
      %426 = vmatpush1.msra.mxu0 0.0
      %427 = vmatprep.subr.mxu0 0.0
      %428 = vmatpush1.msra.mxu0 0.0
      %429 = vmatprep.subr.mxu0 0.0
      %430 = vmatpush1.msra.mxu0 0.0
      %431 = vmatprep.subr.mxu0 0.0
      %432 = vmatpush1.msra.mxu0 0.0
      %433 = vmatprep.subr.mxu0 0.0
      %434 = vmatpush1.msra.mxu0 0.0
      %435 = vmatprep.subr.mxu0 0.0
      %436 = vmatpush1.msra.mxu0 0.0
      %437 = vmatprep.subr.mxu0 0.0
      %438 = vmatpush1.msra.mxu0 0.0
      %439 = vmatprep.subr.mxu0 0.0
      %440 = vmatpush1.msra.mxu0 0.0
      %441 = vmatprep.subr.mxu0 0.0
      %442 = vmatpush1.msra.mxu0 0.0
      %443 = vmatprep.subr.mxu0 0.0
      %444 = vmatpush1.msra.mxu0 0.0
      %445 = vmatprep.subr.mxu0 0.0
      %446 = vmatpush1.msra.mxu0 0.0
      %447 = vmatprep.subr.mxu0 0.0
      %448 = vmatpush1.msra.mxu0 0.0
      %449 = vmatprep.subr.mxu0 0.0
      %450 = vmatpush1.msra.mxu0 0.0
      %451 = vmatprep.mubr.f32.mxu0 0.0
      %452 = vmatmul.mubr.f32.gmra.mrb[0].mxu0 %v373
      %v453 = vpop.f32.mrb[0].mxu0
      %v454 = vadd.f32 %v276, %v453
      %v455 = vpop.f32.mrb[0].mxu0
      %v456 = vadd.f32 %v278, %v455
      %457 = vmatprep.mubr.f32.mxu0 0.0
      %458 = vmatmul.mubr.f32.gmra.mrb[0].mxu0 %v376
      %v459 = vpop.f32.mrb[0].mxu0
      %v460 = vadd.f32 %v282, %v459
      %v461 = vpop.f32.mrb[0].mxu0
      %v462 = vadd.f32 %v284, %v461
      %463 = vmatprep.mubr.f32.mxu0 0.0
      %464 = vmatmul.mubr.f32.gmra.mrb[0].mxu0 %v379
      %v465 = vpop.f32.mrb[0].mxu0
      %v466 = vadd.f32 %v288, %v465
      %v467 = vpop.f32.mrb[0].mxu0
      %v468 = vadd.f32 %v290, %v467
      %469 = vdwg.mxu0
      %470 = vmatprep.subr.mxu0 0.0
      %471 = vmatpush1.msra.mxu0 %v385
      %472 = vmatprep.subr.mxu0 0.0
      %473 = vmatpush1.msra.mxu0 0.0
      %474 = vmatprep.subr.mxu0 0.0
      %475 = vmatpush1.msra.mxu0 0.0
      %476 = vmatprep.subr.mxu0 0.0
      %477 = vmatpush1.msra.mxu0 0.0
      %478 = vmatprep.subr.mxu0 0.0
      %479 = vmatpush1.msra.mxu0 0.0
      %480 = vmatprep.subr.mxu0 0.0
      %481 = vmatpush1.msra.mxu0 0.0
      %482 = vmatprep.subr.mxu0 0.0
      %483 = vmatpush1.msra.mxu0 0.0
      %484 = vmatprep.subr.mxu0 0.0
      %485 = vmatpush1.msra.mxu0 0.0
      %486 = vmatprep.subr.mxu0 0.0
      %487 = vmatpush1.msra.mxu0 0.0
      %488 = vmatprep.subr.mxu0 0.0
      %489 = vmatpush1.msra.mxu0 0.0
      %490 = vmatprep.subr.mxu0 0.0
      %491 = vmatpush1.msra.mxu0 0.0
      %492 = vmatprep.subr.mxu0 0.0
      %493 = vmatpush1.msra.mxu0 0.0
      %494 = vmatprep.subr.mxu0 0.0
      %495 = vmatpush1.msra.mxu0 0.0
      %496 = vmatprep.subr.mxu0 0.0
      %497 = vmatpush1.msra.mxu0 0.0
      %498 = vmatprep.subr.mxu0 0.0
      %499 = vmatpush1.msra.mxu0 0.0
      %500 = vmatprep.subr.mxu0 0.0
      %501 = vmatpush1.msra.mxu0 0.0
      %502 = vmatprep.subr.mxu0 0.0
      %503 = vmatpush1.msra.mxu0 0.0
      %504 = vmatprep.subr.mxu0 0.0
      %505 = vmatpush1.msra.mxu0 0.0
      %506 = vmatprep.subr.mxu0 0.0
      %507 = vmatpush1.msra.mxu0 0.0
      %508 = vmatprep.subr.mxu0 0.0
      %509 = vmatpush1.msra.mxu0 0.0
      %510 = vmatprep.subr.mxu0 0.0
      %511 = vmatpush1.msra.mxu0 0.0
      %512 = vmatprep.subr.mxu0 0.0
      %513 = vmatpush1.msra.mxu0 0.0
      %514 = vmatprep.subr.mxu0 0.0
      %515 = vmatpush1.msra.mxu0 0.0
      %516 = vmatprep.subr.mxu0 0.0
      %517 = vmatpush1.msra.mxu0 0.0
      %518 = vmatprep.subr.mxu0 0.0
      %519 = vmatpush1.msra.mxu0 0.0
      %520 = vmatprep.subr.mxu0 0.0
      %521 = vmatpush1.msra.mxu0 0.0
      %522 = vmatprep.subr.mxu0 0.0
      %523 = vmatpush1.msra.mxu0 0.0
      %524 = vmatprep.subr.mxu0 0.0
      %525 = vmatpush1.msra.mxu0 0.0
      %526 = vmatprep.subr.mxu0 0.0
      %527 = vmatpush1.msra.mxu0 0.0
      %528 = vmatprep.subr.mxu0 0.0
      %529 = vmatpush1.msra.mxu0 0.0
      %530 = vmatprep.subr.mxu0 0.0
      %531 = vmatpush1.msra.mxu0 0.0
      %532 = vmatprep.subr.mxu0 0.0
      %533 = vmatpush1.msra.mxu0 0.0
      %534 = vmatprep.mubr.f32.mxu0 0.0
      %535 = vmatmul.mubr.f32.gmra.mrb[0].mxu0 %v373
      %v536 = vpop.f32.mrb[0].mxu0
      %v537 = vadd.f32 %v359, %v536
      %v538 = vpop.f32.mrb[0].mxu0
      %539 = vmatprep.mubr.f32.mxu0 0.0
      %540 = vmatmul.mubr.f32.gmra.mrb[0].mxu0 %v376
      %v541 = vpop.f32.mrb[0].mxu0
      %v542 = vadd.f32 %v364, %v541
      %v543 = vpop.f32.mrb[0].mxu0
      %544 = vmatprep.mubr.f32.mxu0 0.0
      %545 = vmatmul.mubr.f32.gmra.mrb[0].mxu0 %v379
      %v546 = vpop.f32.mrb[0].mxu0
      %v547 = vadd.f32 %v369, %v546
      %v548 = vpop.f32.mrb[0].mxu0
      %549 = vdwg.mxu0
      %s550 = scalar_lea.vmem %s1, 48
      %v551 = vld [vmem:[%s550] sm:$0xff]
      %v552 = vld [vmem:[%s550 + $0x8] sm:$0xff]
      %v553 = vld [vmem:[%s550 + $0x10] sm:$0xff]
      %554 = vrot.lane.b32.xlu0 %v171, 126
      %v555 = vpop.permute.xlu0 %554
      %556 = vrot.lane.b32.xlu0 %v182, 126
      %v557 = vpop.permute.xlu0 %556
      %558 = vrot.lane.b32.xlu0 %v172, 126
      %v559 = vpop.permute.xlu0 %558
      %vm560 = vcmask 1031168
      %v561 = vsel %vm560, %v555, %v557
      %v562 = vsel %vm560, %v557, %v559
      %v564 = vsel %vm192, %v551, 0
      %v567 = vsel %vm192, %v552, 0
      %v570 = vsel %vm192, %v553, 0
      %v572 = vsel %vm202, %v561, 0
      %v574 = vsel %vm202, %v562, 0
      %v576 = vsel %vm202, %v559, 0
      %578 = vmatprep.subr.mxu0 %v574
      %579 = vmatpush1.msra.mxu0 %v572
      %580 = vmatprep.subr.mxu0 0.0
      %581 = vmatpush1.msra.mxu0 0.0
      %582 = vmatprep.subr.mxu0 0.0
      %583 = vmatpush1.msra.mxu0 0.0
      %584 = vmatprep.subr.mxu0 0.0
      %585 = vmatpush1.msra.mxu0 0.0
      %586 = vmatprep.subr.mxu0 0.0
      %587 = vmatpush1.msra.mxu0 0.0
      %588 = vmatprep.subr.mxu0 0.0
      %589 = vmatpush1.msra.mxu0 0.0
      %590 = vmatprep.subr.mxu0 0.0
      %591 = vmatpush1.msra.mxu0 0.0
      %592 = vmatprep.subr.mxu0 0.0
      %593 = vmatpush1.msra.mxu0 0.0
      %594 = vmatprep.subr.mxu0 0.0
      %595 = vmatpush1.msra.mxu0 0.0
      %596 = vmatprep.subr.mxu0 0.0
      %597 = vmatpush1.msra.mxu0 0.0
      %598 = vmatprep.subr.mxu0 0.0
      %599 = vmatpush1.msra.mxu0 0.0
      %600 = vmatprep.subr.mxu0 0.0
      %601 = vmatpush1.msra.mxu0 0.0
      %602 = vmatprep.subr.mxu0 0.0
      %603 = vmatpush1.msra.mxu0 0.0
      %604 = vmatprep.subr.mxu0 0.0
      %605 = vmatpush1.msra.mxu0 0.0
      %606 = vmatprep.subr.mxu0 0.0
      %607 = vmatpush1.msra.mxu0 0.0
      %608 = vmatprep.subr.mxu0 0.0
      %609 = vmatpush1.msra.mxu0 0.0
      %610 = vmatprep.subr.mxu0 0.0
      %611 = vmatpush1.msra.mxu0 0.0
      %612 = vmatprep.subr.mxu0 0.0
      %613 = vmatpush1.msra.mxu0 0.0
      %614 = vmatprep.subr.mxu0 0.0
      %615 = vmatpush1.msra.mxu0 0.0
      %616 = vmatprep.subr.mxu0 0.0
      %617 = vmatpush1.msra.mxu0 0.0
      %618 = vmatprep.subr.mxu0 0.0
      %619 = vmatpush1.msra.mxu0 0.0
      %620 = vmatprep.subr.mxu0 0.0
      %621 = vmatpush1.msra.mxu0 0.0
      %622 = vmatprep.subr.mxu0 0.0
      %623 = vmatpush1.msra.mxu0 0.0
      %624 = vmatprep.subr.mxu0 0.0
      %625 = vmatpush1.msra.mxu0 0.0
      %626 = vmatprep.subr.mxu0 0.0
      %627 = vmatpush1.msra.mxu0 0.0
      %628 = vmatprep.subr.mxu0 0.0
      %629 = vmatpush1.msra.mxu0 0.0
      %630 = vmatprep.subr.mxu0 0.0
      %631 = vmatpush1.msra.mxu0 0.0
      %632 = vmatprep.subr.mxu0 0.0
      %633 = vmatpush1.msra.mxu0 0.0
      %634 = vmatprep.subr.mxu0 0.0
      %635 = vmatpush1.msra.mxu0 0.0
      %636 = vmatprep.subr.mxu0 0.0
      %637 = vmatpush1.msra.mxu0 0.0
      %638 = vmatprep.subr.mxu0 0.0
      %639 = vmatpush1.msra.mxu0 0.0
      %640 = vmatprep.subr.mxu0 0.0
      %641 = vmatpush1.msra.mxu0 0.0
      %642 = vmatprep.mubr.f32.mxu0 0.0
      %643 = vmatmul.mubr.f32.gmra.mrb[0].mxu0 %v564
      %v644 = vpop.f32.mrb[0].mxu0
      %v645 = vadd.f32 0.0, %v644
      %v646 = vpop.f32.mrb[0].mxu0
      %v647 = vadd.f32 0.0, %v646
      %648 = vmatprep.mubr.f32.mxu0 0.0
      %649 = vmatmul.mubr.f32.gmra.mrb[0].mxu0 %v567
      %v650 = vpop.f32.mrb[0].mxu0
      %v651 = vadd.f32 0.0, %v650
      %v652 = vpop.f32.mrb[0].mxu0
      %v653 = vadd.f32 0.0, %v652
      %654 = vmatprep.mubr.f32.mxu0 0.0
      %655 = vmatmul.mubr.f32.gmra.mrb[0].mxu0 %v570
      %v656 = vpop.f32.mrb[0].mxu0
      %v657 = vadd.f32 0.0, %v656
      %v658 = vpop.f32.mrb[0].mxu0
      %v659 = vadd.f32 0.0, %v658
      %660 = vdwg.mxu0
      %661 = vmatprep.subr.mxu0 0.0
      %662 = vmatpush1.msra.mxu0 %v576
      %663 = vmatprep.subr.mxu0 0.0
      %664 = vmatpush1.msra.mxu0 0.0
      %665 = vmatprep.subr.mxu0 0.0
      %666 = vmatpush1.msra.mxu0 0.0
      %667 = vmatprep.subr.mxu0 0.0
      %668 = vmatpush1.msra.mxu0 0.0
      %669 = vmatprep.subr.mxu0 0.0
      %670 = vmatpush1.msra.mxu0 0.0
      %671 = vmatprep.subr.mxu0 0.0
      %672 = vmatpush1.msra.mxu0 0.0
      %673 = vmatprep.subr.mxu0 0.0
      %674 = vmatpush1.msra.mxu0 0.0
      %675 = vmatprep.subr.mxu0 0.0
      %676 = vmatpush1.msra.mxu0 0.0
      %677 = vmatprep.subr.mxu0 0.0
      %678 = vmatpush1.msra.mxu0 0.0
      %679 = vmatprep.subr.mxu0 0.0
      %680 = vmatpush1.msra.mxu0 0.0
      %681 = vmatprep.subr.mxu0 0.0
      %682 = vmatpush1.msra.mxu0 0.0
      %683 = vmatprep.subr.mxu0 0.0
      %684 = vmatpush1.msra.mxu0 0.0
      %685 = vmatprep.subr.mxu0 0.0
      %686 = vmatpush1.msra.mxu0 0.0
      %687 = vmatprep.subr.mxu0 0.0
      %688 = vmatpush1.msra.mxu0 0.0
      %689 = vmatprep.subr.mxu0 0.0
      %690 = vmatpush1.msra.mxu0 0.0
      %691 = vmatprep.subr.mxu0 0.0
      %692 = vmatpush1.msra.mxu0 0.0
      %693 = vmatprep.subr.mxu0 0.0
      %694 = vmatpush1.msra.mxu0 0.0
      %695 = vmatprep.subr.mxu0 0.0
      %696 = vmatpush1.msra.mxu0 0.0
      %697 = vmatprep.subr.mxu0 0.0
      %698 = vmatpush1.msra.mxu0 0.0
      %699 = vmatprep.subr.mxu0 0.0
      %700 = vmatpush1.msra.mxu0 0.0
      %701 = vmatprep.subr.mxu0 0.0
      %702 = vmatpush1.msra.mxu0 0.0
      %703 = vmatprep.subr.mxu0 0.0
      %704 = vmatpush1.msra.mxu0 0.0
      %705 = vmatprep.subr.mxu0 0.0
      %706 = vmatpush1.msra.mxu0 0.0
      %707 = vmatprep.subr.mxu0 0.0
      %708 = vmatpush1.msra.mxu0 0.0
      %709 = vmatprep.subr.mxu0 0.0
      %710 = vmatpush1.msra.mxu0 0.0
      %711 = vmatprep.subr.mxu0 0.0
      %712 = vmatpush1.msra.mxu0 0.0
      %713 = vmatprep.subr.mxu0 0.0
      %714 = vmatpush1.msra.mxu0 0.0
      %715 = vmatprep.subr.mxu0 0.0
      %716 = vmatpush1.msra.mxu0 0.0
      %717 = vmatprep.subr.mxu0 0.0
      %718 = vmatpush1.msra.mxu0 0.0
      %719 = vmatprep.subr.mxu0 0.0
      %720 = vmatpush1.msra.mxu0 0.0
      %721 = vmatprep.subr.mxu0 0.0
      %722 = vmatpush1.msra.mxu0 0.0
      %723 = vmatprep.subr.mxu0 0.0
      %724 = vmatpush1.msra.mxu0 0.0
      %725 = vmatprep.mubr.f32.mxu0 0.0
      %726 = vmatmul.mubr.f32.gmra.mrb[0].mxu0 %v564
      %v727 = vpop.f32.mrb[0].mxu0
      %v728 = vadd.f32 0.0, %v727
      %v729 = vpop.f32.mrb[0].mxu0
      %730 = vmatprep.mubr.f32.mxu0 0.0
      %731 = vmatmul.mubr.f32.gmra.mrb[0].mxu0 %v567
      %v732 = vpop.f32.mrb[0].mxu0
      %v733 = vadd.f32 0.0, %v732
      %v734 = vpop.f32.mrb[0].mxu0
      %735 = vmatprep.mubr.f32.mxu0 0.0
      %736 = vmatmul.mubr.f32.gmra.mrb[0].mxu0 %v570
      %v737 = vpop.f32.mrb[0].mxu0
      %v738 = vadd.f32 0.0, %v737
      %v739 = vpop.f32.mrb[0].mxu0
      %740 = vdwg.mxu0
      %v741 = vadd.f32 %v454, %v645
      %v742 = vadd.f32 %v456, %v647
      %v743 = vadd.f32 %v537, %v728
      %v744 = vadd.f32 %v460, %v651
      %v745 = vadd.f32 %v462, %v653
      %v746 = vadd.f32 %v542, %v733
      %v747 = vadd.f32 %v466, %v657
      %v748 = vadd.f32 %v468, %v659
      %v749 = vadd.f32 %v547, %v738
      %s750 = scalar_lea.vmem %s1, 72
      %v751 = vld [vmem:[%s750] sm:$0xff]
      %v752 = vld [vmem:[%s750 + $0x8] sm:$0xff]
      %v753 = vld [vmem:[%s750 + $0x10] sm:$0xff]
      %754 = vrot.lane.b32.xlu0 %v171, 125
      %v755 = vpop.permute.xlu0 %754
      %756 = vrot.lane.b32.xlu0 %v182, 125
      %v757 = vpop.permute.xlu0 %756
      %758 = vrot.lane.b32.xlu0 %v172, 125
      %v759 = vpop.permute.xlu0 %758
      %vm760 = vcmask 1022976
      %v761 = vsel %vm760, %v755, %v757
      %v762 = vsel %vm760, %v757, %v759
      %v764 = vsel %vm192, %v751, 0
      %v767 = vsel %vm192, %v752, 0
      %v770 = vsel %vm192, %v753, 0
      %v772 = vsel %vm202, %v761, 0
      %v774 = vsel %vm202, %v762, 0
      %v776 = vsel %vm202, %v759, 0
      %778 = vmatprep.subr.mxu0 %v774
      %779 = vmatpush1.msra.mxu0 %v772
      %780 = vmatprep.subr.mxu0 0.0
      %781 = vmatpush1.msra.mxu0 0.0
      %782 = vmatprep.subr.mxu0 0.0
      %783 = vmatpush1.msra.mxu0 0.0
      %784 = vmatprep.subr.mxu0 0.0
      %785 = vmatpush1.msra.mxu0 0.0
      %786 = vmatprep.subr.mxu0 0.0
      %787 = vmatpush1.msra.mxu0 0.0
      %788 = vmatprep.subr.mxu0 0.0
      %789 = vmatpush1.msra.mxu0 0.0
      %790 = vmatprep.subr.mxu0 0.0
      %791 = vmatpush1.msra.mxu0 0.0
      %792 = vmatprep.subr.mxu0 0.0
      %793 = vmatpush1.msra.mxu0 0.0
      %794 = vmatprep.subr.mxu0 0.0
      %795 = vmatpush1.msra.mxu0 0.0
      %796 = vmatprep.subr.mxu0 0.0
      %797 = vmatpush1.msra.mxu0 0.0
      %798 = vmatprep.subr.mxu0 0.0
      %799 = vmatpush1.msra.mxu0 0.0
      %800 = vmatprep.subr.mxu0 0.0
      %801 = vmatpush1.msra.mxu0 0.0
      %802 = vmatprep.subr.mxu0 0.0
      %803 = vmatpush1.msra.mxu0 0.0
      %804 = vmatprep.subr.mxu0 0.0
      %805 = vmatpush1.msra.mxu0 0.0
      %806 = vmatprep.subr.mxu0 0.0
      %807 = vmatpush1.msra.mxu0 0.0
      %808 = vmatprep.subr.mxu0 0.0
      %809 = vmatpush1.msra.mxu0 0.0
      %810 = vmatprep.subr.mxu0 0.0
      %811 = vmatpush1.msra.mxu0 0.0
      %812 = vmatprep.subr.mxu0 0.0
      %813 = vmatpush1.msra.mxu0 0.0
      %814 = vmatprep.subr.mxu0 0.0
      %815 = vmatpush1.msra.mxu0 0.0
      %816 = vmatprep.subr.mxu0 0.0
      %817 = vmatpush1.msra.mxu0 0.0
      %818 = vmatprep.subr.mxu0 0.0
      %819 = vmatpush1.msra.mxu0 0.0
      %820 = vmatprep.subr.mxu0 0.0
      %821 = vmatpush1.msra.mxu0 0.0
      %822 = vmatprep.subr.mxu0 0.0
      %823 = vmatpush1.msra.mxu0 0.0
      %824 = vmatprep.subr.mxu0 0.0
      %825 = vmatpush1.msra.mxu0 0.0
      %826 = vmatprep.subr.mxu0 0.0
      %827 = vmatpush1.msra.mxu0 0.0
      %828 = vmatprep.subr.mxu0 0.0
      %829 = vmatpush1.msra.mxu0 0.0
      %830 = vmatprep.subr.mxu0 0.0
      %831 = vmatpush1.msra.mxu0 0.0
      %832 = vmatprep.subr.mxu0 0.0
      %833 = vmatpush1.msra.mxu0 0.0
      %834 = vmatprep.subr.mxu0 0.0
      %835 = vmatpush1.msra.mxu0 0.0
      %836 = vmatprep.subr.mxu0 0.0
      %837 = vmatpush1.msra.mxu0 0.0
      %838 = vmatprep.subr.mxu0 0.0
      %839 = vmatpush1.msra.mxu0 0.0
      %840 = vmatprep.subr.mxu0 0.0
      %841 = vmatpush1.msra.mxu0 0.0
      %842 = vmatprep.mubr.f32.mxu0 0.0
      %843 = vmatmul.mubr.f32.gmra.mrb[0].mxu0 %v764
      %v844 = vpop.f32.mrb[0].mxu0
      %v845 = vadd.f32 0.0, %v844
      %v846 = vpop.f32.mrb[0].mxu0
      %v847 = vadd.f32 0.0, %v846
      %848 = vmatprep.mubr.f32.mxu0 0.0
      %849 = vmatmul.mubr.f32.gmra.mrb[0].mxu0 %v767
      %v850 = vpop.f32.mrb[0].mxu0
      %v851 = vadd.f32 0.0, %v850
      %v852 = vpop.f32.mrb[0].mxu0
      %v853 = vadd.f32 0.0, %v852
      %854 = vmatprep.mubr.f32.mxu0 0.0
      %855 = vmatmul.mubr.f32.gmra.mrb[0].mxu0 %v770
      %v856 = vpop.f32.mrb[0].mxu0
      %v857 = vadd.f32 0.0, %v856
      %v858 = vpop.f32.mrb[0].mxu0
      %v859 = vadd.f32 0.0, %v858
      %860 = vdwg.mxu0
      %861 = vmatprep.subr.mxu0 0.0
      %862 = vmatpush1.msra.mxu0 %v776
      %863 = vmatprep.subr.mxu0 0.0
      %864 = vmatpush1.msra.mxu0 0.0
      %865 = vmatprep.subr.mxu0 0.0
      %866 = vmatpush1.msra.mxu0 0.0
      %867 = vmatprep.subr.mxu0 0.0
      %868 = vmatpush1.msra.mxu0 0.0
      %869 = vmatprep.subr.mxu0 0.0
      %870 = vmatpush1.msra.mxu0 0.0
      %871 = vmatprep.subr.mxu0 0.0
      %872 = vmatpush1.msra.mxu0 0.0
      %873 = vmatprep.subr.mxu0 0.0
      %874 = vmatpush1.msra.mxu0 0.0
      %875 = vmatprep.subr.mxu0 0.0
      %876 = vmatpush1.msra.mxu0 0.0
      %877 = vmatprep.subr.mxu0 0.0
      %878 = vmatpush1.msra.mxu0 0.0
      %879 = vmatprep.subr.mxu0 0.0
      %880 = vmatpush1.msra.mxu0 0.0
      %881 = vmatprep.subr.mxu0 0.0
      %882 = vmatpush1.msra.mxu0 0.0
      %883 = vmatprep.subr.mxu0 0.0
      %884 = vmatpush1.msra.mxu0 0.0
      %885 = vmatprep.subr.mxu0 0.0
      %886 = vmatpush1.msra.mxu0 0.0
      %887 = vmatprep.subr.mxu0 0.0
      %888 = vmatpush1.msra.mxu0 0.0
      %889 = vmatprep.subr.mxu0 0.0
      %890 = vmatpush1.msra.mxu0 0.0
      %891 = vmatprep.subr.mxu0 0.0
      %892 = vmatpush1.msra.mxu0 0.0
      %893 = vmatprep.subr.mxu0 0.0
      %894 = vmatpush1.msra.mxu0 0.0
      %895 = vmatprep.subr.mxu0 0.0
      %896 = vmatpush1.msra.mxu0 0.0
      %897 = vmatprep.subr.mxu0 0.0
      %898 = vmatpush1.msra.mxu0 0.0
      %899 = vmatprep.subr.mxu0 0.0
      %900 = vmatpush1.msra.mxu0 0.0
      %901 = vmatprep.subr.mxu0 0.0
      %902 = vmatpush1.msra.mxu0 0.0
      %903 = vmatprep.subr.mxu0 0.0
      %904 = vmatpush1.msra.mxu0 0.0
      %905 = vmatprep.subr.mxu0 0.0
      %906 = vmatpush1.msra.mxu0 0.0
      %907 = vmatprep.subr.mxu0 0.0
      %908 = vmatpush1.msra.mxu0 0.0
      %909 = vmatprep.subr.mxu0 0.0
      %910 = vmatpush1.msra.mxu0 0.0
      %911 = vmatprep.subr.mxu0 0.0
      %912 = vmatpush1.msra.mxu0 0.0
      %913 = vmatprep.subr.mxu0 0.0
      %914 = vmatpush1.msra.mxu0 0.0
      %915 = vmatprep.subr.mxu0 0.0
      %916 = vmatpush1.msra.mxu0 0.0
      %917 = vmatprep.subr.mxu0 0.0
      %918 = vmatpush1.msra.mxu0 0.0
      %919 = vmatprep.subr.mxu0 0.0
      %920 = vmatpush1.msra.mxu0 0.0
      %921 = vmatprep.subr.mxu0 0.0
      %922 = vmatpush1.msra.mxu0 0.0
      %923 = vmatprep.subr.mxu0 0.0
      %924 = vmatpush1.msra.mxu0 0.0
      %925 = vmatprep.mubr.f32.mxu0 0.0
      %926 = vmatmul.mubr.f32.gmra.mrb[0].mxu0 %v764
      %v927 = vpop.f32.mrb[0].mxu0
      %v928 = vadd.f32 0.0, %v927
      %v929 = vpop.f32.mrb[0].mxu0
      %930 = vmatprep.mubr.f32.mxu0 0.0
      %931 = vmatmul.mubr.f32.gmra.mrb[0].mxu0 %v767
      %v932 = vpop.f32.mrb[0].mxu0
      %v933 = vadd.f32 0.0, %v932
      %v934 = vpop.f32.mrb[0].mxu0
      %935 = vmatprep.mubr.f32.mxu0 0.0
      %936 = vmatmul.mubr.f32.gmra.mrb[0].mxu0 %v770
      %v937 = vpop.f32.mrb[0].mxu0
      %v938 = vadd.f32 0.0, %v937
      %v939 = vpop.f32.mrb[0].mxu0
      %940 = vdwg.mxu0
      %v941 = vadd.f32 %v741, %v845
      %v942 = vadd.f32 %v742, %v847
      %v943 = vadd.f32 %v743, %v928
      %v944 = vadd.f32 %v744, %v851
      %v945 = vadd.f32 %v745, %v853
      %v946 = vadd.f32 %v746, %v933
      %v947 = vadd.f32 %v747, %v857
      %v948 = vadd.f32 %v748, %v859
      %v949 = vadd.f32 %v749, %v938
      %s950 = scalar_lea.vmem %s1, 96
      %v951 = vld [vmem:[%s950] sm:$0xff]
      %v952 = vld [vmem:[%s950 + $0x8] sm:$0xff]
      %v953 = vld [vmem:[%s950 + $0x10] sm:$0xff]
      %954 = vrot.lane.b32.xlu0 %v171, 124
      %v955 = vpop.permute.xlu0 %954
      %956 = vrot.lane.b32.xlu0 %v182, 124
      %v957 = vpop.permute.xlu0 %956
      %958 = vrot.lane.b32.xlu0 %v172, 124
      %v959 = vpop.permute.xlu0 %958
      %vm960 = vcmask 1014784
      %v961 = vsel %vm960, %v955, %v957
      %v962 = vsel %vm960, %v957, %v959
      %v964 = vsel %vm192, %v951, 0
      %v967 = vsel %vm192, %v952, 0
      %v970 = vsel %vm192, %v953, 0
      %v972 = vsel %vm202, %v961, 0
      %v974 = vsel %vm202, %v962, 0
      %v976 = vsel %vm202, %v959, 0
      %978 = vmatprep.subr.mxu0 %v974
      %979 = vmatpush1.msra.mxu0 %v972
      %980 = vmatprep.subr.mxu0 0.0
      %981 = vmatpush1.msra.mxu0 0.0
      %982 = vmatprep.subr.mxu0 0.0
      %983 = vmatpush1.msra.mxu0 0.0
      %984 = vmatprep.subr.mxu0 0.0
      %985 = vmatpush1.msra.mxu0 0.0
      %986 = vmatprep.subr.mxu0 0.0
      %987 = vmatpush1.msra.mxu0 0.0
      %988 = vmatprep.subr.mxu0 0.0
      %989 = vmatpush1.msra.mxu0 0.0
      %990 = vmatprep.subr.mxu0 0.0
      %991 = vmatpush1.msra.mxu0 0.0
      %992 = vmatprep.subr.mxu0 0.0
      %993 = vmatpush1.msra.mxu0 0.0
      %994 = vmatprep.subr.mxu0 0.0
      %995 = vmatpush1.msra.mxu0 0.0
      %996 = vmatprep.subr.mxu0 0.0
      %997 = vmatpush1.msra.mxu0 0.0
      %998 = vmatprep.subr.mxu0 0.0
      %999 = vmatpush1.msra.mxu0 0.0
      %1000 = vmatprep.subr.mxu0 0.0
      %1001 = vmatpush1.msra.mxu0 0.0
      %1002 = vmatprep.subr.mxu0 0.0
      %1003 = vmatpush1.msra.mxu0 0.0
      %1004 = vmatprep.subr.mxu0 0.0
      %1005 = vmatpush1.msra.mxu0 0.0
      %1006 = vmatprep.subr.mxu0 0.0
      %1007 = vmatpush1.msra.mxu0 0.0
      %1008 = vmatprep.subr.mxu0 0.0
      %1009 = vmatpush1.msra.mxu0 0.0
      %1010 = vmatprep.subr.mxu0 0.0
      %1011 = vmatpush1.msra.mxu0 0.0
      %1012 = vmatprep.subr.mxu0 0.0
      %1013 = vmatpush1.msra.mxu0 0.0
      %1014 = vmatprep.subr.mxu0 0.0
      %1015 = vmatpush1.msra.mxu0 0.0
      %1016 = vmatprep.subr.mxu0 0.0
      %1017 = vmatpush1.msra.mxu0 0.0
      %1018 = vmatprep.subr.mxu0 0.0
      %1019 = vmatpush1.msra.mxu0 0.0
      %1020 = vmatprep.subr.mxu0 0.0
      %1021 = vmatpush1.msra.mxu0 0.0
      %1022 = vmatprep.subr.mxu0 0.0
      %1023 = vmatpush1.msra.mxu0 0.0
      %1024 = vmatprep.subr.mxu0 0.0
      %1025 = vmatpush1.msra.mxu0 0.0
      %1026 = vmatprep.subr.mxu0 0.0
      %1027 = vmatpush1.msra.mxu0 0.0
      %1028 = vmatprep.subr.mxu0 0.0
      %1029 = vmatpush1.msra.mxu0 0.0
      %1030 = vmatprep.subr.mxu0 0.0
      %1031 = vmatpush1.msra.mxu0 0.0
      %1032 = vmatprep.subr.mxu0 0.0
      %1033 = vmatpush1.msra.mxu0 0.0
      %1034 = vmatprep.subr.mxu0 0.0
      %1035 = vmatpush1.msra.mxu0 0.0
      %1036 = vmatprep.subr.mxu0 0.0
      %1037 = vmatpush1.msra.mxu0 0.0
      %1038 = vmatprep.subr.mxu0 0.0
      %1039 = vmatpush1.msra.mxu0 0.0
      %1040 = vmatprep.subr.mxu0 0.0
      %1041 = vmatpush1.msra.mxu0 0.0
      %1042 = vmatprep.mubr.f32.mxu0 0.0
      %1043 = vmatmul.mubr.f32.gmra.mrb[0].mxu0 %v964
      %v1044 = vpop.f32.mrb[0].mxu0
      %v1045 = vadd.f32 0.0, %v1044
      %v1046 = vpop.f32.mrb[0].mxu0
      %v1047 = vadd.f32 0.0, %v1046
      %1048 = vmatprep.mubr.f32.mxu0 0.0
      %1049 = vmatmul.mubr.f32.gmra.mrb[0].mxu0 %v967
      %v1050 = vpop.f32.mrb[0].mxu0
      %v1051 = vadd.f32 0.0, %v1050
      %v1052 = vpop.f32.mrb[0].mxu0
      %v1053 = vadd.f32 0.0, %v1052
      %1054 = vmatprep.mubr.f32.mxu0 0.0
      %1055 = vmatmul.mubr.f32.gmra.mrb[0].mxu0 %v970
      %v1056 = vpop.f32.mrb[0].mxu0
      %v1057 = vadd.f32 0.0, %v1056
      %v1058 = vpop.f32.mrb[0].mxu0
      %v1059 = vadd.f32 0.0, %v1058
      %1060 = vdwg.mxu0
      %1061 = vmatprep.subr.mxu0 0.0
      %1062 = vmatpush1.msra.mxu0 %v976
      %1063 = vmatprep.subr.mxu0 0.0
      %1064 = vmatpush1.msra.mxu0 0.0
      %1065 = vmatprep.subr.mxu0 0.0
      %1066 = vmatpush1.msra.mxu0 0.0
      %1067 = vmatprep.subr.mxu0 0.0
      %1068 = vmatpush1.msra.mxu0 0.0
      %1069 = vmatprep.subr.mxu0 0.0
      %1070 = vmatpush1.msra.mxu0 0.0
      %1071 = vmatprep.subr.mxu0 0.0
      %1072 = vmatpush1.msra.mxu0 0.0
      %1073 = vmatprep.subr.mxu0 0.0
      %1074 = vmatpush1.msra.mxu0 0.0
      %1075 = vmatprep.subr.mxu0 0.0
      %1076 = vmatpush1.msra.mxu0 0.0
      %1077 = vmatprep.subr.mxu0 0.0
      %1078 = vmatpush1.msra.mxu0 0.0
      %1079 = vmatprep.subr.mxu0 0.0
      %1080 = vmatpush1.msra.mxu0 0.0
      %1081 = vmatprep.subr.mxu0 0.0
      %1082 = vmatpush1.msra.mxu0 0.0
      %1083 = vmatprep.subr.mxu0 0.0
      %1084 = vmatpush1.msra.mxu0 0.0
      %1085 = vmatprep.subr.mxu0 0.0
      %1086 = vmatpush1.msra.mxu0 0.0
      %1087 = vmatprep.subr.mxu0 0.0
      %1088 = vmatpush1.msra.mxu0 0.0
      %1089 = vmatprep.subr.mxu0 0.0
      %1090 = vmatpush1.msra.mxu0 0.0
      %1091 = vmatprep.subr.mxu0 0.0
      %1092 = vmatpush1.msra.mxu0 0.0
      %1093 = vmatprep.subr.mxu0 0.0
      %1094 = vmatpush1.msra.mxu0 0.0
      %1095 = vmatprep.subr.mxu0 0.0
      %1096 = vmatpush1.msra.mxu0 0.0
      %1097 = vmatprep.subr.mxu0 0.0
      %1098 = vmatpush1.msra.mxu0 0.0
      %1099 = vmatprep.subr.mxu0 0.0
      %1100 = vmatpush1.msra.mxu0 0.0
      %1101 = vmatprep.subr.mxu0 0.0
      %1102 = vmatpush1.msra.mxu0 0.0
      %1103 = vmatprep.subr.mxu0 0.0
      %1104 = vmatpush1.msra.mxu0 0.0
      %1105 = vmatprep.subr.mxu0 0.0
      %1106 = vmatpush1.msra.mxu0 0.0
      %1107 = vmatprep.subr.mxu0 0.0
      %1108 = vmatpush1.msra.mxu0 0.0
      %1109 = vmatprep.subr.mxu0 0.0
      %1110 = vmatpush1.msra.mxu0 0.0
      %1111 = vmatprep.subr.mxu0 0.0
      %1112 = vmatpush1.msra.mxu0 0.0
      %1113 = vmatprep.subr.mxu0 0.0
      %1114 = vmatpush1.msra.mxu0 0.0
      %1115 = vmatprep.subr.mxu0 0.0
      %1116 = vmatpush1.msra.mxu0 0.0
      %1117 = vmatprep.subr.mxu0 0.0
      %1118 = vmatpush1.msra.mxu0 0.0
      %1119 = vmatprep.subr.mxu0 0.0
      %1120 = vmatpush1.msra.mxu0 0.0
      %1121 = vmatprep.subr.mxu0 0.0
      %1122 = vmatpush1.msra.mxu0 0.0
      %1123 = vmatprep.subr.mxu0 0.0
      %1124 = vmatpush1.msra.mxu0 0.0
      %1125 = vmatprep.mubr.f32.mxu0 0.0
      %1126 = vmatmul.mubr.f32.gmra.mrb[0].mxu0 %v964
      %v1127 = vpop.f32.mrb[0].mxu0
      %v1128 = vadd.f32 0.0, %v1127
      %v1129 = vpop.f32.mrb[0].mxu0
      %1130 = vmatprep.mubr.f32.mxu0 0.0
      %1131 = vmatmul.mubr.f32.gmra.mrb[0].mxu0 %v967
      %v1132 = vpop.f32.mrb[0].mxu0
      %v1133 = vadd.f32 0.0, %v1132
      %v1134 = vpop.f32.mrb[0].mxu0
      %1135 = vmatprep.mubr.f32.mxu0 0.0
      %1136 = vmatmul.mubr.f32.gmra.mrb[0].mxu0 %v970
      %v1137 = vpop.f32.mrb[0].mxu0
      %v1138 = vadd.f32 0.0, %v1137
      %v1139 = vpop.f32.mrb[0].mxu0
      %1140 = vdwg.mxu0
      %v1141 = vadd.f32 %v941, %v1045
      %v1142 = vadd.f32 %v942, %v1047
      %v1143 = vadd.f32 %v943, %v1128
      %v1144 = vadd.f32 %v944, %v1051
      %v1145 = vadd.f32 %v945, %v1053
      %v1146 = vadd.f32 %v946, %v1133
      %v1147 = vadd.f32 %v947, %v1057
      %v1148 = vadd.f32 %v948, %v1059
      %v1149 = vadd.f32 %v949, %v1138
      %s1150 = scalar_lea.vmem %s1, 120
      %v1151 = vld [vmem:[%s1150] sm:$0xff]
      %v1152 = vld [vmem:[%s1150 + $0x8] sm:$0xff]
      %v1153 = vld [vmem:[%s1150 + $0x10] sm:$0xff]
      %1154 = vrot.lane.b32.xlu0 %v171, 123
      %v1155 = vpop.permute.xlu0 %1154
      %1156 = vrot.lane.b32.xlu0 %v182, 123
      %v1157 = vpop.permute.xlu0 %1156
      %1158 = vrot.lane.b32.xlu0 %v172, 123
      %v1159 = vpop.permute.xlu0 %1158
      %vm1160 = vcmask 1006592
      %v1161 = vsel %vm1160, %v1155, %v1157
      %v1162 = vsel %vm1160, %v1157, %v1159
      %v1164 = vsel %vm192, %v1151, 0
      %v1167 = vsel %vm192, %v1152, 0
      %v1170 = vsel %vm192, %v1153, 0
      %v1172 = vsel %vm202, %v1161, 0
      %v1174 = vsel %vm202, %v1162, 0
      %v1176 = vsel %vm202, %v1159, 0
      %1178 = vmatprep.subr.mxu0 %v1174
      %1179 = vmatpush1.msra.mxu0 %v1172
      %1180 = vmatprep.subr.mxu0 0.0
      %1181 = vmatpush1.msra.mxu0 0.0
      %1182 = vmatprep.subr.mxu0 0.0
      %1183 = vmatpush1.msra.mxu0 0.0
      %1184 = vmatprep.subr.mxu0 0.0
      %1185 = vmatpush1.msra.mxu0 0.0
      %1186 = vmatprep.subr.mxu0 0.0
      %1187 = vmatpush1.msra.mxu0 0.0
      %1188 = vmatprep.subr.mxu0 0.0
      %1189 = vmatpush1.msra.mxu0 0.0
      %1190 = vmatprep.subr.mxu0 0.0
      %1191 = vmatpush1.msra.mxu0 0.0
      %1192 = vmatprep.subr.mxu0 0.0
      %1193 = vmatpush1.msra.mxu0 0.0
      %1194 = vmatprep.subr.mxu0 0.0
      %1195 = vmatpush1.msra.mxu0 0.0
      %1196 = vmatprep.subr.mxu0 0.0
      %1197 = vmatpush1.msra.mxu0 0.0
      %1198 = vmatprep.subr.mxu0 0.0
      %1199 = vmatpush1.msra.mxu0 0.0
      %1200 = vmatprep.subr.mxu0 0.0
      %1201 = vmatpush1.msra.mxu0 0.0
      %1202 = vmatprep.subr.mxu0 0.0
      %1203 = vmatpush1.msra.mxu0 0.0
      %1204 = vmatprep.subr.mxu0 0.0
      %1205 = vmatpush1.msra.mxu0 0.0
      %1206 = vmatprep.subr.mxu0 0.0
      %1207 = vmatpush1.msra.mxu0 0.0
      %1208 = vmatprep.subr.mxu0 0.0
      %1209 = vmatpush1.msra.mxu0 0.0
      %1210 = vmatprep.subr.mxu0 0.0
      %1211 = vmatpush1.msra.mxu0 0.0
      %1212 = vmatprep.subr.mxu0 0.0
      %1213 = vmatpush1.msra.mxu0 0.0
      %1214 = vmatprep.subr.mxu0 0.0
      %1215 = vmatpush1.msra.mxu0 0.0
      %1216 = vmatprep.subr.mxu0 0.0
      %1217 = vmatpush1.msra.mxu0 0.0
      %1218 = vmatprep.subr.mxu0 0.0
      %1219 = vmatpush1.msra.mxu0 0.0
      %1220 = vmatprep.subr.mxu0 0.0
      %1221 = vmatpush1.msra.mxu0 0.0
      %1222 = vmatprep.subr.mxu0 0.0
      %1223 = vmatpush1.msra.mxu0 0.0
      %1224 = vmatprep.subr.mxu0 0.0
      %1225 = vmatpush1.msra.mxu0 0.0
      %1226 = vmatprep.subr.mxu0 0.0
      %1227 = vmatpush1.msra.mxu0 0.0
      %1228 = vmatprep.subr.mxu0 0.0
      %1229 = vmatpush1.msra.mxu0 0.0
      %1230 = vmatprep.subr.mxu0 0.0
      %1231 = vmatpush1.msra.mxu0 0.0
      %1232 = vmatprep.subr.mxu0 0.0
      %1233 = vmatpush1.msra.mxu0 0.0
      %1234 = vmatprep.subr.mxu0 0.0
      %1235 = vmatpush1.msra.mxu0 0.0
      %1236 = vmatprep.subr.mxu0 0.0
      %1237 = vmatpush1.msra.mxu0 0.0
      %1238 = vmatprep.subr.mxu0 0.0
      %1239 = vmatpush1.msra.mxu0 0.0
      %1240 = vmatprep.subr.mxu0 0.0
      %1241 = vmatpush1.msra.mxu0 0.0
      %1242 = vmatprep.mubr.f32.mxu0 0.0
      %1243 = vmatmul.mubr.f32.gmra.mrb[0].mxu0 %v1164
      %v1244 = vpop.f32.mrb[0].mxu0
      %v1245 = vadd.f32 0.0, %v1244
      %v1246 = vpop.f32.mrb[0].mxu0
      %v1247 = vadd.f32 0.0, %v1246
      %1248 = vmatprep.mubr.f32.mxu0 0.0
      %1249 = vmatmul.mubr.f32.gmra.mrb[0].mxu0 %v1167
      %v1250 = vpop.f32.mrb[0].mxu0
      %v1251 = vadd.f32 0.0, %v1250
      %v1252 = vpop.f32.mrb[0].mxu0
      %v1253 = vadd.f32 0.0, %v1252
      %1254 = vmatprep.mubr.f32.mxu0 0.0
      %1255 = vmatmul.mubr.f32.gmra.mrb[0].mxu0 %v1170
      %v1256 = vpop.f32.mrb[0].mxu0
      %v1257 = vadd.f32 0.0, %v1256
      %v1258 = vpop.f32.mrb[0].mxu0
      %v1259 = vadd.f32 0.0, %v1258
      %1260 = vdwg.mxu0
      %1261 = vmatprep.subr.mxu0 0.0
      %1262 = vmatpush1.msra.mxu0 %v1176
      %1263 = vmatprep.subr.mxu0 0.0
      %1264 = vmatpush1.msra.mxu0 0.0
      %1265 = vmatprep.subr.mxu0 0.0
      %1266 = vmatpush1.msra.mxu0 0.0
      %1267 = vmatprep.subr.mxu0 0.0
      %1268 = vmatpush1.msra.mxu0 0.0
      %1269 = vmatprep.subr.mxu0 0.0
      %1270 = vmatpush1.msra.mxu0 0.0
      %1271 = vmatprep.subr.mxu0 0.0
      %1272 = vmatpush1.msra.mxu0 0.0
      %1273 = vmatprep.subr.mxu0 0.0
      %1274 = vmatpush1.msra.mxu0 0.0
      %1275 = vmatprep.subr.mxu0 0.0
      %1276 = vmatpush1.msra.mxu0 0.0
      %1277 = vmatprep.subr.mxu0 0.0
      %1278 = vmatpush1.msra.mxu0 0.0
      %1279 = vmatprep.subr.mxu0 0.0
      %1280 = vmatpush1.msra.mxu0 0.0
      %1281 = vmatprep.subr.mxu0 0.0
      %1282 = vmatpush1.msra.mxu0 0.0
      %1283 = vmatprep.subr.mxu0 0.0
      %1284 = vmatpush1.msra.mxu0 0.0
      %1285 = vmatprep.subr.mxu0 0.0
      %1286 = vmatpush1.msra.mxu0 0.0
      %1287 = vmatprep.subr.mxu0 0.0
      %1288 = vmatpush1.msra.mxu0 0.0
      %1289 = vmatprep.subr.mxu0 0.0
      %1290 = vmatpush1.msra.mxu0 0.0
      %1291 = vmatprep.subr.mxu0 0.0
      %1292 = vmatpush1.msra.mxu0 0.0
      %1293 = vmatprep.subr.mxu0 0.0
      %1294 = vmatpush1.msra.mxu0 0.0
      %1295 = vmatprep.subr.mxu0 0.0
      %1296 = vmatpush1.msra.mxu0 0.0
      %1297 = vmatprep.subr.mxu0 0.0
      %1298 = vmatpush1.msra.mxu0 0.0
      %1299 = vmatprep.subr.mxu0 0.0
      %1300 = vmatpush1.msra.mxu0 0.0
      %1301 = vmatprep.subr.mxu0 0.0
      %1302 = vmatpush1.msra.mxu0 0.0
      %1303 = vmatprep.subr.mxu0 0.0
      %1304 = vmatpush1.msra.mxu0 0.0
      %1305 = vmatprep.subr.mxu0 0.0
      %1306 = vmatpush1.msra.mxu0 0.0
      %1307 = vmatprep.subr.mxu0 0.0
      %1308 = vmatpush1.msra.mxu0 0.0
      %1309 = vmatprep.subr.mxu0 0.0
      %1310 = vmatpush1.msra.mxu0 0.0
      %1311 = vmatprep.subr.mxu0 0.0
      %1312 = vmatpush1.msra.mxu0 0.0
      %1313 = vmatprep.subr.mxu0 0.0
      %1314 = vmatpush1.msra.mxu0 0.0
      %1315 = vmatprep.subr.mxu0 0.0
      %1316 = vmatpush1.msra.mxu0 0.0
      %1317 = vmatprep.subr.mxu0 0.0
      %1318 = vmatpush1.msra.mxu0 0.0
      %1319 = vmatprep.subr.mxu0 0.0
      %1320 = vmatpush1.msra.mxu0 0.0
      %1321 = vmatprep.subr.mxu0 0.0
      %1322 = vmatpush1.msra.mxu0 0.0
      %1323 = vmatprep.subr.mxu0 0.0
      %1324 = vmatpush1.msra.mxu0 0.0
      %1325 = vmatprep.mubr.f32.mxu0 0.0
      %1326 = vmatmul.mubr.f32.gmra.mrb[0].mxu0 %v1164
      %v1327 = vpop.f32.mrb[0].mxu0
      %v1328 = vadd.f32 0.0, %v1327
      %v1329 = vpop.f32.mrb[0].mxu0
      %1330 = vmatprep.mubr.f32.mxu0 0.0
      %1331 = vmatmul.mubr.f32.gmra.mrb[0].mxu0 %v1167
      %v1332 = vpop.f32.mrb[0].mxu0
      %v1333 = vadd.f32 0.0, %v1332
      %v1334 = vpop.f32.mrb[0].mxu0
      %1335 = vmatprep.mubr.f32.mxu0 0.0
      %1336 = vmatmul.mubr.f32.gmra.mrb[0].mxu0 %v1170
      %v1337 = vpop.f32.mrb[0].mxu0
      %v1338 = vadd.f32 0.0, %v1337
      %v1339 = vpop.f32.mrb[0].mxu0
      %1340 = vdwg.mxu0
      %v1341 = vadd.f32 %v1141, %v1245
      %v1342 = vadd.f32 %v1142, %v1247
      %v1343 = vadd.f32 %v1143, %v1328
      %v1344 = vadd.f32 %v1144, %v1251
      %v1345 = vadd.f32 %v1145, %v1253
      %v1346 = vadd.f32 %v1146, %v1333
      %v1347 = vadd.f32 %v1147, %v1257
      %v1348 = vadd.f32 %v1148, %v1259
      %v1349 = vadd.f32 %v1149, %v1338
      %s1350 = scalar_lea.vmem %s1, 144
      %v1351 = vld [vmem:[%s1350] sm:$0xff]
      %v1352 = vld [vmem:[%s1350 + $0x8] sm:$0xff]
      %v1353 = vld [vmem:[%s1350 + $0x10] sm:$0xff]
      %1354 = vrot.lane.b32.xlu0 %v171, 122
      %v1355 = vpop.permute.xlu0 %1354
      %1356 = vrot.lane.b32.xlu0 %v182, 122
      %v1357 = vpop.permute.xlu0 %1356
      %1358 = vrot.lane.b32.xlu0 %v172, 122
      %v1359 = vpop.permute.xlu0 %1358
      %vm1360 = vcmask 998400
      %v1361 = vsel %vm1360, %v1355, %v1357
      %v1362 = vsel %vm1360, %v1357, %v1359
      %v1364 = vsel %vm192, %v1351, 0
      %v1367 = vsel %vm192, %v1352, 0
      %v1370 = vsel %vm192, %v1353, 0
      %v1372 = vsel %vm202, %v1361, 0
      %v1374 = vsel %vm202, %v1362, 0
      %v1376 = vsel %vm202, %v1359, 0
      %1378 = vmatprep.subr.mxu0 %v1374
      %1379 = vmatpush1.msra.mxu0 %v1372
      %1380 = vmatprep.subr.mxu0 0.0
      %1381 = vmatpush1.msra.mxu0 0.0
      %1382 = vmatprep.subr.mxu0 0.0
      %1383 = vmatpush1.msra.mxu0 0.0
      %1384 = vmatprep.subr.mxu0 0.0
      %1385 = vmatpush1.msra.mxu0 0.0
      %1386 = vmatprep.subr.mxu0 0.0
      %1387 = vmatpush1.msra.mxu0 0.0
      %1388 = vmatprep.subr.mxu0 0.0
      %1389 = vmatpush1.msra.mxu0 0.0
      %1390 = vmatprep.subr.mxu0 0.0
      %1391 = vmatpush1.msra.mxu0 0.0
      %1392 = vmatprep.subr.mxu0 0.0
      %1393 = vmatpush1.msra.mxu0 0.0
      %1394 = vmatprep.subr.mxu0 0.0
      %1395 = vmatpush1.msra.mxu0 0.0
      %1396 = vmatprep.subr.mxu0 0.0
      %1397 = vmatpush1.msra.mxu0 0.0
      %1398 = vmatprep.subr.mxu0 0.0
      %1399 = vmatpush1.msra.mxu0 0.0
      %1400 = vmatprep.subr.mxu0 0.0
      %1401 = vmatpush1.msra.mxu0 0.0
      %1402 = vmatprep.subr.mxu0 0.0
      %1403 = vmatpush1.msra.mxu0 0.0
      %1404 = vmatprep.subr.mxu0 0.0
      %1405 = vmatpush1.msra.mxu0 0.0
      %1406 = vmatprep.subr.mxu0 0.0
      %1407 = vmatpush1.msra.mxu0 0.0
      %1408 = vmatprep.subr.mxu0 0.0
      %1409 = vmatpush1.msra.mxu0 0.0
      %1410 = vmatprep.subr.mxu0 0.0
      %1411 = vmatpush1.msra.mxu0 0.0
      %1412 = vmatprep.subr.mxu0 0.0
      %1413 = vmatpush1.msra.mxu0 0.0
      %1414 = vmatprep.subr.mxu0 0.0
      %1415 = vmatpush1.msra.mxu0 0.0
      %1416 = vmatprep.subr.mxu0 0.0
      %1417 = vmatpush1.msra.mxu0 0.0
      %1418 = vmatprep.subr.mxu0 0.0
      %1419 = vmatpush1.msra.mxu0 0.0
      %1420 = vmatprep.subr.mxu0 0.0
      %1421 = vmatpush1.msra.mxu0 0.0
      %1422 = vmatprep.subr.mxu0 0.0
      %1423 = vmatpush1.msra.mxu0 0.0
      %1424 = vmatprep.subr.mxu0 0.0
      %1425 = vmatpush1.msra.mxu0 0.0
      %1426 = vmatprep.subr.mxu0 0.0
      %1427 = vmatpush1.msra.mxu0 0.0
      %1428 = vmatprep.subr.mxu0 0.0
      %1429 = vmatpush1.msra.mxu0 0.0
      %1430 = vmatprep.subr.mxu0 0.0
      %1431 = vmatpush1.msra.mxu0 0.0
      %1432 = vmatprep.subr.mxu0 0.0
      %1433 = vmatpush1.msra.mxu0 0.0
      %1434 = vmatprep.subr.mxu0 0.0
      %1435 = vmatpush1.msra.mxu0 0.0
      %1436 = vmatprep.subr.mxu0 0.0
      %1437 = vmatpush1.msra.mxu0 0.0
      %1438 = vmatprep.subr.mxu0 0.0
      %1439 = vmatpush1.msra.mxu0 0.0
      %1440 = vmatprep.subr.mxu0 0.0
      %1441 = vmatpush1.msra.mxu0 0.0
      %1442 = vmatprep.mubr.f32.mxu0 0.0
      %1443 = vmatmul.mubr.f32.gmra.mrb[0].mxu0 %v1364
      %v1444 = vpop.f32.mrb[0].mxu0
      %v1445 = vadd.f32 0.0, %v1444
      %v1446 = vpop.f32.mrb[0].mxu0
      %v1447 = vadd.f32 0.0, %v1446
      %1448 = vmatprep.mubr.f32.mxu0 0.0
      %1449 = vmatmul.mubr.f32.gmra.mrb[0].mxu0 %v1367
      %v1450 = vpop.f32.mrb[0].mxu0
      %v1451 = vadd.f32 0.0, %v1450
      %v1452 = vpop.f32.mrb[0].mxu0
      %v1453 = vadd.f32 0.0, %v1452
      %1454 = vmatprep.mubr.f32.mxu0 0.0
      %1455 = vmatmul.mubr.f32.gmra.mrb[0].mxu0 %v1370
      %v1456 = vpop.f32.mrb[0].mxu0
      %v1457 = vadd.f32 0.0, %v1456
      %v1458 = vpop.f32.mrb[0].mxu0
      %v1459 = vadd.f32 0.0, %v1458
      %1460 = vdwg.mxu0
      %1461 = vmatprep.subr.mxu0 0.0
      %1462 = vmatpush1.msra.mxu0 %v1376
      %1463 = vmatprep.subr.mxu0 0.0
      %1464 = vmatpush1.msra.mxu0 0.0
      %1465 = vmatprep.subr.mxu0 0.0
      %1466 = vmatpush1.msra.mxu0 0.0
      %1467 = vmatprep.subr.mxu0 0.0
      %1468 = vmatpush1.msra.mxu0 0.0
      %1469 = vmatprep.subr.mxu0 0.0
      %1470 = vmatpush1.msra.mxu0 0.0
      %1471 = vmatprep.subr.mxu0 0.0
      %1472 = vmatpush1.msra.mxu0 0.0
      %1473 = vmatprep.subr.mxu0 0.0
      %1474 = vmatpush1.msra.mxu0 0.0
      %1475 = vmatprep.subr.mxu0 0.0
      %1476 = vmatpush1.msra.mxu0 0.0
      %1477 = vmatprep.subr.mxu0 0.0
      %1478 = vmatpush1.msra.mxu0 0.0
      %1479 = vmatprep.subr.mxu0 0.0
      %1480 = vmatpush1.msra.mxu0 0.0
      %1481 = vmatprep.subr.mxu0 0.0
      %1482 = vmatpush1.msra.mxu0 0.0
      %1483 = vmatprep.subr.mxu0 0.0
      %1484 = vmatpush1.msra.mxu0 0.0
      %1485 = vmatprep.subr.mxu0 0.0
      %1486 = vmatpush1.msra.mxu0 0.0
      %1487 = vmatprep.subr.mxu0 0.0
      %1488 = vmatpush1.msra.mxu0 0.0
      %1489 = vmatprep.subr.mxu0 0.0
      %1490 = vmatpush1.msra.mxu0 0.0
      %1491 = vmatprep.subr.mxu0 0.0
      %1492 = vmatpush1.msra.mxu0 0.0
      %1493 = vmatprep.subr.mxu0 0.0
      %1494 = vmatpush1.msra.mxu0 0.0
      %1495 = vmatprep.subr.mxu0 0.0
      %1496 = vmatpush1.msra.mxu0 0.0
      %1497 = vmatprep.subr.mxu0 0.0
      %1498 = vmatpush1.msra.mxu0 0.0
      %1499 = vmatprep.subr.mxu0 0.0
      %1500 = vmatpush1.msra.mxu0 0.0
      %1501 = vmatprep.subr.mxu0 0.0
      %1502 = vmatpush1.msra.mxu0 0.0
      %1503 = vmatprep.subr.mxu0 0.0
      %1504 = vmatpush1.msra.mxu0 0.0
      %1505 = vmatprep.subr.mxu0 0.0
      %1506 = vmatpush1.msra.mxu0 0.0
      %1507 = vmatprep.subr.mxu0 0.0
      %1508 = vmatpush1.msra.mxu0 0.0
      %1509 = vmatprep.subr.mxu0 0.0
      %1510 = vmatpush1.msra.mxu0 0.0
      %1511 = vmatprep.subr.mxu0 0.0
      %1512 = vmatpush1.msra.mxu0 0.0
      %1513 = vmatprep.subr.mxu0 0.0
      %1514 = vmatpush1.msra.mxu0 0.0
      %1515 = vmatprep.subr.mxu0 0.0
      %1516 = vmatpush1.msra.mxu0 0.0
      %1517 = vmatprep.subr.mxu0 0.0
      %1518 = vmatpush1.msra.mxu0 0.0
      %1519 = vmatprep.subr.mxu0 0.0
      %1520 = vmatpush1.msra.mxu0 0.0
      %1521 = vmatprep.subr.mxu0 0.0
      %1522 = vmatpush1.msra.mxu0 0.0
      %1523 = vmatprep.subr.mxu0 0.0
      %1524 = vmatpush1.msra.mxu0 0.0
      %1525 = vmatprep.mubr.f32.mxu0 0.0
      %1526 = vmatmul.mubr.f32.gmra.mrb[0].mxu0 %v1364
      %v1527 = vpop.f32.mrb[0].mxu0
      %v1528 = vadd.f32 0.0, %v1527
      %v1529 = vpop.f32.mrb[0].mxu0
      %1530 = vmatprep.mubr.f32.mxu0 0.0
      %1531 = vmatmul.mubr.f32.gmra.mrb[0].mxu0 %v1367
      %v1532 = vpop.f32.mrb[0].mxu0
      %v1533 = vadd.f32 0.0, %v1532
      %v1534 = vpop.f32.mrb[0].mxu0
      %1535 = vmatprep.mubr.f32.mxu0 0.0
      %1536 = vmatmul.mubr.f32.gmra.mrb[0].mxu0 %v1370
      %v1537 = vpop.f32.mrb[0].mxu0
      %v1538 = vadd.f32 0.0, %v1537
      %v1539 = vpop.f32.mrb[0].mxu0
      %1540 = vdwg.mxu0
      %v1541 = vadd.f32 %v1341, %v1445
      %v1542 = vadd.f32 %v1342, %v1447
      %v1543 = vadd.f32 %v1343, %v1528
      %v1544 = vadd.f32 %v1344, %v1451
      %v1545 = vadd.f32 %v1345, %v1453
      %v1546 = vadd.f32 %v1346, %v1533
      %v1547 = vadd.f32 %v1347, %v1457
      %v1548 = vadd.f32 %v1348, %v1459
      %v1549 = vadd.f32 %v1349, %v1538
      %s1550 = scalar_lea.vmem %s1, 168
      %v1551 = vld [vmem:[%s1550] sm:$0xff]
      %v1552 = vld [vmem:[%s1550 + $0x8] sm:$0xff]
      %v1553 = vld [vmem:[%s1550 + $0x10] sm:$0xff]
      %1554 = vrot.lane.b32.xlu0 %v171, 106
      %v1555 = vpop.permute.xlu0 %1554
      %1556 = vrot.lane.b32.xlu0 %v182, 106
      %v1557 = vpop.permute.xlu0 %1556
      %1558 = vrot.lane.b32.xlu0 %v172, 106
      %v1559 = vpop.permute.xlu0 %1558
      %vm1560 = vcmask 867328
      %v1561 = vsel %vm1560, %v1555, %v1557
      %v1562 = vsel %vm1560, %v1557, %v1559
      %v1564 = vsel %vm192, %v1551, 0
      %v1567 = vsel %vm192, %v1552, 0
      %v1570 = vsel %vm192, %v1553, 0
      %v1572 = vsel %vm202, %v1561, 0
      %v1574 = vsel %vm202, %v1562, 0
      %v1576 = vsel %vm202, %v1559, 0
      %1578 = vmatprep.subr.mxu0 %v1574
      %1579 = vmatpush1.msra.mxu0 %v1572
      %1580 = vmatprep.subr.mxu0 0.0
      %1581 = vmatpush1.msra.mxu0 0.0
      %1582 = vmatprep.subr.mxu0 0.0
      %1583 = vmatpush1.msra.mxu0 0.0
      %1584 = vmatprep.subr.mxu0 0.0
      %1585 = vmatpush1.msra.mxu0 0.0
      %1586 = vmatprep.subr.mxu0 0.0
      %1587 = vmatpush1.msra.mxu0 0.0
      %1588 = vmatprep.subr.mxu0 0.0
      %1589 = vmatpush1.msra.mxu0 0.0
      %1590 = vmatprep.subr.mxu0 0.0
      %1591 = vmatpush1.msra.mxu0 0.0
      %1592 = vmatprep.subr.mxu0 0.0
      %1593 = vmatpush1.msra.mxu0 0.0
      %1594 = vmatprep.subr.mxu0 0.0
      %1595 = vmatpush1.msra.mxu0 0.0
      %1596 = vmatprep.subr.mxu0 0.0
      %1597 = vmatpush1.msra.mxu0 0.0
      %1598 = vmatprep.subr.mxu0 0.0
      %1599 = vmatpush1.msra.mxu0 0.0
      %1600 = vmatprep.subr.mxu0 0.0
      %1601 = vmatpush1.msra.mxu0 0.0
      %1602 = vmatprep.subr.mxu0 0.0
      %1603 = vmatpush1.msra.mxu0 0.0
      %1604 = vmatprep.subr.mxu0 0.0
      %1605 = vmatpush1.msra.mxu0 0.0
      %1606 = vmatprep.subr.mxu0 0.0
      %1607 = vmatpush1.msra.mxu0 0.0
      %1608 = vmatprep.subr.mxu0 0.0
      %1609 = vmatpush1.msra.mxu0 0.0
      %1610 = vmatprep.subr.mxu0 0.0
      %1611 = vmatpush1.msra.mxu0 0.0
      %1612 = vmatprep.subr.mxu0 0.0
      %1613 = vmatpush1.msra.mxu0 0.0
      %1614 = vmatprep.subr.mxu0 0.0
      %1615 = vmatpush1.msra.mxu0 0.0
      %1616 = vmatprep.subr.mxu0 0.0
      %1617 = vmatpush1.msra.mxu0 0.0
      %1618 = vmatprep.subr.mxu0 0.0
      %1619 = vmatpush1.msra.mxu0 0.0
      %1620 = vmatprep.subr.mxu0 0.0
      %1621 = vmatpush1.msra.mxu0 0.0
      %1622 = vmatprep.subr.mxu0 0.0
      %1623 = vmatpush1.msra.mxu0 0.0
      %1624 = vmatprep.subr.mxu0 0.0
      %1625 = vmatpush1.msra.mxu0 0.0
      %1626 = vmatprep.subr.mxu0 0.0
      %1627 = vmatpush1.msra.mxu0 0.0
      %1628 = vmatprep.subr.mxu0 0.0
      %1629 = vmatpush1.msra.mxu0 0.0
      %1630 = vmatprep.subr.mxu0 0.0
      %1631 = vmatpush1.msra.mxu0 0.0
      %1632 = vmatprep.subr.mxu0 0.0
      %1633 = vmatpush1.msra.mxu0 0.0
      %1634 = vmatprep.subr.mxu0 0.0
      %1635 = vmatpush1.msra.mxu0 0.0
      %1636 = vmatprep.subr.mxu0 0.0
      %1637 = vmatpush1.msra.mxu0 0.0
      %1638 = vmatprep.subr.mxu0 0.0
      %1639 = vmatpush1.msra.mxu0 0.0
      %1640 = vmatprep.subr.mxu0 0.0
      %1641 = vmatpush1.msra.mxu0 0.0
      %1642 = vmatprep.mubr.f32.mxu0 0.0
      %1643 = vmatmul.mubr.f32.gmra.mrb[0].mxu0 %v1564
      %v1644 = vpop.f32.mrb[0].mxu0
      %v1645 = vadd.f32 0.0, %v1644
      %v1646 = vpop.f32.mrb[0].mxu0
      %v1647 = vadd.f32 0.0, %v1646
      %1648 = vmatprep.mubr.f32.mxu0 0.0
      %1649 = vmatmul.mubr.f32.gmra.mrb[0].mxu0 %v1567
      %v1650 = vpop.f32.mrb[0].mxu0
      %v1651 = vadd.f32 0.0, %v1650
      %v1652 = vpop.f32.mrb[0].mxu0
      %v1653 = vadd.f32 0.0, %v1652
      %1654 = vmatprep.mubr.f32.mxu0 0.0
      %1655 = vmatmul.mubr.f32.gmra.mrb[0].mxu0 %v1570
      %v1656 = vpop.f32.mrb[0].mxu0
      %v1657 = vadd.f32 0.0, %v1656
      %v1658 = vpop.f32.mrb[0].mxu0
      %v1659 = vadd.f32 0.0, %v1658
      %1660 = vdwg.mxu0
      %1661 = vmatprep.subr.mxu0 0.0
      %1662 = vmatpush1.msra.mxu0 %v1576
      %1663 = vmatprep.subr.mxu0 0.0
      %1664 = vmatpush1.msra.mxu0 0.0
      %1665 = vmatprep.subr.mxu0 0.0
      %1666 = vmatpush1.msra.mxu0 0.0
      %1667 = vmatprep.subr.mxu0 0.0
      %1668 = vmatpush1.msra.mxu0 0.0
      %1669 = vmatprep.subr.mxu0 0.0
      %1670 = vmatpush1.msra.mxu0 0.0
      %1671 = vmatprep.subr.mxu0 0.0
      %1672 = vmatpush1.msra.mxu0 0.0
      %1673 = vmatprep.subr.mxu0 0.0
      %1674 = vmatpush1.msra.mxu0 0.0
      %1675 = vmatprep.subr.mxu0 0.0
      %1676 = vmatpush1.msra.mxu0 0.0
      %1677 = vmatprep.subr.mxu0 0.0
      %1678 = vmatpush1.msra.mxu0 0.0
      %1679 = vmatprep.subr.mxu0 0.0
      %1680 = vmatpush1.msra.mxu0 0.0
      %1681 = vmatprep.subr.mxu0 0.0
      %1682 = vmatpush1.msra.mxu0 0.0
      %1683 = vmatprep.subr.mxu0 0.0
      %1684 = vmatpush1.msra.mxu0 0.0
      %1685 = vmatprep.subr.mxu0 0.0
      %1686 = vmatpush1.msra.mxu0 0.0
      %1687 = vmatprep.subr.mxu0 0.0
      %1688 = vmatpush1.msra.mxu0 0.0
      %1689 = vmatprep.subr.mxu0 0.0
      %1690 = vmatpush1.msra.mxu0 0.0
      %1691 = vmatprep.subr.mxu0 0.0
      %1692 = vmatpush1.msra.mxu0 0.0
      %1693 = vmatprep.subr.mxu0 0.0
      %1694 = vmatpush1.msra.mxu0 0.0
      %1695 = vmatprep.subr.mxu0 0.0
      %1696 = vmatpush1.msra.mxu0 0.0
      %1697 = vmatprep.subr.mxu0 0.0
      %1698 = vmatpush1.msra.mxu0 0.0
      %1699 = vmatprep.subr.mxu0 0.0
      %1700 = vmatpush1.msra.mxu0 0.0
      %1701 = vmatprep.subr.mxu0 0.0
      %1702 = vmatpush1.msra.mxu0 0.0
      %1703 = vmatprep.subr.mxu0 0.0
      %1704 = vmatpush1.msra.mxu0 0.0
      %1705 = vmatprep.subr.mxu0 0.0
      %1706 = vmatpush1.msra.mxu0 0.0
      %1707 = vmatprep.subr.mxu0 0.0
      %1708 = vmatpush1.msra.mxu0 0.0
      %1709 = vmatprep.subr.mxu0 0.0
      %1710 = vmatpush1.msra.mxu0 0.0
      %1711 = vmatprep.subr.mxu0 0.0
      %1712 = vmatpush1.msra.mxu0 0.0
      %1713 = vmatprep.subr.mxu0 0.0
      %1714 = vmatpush1.msra.mxu0 0.0
      %1715 = vmatprep.subr.mxu0 0.0
      %1716 = vmatpush1.msra.mxu0 0.0
      %1717 = vmatprep.subr.mxu0 0.0
      %1718 = vmatpush1.msra.mxu0 0.0
      %1719 = vmatprep.subr.mxu0 0.0
      %1720 = vmatpush1.msra.mxu0 0.0
      %1721 = vmatprep.subr.mxu0 0.0
      %1722 = vmatpush1.msra.mxu0 0.0
      %1723 = vmatprep.subr.mxu0 0.0
      %1724 = vmatpush1.msra.mxu0 0.0
      %1725 = vmatprep.mubr.f32.mxu0 0.0
      %1726 = vmatmul.mubr.f32.gmra.mrb[0].mxu0 %v1564
      %v1727 = vpop.f32.mrb[0].mxu0
      %v1728 = vadd.f32 0.0, %v1727
      %v1729 = vpop.f32.mrb[0].mxu0
      %1730 = vmatprep.mubr.f32.mxu0 0.0
      %1731 = vmatmul.mubr.f32.gmra.mrb[0].mxu0 %v1567
      %v1732 = vpop.f32.mrb[0].mxu0
      %v1733 = vadd.f32 0.0, %v1732
      %v1734 = vpop.f32.mrb[0].mxu0
      %1735 = vmatprep.mubr.f32.mxu0 0.0
      %1736 = vmatmul.mubr.f32.gmra.mrb[0].mxu0 %v1570
      %v1737 = vpop.f32.mrb[0].mxu0
      %v1738 = vadd.f32 0.0, %v1737
      %v1739 = vpop.f32.mrb[0].mxu0
      %1740 = vdwg.mxu0
      %v1741 = vadd.f32 %v1541, %v1645
      %v1742 = vadd.f32 %v1542, %v1647
      %v1743 = vadd.f32 %v1543, %v1728
      %v1744 = vadd.f32 %v1544, %v1651
      %v1745 = vadd.f32 %v1545, %v1653
      %v1746 = vadd.f32 %v1546, %v1733
      %v1747 = vadd.f32 %v1547, %v1657
      %v1748 = vadd.f32 %v1548, %v1659
      %v1749 = vadd.f32 %v1549, %v1738
      %s1750 = scalar_lea.vmem %s1, 192
      %v1751 = vld [vmem:[%s1750] sm:$0xff]
      %v1752 = vld [vmem:[%s1750 + $0x8] sm:$0xff]
      %v1753 = vld [vmem:[%s1750 + $0x10] sm:$0xff]
      %1754 = vrot.lane.b32.xlu0 %v171, 105
      %v1755 = vpop.permute.xlu0 %1754
      %1756 = vrot.lane.b32.xlu0 %v182, 105
      %v1757 = vpop.permute.xlu0 %1756
      %1758 = vrot.lane.b32.xlu0 %v172, 105
      %v1759 = vpop.permute.xlu0 %1758
      %vm1760 = vcmask 859136
      %v1761 = vsel %vm1760, %v1755, %v1757
      %v1762 = vsel %vm1760, %v1757, %v1759
      %v1764 = vsel %vm192, %v1751, 0
      %v1767 = vsel %vm192, %v1752, 0
      %v1770 = vsel %vm192, %v1753, 0
      %v1772 = vsel %vm202, %v1761, 0
      %v1774 = vsel %vm202, %v1762, 0
      %v1776 = vsel %vm202, %v1759, 0
      %1778 = vmatprep.subr.mxu0 %v1774
      %1779 = vmatpush1.msra.mxu0 %v1772
      %1780 = vmatprep.subr.mxu0 0.0
      %1781 = vmatpush1.msra.mxu0 0.0
      %1782 = vmatprep.subr.mxu0 0.0
      %1783 = vmatpush1.msra.mxu0 0.0
      %1784 = vmatprep.subr.mxu0 0.0
      %1785 = vmatpush1.msra.mxu0 0.0
      %1786 = vmatprep.subr.mxu0 0.0
      %1787 = vmatpush1.msra.mxu0 0.0
      %1788 = vmatprep.subr.mxu0 0.0
      %1789 = vmatpush1.msra.mxu0 0.0
      %1790 = vmatprep.subr.mxu0 0.0
      %1791 = vmatpush1.msra.mxu0 0.0
      %1792 = vmatprep.subr.mxu0 0.0
      %1793 = vmatpush1.msra.mxu0 0.0
      %1794 = vmatprep.subr.mxu0 0.0
      %1795 = vmatpush1.msra.mxu0 0.0
      %1796 = vmatprep.subr.mxu0 0.0
      %1797 = vmatpush1.msra.mxu0 0.0
      %1798 = vmatprep.subr.mxu0 0.0
      %1799 = vmatpush1.msra.mxu0 0.0
      %1800 = vmatprep.subr.mxu0 0.0
      %1801 = vmatpush1.msra.mxu0 0.0
      %1802 = vmatprep.subr.mxu0 0.0
      %1803 = vmatpush1.msra.mxu0 0.0
      %1804 = vmatprep.subr.mxu0 0.0
      %1805 = vmatpush1.msra.mxu0 0.0
      %1806 = vmatprep.subr.mxu0 0.0
      %1807 = vmatpush1.msra.mxu0 0.0
      %1808 = vmatprep.subr.mxu0 0.0
      %1809 = vmatpush1.msra.mxu0 0.0
      %1810 = vmatprep.subr.mxu0 0.0
      %1811 = vmatpush1.msra.mxu0 0.0
      %1812 = vmatprep.subr.mxu0 0.0
      %1813 = vmatpush1.msra.mxu0 0.0
      %1814 = vmatprep.subr.mxu0 0.0
      %1815 = vmatpush1.msra.mxu0 0.0
      %1816 = vmatprep.subr.mxu0 0.0
      %1817 = vmatpush1.msra.mxu0 0.0
      %1818 = vmatprep.subr.mxu0 0.0
      %1819 = vmatpush1.msra.mxu0 0.0
      %1820 = vmatprep.subr.mxu0 0.0
      %1821 = vmatpush1.msra.mxu0 0.0
      %1822 = vmatprep.subr.mxu0 0.0
      %1823 = vmatpush1.msra.mxu0 0.0
      %1824 = vmatprep.subr.mxu0 0.0
      %1825 = vmatpush1.msra.mxu0 0.0
      %1826 = vmatprep.subr.mxu0 0.0
      %1827 = vmatpush1.msra.mxu0 0.0
      %1828 = vmatprep.subr.mxu0 0.0
      %1829 = vmatpush1.msra.mxu0 0.0
      %1830 = vmatprep.subr.mxu0 0.0
      %1831 = vmatpush1.msra.mxu0 0.0
      %1832 = vmatprep.subr.mxu0 0.0
      %1833 = vmatpush1.msra.mxu0 0.0
      %1834 = vmatprep.subr.mxu0 0.0
      %1835 = vmatpush1.msra.mxu0 0.0
      %1836 = vmatprep.subr.mxu0 0.0
      %1837 = vmatpush1.msra.mxu0 0.0
      %1838 = vmatprep.subr.mxu0 0.0
      %1839 = vmatpush1.msra.mxu0 0.0
      %1840 = vmatprep.subr.mxu0 0.0
      %1841 = vmatpush1.msra.mxu0 0.0
      %1842 = vmatprep.mubr.f32.mxu0 0.0
      %1843 = vmatmul.mubr.f32.gmra.mrb[0].mxu0 %v1764
      %v1844 = vpop.f32.mrb[0].mxu0
      %v1845 = vadd.f32 0.0, %v1844
      %v1846 = vpop.f32.mrb[0].mxu0
      %v1847 = vadd.f32 0.0, %v1846
      %1848 = vmatprep.mubr.f32.mxu0 0.0
      %1849 = vmatmul.mubr.f32.gmra.mrb[0].mxu0 %v1767
      %v1850 = vpop.f32.mrb[0].mxu0
      %v1851 = vadd.f32 0.0, %v1850
      %v1852 = vpop.f32.mrb[0].mxu0
      %v1853 = vadd.f32 0.0, %v1852
      %1854 = vmatprep.mubr.f32.mxu0 0.0
      %1855 = vmatmul.mubr.f32.gmra.mrb[0].mxu0 %v1770
      %v1856 = vpop.f32.mrb[0].mxu0
      %v1857 = vadd.f32 0.0, %v1856
      %v1858 = vpop.f32.mrb[0].mxu0
      %v1859 = vadd.f32 0.0, %v1858
      %1860 = vdwg.mxu0
      %1861 = vmatprep.subr.mxu0 0.0
      %1862 = vmatpush1.msra.mxu0 %v1776
      %1863 = vmatprep.subr.mxu0 0.0
      %1864 = vmatpush1.msra.mxu0 0.0
      %1865 = vmatprep.subr.mxu0 0.0
      %1866 = vmatpush1.msra.mxu0 0.0
      %1867 = vmatprep.subr.mxu0 0.0
      %1868 = vmatpush1.msra.mxu0 0.0
      %1869 = vmatprep.subr.mxu0 0.0
      %1870 = vmatpush1.msra.mxu0 0.0
      %1871 = vmatprep.subr.mxu0 0.0
      %1872 = vmatpush1.msra.mxu0 0.0
      %1873 = vmatprep.subr.mxu0 0.0
      %1874 = vmatpush1.msra.mxu0 0.0
      %1875 = vmatprep.subr.mxu0 0.0
      %1876 = vmatpush1.msra.mxu0 0.0
      %1877 = vmatprep.subr.mxu0 0.0
      %1878 = vmatpush1.msra.mxu0 0.0
      %1879 = vmatprep.subr.mxu0 0.0
      %1880 = vmatpush1.msra.mxu0 0.0
      %1881 = vmatprep.subr.mxu0 0.0
      %1882 = vmatpush1.msra.mxu0 0.0
      %1883 = vmatprep.subr.mxu0 0.0
      %1884 = vmatpush1.msra.mxu0 0.0
      %1885 = vmatprep.subr.mxu0 0.0
      %1886 = vmatpush1.msra.mxu0 0.0
      %1887 = vmatprep.subr.mxu0 0.0
      %1888 = vmatpush1.msra.mxu0 0.0
      %1889 = vmatprep.subr.mxu0 0.0
      %1890 = vmatpush1.msra.mxu0 0.0
      %1891 = vmatprep.subr.mxu0 0.0
      %1892 = vmatpush1.msra.mxu0 0.0
      %1893 = vmatprep.subr.mxu0 0.0
      %1894 = vmatpush1.msra.mxu0 0.0
      %1895 = vmatprep.subr.mxu0 0.0
      %1896 = vmatpush1.msra.mxu0 0.0
      %1897 = vmatprep.subr.mxu0 0.0
      %1898 = vmatpush1.msra.mxu0 0.0
      %1899 = vmatprep.subr.mxu0 0.0
      %1900 = vmatpush1.msra.mxu0 0.0
      %1901 = vmatprep.subr.mxu0 0.0
      %1902 = vmatpush1.msra.mxu0 0.0
      %1903 = vmatprep.subr.mxu0 0.0
      %1904 = vmatpush1.msra.mxu0 0.0
      %1905 = vmatprep.subr.mxu0 0.0
      %1906 = vmatpush1.msra.mxu0 0.0
      %1907 = vmatprep.subr.mxu0 0.0
      %1908 = vmatpush1.msra.mxu0 0.0
      %1909 = vmatprep.subr.mxu0 0.0
      %1910 = vmatpush1.msra.mxu0 0.0
      %1911 = vmatprep.subr.mxu0 0.0
      %1912 = vmatpush1.msra.mxu0 0.0
      %1913 = vmatprep.subr.mxu0 0.0
      %1914 = vmatpush1.msra.mxu0 0.0
      %1915 = vmatprep.subr.mxu0 0.0
      %1916 = vmatpush1.msra.mxu0 0.0
      %1917 = vmatprep.subr.mxu0 0.0
      %1918 = vmatpush1.msra.mxu0 0.0
      %1919 = vmatprep.subr.mxu0 0.0
      %1920 = vmatpush1.msra.mxu0 0.0
      %1921 = vmatprep.subr.mxu0 0.0
      %1922 = vmatpush1.msra.mxu0 0.0
      %1923 = vmatprep.subr.mxu0 0.0
      %1924 = vmatpush1.msra.mxu0 0.0
      %1925 = vmatprep.mubr.f32.mxu0 0.0
      %1926 = vmatmul.mubr.f32.gmra.mrb[0].mxu0 %v1764
      %v1927 = vpop.f32.mrb[0].mxu0
      %v1928 = vadd.f32 0.0, %v1927
      %v1929 = vpop.f32.mrb[0].mxu0
      %1930 = vmatprep.mubr.f32.mxu0 0.0
      %1931 = vmatmul.mubr.f32.gmra.mrb[0].mxu0 %v1767
      %v1932 = vpop.f32.mrb[0].mxu0
      %v1933 = vadd.f32 0.0, %v1932
      %v1934 = vpop.f32.mrb[0].mxu0
      %1935 = vmatprep.mubr.f32.mxu0 0.0
      %1936 = vmatmul.mubr.f32.gmra.mrb[0].mxu0 %v1770
      %v1937 = vpop.f32.mrb[0].mxu0
      %v1938 = vadd.f32 0.0, %v1937
      %v1939 = vpop.f32.mrb[0].mxu0
      %1940 = vdwg.mxu0
      %v1941 = vadd.f32 %v1741, %v1845
      %v1942 = vadd.f32 %v1742, %v1847
      %v1943 = vadd.f32 %v1743, %v1928
      %v1944 = vadd.f32 %v1744, %v1851
      %v1945 = vadd.f32 %v1745, %v1853
      %v1946 = vadd.f32 %v1746, %v1933
      %v1947 = vadd.f32 %v1747, %v1857
      %v1948 = vadd.f32 %v1748, %v1859
      %v1949 = vadd.f32 %v1749, %v1938
      %s1950 = scalar_lea.vmem %s1, 216
      %v1951 = vld [vmem:[%s1950] sm:$0xff]
      %v1952 = vld [vmem:[%s1950 + $0x8] sm:$0xff]
      %v1953 = vld [vmem:[%s1950 + $0x10] sm:$0xff]
      %1954 = vrot.lane.b32.xlu0 %v171, 104
      %v1955 = vpop.permute.xlu0 %1954
      %1956 = vrot.lane.b32.xlu0 %v182, 104
      %v1957 = vpop.permute.xlu0 %1956
      %1958 = vrot.lane.b32.xlu0 %v172, 104
      %v1959 = vpop.permute.xlu0 %1958
      %vm1960 = vcmask 850944
      %v1961 = vsel %vm1960, %v1955, %v1957
      %v1962 = vsel %vm1960, %v1957, %v1959
      %v1964 = vsel %vm192, %v1951, 0
      %v1967 = vsel %vm192, %v1952, 0
      %v1970 = vsel %vm192, %v1953, 0
      %v1972 = vsel %vm202, %v1961, 0
      %v1974 = vsel %vm202, %v1962, 0
      %v1976 = vsel %vm202, %v1959, 0
      %1978 = vmatprep.subr.mxu0 %v1974
      %1979 = vmatpush1.msra.mxu0 %v1972
      %1980 = vmatprep.subr.mxu0 0.0
      %1981 = vmatpush1.msra.mxu0 0.0
      %1982 = vmatprep.subr.mxu0 0.0
      %1983 = vmatpush1.msra.mxu0 0.0
      %1984 = vmatprep.subr.mxu0 0.0
      %1985 = vmatpush1.msra.mxu0 0.0
      %1986 = vmatprep.subr.mxu0 0.0
      %1987 = vmatpush1.msra.mxu0 0.0
      %1988 = vmatprep.subr.mxu0 0.0
      %1989 = vmatpush1.msra.mxu0 0.0
      %1990 = vmatprep.subr.mxu0 0.0
      %1991 = vmatpush1.msra.mxu0 0.0
      %1992 = vmatprep.subr.mxu0 0.0
      %1993 = vmatpush1.msra.mxu0 0.0
      %1994 = vmatprep.subr.mxu0 0.0
      %1995 = vmatpush1.msra.mxu0 0.0
      %1996 = vmatprep.subr.mxu0 0.0
      %1997 = vmatpush1.msra.mxu0 0.0
      %1998 = vmatprep.subr.mxu0 0.0
      %1999 = vmatpush1.msra.mxu0 0.0
      %2000 = vmatprep.subr.mxu0 0.0
      %2001 = vmatpush1.msra.mxu0 0.0
      %2002 = vmatprep.subr.mxu0 0.0
      %2003 = vmatpush1.msra.mxu0 0.0
      %2004 = vmatprep.subr.mxu0 0.0
      %2005 = vmatpush1.msra.mxu0 0.0
      %2006 = vmatprep.subr.mxu0 0.0
      %2007 = vmatpush1.msra.mxu0 0.0
      %2008 = vmatprep.subr.mxu0 0.0
      %2009 = vmatpush1.msra.mxu0 0.0
      %2010 = vmatprep.subr.mxu0 0.0
      %2011 = vmatpush1.msra.mxu0 0.0
      %2012 = vmatprep.subr.mxu0 0.0
      %2013 = vmatpush1.msra.mxu0 0.0
      %2014 = vmatprep.subr.mxu0 0.0
      %2015 = vmatpush1.msra.mxu0 0.0
      %2016 = vmatprep.subr.mxu0 0.0
      %2017 = vmatpush1.msra.mxu0 0.0
      %2018 = vmatprep.subr.mxu0 0.0
      %2019 = vmatpush1.msra.mxu0 0.0
      %2020 = vmatprep.subr.mxu0 0.0
      %2021 = vmatpush1.msra.mxu0 0.0
      %2022 = vmatprep.subr.mxu0 0.0
      %2023 = vmatpush1.msra.mxu0 0.0
      %2024 = vmatprep.subr.mxu0 0.0
      %2025 = vmatpush1.msra.mxu0 0.0
      %2026 = vmatprep.subr.mxu0 0.0
      %2027 = vmatpush1.msra.mxu0 0.0
      %2028 = vmatprep.subr.mxu0 0.0
      %2029 = vmatpush1.msra.mxu0 0.0
      %2030 = vmatprep.subr.mxu0 0.0
      %2031 = vmatpush1.msra.mxu0 0.0
      %2032 = vmatprep.subr.mxu0 0.0
      %2033 = vmatpush1.msra.mxu0 0.0
      %2034 = vmatprep.subr.mxu0 0.0
      %2035 = vmatpush1.msra.mxu0 0.0
      %2036 = vmatprep.subr.mxu0 0.0
      %2037 = vmatpush1.msra.mxu0 0.0
      %2038 = vmatprep.subr.mxu0 0.0
      %2039 = vmatpush1.msra.mxu0 0.0
      %2040 = vmatprep.subr.mxu0 0.0
      %2041 = vmatpush1.msra.mxu0 0.0
      %2042 = vmatprep.mubr.f32.mxu0 0.0
      %2043 = vmatmul.mubr.f32.gmra.mrb[0].mxu0 %v1964
      %v2044 = vpop.f32.mrb[0].mxu0
      %v2045 = vadd.f32 0.0, %v2044
      %v2046 = vpop.f32.mrb[0].mxu0
      %v2047 = vadd.f32 0.0, %v2046
      %2048 = vmatprep.mubr.f32.mxu0 0.0
      %2049 = vmatmul.mubr.f32.gmra.mrb[0].mxu0 %v1967
      %v2050 = vpop.f32.mrb[0].mxu0
      %v2051 = vadd.f32 0.0, %v2050
      %v2052 = vpop.f32.mrb[0].mxu0
      %v2053 = vadd.f32 0.0, %v2052
      %2054 = vmatprep.mubr.f32.mxu0 0.0
      %2055 = vmatmul.mubr.f32.gmra.mrb[0].mxu0 %v1970
      %v2056 = vpop.f32.mrb[0].mxu0
      %v2057 = vadd.f32 0.0, %v2056
      %v2058 = vpop.f32.mrb[0].mxu0
      %v2059 = vadd.f32 0.0, %v2058
      %2060 = vdwg.mxu0
      %2061 = vmatprep.subr.mxu0 0.0
      %2062 = vmatpush1.msra.mxu0 %v1976
      %2063 = vmatprep.subr.mxu0 0.0
      %2064 = vmatpush1.msra.mxu0 0.0
      %2065 = vmatprep.subr.mxu0 0.0
      %2066 = vmatpush1.msra.mxu0 0.0
      %2067 = vmatprep.subr.mxu0 0.0
      %2068 = vmatpush1.msra.mxu0 0.0
      %2069 = vmatprep.subr.mxu0 0.0
      %2070 = vmatpush1.msra.mxu0 0.0
      %2071 = vmatprep.subr.mxu0 0.0
      %2072 = vmatpush1.msra.mxu0 0.0
      %2073 = vmatprep.subr.mxu0 0.0
      %2074 = vmatpush1.msra.mxu0 0.0
      %2075 = vmatprep.subr.mxu0 0.0
      %2076 = vmatpush1.msra.mxu0 0.0
      %2077 = vmatprep.subr.mxu0 0.0
      %2078 = vmatpush1.msra.mxu0 0.0
      %2079 = vmatprep.subr.mxu0 0.0
      %2080 = vmatpush1.msra.mxu0 0.0
      %2081 = vmatprep.subr.mxu0 0.0
      %2082 = vmatpush1.msra.mxu0 0.0
      %2083 = vmatprep.subr.mxu0 0.0
      %2084 = vmatpush1.msra.mxu0 0.0
      %2085 = vmatprep.subr.mxu0 0.0
      %2086 = vmatpush1.msra.mxu0 0.0
      %2087 = vmatprep.subr.mxu0 0.0
      %2088 = vmatpush1.msra.mxu0 0.0
      %2089 = vmatprep.subr.mxu0 0.0
      %2090 = vmatpush1.msra.mxu0 0.0
      %2091 = vmatprep.subr.mxu0 0.0
      %2092 = vmatpush1.msra.mxu0 0.0
      %2093 = vmatprep.subr.mxu0 0.0
      %2094 = vmatpush1.msra.mxu0 0.0
      %2095 = vmatprep.subr.mxu0 0.0
      %2096 = vmatpush1.msra.mxu0 0.0
      %2097 = vmatprep.subr.mxu0 0.0
      %2098 = vmatpush1.msra.mxu0 0.0
      %2099 = vmatprep.subr.mxu0 0.0
      %2100 = vmatpush1.msra.mxu0 0.0
      %2101 = vmatprep.subr.mxu0 0.0
      %2102 = vmatpush1.msra.mxu0 0.0
      %2103 = vmatprep.subr.mxu0 0.0
      %2104 = vmatpush1.msra.mxu0 0.0
      %2105 = vmatprep.subr.mxu0 0.0
      %2106 = vmatpush1.msra.mxu0 0.0
      %2107 = vmatprep.subr.mxu0 0.0
      %2108 = vmatpush1.msra.mxu0 0.0
      %2109 = vmatprep.subr.mxu0 0.0
      %2110 = vmatpush1.msra.mxu0 0.0
      %2111 = vmatprep.subr.mxu0 0.0
      %2112 = vmatpush1.msra.mxu0 0.0
      %2113 = vmatprep.subr.mxu0 0.0
      %2114 = vmatpush1.msra.mxu0 0.0
      %2115 = vmatprep.subr.mxu0 0.0
      %2116 = vmatpush1.msra.mxu0 0.0
      %2117 = vmatprep.subr.mxu0 0.0
      %2118 = vmatpush1.msra.mxu0 0.0
      %2119 = vmatprep.subr.mxu0 0.0
      %2120 = vmatpush1.msra.mxu0 0.0
      %2121 = vmatprep.subr.mxu0 0.0
      %2122 = vmatpush1.msra.mxu0 0.0
      %2123 = vmatprep.subr.mxu0 0.0
      %2124 = vmatpush1.msra.mxu0 0.0
      %2125 = vmatprep.mubr.f32.mxu0 0.0
      %2126 = vmatmul.mubr.f32.gmra.mrb[0].mxu0 %v1964
      %v2127 = vpop.f32.mrb[0].mxu0
      %v2128 = vadd.f32 0.0, %v2127
      %v2129 = vpop.f32.mrb[0].mxu0
      %2130 = vmatprep.mubr.f32.mxu0 0.0
      %2131 = vmatmul.mubr.f32.gmra.mrb[0].mxu0 %v1967
      %v2132 = vpop.f32.mrb[0].mxu0
      %v2133 = vadd.f32 0.0, %v2132
      %v2134 = vpop.f32.mrb[0].mxu0
      %2135 = vmatprep.mubr.f32.mxu0 0.0
      %2136 = vmatmul.mubr.f32.gmra.mrb[0].mxu0 %v1970
      %v2137 = vpop.f32.mrb[0].mxu0
      %v2138 = vadd.f32 0.0, %v2137
      %v2139 = vpop.f32.mrb[0].mxu0
      %2140 = vdwg.mxu0
      %v2141 = vadd.f32 %v1941, %v2045
      %v2142 = vadd.f32 %v1942, %v2047
      %v2143 = vadd.f32 %v1943, %v2128
      %v2144 = vadd.f32 %v1944, %v2051
      %v2145 = vadd.f32 %v1945, %v2053
      %v2146 = vadd.f32 %v1946, %v2133
      %v2147 = vadd.f32 %v1947, %v2057
      %v2148 = vadd.f32 %v1948, %v2059
      %v2149 = vadd.f32 %v1949, %v2138
      %s2150 = scalar_lea.vmem %s1, 240
      %v2151 = vld [vmem:[%s2150] sm:$0xff]
      %v2152 = vld [vmem:[%s2150 + $0x8] sm:$0xff]
      %v2153 = vld [vmem:[%s2150 + $0x10] sm:$0xff]
      %2154 = vrot.lane.b32.xlu0 %v171, 103
      %v2155 = vpop.permute.xlu0 %2154
      %2156 = vrot.lane.b32.xlu0 %v182, 103
      %v2157 = vpop.permute.xlu0 %2156
      %2158 = vrot.lane.b32.xlu0 %v172, 103
      %v2159 = vpop.permute.xlu0 %2158
      %vm2160 = vcmask 842752
      %v2161 = vsel %vm2160, %v2155, %v2157
      %v2162 = vsel %vm2160, %v2157, %v2159
      %v2164 = vsel %vm192, %v2151, 0
      %v2167 = vsel %vm192, %v2152, 0
      %v2170 = vsel %vm192, %v2153, 0
      %v2172 = vsel %vm202, %v2161, 0
      %v2174 = vsel %vm202, %v2162, 0
      %v2176 = vsel %vm202, %v2159, 0
      %2178 = vmatprep.subr.mxu0 %v2174
      %2179 = vmatpush1.msra.mxu0 %v2172
      %2180 = vmatprep.subr.mxu0 0.0
      %2181 = vmatpush1.msra.mxu0 0.0
      %2182 = vmatprep.subr.mxu0 0.0
      %2183 = vmatpush1.msra.mxu0 0.0
      %2184 = vmatprep.subr.mxu0 0.0
      %2185 = vmatpush1.msra.mxu0 0.0
      %2186 = vmatprep.subr.mxu0 0.0
      %2187 = vmatpush1.msra.mxu0 0.0
      %2188 = vmatprep.subr.mxu0 0.0
      %2189 = vmatpush1.msra.mxu0 0.0
      %2190 = vmatprep.subr.mxu0 0.0
      %2191 = vmatpush1.msra.mxu0 0.0
      %2192 = vmatprep.subr.mxu0 0.0
      %2193 = vmatpush1.msra.mxu0 0.0
      %2194 = vmatprep.subr.mxu0 0.0
      %2195 = vmatpush1.msra.mxu0 0.0
      %2196 = vmatprep.subr.mxu0 0.0
      %2197 = vmatpush1.msra.mxu0 0.0
      %2198 = vmatprep.subr.mxu0 0.0
      %2199 = vmatpush1.msra.mxu0 0.0
      %2200 = vmatprep.subr.mxu0 0.0
      %2201 = vmatpush1.msra.mxu0 0.0
      %2202 = vmatprep.subr.mxu0 0.0
      %2203 = vmatpush1.msra.mxu0 0.0
      %2204 = vmatprep.subr.mxu0 0.0
      %2205 = vmatpush1.msra.mxu0 0.0
      %2206 = vmatprep.subr.mxu0 0.0
      %2207 = vmatpush1.msra.mxu0 0.0
      %2208 = vmatprep.subr.mxu0 0.0
      %2209 = vmatpush1.msra.mxu0 0.0
      %2210 = vmatprep.subr.mxu0 0.0
      %2211 = vmatpush1.msra.mxu0 0.0
      %2212 = vmatprep.subr.mxu0 0.0
      %2213 = vmatpush1.msra.mxu0 0.0
      %2214 = vmatprep.subr.mxu0 0.0
      %2215 = vmatpush1.msra.mxu0 0.0
      %2216 = vmatprep.subr.mxu0 0.0
      %2217 = vmatpush1.msra.mxu0 0.0
      %2218 = vmatprep.subr.mxu0 0.0
      %2219 = vmatpush1.msra.mxu0 0.0
      %2220 = vmatprep.subr.mxu0 0.0
      %2221 = vmatpush1.msra.mxu0 0.0
      %2222 = vmatprep.subr.mxu0 0.0
      %2223 = vmatpush1.msra.mxu0 0.0
      %2224 = vmatprep.subr.mxu0 0.0
      %2225 = vmatpush1.msra.mxu0 0.0
      %2226 = vmatprep.subr.mxu0 0.0
      %2227 = vmatpush1.msra.mxu0 0.0
      %2228 = vmatprep.subr.mxu0 0.0
      %2229 = vmatpush1.msra.mxu0 0.0
      %2230 = vmatprep.subr.mxu0 0.0
      %2231 = vmatpush1.msra.mxu0 0.0
      %2232 = vmatprep.subr.mxu0 0.0
      %2233 = vmatpush1.msra.mxu0 0.0
      %2234 = vmatprep.subr.mxu0 0.0
      %2235 = vmatpush1.msra.mxu0 0.0
      %2236 = vmatprep.subr.mxu0 0.0
      %2237 = vmatpush1.msra.mxu0 0.0
      %2238 = vmatprep.subr.mxu0 0.0
      %2239 = vmatpush1.msra.mxu0 0.0
      %2240 = vmatprep.subr.mxu0 0.0
      %2241 = vmatpush1.msra.mxu0 0.0
      %2242 = vmatprep.mubr.f32.mxu0 0.0
      %2243 = vmatmul.mubr.f32.gmra.mrb[0].mxu0 %v2164
      %v2244 = vpop.f32.mrb[0].mxu0
      %v2245 = vadd.f32 0.0, %v2244
      %v2246 = vpop.f32.mrb[0].mxu0
      %v2247 = vadd.f32 0.0, %v2246
      %2248 = vmatprep.mubr.f32.mxu0 0.0
      %2249 = vmatmul.mubr.f32.gmra.mrb[0].mxu0 %v2167
      %v2250 = vpop.f32.mrb[0].mxu0
      %v2251 = vadd.f32 0.0, %v2250
      %v2252 = vpop.f32.mrb[0].mxu0
      %v2253 = vadd.f32 0.0, %v2252
      %2254 = vmatprep.mubr.f32.mxu0 0.0
      %2255 = vmatmul.mubr.f32.gmra.mrb[0].mxu0 %v2170
      %v2256 = vpop.f32.mrb[0].mxu0
      %v2257 = vadd.f32 0.0, %v2256
      %v2258 = vpop.f32.mrb[0].mxu0
      %v2259 = vadd.f32 0.0, %v2258
      %2260 = vdwg.mxu0
      %2261 = vmatprep.subr.mxu0 0.0
      %2262 = vmatpush1.msra.mxu0 %v2176
      %2263 = vmatprep.subr.mxu0 0.0
      %2264 = vmatpush1.msra.mxu0 0.0
      %2265 = vmatprep.subr.mxu0 0.0
      %2266 = vmatpush1.msra.mxu0 0.0
      %2267 = vmatprep.subr.mxu0 0.0
      %2268 = vmatpush1.msra.mxu0 0.0
      %2269 = vmatprep.subr.mxu0 0.0
      %2270 = vmatpush1.msra.mxu0 0.0
      %2271 = vmatprep.subr.mxu0 0.0
      %2272 = vmatpush1.msra.mxu0 0.0
      %2273 = vmatprep.subr.mxu0 0.0
      %2274 = vmatpush1.msra.mxu0 0.0
      %2275 = vmatprep.subr.mxu0 0.0
      %2276 = vmatpush1.msra.mxu0 0.0
      %2277 = vmatprep.subr.mxu0 0.0
      %2278 = vmatpush1.msra.mxu0 0.0
      %2279 = vmatprep.subr.mxu0 0.0
      %2280 = vmatpush1.msra.mxu0 0.0
      %2281 = vmatprep.subr.mxu0 0.0
      %2282 = vmatpush1.msra.mxu0 0.0
      %2283 = vmatprep.subr.mxu0 0.0
      %2284 = vmatpush1.msra.mxu0 0.0
      %2285 = vmatprep.subr.mxu0 0.0
      %2286 = vmatpush1.msra.mxu0 0.0
      %2287 = vmatprep.subr.mxu0 0.0
      %2288 = vmatpush1.msra.mxu0 0.0
      %2289 = vmatprep.subr.mxu0 0.0
      %2290 = vmatpush1.msra.mxu0 0.0
      %2291 = vmatprep.subr.mxu0 0.0
      %2292 = vmatpush1.msra.mxu0 0.0
      %2293 = vmatprep.subr.mxu0 0.0
      %2294 = vmatpush1.msra.mxu0 0.0
      %2295 = vmatprep.subr.mxu0 0.0
      %2296 = vmatpush1.msra.mxu0 0.0
      %2297 = vmatprep.subr.mxu0 0.0
      %2298 = vmatpush1.msra.mxu0 0.0
      %2299 = vmatprep.subr.mxu0 0.0
      %2300 = vmatpush1.msra.mxu0 0.0
      %2301 = vmatprep.subr.mxu0 0.0
      %2302 = vmatpush1.msra.mxu0 0.0
      %2303 = vmatprep.subr.mxu0 0.0
      %2304 = vmatpush1.msra.mxu0 0.0
      %2305 = vmatprep.subr.mxu0 0.0
      %2306 = vmatpush1.msra.mxu0 0.0
      %2307 = vmatprep.subr.mxu0 0.0
      %2308 = vmatpush1.msra.mxu0 0.0
      %2309 = vmatprep.subr.mxu0 0.0
      %2310 = vmatpush1.msra.mxu0 0.0
      %2311 = vmatprep.subr.mxu0 0.0
      %2312 = vmatpush1.msra.mxu0 0.0
      %2313 = vmatprep.subr.mxu0 0.0
      %2314 = vmatpush1.msra.mxu0 0.0
      %2315 = vmatprep.subr.mxu0 0.0
      %2316 = vmatpush1.msra.mxu0 0.0
      %2317 = vmatprep.subr.mxu0 0.0
      %2318 = vmatpush1.msra.mxu0 0.0
      %2319 = vmatprep.subr.mxu0 0.0
      %2320 = vmatpush1.msra.mxu0 0.0
      %2321 = vmatprep.subr.mxu0 0.0
      %2322 = vmatpush1.msra.mxu0 0.0
      %2323 = vmatprep.subr.mxu0 0.0
      %2324 = vmatpush1.msra.mxu0 0.0
      %2325 = vmatprep.mubr.f32.mxu0 0.0
      %2326 = vmatmul.mubr.f32.gmra.mrb[0].mxu0 %v2164
      %v2327 = vpop.f32.mrb[0].mxu0
      %v2328 = vadd.f32 0.0, %v2327
      %v2329 = vpop.f32.mrb[0].mxu0
      %2330 = vmatprep.mubr.f32.mxu0 0.0
      %2331 = vmatmul.mubr.f32.gmra.mrb[0].mxu0 %v2167
      %v2332 = vpop.f32.mrb[0].mxu0
      %v2333 = vadd.f32 0.0, %v2332
      %v2334 = vpop.f32.mrb[0].mxu0
      %2335 = vmatprep.mubr.f32.mxu0 0.0
      %2336 = vmatmul.mubr.f32.gmra.mrb[0].mxu0 %v2170
      %v2337 = vpop.f32.mrb[0].mxu0
      %v2338 = vadd.f32 0.0, %v2337
      %v2339 = vpop.f32.mrb[0].mxu0
      %2340 = vdwg.mxu0
      %v2341 = vadd.f32 %v2141, %v2245
      %v2342 = vadd.f32 %v2142, %v2247
      %v2343 = vadd.f32 %v2143, %v2328
      %v2344 = vadd.f32 %v2144, %v2251
      %v2345 = vadd.f32 %v2145, %v2253
      %v2346 = vadd.f32 %v2146, %v2333
      %v2347 = vadd.f32 %v2147, %v2257
      %v2348 = vadd.f32 %v2148, %v2259
      %v2349 = vadd.f32 %v2149, %v2338
      %s2350 = scalar_lea.vmem %s1, 264
      %v2351 = vld [vmem:[%s2350] sm:$0xff]
      %v2352 = vld [vmem:[%s2350 + $0x8] sm:$0xff]
      %v2353 = vld [vmem:[%s2350 + $0x10] sm:$0xff]
      %2354 = vrot.lane.b32.xlu0 %v171, 102
      %v2355 = vpop.permute.xlu0 %2354
      %2356 = vrot.lane.b32.xlu0 %v182, 102
      %v2357 = vpop.permute.xlu0 %2356
      %2358 = vrot.lane.b32.xlu0 %v172, 102
      %v2359 = vpop.permute.xlu0 %2358
      %vm2360 = vcmask 834560
      %v2361 = vsel %vm2360, %v2355, %v2357
      %v2362 = vsel %vm2360, %v2357, %v2359
      %v2364 = vsel %vm192, %v2351, 0
      %v2367 = vsel %vm192, %v2352, 0
      %v2370 = vsel %vm192, %v2353, 0
      %v2372 = vsel %vm202, %v2361, 0
      %v2374 = vsel %vm202, %v2362, 0
      %v2376 = vsel %vm202, %v2359, 0
      %2378 = vmatprep.subr.mxu0 %v2374
      %2379 = vmatpush1.msra.mxu0 %v2372
      %2380 = vmatprep.subr.mxu0 0.0
      %2381 = vmatpush1.msra.mxu0 0.0
      %2382 = vmatprep.subr.mxu0 0.0
      %2383 = vmatpush1.msra.mxu0 0.0
      %2384 = vmatprep.subr.mxu0 0.0
      %2385 = vmatpush1.msra.mxu0 0.0
      %2386 = vmatprep.subr.mxu0 0.0
      %2387 = vmatpush1.msra.mxu0 0.0
      %2388 = vmatprep.subr.mxu0 0.0
      %2389 = vmatpush1.msra.mxu0 0.0
      %2390 = vmatprep.subr.mxu0 0.0
      %2391 = vmatpush1.msra.mxu0 0.0
      %2392 = vmatprep.subr.mxu0 0.0
      %2393 = vmatpush1.msra.mxu0 0.0
      %2394 = vmatprep.subr.mxu0 0.0
      %2395 = vmatpush1.msra.mxu0 0.0
      %2396 = vmatprep.subr.mxu0 0.0
      %2397 = vmatpush1.msra.mxu0 0.0
      %2398 = vmatprep.subr.mxu0 0.0
      %2399 = vmatpush1.msra.mxu0 0.0
      %2400 = vmatprep.subr.mxu0 0.0
      %2401 = vmatpush1.msra.mxu0 0.0
      %2402 = vmatprep.subr.mxu0 0.0
      %2403 = vmatpush1.msra.mxu0 0.0
      %2404 = vmatprep.subr.mxu0 0.0
      %2405 = vmatpush1.msra.mxu0 0.0
      %2406 = vmatprep.subr.mxu0 0.0
      %2407 = vmatpush1.msra.mxu0 0.0
      %2408 = vmatprep.subr.mxu0 0.0
      %2409 = vmatpush1.msra.mxu0 0.0
      %2410 = vmatprep.subr.mxu0 0.0
      %2411 = vmatpush1.msra.mxu0 0.0
      %2412 = vmatprep.subr.mxu0 0.0
      %2413 = vmatpush1.msra.mxu0 0.0
      %2414 = vmatprep.subr.mxu0 0.0
      %2415 = vmatpush1.msra.mxu0 0.0
      %2416 = vmatprep.subr.mxu0 0.0
      %2417 = vmatpush1.msra.mxu0 0.0
      %2418 = vmatprep.subr.mxu0 0.0
      %2419 = vmatpush1.msra.mxu0 0.0
      %2420 = vmatprep.subr.mxu0 0.0
      %2421 = vmatpush1.msra.mxu0 0.0
      %2422 = vmatprep.subr.mxu0 0.0
      %2423 = vmatpush1.msra.mxu0 0.0
      %2424 = vmatprep.subr.mxu0 0.0
      %2425 = vmatpush1.msra.mxu0 0.0
      %2426 = vmatprep.subr.mxu0 0.0
      %2427 = vmatpush1.msra.mxu0 0.0
      %2428 = vmatprep.subr.mxu0 0.0
      %2429 = vmatpush1.msra.mxu0 0.0
      %2430 = vmatprep.subr.mxu0 0.0
      %2431 = vmatpush1.msra.mxu0 0.0
      %2432 = vmatprep.subr.mxu0 0.0
      %2433 = vmatpush1.msra.mxu0 0.0
      %2434 = vmatprep.subr.mxu0 0.0
      %2435 = vmatpush1.msra.mxu0 0.0
      %2436 = vmatprep.subr.mxu0 0.0
      %2437 = vmatpush1.msra.mxu0 0.0
      %2438 = vmatprep.subr.mxu0 0.0
      %2439 = vmatpush1.msra.mxu0 0.0
      %2440 = vmatprep.subr.mxu0 0.0
      %2441 = vmatpush1.msra.mxu0 0.0
      %2442 = vmatprep.mubr.f32.mxu0 0.0
      %2443 = vmatmul.mubr.f32.gmra.mrb[0].mxu0 %v2364
      %v2444 = vpop.f32.mrb[0].mxu0
      %v2445 = vadd.f32 0.0, %v2444
      %v2446 = vpop.f32.mrb[0].mxu0
      %v2447 = vadd.f32 0.0, %v2446
      %2448 = vmatprep.mubr.f32.mxu0 0.0
      %2449 = vmatmul.mubr.f32.gmra.mrb[0].mxu0 %v2367
      %v2450 = vpop.f32.mrb[0].mxu0
      %v2451 = vadd.f32 0.0, %v2450
      %v2452 = vpop.f32.mrb[0].mxu0
      %v2453 = vadd.f32 0.0, %v2452
      %2454 = vmatprep.mubr.f32.mxu0 0.0
      %2455 = vmatmul.mubr.f32.gmra.mrb[0].mxu0 %v2370
      %v2456 = vpop.f32.mrb[0].mxu0
      %v2457 = vadd.f32 0.0, %v2456
      %v2458 = vpop.f32.mrb[0].mxu0
      %v2459 = vadd.f32 0.0, %v2458
      %2460 = vdwg.mxu0
      %2461 = vmatprep.subr.mxu0 0.0
      %2462 = vmatpush1.msra.mxu0 %v2376
      %2463 = vmatprep.subr.mxu0 0.0
      %2464 = vmatpush1.msra.mxu0 0.0
      %2465 = vmatprep.subr.mxu0 0.0
      %2466 = vmatpush1.msra.mxu0 0.0
      %2467 = vmatprep.subr.mxu0 0.0
      %2468 = vmatpush1.msra.mxu0 0.0
      %2469 = vmatprep.subr.mxu0 0.0
      %2470 = vmatpush1.msra.mxu0 0.0
      %2471 = vmatprep.subr.mxu0 0.0
      %2472 = vmatpush1.msra.mxu0 0.0
      %2473 = vmatprep.subr.mxu0 0.0
      %2474 = vmatpush1.msra.mxu0 0.0
      %2475 = vmatprep.subr.mxu0 0.0
      %2476 = vmatpush1.msra.mxu0 0.0
      %2477 = vmatprep.subr.mxu0 0.0
      %2478 = vmatpush1.msra.mxu0 0.0
      %2479 = vmatprep.subr.mxu0 0.0
      %2480 = vmatpush1.msra.mxu0 0.0
      %2481 = vmatprep.subr.mxu0 0.0
      %2482 = vmatpush1.msra.mxu0 0.0
      %2483 = vmatprep.subr.mxu0 0.0
      %2484 = vmatpush1.msra.mxu0 0.0
      %2485 = vmatprep.subr.mxu0 0.0
      %2486 = vmatpush1.msra.mxu0 0.0
      %2487 = vmatprep.subr.mxu0 0.0
      %2488 = vmatpush1.msra.mxu0 0.0
      %2489 = vmatprep.subr.mxu0 0.0
      %2490 = vmatpush1.msra.mxu0 0.0
      %2491 = vmatprep.subr.mxu0 0.0
      %2492 = vmatpush1.msra.mxu0 0.0
      %2493 = vmatprep.subr.mxu0 0.0
      %2494 = vmatpush1.msra.mxu0 0.0
      %2495 = vmatprep.subr.mxu0 0.0
      %2496 = vmatpush1.msra.mxu0 0.0
      %2497 = vmatprep.subr.mxu0 0.0
      %2498 = vmatpush1.msra.mxu0 0.0
      %2499 = vmatprep.subr.mxu0 0.0
      %2500 = vmatpush1.msra.mxu0 0.0
      %2501 = vmatprep.subr.mxu0 0.0
      %2502 = vmatpush1.msra.mxu0 0.0
      %2503 = vmatprep.subr.mxu0 0.0
      %2504 = vmatpush1.msra.mxu0 0.0
      %2505 = vmatprep.subr.mxu0 0.0
      %2506 = vmatpush1.msra.mxu0 0.0
      %2507 = vmatprep.subr.mxu0 0.0
      %2508 = vmatpush1.msra.mxu0 0.0
      %2509 = vmatprep.subr.mxu0 0.0
      %2510 = vmatpush1.msra.mxu0 0.0
      %2511 = vmatprep.subr.mxu0 0.0
      %2512 = vmatpush1.msra.mxu0 0.0
      %2513 = vmatprep.subr.mxu0 0.0
      %2514 = vmatpush1.msra.mxu0 0.0
      %2515 = vmatprep.subr.mxu0 0.0
      %2516 = vmatpush1.msra.mxu0 0.0
      %2517 = vmatprep.subr.mxu0 0.0
      %2518 = vmatpush1.msra.mxu0 0.0
      %2519 = vmatprep.subr.mxu0 0.0
      %2520 = vmatpush1.msra.mxu0 0.0
      %2521 = vmatprep.subr.mxu0 0.0
      %2522 = vmatpush1.msra.mxu0 0.0
      %2523 = vmatprep.subr.mxu0 0.0
      %2524 = vmatpush1.msra.mxu0 0.0
      %2525 = vmatprep.mubr.f32.mxu0 0.0
      %2526 = vmatmul.mubr.f32.gmra.mrb[0].mxu0 %v2364
      %v2527 = vpop.f32.mrb[0].mxu0
      %v2528 = vadd.f32 0.0, %v2527
      %v2529 = vpop.f32.mrb[0].mxu0
      %2530 = vmatprep.mubr.f32.mxu0 0.0
      %2531 = vmatmul.mubr.f32.gmra.mrb[0].mxu0 %v2367
      %v2532 = vpop.f32.mrb[0].mxu0
      %v2533 = vadd.f32 0.0, %v2532
      %v2534 = vpop.f32.mrb[0].mxu0
      %2535 = vmatprep.mubr.f32.mxu0 0.0
      %2536 = vmatmul.mubr.f32.gmra.mrb[0].mxu0 %v2370
      %v2537 = vpop.f32.mrb[0].mxu0
      %v2538 = vadd.f32 0.0, %v2537
      %v2539 = vpop.f32.mrb[0].mxu0
      %2540 = vdwg.mxu0
      %v2541 = vadd.f32 %v2341, %v2445
      %v2542 = vadd.f32 %v2342, %v2447
      %v2543 = vadd.f32 %v2343, %v2528
      %v2544 = vadd.f32 %v2344, %v2451
      %v2545 = vadd.f32 %v2345, %v2453
      %v2546 = vadd.f32 %v2346, %v2533
      %v2547 = vadd.f32 %v2347, %v2457
      %v2548 = vadd.f32 %v2348, %v2459
      %v2549 = vadd.f32 %v2349, %v2538
      %s2550 = scalar_lea.vmem %s1, 288
      %v2551 = vld [vmem:[%s2550] sm:$0xff]
      %v2552 = vld [vmem:[%s2550 + $0x8] sm:$0xff]
      %v2553 = vld [vmem:[%s2550 + $0x10] sm:$0xff]
      %2554 = vrot.lane.b32.xlu0 %v171, 101
      %v2555 = vpop.permute.xlu0 %2554
      %2556 = vrot.lane.b32.xlu0 %v182, 101
      %v2557 = vpop.permute.xlu0 %2556
      %2558 = vrot.lane.b32.xlu0 %v172, 101
      %v2559 = vpop.permute.xlu0 %2558
      %vm2560 = vcmask 826368
      %v2561 = vsel %vm2560, %v2555, %v2557
      %v2562 = vsel %vm2560, %v2557, %v2559
      %v2564 = vsel %vm192, %v2551, 0
      %v2567 = vsel %vm192, %v2552, 0
      %v2570 = vsel %vm192, %v2553, 0
      %v2572 = vsel %vm202, %v2561, 0
      %v2574 = vsel %vm202, %v2562, 0
      %v2576 = vsel %vm202, %v2559, 0
      %2578 = vmatprep.subr.mxu0 %v2574
      %2579 = vmatpush1.msra.mxu0 %v2572
      %2580 = vmatprep.subr.mxu0 0.0
      %2581 = vmatpush1.msra.mxu0 0.0
      %2582 = vmatprep.subr.mxu0 0.0
      %2583 = vmatpush1.msra.mxu0 0.0
      %2584 = vmatprep.subr.mxu0 0.0
      %2585 = vmatpush1.msra.mxu0 0.0
      %2586 = vmatprep.subr.mxu0 0.0
      %2587 = vmatpush1.msra.mxu0 0.0
      %2588 = vmatprep.subr.mxu0 0.0
      %2589 = vmatpush1.msra.mxu0 0.0
      %2590 = vmatprep.subr.mxu0 0.0
      %2591 = vmatpush1.msra.mxu0 0.0
      %2592 = vmatprep.subr.mxu0 0.0
      %2593 = vmatpush1.msra.mxu0 0.0
      %2594 = vmatprep.subr.mxu0 0.0
      %2595 = vmatpush1.msra.mxu0 0.0
      %2596 = vmatprep.subr.mxu0 0.0
      %2597 = vmatpush1.msra.mxu0 0.0
      %2598 = vmatprep.subr.mxu0 0.0
      %2599 = vmatpush1.msra.mxu0 0.0
      %2600 = vmatprep.subr.mxu0 0.0
      %2601 = vmatpush1.msra.mxu0 0.0
      %2602 = vmatprep.subr.mxu0 0.0
      %2603 = vmatpush1.msra.mxu0 0.0
      %2604 = vmatprep.subr.mxu0 0.0
      %2605 = vmatpush1.msra.mxu0 0.0
      %2606 = vmatprep.subr.mxu0 0.0
      %2607 = vmatpush1.msra.mxu0 0.0
      %2608 = vmatprep.subr.mxu0 0.0
      %2609 = vmatpush1.msra.mxu0 0.0
      %2610 = vmatprep.subr.mxu0 0.0
      %2611 = vmatpush1.msra.mxu0 0.0
      %2612 = vmatprep.subr.mxu0 0.0
      %2613 = vmatpush1.msra.mxu0 0.0
      %2614 = vmatprep.subr.mxu0 0.0
      %2615 = vmatpush1.msra.mxu0 0.0
      %2616 = vmatprep.subr.mxu0 0.0
      %2617 = vmatpush1.msra.mxu0 0.0
      %2618 = vmatprep.subr.mxu0 0.0
      %2619 = vmatpush1.msra.mxu0 0.0
      %2620 = vmatprep.subr.mxu0 0.0
      %2621 = vmatpush1.msra.mxu0 0.0
      %2622 = vmatprep.subr.mxu0 0.0
      %2623 = vmatpush1.msra.mxu0 0.0
      %2624 = vmatprep.subr.mxu0 0.0
      %2625 = vmatpush1.msra.mxu0 0.0
      %2626 = vmatprep.subr.mxu0 0.0
      %2627 = vmatpush1.msra.mxu0 0.0
      %2628 = vmatprep.subr.mxu0 0.0
      %2629 = vmatpush1.msra.mxu0 0.0
      %2630 = vmatprep.subr.mxu0 0.0
      %2631 = vmatpush1.msra.mxu0 0.0
      %2632 = vmatprep.subr.mxu0 0.0
      %2633 = vmatpush1.msra.mxu0 0.0
      %2634 = vmatprep.subr.mxu0 0.0
      %2635 = vmatpush1.msra.mxu0 0.0
      %2636 = vmatprep.subr.mxu0 0.0
      %2637 = vmatpush1.msra.mxu0 0.0
      %2638 = vmatprep.subr.mxu0 0.0
      %2639 = vmatpush1.msra.mxu0 0.0
      %2640 = vmatprep.subr.mxu0 0.0
      %2641 = vmatpush1.msra.mxu0 0.0
      %2642 = vmatprep.mubr.f32.mxu0 0.0
      %2643 = vmatmul.mubr.f32.gmra.mrb[0].mxu0 %v2564
      %v2644 = vpop.f32.mrb[0].mxu0
      %v2645 = vadd.f32 0.0, %v2644
      %v2646 = vpop.f32.mrb[0].mxu0
      %v2647 = vadd.f32 0.0, %v2646
      %2648 = vmatprep.mubr.f32.mxu0 0.0
      %2649 = vmatmul.mubr.f32.gmra.mrb[0].mxu0 %v2567
      %v2650 = vpop.f32.mrb[0].mxu0
      %v2651 = vadd.f32 0.0, %v2650
      %v2652 = vpop.f32.mrb[0].mxu0
      %v2653 = vadd.f32 0.0, %v2652
      %2654 = vmatprep.mubr.f32.mxu0 0.0
      %2655 = vmatmul.mubr.f32.gmra.mrb[0].mxu0 %v2570
      %v2656 = vpop.f32.mrb[0].mxu0
      %v2657 = vadd.f32 0.0, %v2656
      %v2658 = vpop.f32.mrb[0].mxu0
      %v2659 = vadd.f32 0.0, %v2658
      %2660 = vdwg.mxu0
      %2661 = vmatprep.subr.mxu0 0.0
      %2662 = vmatpush1.msra.mxu0 %v2576
      %2663 = vmatprep.subr.mxu0 0.0
      %2664 = vmatpush1.msra.mxu0 0.0
      %2665 = vmatprep.subr.mxu0 0.0
      %2666 = vmatpush1.msra.mxu0 0.0
      %2667 = vmatprep.subr.mxu0 0.0
      %2668 = vmatpush1.msra.mxu0 0.0
      %2669 = vmatprep.subr.mxu0 0.0
      %2670 = vmatpush1.msra.mxu0 0.0
      %2671 = vmatprep.subr.mxu0 0.0
      %2672 = vmatpush1.msra.mxu0 0.0
      %2673 = vmatprep.subr.mxu0 0.0
      %2674 = vmatpush1.msra.mxu0 0.0
      %2675 = vmatprep.subr.mxu0 0.0
      %2676 = vmatpush1.msra.mxu0 0.0
      %2677 = vmatprep.subr.mxu0 0.0
      %2678 = vmatpush1.msra.mxu0 0.0
      %2679 = vmatprep.subr.mxu0 0.0
      %2680 = vmatpush1.msra.mxu0 0.0
      %2681 = vmatprep.subr.mxu0 0.0
      %2682 = vmatpush1.msra.mxu0 0.0
      %2683 = vmatprep.subr.mxu0 0.0
      %2684 = vmatpush1.msra.mxu0 0.0
      %2685 = vmatprep.subr.mxu0 0.0
      %2686 = vmatpush1.msra.mxu0 0.0
      %2687 = vmatprep.subr.mxu0 0.0
      %2688 = vmatpush1.msra.mxu0 0.0
      %2689 = vmatprep.subr.mxu0 0.0
      %2690 = vmatpush1.msra.mxu0 0.0
      %2691 = vmatprep.subr.mxu0 0.0
      %2692 = vmatpush1.msra.mxu0 0.0
      %2693 = vmatprep.subr.mxu0 0.0
      %2694 = vmatpush1.msra.mxu0 0.0
      %2695 = vmatprep.subr.mxu0 0.0
      %2696 = vmatpush1.msra.mxu0 0.0
      %2697 = vmatprep.subr.mxu0 0.0
      %2698 = vmatpush1.msra.mxu0 0.0
      %2699 = vmatprep.subr.mxu0 0.0
      %2700 = vmatpush1.msra.mxu0 0.0
      %2701 = vmatprep.subr.mxu0 0.0
      %2702 = vmatpush1.msra.mxu0 0.0
      %2703 = vmatprep.subr.mxu0 0.0
      %2704 = vmatpush1.msra.mxu0 0.0
      %2705 = vmatprep.subr.mxu0 0.0
      %2706 = vmatpush1.msra.mxu0 0.0
      %2707 = vmatprep.subr.mxu0 0.0
      %2708 = vmatpush1.msra.mxu0 0.0
      %2709 = vmatprep.subr.mxu0 0.0
      %2710 = vmatpush1.msra.mxu0 0.0
      %2711 = vmatprep.subr.mxu0 0.0
      %2712 = vmatpush1.msra.mxu0 0.0
      %2713 = vmatprep.subr.mxu0 0.0
      %2714 = vmatpush1.msra.mxu0 0.0
      %2715 = vmatprep.subr.mxu0 0.0
      %2716 = vmatpush1.msra.mxu0 0.0
      %2717 = vmatprep.subr.mxu0 0.0
      %2718 = vmatpush1.msra.mxu0 0.0
      %2719 = vmatprep.subr.mxu0 0.0
      %2720 = vmatpush1.msra.mxu0 0.0
      %2721 = vmatprep.subr.mxu0 0.0
      %2722 = vmatpush1.msra.mxu0 0.0
      %2723 = vmatprep.subr.mxu0 0.0
      %2724 = vmatpush1.msra.mxu0 0.0
      %2725 = vmatprep.mubr.f32.mxu0 0.0
      %2726 = vmatmul.mubr.f32.gmra.mrb[0].mxu0 %v2564
      %v2727 = vpop.f32.mrb[0].mxu0
      %v2728 = vadd.f32 0.0, %v2727
      %v2729 = vpop.f32.mrb[0].mxu0
      %2730 = vmatprep.mubr.f32.mxu0 0.0
      %2731 = vmatmul.mubr.f32.gmra.mrb[0].mxu0 %v2567
      %v2732 = vpop.f32.mrb[0].mxu0
      %v2733 = vadd.f32 0.0, %v2732
      %v2734 = vpop.f32.mrb[0].mxu0
      %2735 = vmatprep.mubr.f32.mxu0 0.0
      %2736 = vmatmul.mubr.f32.gmra.mrb[0].mxu0 %v2570
      %v2737 = vpop.f32.mrb[0].mxu0
      %v2738 = vadd.f32 0.0, %v2737
      %v2739 = vpop.f32.mrb[0].mxu0
      %2740 = vdwg.mxu0
      %v2741 = vadd.f32 %v2541, %v2645
      %v2742 = vadd.f32 %v2542, %v2647
      %v2743 = vadd.f32 %v2543, %v2728
      %v2744 = vadd.f32 %v2544, %v2651
      %v2745 = vadd.f32 %v2545, %v2653
      %v2746 = vadd.f32 %v2546, %v2733
      %v2747 = vadd.f32 %v2547, %v2657
      %v2748 = vadd.f32 %v2548, %v2659
      %v2749 = vadd.f32 %v2549, %v2738
      %s2750 = scalar_lea.vmem %s1, 312
      %v2751 = vld [vmem:[%s2750] sm:$0xff]
      %v2752 = vld [vmem:[%s2750 + $0x8] sm:$0xff]
      %v2753 = vld [vmem:[%s2750 + $0x10] sm:$0xff]
      %2754 = vrot.lane.b32.xlu0 %v171, 100
      %v2755 = vpop.permute.xlu0 %2754
      %2756 = vrot.lane.b32.xlu0 %v182, 100
      %v2757 = vpop.permute.xlu0 %2756
      %2758 = vrot.lane.b32.xlu0 %v172, 100
      %v2759 = vpop.permute.xlu0 %2758
      %vm2760 = vcmask 818176
      %v2761 = vsel %vm2760, %v2755, %v2757
      %v2762 = vsel %vm2760, %v2757, %v2759
      %v2764 = vsel %vm192, %v2751, 0
      %v2767 = vsel %vm192, %v2752, 0
      %v2770 = vsel %vm192, %v2753, 0
      %v2772 = vsel %vm202, %v2761, 0
      %v2774 = vsel %vm202, %v2762, 0
      %v2776 = vsel %vm202, %v2759, 0
      %2778 = vmatprep.subr.mxu0 %v2774
      %2779 = vmatpush1.msra.mxu0 %v2772
      %2780 = vmatprep.subr.mxu0 0.0
      %2781 = vmatpush1.msra.mxu0 0.0
      %2782 = vmatprep.subr.mxu0 0.0
      %2783 = vmatpush1.msra.mxu0 0.0
      %2784 = vmatprep.subr.mxu0 0.0
      %2785 = vmatpush1.msra.mxu0 0.0
      %2786 = vmatprep.subr.mxu0 0.0
      %2787 = vmatpush1.msra.mxu0 0.0
      %2788 = vmatprep.subr.mxu0 0.0
      %2789 = vmatpush1.msra.mxu0 0.0
      %2790 = vmatprep.subr.mxu0 0.0
      %2791 = vmatpush1.msra.mxu0 0.0
      %2792 = vmatprep.subr.mxu0 0.0
      %2793 = vmatpush1.msra.mxu0 0.0
      %2794 = vmatprep.subr.mxu0 0.0
      %2795 = vmatpush1.msra.mxu0 0.0
      %2796 = vmatprep.subr.mxu0 0.0
      %2797 = vmatpush1.msra.mxu0 0.0
      %2798 = vmatprep.subr.mxu0 0.0
      %2799 = vmatpush1.msra.mxu0 0.0
      %2800 = vmatprep.subr.mxu0 0.0
      %2801 = vmatpush1.msra.mxu0 0.0
      %2802 = vmatprep.subr.mxu0 0.0
      %2803 = vmatpush1.msra.mxu0 0.0
      %2804 = vmatprep.subr.mxu0 0.0
      %2805 = vmatpush1.msra.mxu0 0.0
      %2806 = vmatprep.subr.mxu0 0.0
      %2807 = vmatpush1.msra.mxu0 0.0
      %2808 = vmatprep.subr.mxu0 0.0
      %2809 = vmatpush1.msra.mxu0 0.0
      %2810 = vmatprep.subr.mxu0 0.0
      %2811 = vmatpush1.msra.mxu0 0.0
      %2812 = vmatprep.subr.mxu0 0.0
      %2813 = vmatpush1.msra.mxu0 0.0
      %2814 = vmatprep.subr.mxu0 0.0
      %2815 = vmatpush1.msra.mxu0 0.0
      %2816 = vmatprep.subr.mxu0 0.0
      %2817 = vmatpush1.msra.mxu0 0.0
      %2818 = vmatprep.subr.mxu0 0.0
      %2819 = vmatpush1.msra.mxu0 0.0
      %2820 = vmatprep.subr.mxu0 0.0
      %2821 = vmatpush1.msra.mxu0 0.0
      %2822 = vmatprep.subr.mxu0 0.0
      %2823 = vmatpush1.msra.mxu0 0.0
      %2824 = vmatprep.subr.mxu0 0.0
      %2825 = vmatpush1.msra.mxu0 0.0
      %2826 = vmatprep.subr.mxu0 0.0
      %2827 = vmatpush1.msra.mxu0 0.0
      %2828 = vmatprep.subr.mxu0 0.0
      %2829 = vmatpush1.msra.mxu0 0.0
      %2830 = vmatprep.subr.mxu0 0.0
      %2831 = vmatpush1.msra.mxu0 0.0
      %2832 = vmatprep.subr.mxu0 0.0
      %2833 = vmatpush1.msra.mxu0 0.0
      %2834 = vmatprep.subr.mxu0 0.0
      %2835 = vmatpush1.msra.mxu0 0.0
      %2836 = vmatprep.subr.mxu0 0.0
      %2837 = vmatpush1.msra.mxu0 0.0
      %2838 = vmatprep.subr.mxu0 0.0
      %2839 = vmatpush1.msra.mxu0 0.0
      %2840 = vmatprep.subr.mxu0 0.0
      %2841 = vmatpush1.msra.mxu0 0.0
      %2842 = vmatprep.mubr.f32.mxu0 0.0
      %2843 = vmatmul.mubr.f32.gmra.mrb[0].mxu0 %v2764
      %v2844 = vpop.f32.mrb[0].mxu0
      %v2845 = vadd.f32 0.0, %v2844
      %v2846 = vpop.f32.mrb[0].mxu0
      %v2847 = vadd.f32 0.0, %v2846
      %2848 = vmatprep.mubr.f32.mxu0 0.0
      %2849 = vmatmul.mubr.f32.gmra.mrb[0].mxu0 %v2767
      %v2850 = vpop.f32.mrb[0].mxu0
      %v2851 = vadd.f32 0.0, %v2850
      %v2852 = vpop.f32.mrb[0].mxu0
      %v2853 = vadd.f32 0.0, %v2852
      %2854 = vmatprep.mubr.f32.mxu0 0.0
      %2855 = vmatmul.mubr.f32.gmra.mrb[0].mxu0 %v2770
      %v2856 = vpop.f32.mrb[0].mxu0
      %v2857 = vadd.f32 0.0, %v2856
      %v2858 = vpop.f32.mrb[0].mxu0
      %v2859 = vadd.f32 0.0, %v2858
      %2860 = vdwg.mxu0
      %2861 = vmatprep.subr.mxu0 0.0
      %2862 = vmatpush1.msra.mxu0 %v2776
      %2863 = vmatprep.subr.mxu0 0.0
      %2864 = vmatpush1.msra.mxu0 0.0
      %2865 = vmatprep.subr.mxu0 0.0
      %2866 = vmatpush1.msra.mxu0 0.0
      %2867 = vmatprep.subr.mxu0 0.0
      %2868 = vmatpush1.msra.mxu0 0.0
      %2869 = vmatprep.subr.mxu0 0.0
      %2870 = vmatpush1.msra.mxu0 0.0
      %2871 = vmatprep.subr.mxu0 0.0
      %2872 = vmatpush1.msra.mxu0 0.0
      %2873 = vmatprep.subr.mxu0 0.0
      %2874 = vmatpush1.msra.mxu0 0.0
      %2875 = vmatprep.subr.mxu0 0.0
      %2876 = vmatpush1.msra.mxu0 0.0
      %2877 = vmatprep.subr.mxu0 0.0
      %2878 = vmatpush1.msra.mxu0 0.0
      %2879 = vmatprep.subr.mxu0 0.0
      %2880 = vmatpush1.msra.mxu0 0.0
      %2881 = vmatprep.subr.mxu0 0.0
      %2882 = vmatpush1.msra.mxu0 0.0
      %2883 = vmatprep.subr.mxu0 0.0
      %2884 = vmatpush1.msra.mxu0 0.0
      %2885 = vmatprep.subr.mxu0 0.0
      %2886 = vmatpush1.msra.mxu0 0.0
      %2887 = vmatprep.subr.mxu0 0.0
      %2888 = vmatpush1.msra.mxu0 0.0
      %2889 = vmatprep.subr.mxu0 0.0
      %2890 = vmatpush1.msra.mxu0 0.0
      %2891 = vmatprep.subr.mxu0 0.0
      %2892 = vmatpush1.msra.mxu0 0.0
      %2893 = vmatprep.subr.mxu0 0.0
      %2894 = vmatpush1.msra.mxu0 0.0
      %2895 = vmatprep.subr.mxu0 0.0
      %2896 = vmatpush1.msra.mxu0 0.0
      %2897 = vmatprep.subr.mxu0 0.0
      %2898 = vmatpush1.msra.mxu0 0.0
      %2899 = vmatprep.subr.mxu0 0.0
      %2900 = vmatpush1.msra.mxu0 0.0
      %2901 = vmatprep.subr.mxu0 0.0
      %2902 = vmatpush1.msra.mxu0 0.0
      %2903 = vmatprep.subr.mxu0 0.0
      %2904 = vmatpush1.msra.mxu0 0.0
      %2905 = vmatprep.subr.mxu0 0.0
      %2906 = vmatpush1.msra.mxu0 0.0
      %2907 = vmatprep.subr.mxu0 0.0
      %2908 = vmatpush1.msra.mxu0 0.0
      %2909 = vmatprep.subr.mxu0 0.0
      %2910 = vmatpush1.msra.mxu0 0.0
      %2911 = vmatprep.subr.mxu0 0.0
      %2912 = vmatpush1.msra.mxu0 0.0
      %2913 = vmatprep.subr.mxu0 0.0
      %2914 = vmatpush1.msra.mxu0 0.0
      %2915 = vmatprep.subr.mxu0 0.0
      %2916 = vmatpush1.msra.mxu0 0.0
      %2917 = vmatprep.subr.mxu0 0.0
      %2918 = vmatpush1.msra.mxu0 0.0
      %2919 = vmatprep.subr.mxu0 0.0
      %2920 = vmatpush1.msra.mxu0 0.0
      %2921 = vmatprep.subr.mxu0 0.0
      %2922 = vmatpush1.msra.mxu0 0.0
      %2923 = vmatprep.subr.mxu0 0.0
      %2924 = vmatpush1.msra.mxu0 0.0
      %2925 = vmatprep.mubr.f32.mxu0 0.0
      %2926 = vmatmul.mubr.f32.gmra.mrb[0].mxu0 %v2764
      %v2927 = vpop.f32.mrb[0].mxu0
      %v2928 = vadd.f32 0.0, %v2927
      %v2929 = vpop.f32.mrb[0].mxu0
      %2930 = vmatprep.mubr.f32.mxu0 0.0
      %2931 = vmatmul.mubr.f32.gmra.mrb[0].mxu0 %v2767
      %v2932 = vpop.f32.mrb[0].mxu0
      %v2933 = vadd.f32 0.0, %v2932
      %v2934 = vpop.f32.mrb[0].mxu0
      %2935 = vmatprep.mubr.f32.mxu0 0.0
      %2936 = vmatmul.mubr.f32.gmra.mrb[0].mxu0 %v2770
      %v2937 = vpop.f32.mrb[0].mxu0
      %v2938 = vadd.f32 0.0, %v2937
      %v2939 = vpop.f32.mrb[0].mxu0
      %2940 = vdwg.mxu0
      %v2941 = vadd.f32 %v2741, %v2845
      %v2942 = vadd.f32 %v2742, %v2847
      %v2943 = vadd.f32 %v2743, %v2928
      %v2944 = vadd.f32 %v2744, %v2851
      %v2945 = vadd.f32 %v2745, %v2853
      %v2946 = vadd.f32 %v2746, %v2933
      %v2947 = vadd.f32 %v2747, %v2857
      %v2948 = vadd.f32 %v2748, %v2859
      %v2949 = vadd.f32 %v2749, %v2938
      %s2950 = scalar_lea.vmem %s1, 336
      %v2951 = vld [vmem:[%s2950] sm:$0xff]
      %v2952 = vld [vmem:[%s2950 + $0x8] sm:$0xff]
      %v2953 = vld [vmem:[%s2950 + $0x10] sm:$0xff]
      %v2954 = vcombine.high %v172, %v172
      %2955 = vrot.lane.b32.xlu0 %v171, 84
      %v2956 = vpop.permute.xlu0 %2955
      %2957 = vrot.lane.b32.xlu0 %v182, 84
      %v2958 = vpop.permute.xlu0 %2957
      %2959 = vrot.lane.b32.xlu0 %v172, 84
      %v2960 = vpop.permute.xlu0 %2959
      %2961 = vrot.lane.b32.xlu0 %v2954, 84
      %v2962 = vpop.permute.xlu0 %2961
      %vm2963 = vcmask 687104
      %v2964 = vsel %vm2963, %v2956, %v2958
      %v2965 = vsel %vm2963, %v2958, %v2960
      %v2966 = vsel %vm2963, %v2960, %v2962
      %v2968 = vsel %vm192, %v2951, 0
      %v2971 = vsel %vm192, %v2952, 0
      %v2974 = vsel %vm192, %v2953, 0
      %v2976 = vsel %vm202, %v2964, 0
      %v2978 = vsel %vm202, %v2965, 0
      %v2980 = vsel %vm202, %v2966, 0
      %2982 = vmatprep.subr.mxu0 %v2978
      %2983 = vmatpush1.msra.mxu0 %v2976
      %2984 = vmatprep.subr.mxu0 0.0
      %2985 = vmatpush1.msra.mxu0 0.0
      %2986 = vmatprep.subr.mxu0 0.0
      %2987 = vmatpush1.msra.mxu0 0.0
      %2988 = vmatprep.subr.mxu0 0.0
      %2989 = vmatpush1.msra.mxu0 0.0
      %2990 = vmatprep.subr.mxu0 0.0
      %2991 = vmatpush1.msra.mxu0 0.0
      %2992 = vmatprep.subr.mxu0 0.0
      %2993 = vmatpush1.msra.mxu0 0.0
      %2994 = vmatprep.subr.mxu0 0.0
      %2995 = vmatpush1.msra.mxu0 0.0
      %2996 = vmatprep.subr.mxu0 0.0
      %2997 = vmatpush1.msra.mxu0 0.0
      %2998 = vmatprep.subr.mxu0 0.0
      %2999 = vmatpush1.msra.mxu0 0.0
      %3000 = vmatprep.subr.mxu0 0.0
      %3001 = vmatpush1.msra.mxu0 0.0
      %3002 = vmatprep.subr.mxu0 0.0
      %3003 = vmatpush1.msra.mxu0 0.0
      %3004 = vmatprep.subr.mxu0 0.0
      %3005 = vmatpush1.msra.mxu0 0.0
      %3006 = vmatprep.subr.mxu0 0.0
      %3007 = vmatpush1.msra.mxu0 0.0
      %3008 = vmatprep.subr.mxu0 0.0
      %3009 = vmatpush1.msra.mxu0 0.0
      %3010 = vmatprep.subr.mxu0 0.0
      %3011 = vmatpush1.msra.mxu0 0.0
      %3012 = vmatprep.subr.mxu0 0.0
      %3013 = vmatpush1.msra.mxu0 0.0
      %3014 = vmatprep.subr.mxu0 0.0
      %3015 = vmatpush1.msra.mxu0 0.0
      %3016 = vmatprep.subr.mxu0 0.0
      %3017 = vmatpush1.msra.mxu0 0.0
      %3018 = vmatprep.subr.mxu0 0.0
      %3019 = vmatpush1.msra.mxu0 0.0
      %3020 = vmatprep.subr.mxu0 0.0
      %3021 = vmatpush1.msra.mxu0 0.0
      %3022 = vmatprep.subr.mxu0 0.0
      %3023 = vmatpush1.msra.mxu0 0.0
      %3024 = vmatprep.subr.mxu0 0.0
      %3025 = vmatpush1.msra.mxu0 0.0
      %3026 = vmatprep.subr.mxu0 0.0
      %3027 = vmatpush1.msra.mxu0 0.0
      %3028 = vmatprep.subr.mxu0 0.0
      %3029 = vmatpush1.msra.mxu0 0.0
      %3030 = vmatprep.subr.mxu0 0.0
      %3031 = vmatpush1.msra.mxu0 0.0
      %3032 = vmatprep.subr.mxu0 0.0
      %3033 = vmatpush1.msra.mxu0 0.0
      %3034 = vmatprep.subr.mxu0 0.0
      %3035 = vmatpush1.msra.mxu0 0.0
      %3036 = vmatprep.subr.mxu0 0.0
      %3037 = vmatpush1.msra.mxu0 0.0
      %3038 = vmatprep.subr.mxu0 0.0
      %3039 = vmatpush1.msra.mxu0 0.0
      %3040 = vmatprep.subr.mxu0 0.0
      %3041 = vmatpush1.msra.mxu0 0.0
      %3042 = vmatprep.subr.mxu0 0.0
      %3043 = vmatpush1.msra.mxu0 0.0
      %3044 = vmatprep.subr.mxu0 0.0
      %3045 = vmatpush1.msra.mxu0 0.0
      %3046 = vmatprep.mubr.f32.mxu0 0.0
      %3047 = vmatmul.mubr.f32.gmra.mrb[0].mxu0 %v2968
      %v3048 = vpop.f32.mrb[0].mxu0
      %v3049 = vadd.f32 0.0, %v3048
      %v3050 = vpop.f32.mrb[0].mxu0
      %v3051 = vadd.f32 0.0, %v3050
      %3052 = vmatprep.mubr.f32.mxu0 0.0
      %3053 = vmatmul.mubr.f32.gmra.mrb[0].mxu0 %v2971
      %v3054 = vpop.f32.mrb[0].mxu0
      %v3055 = vadd.f32 0.0, %v3054
      %v3056 = vpop.f32.mrb[0].mxu0
      %v3057 = vadd.f32 0.0, %v3056
      %3058 = vmatprep.mubr.f32.mxu0 0.0
      %3059 = vmatmul.mubr.f32.gmra.mrb[0].mxu0 %v2974
      %v3060 = vpop.f32.mrb[0].mxu0
      %v3061 = vadd.f32 0.0, %v3060
      %v3062 = vpop.f32.mrb[0].mxu0
      %v3063 = vadd.f32 0.0, %v3062
      %3064 = vdwg.mxu0
      %3065 = vmatprep.subr.mxu0 0.0
      %3066 = vmatpush1.msra.mxu0 %v2980
      %3067 = vmatprep.subr.mxu0 0.0
      %3068 = vmatpush1.msra.mxu0 0.0
      %3069 = vmatprep.subr.mxu0 0.0
      %3070 = vmatpush1.msra.mxu0 0.0
      %3071 = vmatprep.subr.mxu0 0.0
      %3072 = vmatpush1.msra.mxu0 0.0
      %3073 = vmatprep.subr.mxu0 0.0
      %3074 = vmatpush1.msra.mxu0 0.0
      %3075 = vmatprep.subr.mxu0 0.0
      %3076 = vmatpush1.msra.mxu0 0.0
      %3077 = vmatprep.subr.mxu0 0.0
      %3078 = vmatpush1.msra.mxu0 0.0
      %3079 = vmatprep.subr.mxu0 0.0
      %3080 = vmatpush1.msra.mxu0 0.0
      %3081 = vmatprep.subr.mxu0 0.0
      %3082 = vmatpush1.msra.mxu0 0.0
      %3083 = vmatprep.subr.mxu0 0.0
      %3084 = vmatpush1.msra.mxu0 0.0
      %3085 = vmatprep.subr.mxu0 0.0
      %3086 = vmatpush1.msra.mxu0 0.0
      %3087 = vmatprep.subr.mxu0 0.0
      %3088 = vmatpush1.msra.mxu0 0.0
      %3089 = vmatprep.subr.mxu0 0.0
      %3090 = vmatpush1.msra.mxu0 0.0
      %3091 = vmatprep.subr.mxu0 0.0
      %3092 = vmatpush1.msra.mxu0 0.0
      %3093 = vmatprep.subr.mxu0 0.0
      %3094 = vmatpush1.msra.mxu0 0.0
      %3095 = vmatprep.subr.mxu0 0.0
      %3096 = vmatpush1.msra.mxu0 0.0
      %3097 = vmatprep.subr.mxu0 0.0
      %3098 = vmatpush1.msra.mxu0 0.0
      %3099 = vmatprep.subr.mxu0 0.0
      %3100 = vmatpush1.msra.mxu0 0.0
      %3101 = vmatprep.subr.mxu0 0.0
      %3102 = vmatpush1.msra.mxu0 0.0
      %3103 = vmatprep.subr.mxu0 0.0
      %3104 = vmatpush1.msra.mxu0 0.0
      %3105 = vmatprep.subr.mxu0 0.0
      %3106 = vmatpush1.msra.mxu0 0.0
      %3107 = vmatprep.subr.mxu0 0.0
      %3108 = vmatpush1.msra.mxu0 0.0
      %3109 = vmatprep.subr.mxu0 0.0
      %3110 = vmatpush1.msra.mxu0 0.0
      %3111 = vmatprep.subr.mxu0 0.0
      %3112 = vmatpush1.msra.mxu0 0.0
      %3113 = vmatprep.subr.mxu0 0.0
      %3114 = vmatpush1.msra.mxu0 0.0
      %3115 = vmatprep.subr.mxu0 0.0
      %3116 = vmatpush1.msra.mxu0 0.0
      %3117 = vmatprep.subr.mxu0 0.0
      %3118 = vmatpush1.msra.mxu0 0.0
      %3119 = vmatprep.subr.mxu0 0.0
      %3120 = vmatpush1.msra.mxu0 0.0
      %3121 = vmatprep.subr.mxu0 0.0
      %3122 = vmatpush1.msra.mxu0 0.0
      %3123 = vmatprep.subr.mxu0 0.0
      %3124 = vmatpush1.msra.mxu0 0.0
      %3125 = vmatprep.subr.mxu0 0.0
      %3126 = vmatpush1.msra.mxu0 0.0
      %3127 = vmatprep.subr.mxu0 0.0
      %3128 = vmatpush1.msra.mxu0 0.0
      %3129 = vmatprep.mubr.f32.mxu0 0.0
      %3130 = vmatmul.mubr.f32.gmra.mrb[0].mxu0 %v2968
      %v3131 = vpop.f32.mrb[0].mxu0
      %v3132 = vadd.f32 0.0, %v3131
      %v3133 = vpop.f32.mrb[0].mxu0
      %3134 = vmatprep.mubr.f32.mxu0 0.0
      %3135 = vmatmul.mubr.f32.gmra.mrb[0].mxu0 %v2971
      %v3136 = vpop.f32.mrb[0].mxu0
      %v3137 = vadd.f32 0.0, %v3136
      %v3138 = vpop.f32.mrb[0].mxu0
      %3139 = vmatprep.mubr.f32.mxu0 0.0
      %3140 = vmatmul.mubr.f32.gmra.mrb[0].mxu0 %v2974
      %v3141 = vpop.f32.mrb[0].mxu0
      %v3142 = vadd.f32 0.0, %v3141
      %v3143 = vpop.f32.mrb[0].mxu0
      %3144 = vdwg.mxu0
      %v3145 = vadd.f32 %v2941, %v3049
      %v3146 = vadd.f32 %v2942, %v3051
      %v3147 = vadd.f32 %v2943, %v3132
      %v3148 = vadd.f32 %v2944, %v3055
      %v3149 = vadd.f32 %v2945, %v3057
      %v3150 = vadd.f32 %v2946, %v3137
      %v3151 = vadd.f32 %v2947, %v3061
      %v3152 = vadd.f32 %v2948, %v3063
      %v3153 = vadd.f32 %v2949, %v3142
      %s3154 = scalar_lea.vmem %s1, 360
      %v3155 = vld [vmem:[%s3154] sm:$0xff]
      %v3156 = vld [vmem:[%s3154 + $0x8] sm:$0xff]
      %v3157 = vld [vmem:[%s3154 + $0x10] sm:$0xff]
      %3158 = vrot.lane.b32.xlu0 %v171, 83
      %v3159 = vpop.permute.xlu0 %3158
      %3160 = vrot.lane.b32.xlu0 %v182, 83
      %v3161 = vpop.permute.xlu0 %3160
      %3162 = vrot.lane.b32.xlu0 %v172, 83
      %v3163 = vpop.permute.xlu0 %3162
      %3164 = vrot.lane.b32.xlu0 %v2954, 83
      %v3165 = vpop.permute.xlu0 %3164
      %vm3166 = vcmask 678912
      %v3167 = vsel %vm3166, %v3159, %v3161
      %v3168 = vsel %vm3166, %v3161, %v3163
      %v3169 = vsel %vm3166, %v3163, %v3165
      %v3171 = vsel %vm192, %v3155, 0
      %v3174 = vsel %vm192, %v3156, 0
      %v3177 = vsel %vm192, %v3157, 0
      %v3179 = vsel %vm202, %v3167, 0
      %v3181 = vsel %vm202, %v3168, 0
      %v3183 = vsel %vm202, %v3169, 0
      %3185 = vmatprep.subr.mxu0 %v3181
      %3186 = vmatpush1.msra.mxu0 %v3179
      %3187 = vmatprep.subr.mxu0 0.0
      %3188 = vmatpush1.msra.mxu0 0.0
      %3189 = vmatprep.subr.mxu0 0.0
      %3190 = vmatpush1.msra.mxu0 0.0
      %3191 = vmatprep.subr.mxu0 0.0
      %3192 = vmatpush1.msra.mxu0 0.0
      %3193 = vmatprep.subr.mxu0 0.0
      %3194 = vmatpush1.msra.mxu0 0.0
      %3195 = vmatprep.subr.mxu0 0.0
      %3196 = vmatpush1.msra.mxu0 0.0
      %3197 = vmatprep.subr.mxu0 0.0
      %3198 = vmatpush1.msra.mxu0 0.0
      %3199 = vmatprep.subr.mxu0 0.0
      %3200 = vmatpush1.msra.mxu0 0.0
      %3201 = vmatprep.subr.mxu0 0.0
      %3202 = vmatpush1.msra.mxu0 0.0
      %3203 = vmatprep.subr.mxu0 0.0
      %3204 = vmatpush1.msra.mxu0 0.0
      %3205 = vmatprep.subr.mxu0 0.0
      %3206 = vmatpush1.msra.mxu0 0.0
      %3207 = vmatprep.subr.mxu0 0.0
      %3208 = vmatpush1.msra.mxu0 0.0
      %3209 = vmatprep.subr.mxu0 0.0
      %3210 = vmatpush1.msra.mxu0 0.0
      %3211 = vmatprep.subr.mxu0 0.0
      %3212 = vmatpush1.msra.mxu0 0.0
      %3213 = vmatprep.subr.mxu0 0.0
      %3214 = vmatpush1.msra.mxu0 0.0
      %3215 = vmatprep.subr.mxu0 0.0
      %3216 = vmatpush1.msra.mxu0 0.0
      %3217 = vmatprep.subr.mxu0 0.0
      %3218 = vmatpush1.msra.mxu0 0.0
      %3219 = vmatprep.subr.mxu0 0.0
      %3220 = vmatpush1.msra.mxu0 0.0
      %3221 = vmatprep.subr.mxu0 0.0
      %3222 = vmatpush1.msra.mxu0 0.0
      %3223 = vmatprep.subr.mxu0 0.0
      %3224 = vmatpush1.msra.mxu0 0.0
      %3225 = vmatprep.subr.mxu0 0.0
      %3226 = vmatpush1.msra.mxu0 0.0
      %3227 = vmatprep.subr.mxu0 0.0
      %3228 = vmatpush1.msra.mxu0 0.0
      %3229 = vmatprep.subr.mxu0 0.0
      %3230 = vmatpush1.msra.mxu0 0.0
      %3231 = vmatprep.subr.mxu0 0.0
      %3232 = vmatpush1.msra.mxu0 0.0
      %3233 = vmatprep.subr.mxu0 0.0
      %3234 = vmatpush1.msra.mxu0 0.0
      %3235 = vmatprep.subr.mxu0 0.0
      %3236 = vmatpush1.msra.mxu0 0.0
      %3237 = vmatprep.subr.mxu0 0.0
      %3238 = vmatpush1.msra.mxu0 0.0
      %3239 = vmatprep.subr.mxu0 0.0
      %3240 = vmatpush1.msra.mxu0 0.0
      %3241 = vmatprep.subr.mxu0 0.0
      %3242 = vmatpush1.msra.mxu0 0.0
      %3243 = vmatprep.subr.mxu0 0.0
      %3244 = vmatpush1.msra.mxu0 0.0
      %3245 = vmatprep.subr.mxu0 0.0
      %3246 = vmatpush1.msra.mxu0 0.0
      %3247 = vmatprep.subr.mxu0 0.0
      %3248 = vmatpush1.msra.mxu0 0.0
      %3249 = vmatprep.mubr.f32.mxu0 0.0
      %3250 = vmatmul.mubr.f32.gmra.mrb[0].mxu0 %v3171
      %v3251 = vpop.f32.mrb[0].mxu0
      %v3252 = vadd.f32 0.0, %v3251
      %v3253 = vpop.f32.mrb[0].mxu0
      %v3254 = vadd.f32 0.0, %v3253
      %3255 = vmatprep.mubr.f32.mxu0 0.0
      %3256 = vmatmul.mubr.f32.gmra.mrb[0].mxu0 %v3174
      %v3257 = vpop.f32.mrb[0].mxu0
      %v3258 = vadd.f32 0.0, %v3257
      %v3259 = vpop.f32.mrb[0].mxu0
      %v3260 = vadd.f32 0.0, %v3259
      %3261 = vmatprep.mubr.f32.mxu0 0.0
      %3262 = vmatmul.mubr.f32.gmra.mrb[0].mxu0 %v3177
      %v3263 = vpop.f32.mrb[0].mxu0
      %v3264 = vadd.f32 0.0, %v3263
      %v3265 = vpop.f32.mrb[0].mxu0
      %v3266 = vadd.f32 0.0, %v3265
      %3267 = vdwg.mxu0
      %3268 = vmatprep.subr.mxu0 0.0
      %3269 = vmatpush1.msra.mxu0 %v3183
      %3270 = vmatprep.subr.mxu0 0.0
      %3271 = vmatpush1.msra.mxu0 0.0
      %3272 = vmatprep.subr.mxu0 0.0
      %3273 = vmatpush1.msra.mxu0 0.0
      %3274 = vmatprep.subr.mxu0 0.0
      %3275 = vmatpush1.msra.mxu0 0.0
      %3276 = vmatprep.subr.mxu0 0.0
      %3277 = vmatpush1.msra.mxu0 0.0
      %3278 = vmatprep.subr.mxu0 0.0
      %3279 = vmatpush1.msra.mxu0 0.0
      %3280 = vmatprep.subr.mxu0 0.0
      %3281 = vmatpush1.msra.mxu0 0.0
      %3282 = vmatprep.subr.mxu0 0.0
      %3283 = vmatpush1.msra.mxu0 0.0
      %3284 = vmatprep.subr.mxu0 0.0
      %3285 = vmatpush1.msra.mxu0 0.0
      %3286 = vmatprep.subr.mxu0 0.0
      %3287 = vmatpush1.msra.mxu0 0.0
      %3288 = vmatprep.subr.mxu0 0.0
      %3289 = vmatpush1.msra.mxu0 0.0
      %3290 = vmatprep.subr.mxu0 0.0
      %3291 = vmatpush1.msra.mxu0 0.0
      %3292 = vmatprep.subr.mxu0 0.0
      %3293 = vmatpush1.msra.mxu0 0.0
      %3294 = vmatprep.subr.mxu0 0.0
      %3295 = vmatpush1.msra.mxu0 0.0
      %3296 = vmatprep.subr.mxu0 0.0
      %3297 = vmatpush1.msra.mxu0 0.0
      %3298 = vmatprep.subr.mxu0 0.0
      %3299 = vmatpush1.msra.mxu0 0.0
      %3300 = vmatprep.subr.mxu0 0.0
      %3301 = vmatpush1.msra.mxu0 0.0
      %3302 = vmatprep.subr.mxu0 0.0
      %3303 = vmatpush1.msra.mxu0 0.0
      %3304 = vmatprep.subr.mxu0 0.0
      %3305 = vmatpush1.msra.mxu0 0.0
      %3306 = vmatprep.subr.mxu0 0.0
      %3307 = vmatpush1.msra.mxu0 0.0
      %3308 = vmatprep.subr.mxu0 0.0
      %3309 = vmatpush1.msra.mxu0 0.0
      %3310 = vmatprep.subr.mxu0 0.0
      %3311 = vmatpush1.msra.mxu0 0.0
      %3312 = vmatprep.subr.mxu0 0.0
      %3313 = vmatpush1.msra.mxu0 0.0
      %3314 = vmatprep.subr.mxu0 0.0
      %3315 = vmatpush1.msra.mxu0 0.0
      %3316 = vmatprep.subr.mxu0 0.0
      %3317 = vmatpush1.msra.mxu0 0.0
      %3318 = vmatprep.subr.mxu0 0.0
      %3319 = vmatpush1.msra.mxu0 0.0
      %3320 = vmatprep.subr.mxu0 0.0
      %3321 = vmatpush1.msra.mxu0 0.0
      %3322 = vmatprep.subr.mxu0 0.0
      %3323 = vmatpush1.msra.mxu0 0.0
      %3324 = vmatprep.subr.mxu0 0.0
      %3325 = vmatpush1.msra.mxu0 0.0
      %3326 = vmatprep.subr.mxu0 0.0
      %3327 = vmatpush1.msra.mxu0 0.0
      %3328 = vmatprep.subr.mxu0 0.0
      %3329 = vmatpush1.msra.mxu0 0.0
      %3330 = vmatprep.subr.mxu0 0.0
      %3331 = vmatpush1.msra.mxu0 0.0
      %3332 = vmatprep.mubr.f32.mxu0 0.0
      %3333 = vmatmul.mubr.f32.gmra.mrb[0].mxu0 %v3171
      %v3334 = vpop.f32.mrb[0].mxu0
      %v3335 = vadd.f32 0.0, %v3334
      %v3336 = vpop.f32.mrb[0].mxu0
      %3337 = vmatprep.mubr.f32.mxu0 0.0
      %3338 = vmatmul.mubr.f32.gmra.mrb[0].mxu0 %v3174
      %v3339 = vpop.f32.mrb[0].mxu0
      %v3340 = vadd.f32 0.0, %v3339
      %v3341 = vpop.f32.mrb[0].mxu0
      %3342 = vmatprep.mubr.f32.mxu0 0.0
      %3343 = vmatmul.mubr.f32.gmra.mrb[0].mxu0 %v3177
      %v3344 = vpop.f32.mrb[0].mxu0
      %v3345 = vadd.f32 0.0, %v3344
      %v3346 = vpop.f32.mrb[0].mxu0
      %3347 = vdwg.mxu0
      %v3348 = vadd.f32 %v3145, %v3252
      %v3349 = vadd.f32 %v3146, %v3254
      %v3350 = vadd.f32 %v3147, %v3335
      %v3351 = vadd.f32 %v3148, %v3258
      %v3352 = vadd.f32 %v3149, %v3260
      %v3353 = vadd.f32 %v3150, %v3340
      %v3354 = vadd.f32 %v3151, %v3264
      %v3355 = vadd.f32 %v3152, %v3266
      %v3356 = vadd.f32 %v3153, %v3345
      %s3357 = scalar_lea.vmem %s1, 384
      %v3358 = vld [vmem:[%s3357] sm:$0xff]
      %v3359 = vld [vmem:[%s3357 + $0x8] sm:$0xff]
      %v3360 = vld [vmem:[%s3357 + $0x10] sm:$0xff]
      %3361 = vrot.lane.b32.xlu0 %v171, 82
      %v3362 = vpop.permute.xlu0 %3361
      %3363 = vrot.lane.b32.xlu0 %v182, 82
      %v3364 = vpop.permute.xlu0 %3363
      %3365 = vrot.lane.b32.xlu0 %v172, 82
      %v3366 = vpop.permute.xlu0 %3365
      %3367 = vrot.lane.b32.xlu0 %v2954, 82
      %v3368 = vpop.permute.xlu0 %3367
      %vm3369 = vcmask 670720
      %v3370 = vsel %vm3369, %v3362, %v3364
      %v3371 = vsel %vm3369, %v3364, %v3366
      %v3372 = vsel %vm3369, %v3366, %v3368
      %v3374 = vsel %vm192, %v3358, 0
      %v3377 = vsel %vm192, %v3359, 0
      %v3380 = vsel %vm192, %v3360, 0
      %v3382 = vsel %vm202, %v3370, 0
      %v3384 = vsel %vm202, %v3371, 0
      %v3386 = vsel %vm202, %v3372, 0
      %3388 = vmatprep.subr.mxu0 %v3384
      %3389 = vmatpush1.msra.mxu0 %v3382
      %3390 = vmatprep.subr.mxu0 0.0
      %3391 = vmatpush1.msra.mxu0 0.0
      %3392 = vmatprep.subr.mxu0 0.0
      %3393 = vmatpush1.msra.mxu0 0.0
      %3394 = vmatprep.subr.mxu0 0.0
      %3395 = vmatpush1.msra.mxu0 0.0
      %3396 = vmatprep.subr.mxu0 0.0
      %3397 = vmatpush1.msra.mxu0 0.0
      %3398 = vmatprep.subr.mxu0 0.0
      %3399 = vmatpush1.msra.mxu0 0.0
      %3400 = vmatprep.subr.mxu0 0.0
      %3401 = vmatpush1.msra.mxu0 0.0
      %3402 = vmatprep.subr.mxu0 0.0
      %3403 = vmatpush1.msra.mxu0 0.0
      %3404 = vmatprep.subr.mxu0 0.0
      %3405 = vmatpush1.msra.mxu0 0.0
      %3406 = vmatprep.subr.mxu0 0.0
      %3407 = vmatpush1.msra.mxu0 0.0
      %3408 = vmatprep.subr.mxu0 0.0
      %3409 = vmatpush1.msra.mxu0 0.0
      %3410 = vmatprep.subr.mxu0 0.0
      %3411 = vmatpush1.msra.mxu0 0.0
      %3412 = vmatprep.subr.mxu0 0.0
      %3413 = vmatpush1.msra.mxu0 0.0
      %3414 = vmatprep.subr.mxu0 0.0
      %3415 = vmatpush1.msra.mxu0 0.0
      %3416 = vmatprep.subr.mxu0 0.0
      %3417 = vmatpush1.msra.mxu0 0.0
      %3418 = vmatprep.subr.mxu0 0.0
      %3419 = vmatpush1.msra.mxu0 0.0
      %3420 = vmatprep.subr.mxu0 0.0
      %3421 = vmatpush1.msra.mxu0 0.0
      %3422 = vmatprep.subr.mxu0 0.0
      %3423 = vmatpush1.msra.mxu0 0.0
      %3424 = vmatprep.subr.mxu0 0.0
      %3425 = vmatpush1.msra.mxu0 0.0
      %3426 = vmatprep.subr.mxu0 0.0
      %3427 = vmatpush1.msra.mxu0 0.0
      %3428 = vmatprep.subr.mxu0 0.0
      %3429 = vmatpush1.msra.mxu0 0.0
      %3430 = vmatprep.subr.mxu0 0.0
      %3431 = vmatpush1.msra.mxu0 0.0
      %3432 = vmatprep.subr.mxu0 0.0
      %3433 = vmatpush1.msra.mxu0 0.0
      %3434 = vmatprep.subr.mxu0 0.0
      %3435 = vmatpush1.msra.mxu0 0.0
      %3436 = vmatprep.subr.mxu0 0.0
      %3437 = vmatpush1.msra.mxu0 0.0
      %3438 = vmatprep.subr.mxu0 0.0
      %3439 = vmatpush1.msra.mxu0 0.0
      %3440 = vmatprep.subr.mxu0 0.0
      %3441 = vmatpush1.msra.mxu0 0.0
      %3442 = vmatprep.subr.mxu0 0.0
      %3443 = vmatpush1.msra.mxu0 0.0
      %3444 = vmatprep.subr.mxu0 0.0
      %3445 = vmatpush1.msra.mxu0 0.0
      %3446 = vmatprep.subr.mxu0 0.0
      %3447 = vmatpush1.msra.mxu0 0.0
      %3448 = vmatprep.subr.mxu0 0.0
      %3449 = vmatpush1.msra.mxu0 0.0
      %3450 = vmatprep.subr.mxu0 0.0
      %3451 = vmatpush1.msra.mxu0 0.0
      %3452 = vmatprep.mubr.f32.mxu0 0.0
      %3453 = vmatmul.mubr.f32.gmra.mrb[0].mxu0 %v3374
      %v3454 = vpop.f32.mrb[0].mxu0
      %v3455 = vadd.f32 0.0, %v3454
      %v3456 = vpop.f32.mrb[0].mxu0
      %v3457 = vadd.f32 0.0, %v3456
      %3458 = vmatprep.mubr.f32.mxu0 0.0
      %3459 = vmatmul.mubr.f32.gmra.mrb[0].mxu0 %v3377
      %v3460 = vpop.f32.mrb[0].mxu0
      %v3461 = vadd.f32 0.0, %v3460
      %v3462 = vpop.f32.mrb[0].mxu0
      %v3463 = vadd.f32 0.0, %v3462
      %3464 = vmatprep.mubr.f32.mxu0 0.0
      %3465 = vmatmul.mubr.f32.gmra.mrb[0].mxu0 %v3380
      %v3466 = vpop.f32.mrb[0].mxu0
      %v3467 = vadd.f32 0.0, %v3466
      %v3468 = vpop.f32.mrb[0].mxu0
      %v3469 = vadd.f32 0.0, %v3468
      %3470 = vdwg.mxu0
      %3471 = vmatprep.subr.mxu0 0.0
      %3472 = vmatpush1.msra.mxu0 %v3386
      %3473 = vmatprep.subr.mxu0 0.0
      %3474 = vmatpush1.msra.mxu0 0.0
      %3475 = vmatprep.subr.mxu0 0.0
      %3476 = vmatpush1.msra.mxu0 0.0
      %3477 = vmatprep.subr.mxu0 0.0
      %3478 = vmatpush1.msra.mxu0 0.0
      %3479 = vmatprep.subr.mxu0 0.0
      %3480 = vmatpush1.msra.mxu0 0.0
      %3481 = vmatprep.subr.mxu0 0.0
      %3482 = vmatpush1.msra.mxu0 0.0
      %3483 = vmatprep.subr.mxu0 0.0
      %3484 = vmatpush1.msra.mxu0 0.0
      %3485 = vmatprep.subr.mxu0 0.0
      %3486 = vmatpush1.msra.mxu0 0.0
      %3487 = vmatprep.subr.mxu0 0.0
      %3488 = vmatpush1.msra.mxu0 0.0
      %3489 = vmatprep.subr.mxu0 0.0
      %3490 = vmatpush1.msra.mxu0 0.0
      %3491 = vmatprep.subr.mxu0 0.0
      %3492 = vmatpush1.msra.mxu0 0.0
      %3493 = vmatprep.subr.mxu0 0.0
      %3494 = vmatpush1.msra.mxu0 0.0
      %3495 = vmatprep.subr.mxu0 0.0
      %3496 = vmatpush1.msra.mxu0 0.0
      %3497 = vmatprep.subr.mxu0 0.0
      %3498 = vmatpush1.msra.mxu0 0.0
      %3499 = vmatprep.subr.mxu0 0.0
      %3500 = vmatpush1.msra.mxu0 0.0
      %3501 = vmatprep.subr.mxu0 0.0
      %3502 = vmatpush1.msra.mxu0 0.0
      %3503 = vmatprep.subr.mxu0 0.0
      %3504 = vmatpush1.msra.mxu0 0.0
      %3505 = vmatprep.subr.mxu0 0.0
      %3506 = vmatpush1.msra.mxu0 0.0
      %3507 = vmatprep.subr.mxu0 0.0
      %3508 = vmatpush1.msra.mxu0 0.0
      %3509 = vmatprep.subr.mxu0 0.0
      %3510 = vmatpush1.msra.mxu0 0.0
      %3511 = vmatprep.subr.mxu0 0.0
      %3512 = vmatpush1.msra.mxu0 0.0
      %3513 = vmatprep.subr.mxu0 0.0
      %3514 = vmatpush1.msra.mxu0 0.0
      %3515 = vmatprep.subr.mxu0 0.0
      %3516 = vmatpush1.msra.mxu0 0.0
      %3517 = vmatprep.subr.mxu0 0.0
      %3518 = vmatpush1.msra.mxu0 0.0
      %3519 = vmatprep.subr.mxu0 0.0
      %3520 = vmatpush1.msra.mxu0 0.0
      %3521 = vmatprep.subr.mxu0 0.0
      %3522 = vmatpush1.msra.mxu0 0.0
      %3523 = vmatprep.subr.mxu0 0.0
      %3524 = vmatpush1.msra.mxu0 0.0
      %3525 = vmatprep.subr.mxu0 0.0
      %3526 = vmatpush1.msra.mxu0 0.0
      %3527 = vmatprep.subr.mxu0 0.0
      %3528 = vmatpush1.msra.mxu0 0.0
      %3529 = vmatprep.subr.mxu0 0.0
      %3530 = vmatpush1.msra.mxu0 0.0
      %3531 = vmatprep.subr.mxu0 0.0
      %3532 = vmatpush1.msra.mxu0 0.0
      %3533 = vmatprep.subr.mxu0 0.0
      %3534 = vmatpush1.msra.mxu0 0.0
      %3535 = vmatprep.mubr.f32.mxu0 0.0
      %3536 = vmatmul.mubr.f32.gmra.mrb[0].mxu0 %v3374
      %v3537 = vpop.f32.mrb[0].mxu0
      %v3538 = vadd.f32 0.0, %v3537
      %v3539 = vpop.f32.mrb[0].mxu0
      %3540 = vmatprep.mubr.f32.mxu0 0.0
      %3541 = vmatmul.mubr.f32.gmra.mrb[0].mxu0 %v3377
      %v3542 = vpop.f32.mrb[0].mxu0
      %v3543 = vadd.f32 0.0, %v3542
      %v3544 = vpop.f32.mrb[0].mxu0
      %3545 = vmatprep.mubr.f32.mxu0 0.0
      %3546 = vmatmul.mubr.f32.gmra.mrb[0].mxu0 %v3380
      %v3547 = vpop.f32.mrb[0].mxu0
      %v3548 = vadd.f32 0.0, %v3547
      %v3549 = vpop.f32.mrb[0].mxu0
      %3550 = vdwg.mxu0
      %v3551 = vadd.f32 %v3348, %v3455
      %v3552 = vadd.f32 %v3349, %v3457
      %v3553 = vadd.f32 %v3350, %v3538
      %v3554 = vadd.f32 %v3351, %v3461
      %v3555 = vadd.f32 %v3352, %v3463
      %v3556 = vadd.f32 %v3353, %v3543
      %v3557 = vadd.f32 %v3354, %v3467
      %v3558 = vadd.f32 %v3355, %v3469
      %v3559 = vadd.f32 %v3356, %v3548
      %s3560 = scalar_lea.vmem %s1, 408
      %v3561 = vld [vmem:[%s3560] sm:$0xff]
      %v3562 = vld [vmem:[%s3560 + $0x8] sm:$0xff]
      %v3563 = vld [vmem:[%s3560 + $0x10] sm:$0xff]
      %3564 = vrot.lane.b32.xlu0 %v171, 81
      %v3565 = vpop.permute.xlu0 %3564
      %3566 = vrot.lane.b32.xlu0 %v182, 81
      %v3567 = vpop.permute.xlu0 %3566
      %3568 = vrot.lane.b32.xlu0 %v172, 81
      %v3569 = vpop.permute.xlu0 %3568
      %3570 = vrot.lane.b32.xlu0 %v2954, 81
      %v3571 = vpop.permute.xlu0 %3570
      %vm3572 = vcmask 662528
      %v3573 = vsel %vm3572, %v3565, %v3567
      %v3574 = vsel %vm3572, %v3567, %v3569
      %v3575 = vsel %vm3572, %v3569, %v3571
      %v3577 = vsel %vm192, %v3561, 0
      %v3580 = vsel %vm192, %v3562, 0
      %v3583 = vsel %vm192, %v3563, 0
      %v3585 = vsel %vm202, %v3573, 0
      %v3587 = vsel %vm202, %v3574, 0
      %v3589 = vsel %vm202, %v3575, 0
      %3591 = vmatprep.subr.mxu0 %v3587
      %3592 = vmatpush1.msra.mxu0 %v3585
      %3593 = vmatprep.subr.mxu0 0.0
      %3594 = vmatpush1.msra.mxu0 0.0
      %3595 = vmatprep.subr.mxu0 0.0
      %3596 = vmatpush1.msra.mxu0 0.0
      %3597 = vmatprep.subr.mxu0 0.0
      %3598 = vmatpush1.msra.mxu0 0.0
      %3599 = vmatprep.subr.mxu0 0.0
      %3600 = vmatpush1.msra.mxu0 0.0
      %3601 = vmatprep.subr.mxu0 0.0
      %3602 = vmatpush1.msra.mxu0 0.0
      %3603 = vmatprep.subr.mxu0 0.0
      %3604 = vmatpush1.msra.mxu0 0.0
      %3605 = vmatprep.subr.mxu0 0.0
      %3606 = vmatpush1.msra.mxu0 0.0
      %3607 = vmatprep.subr.mxu0 0.0
      %3608 = vmatpush1.msra.mxu0 0.0
      %3609 = vmatprep.subr.mxu0 0.0
      %3610 = vmatpush1.msra.mxu0 0.0
      %3611 = vmatprep.subr.mxu0 0.0
      %3612 = vmatpush1.msra.mxu0 0.0
      %3613 = vmatprep.subr.mxu0 0.0
      %3614 = vmatpush1.msra.mxu0 0.0
      %3615 = vmatprep.subr.mxu0 0.0
      %3616 = vmatpush1.msra.mxu0 0.0
      %3617 = vmatprep.subr.mxu0 0.0
      %3618 = vmatpush1.msra.mxu0 0.0
      %3619 = vmatprep.subr.mxu0 0.0
      %3620 = vmatpush1.msra.mxu0 0.0
      %3621 = vmatprep.subr.mxu0 0.0
      %3622 = vmatpush1.msra.mxu0 0.0
      %3623 = vmatprep.subr.mxu0 0.0
      %3624 = vmatpush1.msra.mxu0 0.0
      %3625 = vmatprep.subr.mxu0 0.0
      %3626 = vmatpush1.msra.mxu0 0.0
      %3627 = vmatprep.subr.mxu0 0.0
      %3628 = vmatpush1.msra.mxu0 0.0
      %3629 = vmatprep.subr.mxu0 0.0
      %3630 = vmatpush1.msra.mxu0 0.0
      %3631 = vmatprep.subr.mxu0 0.0
      %3632 = vmatpush1.msra.mxu0 0.0
      %3633 = vmatprep.subr.mxu0 0.0
      %3634 = vmatpush1.msra.mxu0 0.0
      %3635 = vmatprep.subr.mxu0 0.0
      %3636 = vmatpush1.msra.mxu0 0.0
      %3637 = vmatprep.subr.mxu0 0.0
      %3638 = vmatpush1.msra.mxu0 0.0
      %3639 = vmatprep.subr.mxu0 0.0
      %3640 = vmatpush1.msra.mxu0 0.0
      %3641 = vmatprep.subr.mxu0 0.0
      %3642 = vmatpush1.msra.mxu0 0.0
      %3643 = vmatprep.subr.mxu0 0.0
      %3644 = vmatpush1.msra.mxu0 0.0
      %3645 = vmatprep.subr.mxu0 0.0
      %3646 = vmatpush1.msra.mxu0 0.0
      %3647 = vmatprep.subr.mxu0 0.0
      %3648 = vmatpush1.msra.mxu0 0.0
      %3649 = vmatprep.subr.mxu0 0.0
      %3650 = vmatpush1.msra.mxu0 0.0
      %3651 = vmatprep.subr.mxu0 0.0
      %3652 = vmatpush1.msra.mxu0 0.0
      %3653 = vmatprep.subr.mxu0 0.0
      %3654 = vmatpush1.msra.mxu0 0.0
      %3655 = vmatprep.mubr.f32.mxu0 0.0
      %3656 = vmatmul.mubr.f32.gmra.mrb[0].mxu0 %v3577
      %v3657 = vpop.f32.mrb[0].mxu0
      %v3658 = vadd.f32 0.0, %v3657
      %v3659 = vpop.f32.mrb[0].mxu0
      %v3660 = vadd.f32 0.0, %v3659
      %3661 = vmatprep.mubr.f32.mxu0 0.0
      %3662 = vmatmul.mubr.f32.gmra.mrb[0].mxu0 %v3580
      %v3663 = vpop.f32.mrb[0].mxu0
      %v3664 = vadd.f32 0.0, %v3663
      %v3665 = vpop.f32.mrb[0].mxu0
      %v3666 = vadd.f32 0.0, %v3665
      %3667 = vmatprep.mubr.f32.mxu0 0.0
      %3668 = vmatmul.mubr.f32.gmra.mrb[0].mxu0 %v3583
      %v3669 = vpop.f32.mrb[0].mxu0
      %v3670 = vadd.f32 0.0, %v3669
      %v3671 = vpop.f32.mrb[0].mxu0
      %v3672 = vadd.f32 0.0, %v3671
      %3673 = vdwg.mxu0
      %3674 = vmatprep.subr.mxu0 0.0
      %3675 = vmatpush1.msra.mxu0 %v3589
      %3676 = vmatprep.subr.mxu0 0.0
      %3677 = vmatpush1.msra.mxu0 0.0
      %3678 = vmatprep.subr.mxu0 0.0
      %3679 = vmatpush1.msra.mxu0 0.0
      %3680 = vmatprep.subr.mxu0 0.0
      %3681 = vmatpush1.msra.mxu0 0.0
      %3682 = vmatprep.subr.mxu0 0.0
      %3683 = vmatpush1.msra.mxu0 0.0
      %3684 = vmatprep.subr.mxu0 0.0
      %3685 = vmatpush1.msra.mxu0 0.0
      %3686 = vmatprep.subr.mxu0 0.0
      %3687 = vmatpush1.msra.mxu0 0.0
      %3688 = vmatprep.subr.mxu0 0.0
      %3689 = vmatpush1.msra.mxu0 0.0
      %3690 = vmatprep.subr.mxu0 0.0
      %3691 = vmatpush1.msra.mxu0 0.0
      %3692 = vmatprep.subr.mxu0 0.0
      %3693 = vmatpush1.msra.mxu0 0.0
      %3694 = vmatprep.subr.mxu0 0.0
      %3695 = vmatpush1.msra.mxu0 0.0
      %3696 = vmatprep.subr.mxu0 0.0
      %3697 = vmatpush1.msra.mxu0 0.0
      %3698 = vmatprep.subr.mxu0 0.0
      %3699 = vmatpush1.msra.mxu0 0.0
      %3700 = vmatprep.subr.mxu0 0.0
      %3701 = vmatpush1.msra.mxu0 0.0
      %3702 = vmatprep.subr.mxu0 0.0
      %3703 = vmatpush1.msra.mxu0 0.0
      %3704 = vmatprep.subr.mxu0 0.0
      %3705 = vmatpush1.msra.mxu0 0.0
      %3706 = vmatprep.subr.mxu0 0.0
      %3707 = vmatpush1.msra.mxu0 0.0
      %3708 = vmatprep.subr.mxu0 0.0
      %3709 = vmatpush1.msra.mxu0 0.0
      %3710 = vmatprep.subr.mxu0 0.0
      %3711 = vmatpush1.msra.mxu0 0.0
      %3712 = vmatprep.subr.mxu0 0.0
      %3713 = vmatpush1.msra.mxu0 0.0
      %3714 = vmatprep.subr.mxu0 0.0
      %3715 = vmatpush1.msra.mxu0 0.0
      %3716 = vmatprep.subr.mxu0 0.0
      %3717 = vmatpush1.msra.mxu0 0.0
      %3718 = vmatprep.subr.mxu0 0.0
      %3719 = vmatpush1.msra.mxu0 0.0
      %3720 = vmatprep.subr.mxu0 0.0
      %3721 = vmatpush1.msra.mxu0 0.0
      %3722 = vmatprep.subr.mxu0 0.0
      %3723 = vmatpush1.msra.mxu0 0.0
      %3724 = vmatprep.subr.mxu0 0.0
      %3725 = vmatpush1.msra.mxu0 0.0
      %3726 = vmatprep.subr.mxu0 0.0
      %3727 = vmatpush1.msra.mxu0 0.0
      %3728 = vmatprep.subr.mxu0 0.0
      %3729 = vmatpush1.msra.mxu0 0.0
      %3730 = vmatprep.subr.mxu0 0.0
      %3731 = vmatpush1.msra.mxu0 0.0
      %3732 = vmatprep.subr.mxu0 0.0
      %3733 = vmatpush1.msra.mxu0 0.0
      %3734 = vmatprep.subr.mxu0 0.0
      %3735 = vmatpush1.msra.mxu0 0.0
      %3736 = vmatprep.subr.mxu0 0.0
      %3737 = vmatpush1.msra.mxu0 0.0
      %3738 = vmatprep.mubr.f32.mxu0 0.0
      %3739 = vmatmul.mubr.f32.gmra.mrb[0].mxu0 %v3577
      %v3740 = vpop.f32.mrb[0].mxu0
      %v3741 = vadd.f32 0.0, %v3740
      %v3742 = vpop.f32.mrb[0].mxu0
      %3743 = vmatprep.mubr.f32.mxu0 0.0
      %3744 = vmatmul.mubr.f32.gmra.mrb[0].mxu0 %v3580
      %v3745 = vpop.f32.mrb[0].mxu0
      %v3746 = vadd.f32 0.0, %v3745
      %v3747 = vpop.f32.mrb[0].mxu0
      %3748 = vmatprep.mubr.f32.mxu0 0.0
      %3749 = vmatmul.mubr.f32.gmra.mrb[0].mxu0 %v3583
      %v3750 = vpop.f32.mrb[0].mxu0
      %v3751 = vadd.f32 0.0, %v3750
      %v3752 = vpop.f32.mrb[0].mxu0
      %3753 = vdwg.mxu0
      %v3754 = vadd.f32 %v3551, %v3658
      %v3755 = vadd.f32 %v3552, %v3660
      %v3756 = vadd.f32 %v3553, %v3741
      %v3757 = vadd.f32 %v3554, %v3664
      %v3758 = vadd.f32 %v3555, %v3666
      %v3759 = vadd.f32 %v3556, %v3746
      %v3760 = vadd.f32 %v3557, %v3670
      %v3761 = vadd.f32 %v3558, %v3672
      %v3762 = vadd.f32 %v3559, %v3751
      %s3763 = scalar_lea.vmem %s1, 432
      %v3764 = vld [vmem:[%s3763] sm:$0xff]
      %v3765 = vld [vmem:[%s3763 + $0x8] sm:$0xff]
      %v3766 = vld [vmem:[%s3763 + $0x10] sm:$0xff]
      %3767 = vrot.lane.b32.xlu0 %v171, 80
      %v3768 = vpop.permute.xlu0 %3767
      %3769 = vrot.lane.b32.xlu0 %v182, 80
      %v3770 = vpop.permute.xlu0 %3769
      %3771 = vrot.lane.b32.xlu0 %v172, 80
      %v3772 = vpop.permute.xlu0 %3771
      %3773 = vrot.lane.b32.xlu0 %v2954, 80
      %v3774 = vpop.permute.xlu0 %3773
      %vm3775 = vcmask 654336
      %v3776 = vsel %vm3775, %v3768, %v3770
      %v3777 = vsel %vm3775, %v3770, %v3772
      %v3778 = vsel %vm3775, %v3772, %v3774
      %v3780 = vsel %vm192, %v3764, 0
      %v3783 = vsel %vm192, %v3765, 0
      %v3786 = vsel %vm192, %v3766, 0
      %v3788 = vsel %vm202, %v3776, 0
      %v3790 = vsel %vm202, %v3777, 0
      %v3792 = vsel %vm202, %v3778, 0
      %3794 = vmatprep.subr.mxu0 %v3790
      %3795 = vmatpush1.msra.mxu0 %v3788
      %3796 = vmatprep.subr.mxu0 0.0
      %3797 = vmatpush1.msra.mxu0 0.0
      %3798 = vmatprep.subr.mxu0 0.0
      %3799 = vmatpush1.msra.mxu0 0.0
      %3800 = vmatprep.subr.mxu0 0.0
      %3801 = vmatpush1.msra.mxu0 0.0
      %3802 = vmatprep.subr.mxu0 0.0
      %3803 = vmatpush1.msra.mxu0 0.0
      %3804 = vmatprep.subr.mxu0 0.0
      %3805 = vmatpush1.msra.mxu0 0.0
      %3806 = vmatprep.subr.mxu0 0.0
      %3807 = vmatpush1.msra.mxu0 0.0
      %3808 = vmatprep.subr.mxu0 0.0
      %3809 = vmatpush1.msra.mxu0 0.0
      %3810 = vmatprep.subr.mxu0 0.0
      %3811 = vmatpush1.msra.mxu0 0.0
      %3812 = vmatprep.subr.mxu0 0.0
      %3813 = vmatpush1.msra.mxu0 0.0
      %3814 = vmatprep.subr.mxu0 0.0
      %3815 = vmatpush1.msra.mxu0 0.0
      %3816 = vmatprep.subr.mxu0 0.0
      %3817 = vmatpush1.msra.mxu0 0.0
      %3818 = vmatprep.subr.mxu0 0.0
      %3819 = vmatpush1.msra.mxu0 0.0
      %3820 = vmatprep.subr.mxu0 0.0
      %3821 = vmatpush1.msra.mxu0 0.0
      %3822 = vmatprep.subr.mxu0 0.0
      %3823 = vmatpush1.msra.mxu0 0.0
      %3824 = vmatprep.subr.mxu0 0.0
      %3825 = vmatpush1.msra.mxu0 0.0
      %3826 = vmatprep.subr.mxu0 0.0
      %3827 = vmatpush1.msra.mxu0 0.0
      %3828 = vmatprep.subr.mxu0 0.0
      %3829 = vmatpush1.msra.mxu0 0.0
      %3830 = vmatprep.subr.mxu0 0.0
      %3831 = vmatpush1.msra.mxu0 0.0
      %3832 = vmatprep.subr.mxu0 0.0
      %3833 = vmatpush1.msra.mxu0 0.0
      %3834 = vmatprep.subr.mxu0 0.0
      %3835 = vmatpush1.msra.mxu0 0.0
      %3836 = vmatprep.subr.mxu0 0.0
      %3837 = vmatpush1.msra.mxu0 0.0
      %3838 = vmatprep.subr.mxu0 0.0
      %3839 = vmatpush1.msra.mxu0 0.0
      %3840 = vmatprep.subr.mxu0 0.0
      %3841 = vmatpush1.msra.mxu0 0.0
      %3842 = vmatprep.subr.mxu0 0.0
      %3843 = vmatpush1.msra.mxu0 0.0
      %3844 = vmatprep.subr.mxu0 0.0
      %3845 = vmatpush1.msra.mxu0 0.0
      %3846 = vmatprep.subr.mxu0 0.0
      %3847 = vmatpush1.msra.mxu0 0.0
      %3848 = vmatprep.subr.mxu0 0.0
      %3849 = vmatpush1.msra.mxu0 0.0
      %3850 = vmatprep.subr.mxu0 0.0
      %3851 = vmatpush1.msra.mxu0 0.0
      %3852 = vmatprep.subr.mxu0 0.0
      %3853 = vmatpush1.msra.mxu0 0.0
      %3854 = vmatprep.subr.mxu0 0.0
      %3855 = vmatpush1.msra.mxu0 0.0
      %3856 = vmatprep.subr.mxu0 0.0
      %3857 = vmatpush1.msra.mxu0 0.0
      %3858 = vmatprep.mubr.f32.mxu0 0.0
      %3859 = vmatmul.mubr.f32.gmra.mrb[0].mxu0 %v3780
      %v3860 = vpop.f32.mrb[0].mxu0
      %v3861 = vadd.f32 0.0, %v3860
      %v3862 = vpop.f32.mrb[0].mxu0
      %v3863 = vadd.f32 0.0, %v3862
      %3864 = vmatprep.mubr.f32.mxu0 0.0
      %3865 = vmatmul.mubr.f32.gmra.mrb[0].mxu0 %v3783
      %v3866 = vpop.f32.mrb[0].mxu0
      %v3867 = vadd.f32 0.0, %v3866
      %v3868 = vpop.f32.mrb[0].mxu0
      %v3869 = vadd.f32 0.0, %v3868
      %3870 = vmatprep.mubr.f32.mxu0 0.0
      %3871 = vmatmul.mubr.f32.gmra.mrb[0].mxu0 %v3786
      %v3872 = vpop.f32.mrb[0].mxu0
      %v3873 = vadd.f32 0.0, %v3872
      %v3874 = vpop.f32.mrb[0].mxu0
      %v3875 = vadd.f32 0.0, %v3874
      %3876 = vdwg.mxu0
      %3877 = vmatprep.subr.mxu0 0.0
      %3878 = vmatpush1.msra.mxu0 %v3792
      %3879 = vmatprep.subr.mxu0 0.0
      %3880 = vmatpush1.msra.mxu0 0.0
      %3881 = vmatprep.subr.mxu0 0.0
      %3882 = vmatpush1.msra.mxu0 0.0
      %3883 = vmatprep.subr.mxu0 0.0
      %3884 = vmatpush1.msra.mxu0 0.0
      %3885 = vmatprep.subr.mxu0 0.0
      %3886 = vmatpush1.msra.mxu0 0.0
      %3887 = vmatprep.subr.mxu0 0.0
      %3888 = vmatpush1.msra.mxu0 0.0
      %3889 = vmatprep.subr.mxu0 0.0
      %3890 = vmatpush1.msra.mxu0 0.0
      %3891 = vmatprep.subr.mxu0 0.0
      %3892 = vmatpush1.msra.mxu0 0.0
      %3893 = vmatprep.subr.mxu0 0.0
      %3894 = vmatpush1.msra.mxu0 0.0
      %3895 = vmatprep.subr.mxu0 0.0
      %3896 = vmatpush1.msra.mxu0 0.0
      %3897 = vmatprep.subr.mxu0 0.0
      %3898 = vmatpush1.msra.mxu0 0.0
      %3899 = vmatprep.subr.mxu0 0.0
      %3900 = vmatpush1.msra.mxu0 0.0
      %3901 = vmatprep.subr.mxu0 0.0
      %3902 = vmatpush1.msra.mxu0 0.0
      %3903 = vmatprep.subr.mxu0 0.0
      %3904 = vmatpush1.msra.mxu0 0.0
      %3905 = vmatprep.subr.mxu0 0.0
      %3906 = vmatpush1.msra.mxu0 0.0
      %3907 = vmatprep.subr.mxu0 0.0
      %3908 = vmatpush1.msra.mxu0 0.0
      %3909 = vmatprep.subr.mxu0 0.0
      %3910 = vmatpush1.msra.mxu0 0.0
      %3911 = vmatprep.subr.mxu0 0.0
      %3912 = vmatpush1.msra.mxu0 0.0
      %3913 = vmatprep.subr.mxu0 0.0
      %3914 = vmatpush1.msra.mxu0 0.0
      %3915 = vmatprep.subr.mxu0 0.0
      %3916 = vmatpush1.msra.mxu0 0.0
      %3917 = vmatprep.subr.mxu0 0.0
      %3918 = vmatpush1.msra.mxu0 0.0
      %3919 = vmatprep.subr.mxu0 0.0
      %3920 = vmatpush1.msra.mxu0 0.0
      %3921 = vmatprep.subr.mxu0 0.0
      %3922 = vmatpush1.msra.mxu0 0.0
      %3923 = vmatprep.subr.mxu0 0.0
      %3924 = vmatpush1.msra.mxu0 0.0
      %3925 = vmatprep.subr.mxu0 0.0
      %3926 = vmatpush1.msra.mxu0 0.0
      %3927 = vmatprep.subr.mxu0 0.0
      %3928 = vmatpush1.msra.mxu0 0.0
      %3929 = vmatprep.subr.mxu0 0.0
      %3930 = vmatpush1.msra.mxu0 0.0
      %3931 = vmatprep.subr.mxu0 0.0
      %3932 = vmatpush1.msra.mxu0 0.0
      %3933 = vmatprep.subr.mxu0 0.0
      %3934 = vmatpush1.msra.mxu0 0.0
      %3935 = vmatprep.subr.mxu0 0.0
      %3936 = vmatpush1.msra.mxu0 0.0
      %3937 = vmatprep.subr.mxu0 0.0
      %3938 = vmatpush1.msra.mxu0 0.0
      %3939 = vmatprep.subr.mxu0 0.0
      %3940 = vmatpush1.msra.mxu0 0.0
      %3941 = vmatprep.mubr.f32.mxu0 0.0
      %3942 = vmatmul.mubr.f32.gmra.mrb[0].mxu0 %v3780
      %v3943 = vpop.f32.mrb[0].mxu0
      %v3944 = vadd.f32 0.0, %v3943
      %v3945 = vpop.f32.mrb[0].mxu0
      %3946 = vmatprep.mubr.f32.mxu0 0.0
      %3947 = vmatmul.mubr.f32.gmra.mrb[0].mxu0 %v3783
      %v3948 = vpop.f32.mrb[0].mxu0
      %v3949 = vadd.f32 0.0, %v3948
      %v3950 = vpop.f32.mrb[0].mxu0
      %3951 = vmatprep.mubr.f32.mxu0 0.0
      %3952 = vmatmul.mubr.f32.gmra.mrb[0].mxu0 %v3786
      %v3953 = vpop.f32.mrb[0].mxu0
      %v3954 = vadd.f32 0.0, %v3953
      %v3955 = vpop.f32.mrb[0].mxu0
      %3956 = vdwg.mxu0
      %v3957 = vadd.f32 %v3754, %v3861
      %v3958 = vadd.f32 %v3755, %v3863
      %v3959 = vadd.f32 %v3756, %v3944
      %v3960 = vadd.f32 %v3757, %v3867
      %v3961 = vadd.f32 %v3758, %v3869
      %v3962 = vadd.f32 %v3759, %v3949
      %v3963 = vadd.f32 %v3760, %v3873
      %v3964 = vadd.f32 %v3761, %v3875
      %v3965 = vadd.f32 %v3762, %v3954
      %s3966 = scalar_lea.vmem %s1, 456
      %v3967 = vld [vmem:[%s3966] sm:$0xff]
      %v3968 = vld [vmem:[%s3966 + $0x8] sm:$0xff]
      %v3969 = vld [vmem:[%s3966 + $0x10] sm:$0xff]
      %3970 = vrot.lane.b32.xlu0 %v171, 79
      %v3971 = vpop.permute.xlu0 %3970
      %3972 = vrot.lane.b32.xlu0 %v182, 79
      %v3973 = vpop.permute.xlu0 %3972
      %3974 = vrot.lane.b32.xlu0 %v172, 79
      %v3975 = vpop.permute.xlu0 %3974
      %3976 = vrot.lane.b32.xlu0 %v2954, 79
      %v3977 = vpop.permute.xlu0 %3976
      %vm3978 = vcmask 646144
      %v3979 = vsel %vm3978, %v3971, %v3973
      %v3980 = vsel %vm3978, %v3973, %v3975
      %v3981 = vsel %vm3978, %v3975, %v3977
      %v3983 = vsel %vm192, %v3967, 0
      %v3986 = vsel %vm192, %v3968, 0
      %v3989 = vsel %vm192, %v3969, 0
      %v3991 = vsel %vm202, %v3979, 0
      %v3993 = vsel %vm202, %v3980, 0
      %v3995 = vsel %vm202, %v3981, 0
      %3997 = vmatprep.subr.mxu0 %v3993
      %3998 = vmatpush1.msra.mxu0 %v3991
      %3999 = vmatprep.subr.mxu0 0.0
      %4000 = vmatpush1.msra.mxu0 0.0
      %4001 = vmatprep.subr.mxu0 0.0
      %4002 = vmatpush1.msra.mxu0 0.0
      %4003 = vmatprep.subr.mxu0 0.0
      %4004 = vmatpush1.msra.mxu0 0.0
      %4005 = vmatprep.subr.mxu0 0.0
      %4006 = vmatpush1.msra.mxu0 0.0
      %4007 = vmatprep.subr.mxu0 0.0
      %4008 = vmatpush1.msra.mxu0 0.0
      %4009 = vmatprep.subr.mxu0 0.0
      %4010 = vmatpush1.msra.mxu0 0.0
      %4011 = vmatprep.subr.mxu0 0.0
      %4012 = vmatpush1.msra.mxu0 0.0
      %4013 = vmatprep.subr.mxu0 0.0
      %4014 = vmatpush1.msra.mxu0 0.0
      %4015 = vmatprep.subr.mxu0 0.0
      %4016 = vmatpush1.msra.mxu0 0.0
      %4017 = vmatprep.subr.mxu0 0.0
      %4018 = vmatpush1.msra.mxu0 0.0
      %4019 = vmatprep.subr.mxu0 0.0
      %4020 = vmatpush1.msra.mxu0 0.0
      %4021 = vmatprep.subr.mxu0 0.0
      %4022 = vmatpush1.msra.mxu0 0.0
      %4023 = vmatprep.subr.mxu0 0.0
      %4024 = vmatpush1.msra.mxu0 0.0
      %4025 = vmatprep.subr.mxu0 0.0
      %4026 = vmatpush1.msra.mxu0 0.0
      %4027 = vmatprep.subr.mxu0 0.0
      %4028 = vmatpush1.msra.mxu0 0.0
      %4029 = vmatprep.subr.mxu0 0.0
      %4030 = vmatpush1.msra.mxu0 0.0
      %4031 = vmatprep.subr.mxu0 0.0
      %4032 = vmatpush1.msra.mxu0 0.0
      %4033 = vmatprep.subr.mxu0 0.0
      %4034 = vmatpush1.msra.mxu0 0.0
      %4035 = vmatprep.subr.mxu0 0.0
      %4036 = vmatpush1.msra.mxu0 0.0
      %4037 = vmatprep.subr.mxu0 0.0
      %4038 = vmatpush1.msra.mxu0 0.0
      %4039 = vmatprep.subr.mxu0 0.0
      %4040 = vmatpush1.msra.mxu0 0.0
      %4041 = vmatprep.subr.mxu0 0.0
      %4042 = vmatpush1.msra.mxu0 0.0
      %4043 = vmatprep.subr.mxu0 0.0
      %4044 = vmatpush1.msra.mxu0 0.0
      %4045 = vmatprep.subr.mxu0 0.0
      %4046 = vmatpush1.msra.mxu0 0.0
      %4047 = vmatprep.subr.mxu0 0.0
      %4048 = vmatpush1.msra.mxu0 0.0
      %4049 = vmatprep.subr.mxu0 0.0
      %4050 = vmatpush1.msra.mxu0 0.0
      %4051 = vmatprep.subr.mxu0 0.0
      %4052 = vmatpush1.msra.mxu0 0.0
      %4053 = vmatprep.subr.mxu0 0.0
      %4054 = vmatpush1.msra.mxu0 0.0
      %4055 = vmatprep.subr.mxu0 0.0
      %4056 = vmatpush1.msra.mxu0 0.0
      %4057 = vmatprep.subr.mxu0 0.0
      %4058 = vmatpush1.msra.mxu0 0.0
      %4059 = vmatprep.subr.mxu0 0.0
      %4060 = vmatpush1.msra.mxu0 0.0
      %4061 = vmatprep.mubr.f32.mxu0 0.0
      %4062 = vmatmul.mubr.f32.gmra.mrb[0].mxu0 %v3983
      %v4063 = vpop.f32.mrb[0].mxu0
      %v4064 = vadd.f32 0.0, %v4063
      %v4065 = vpop.f32.mrb[0].mxu0
      %v4066 = vadd.f32 0.0, %v4065
      %4067 = vmatprep.mubr.f32.mxu0 0.0
      %4068 = vmatmul.mubr.f32.gmra.mrb[0].mxu0 %v3986
      %v4069 = vpop.f32.mrb[0].mxu0
      %v4070 = vadd.f32 0.0, %v4069
      %v4071 = vpop.f32.mrb[0].mxu0
      %v4072 = vadd.f32 0.0, %v4071
      %4073 = vmatprep.mubr.f32.mxu0 0.0
      %4074 = vmatmul.mubr.f32.gmra.mrb[0].mxu0 %v3989
      %v4075 = vpop.f32.mrb[0].mxu0
      %v4076 = vadd.f32 0.0, %v4075
      %v4077 = vpop.f32.mrb[0].mxu0
      %v4078 = vadd.f32 0.0, %v4077
      %4079 = vdwg.mxu0
      %4080 = vmatprep.subr.mxu0 0.0
      %4081 = vmatpush1.msra.mxu0 %v3995
      %4082 = vmatprep.subr.mxu0 0.0
      %4083 = vmatpush1.msra.mxu0 0.0
      %4084 = vmatprep.subr.mxu0 0.0
      %4085 = vmatpush1.msra.mxu0 0.0
      %4086 = vmatprep.subr.mxu0 0.0
      %4087 = vmatpush1.msra.mxu0 0.0
      %4088 = vmatprep.subr.mxu0 0.0
      %4089 = vmatpush1.msra.mxu0 0.0
      %4090 = vmatprep.subr.mxu0 0.0
      %4091 = vmatpush1.msra.mxu0 0.0
      %4092 = vmatprep.subr.mxu0 0.0
      %4093 = vmatpush1.msra.mxu0 0.0
      %4094 = vmatprep.subr.mxu0 0.0
      %4095 = vmatpush1.msra.mxu0 0.0
      %4096 = vmatprep.subr.mxu0 0.0
      %4097 = vmatpush1.msra.mxu0 0.0
      %4098 = vmatprep.subr.mxu0 0.0
      %4099 = vmatpush1.msra.mxu0 0.0
      %4100 = vmatprep.subr.mxu0 0.0
      %4101 = vmatpush1.msra.mxu0 0.0
      %4102 = vmatprep.subr.mxu0 0.0
      %4103 = vmatpush1.msra.mxu0 0.0
      %4104 = vmatprep.subr.mxu0 0.0
      %4105 = vmatpush1.msra.mxu0 0.0
      %4106 = vmatprep.subr.mxu0 0.0
      %4107 = vmatpush1.msra.mxu0 0.0
      %4108 = vmatprep.subr.mxu0 0.0
      %4109 = vmatpush1.msra.mxu0 0.0
      %4110 = vmatprep.subr.mxu0 0.0
      %4111 = vmatpush1.msra.mxu0 0.0
      %4112 = vmatprep.subr.mxu0 0.0
      %4113 = vmatpush1.msra.mxu0 0.0
      %4114 = vmatprep.subr.mxu0 0.0
      %4115 = vmatpush1.msra.mxu0 0.0
      %4116 = vmatprep.subr.mxu0 0.0
      %4117 = vmatpush1.msra.mxu0 0.0
      %4118 = vmatprep.subr.mxu0 0.0
      %4119 = vmatpush1.msra.mxu0 0.0
      %4120 = vmatprep.subr.mxu0 0.0
      %4121 = vmatpush1.msra.mxu0 0.0
      %4122 = vmatprep.subr.mxu0 0.0
      %4123 = vmatpush1.msra.mxu0 0.0
      %4124 = vmatprep.subr.mxu0 0.0
      %4125 = vmatpush1.msra.mxu0 0.0
      %4126 = vmatprep.subr.mxu0 0.0
      %4127 = vmatpush1.msra.mxu0 0.0
      %4128 = vmatprep.subr.mxu0 0.0
      %4129 = vmatpush1.msra.mxu0 0.0
      %4130 = vmatprep.subr.mxu0 0.0
      %4131 = vmatpush1.msra.mxu0 0.0
      %4132 = vmatprep.subr.mxu0 0.0
      %4133 = vmatpush1.msra.mxu0 0.0
      %4134 = vmatprep.subr.mxu0 0.0
      %4135 = vmatpush1.msra.mxu0 0.0
      %4136 = vmatprep.subr.mxu0 0.0
      %4137 = vmatpush1.msra.mxu0 0.0
      %4138 = vmatprep.subr.mxu0 0.0
      %4139 = vmatpush1.msra.mxu0 0.0
      %4140 = vmatprep.subr.mxu0 0.0
      %4141 = vmatpush1.msra.mxu0 0.0
      %4142 = vmatprep.subr.mxu0 0.0
      %4143 = vmatpush1.msra.mxu0 0.0
      %4144 = vmatprep.mubr.f32.mxu0 0.0
      %4145 = vmatmul.mubr.f32.gmra.mrb[0].mxu0 %v3983
      %v4146 = vpop.f32.mrb[0].mxu0
      %v4147 = vadd.f32 0.0, %v4146
      %v4148 = vpop.f32.mrb[0].mxu0
      %4149 = vmatprep.mubr.f32.mxu0 0.0
      %4150 = vmatmul.mubr.f32.gmra.mrb[0].mxu0 %v3986
      %v4151 = vpop.f32.mrb[0].mxu0
      %v4152 = vadd.f32 0.0, %v4151
      %v4153 = vpop.f32.mrb[0].mxu0
      %4154 = vmatprep.mubr.f32.mxu0 0.0
      %4155 = vmatmul.mubr.f32.gmra.mrb[0].mxu0 %v3989
      %v4156 = vpop.f32.mrb[0].mxu0
      %v4157 = vadd.f32 0.0, %v4156
      %v4158 = vpop.f32.mrb[0].mxu0
      %4159 = vdwg.mxu0
      %v4160 = vadd.f32 %v3957, %v4064
      %v4161 = vadd.f32 %v3958, %v4066
      %v4162 = vadd.f32 %v3959, %v4147
      %v4163 = vadd.f32 %v3960, %v4070
      %v4164 = vadd.f32 %v3961, %v4072
      %v4165 = vadd.f32 %v3962, %v4152
      %v4166 = vadd.f32 %v3963, %v4076
      %v4167 = vadd.f32 %v3964, %v4078
      %v4168 = vadd.f32 %v3965, %v4157
      %s4169 = scalar_lea.vmem %s1, 480
      %v4170 = vld [vmem:[%s4169] sm:$0xff]
      %v4171 = vld [vmem:[%s4169 + $0x8] sm:$0xff]
      %v4172 = vld [vmem:[%s4169 + $0x10] sm:$0xff]
      %4173 = vrot.lane.b32.xlu0 %v171, 78
      %v4174 = vpop.permute.xlu0 %4173
      %4175 = vrot.lane.b32.xlu0 %v182, 78
      %v4176 = vpop.permute.xlu0 %4175
      %4177 = vrot.lane.b32.xlu0 %v172, 78
      %v4178 = vpop.permute.xlu0 %4177
      %4179 = vrot.lane.b32.xlu0 %v2954, 78
      %v4180 = vpop.permute.xlu0 %4179
      %vm4181 = vcmask 637952
      %v4182 = vsel %vm4181, %v4174, %v4176
      %v4183 = vsel %vm4181, %v4176, %v4178
      %v4184 = vsel %vm4181, %v4178, %v4180
      %v4186 = vsel %vm192, %v4170, 0
      %v4189 = vsel %vm192, %v4171, 0
      %v4192 = vsel %vm192, %v4172, 0
      %v4194 = vsel %vm202, %v4182, 0
      %v4196 = vsel %vm202, %v4183, 0
      %v4198 = vsel %vm202, %v4184, 0
      %4200 = vmatprep.subr.mxu0 %v4196
      %4201 = vmatpush1.msra.mxu0 %v4194
      %4202 = vmatprep.subr.mxu0 0.0
      %4203 = vmatpush1.msra.mxu0 0.0
      %4204 = vmatprep.subr.mxu0 0.0
      %4205 = vmatpush1.msra.mxu0 0.0
      %4206 = vmatprep.subr.mxu0 0.0
      %4207 = vmatpush1.msra.mxu0 0.0
      %4208 = vmatprep.subr.mxu0 0.0
      %4209 = vmatpush1.msra.mxu0 0.0
      %4210 = vmatprep.subr.mxu0 0.0
      %4211 = vmatpush1.msra.mxu0 0.0
      %4212 = vmatprep.subr.mxu0 0.0
      %4213 = vmatpush1.msra.mxu0 0.0
      %4214 = vmatprep.subr.mxu0 0.0
      %4215 = vmatpush1.msra.mxu0 0.0
      %4216 = vmatprep.subr.mxu0 0.0
      %4217 = vmatpush1.msra.mxu0 0.0
      %4218 = vmatprep.subr.mxu0 0.0
      %4219 = vmatpush1.msra.mxu0 0.0
      %4220 = vmatprep.subr.mxu0 0.0
      %4221 = vmatpush1.msra.mxu0 0.0
      %4222 = vmatprep.subr.mxu0 0.0
      %4223 = vmatpush1.msra.mxu0 0.0
      %4224 = vmatprep.subr.mxu0 0.0
      %4225 = vmatpush1.msra.mxu0 0.0
      %4226 = vmatprep.subr.mxu0 0.0
      %4227 = vmatpush1.msra.mxu0 0.0
      %4228 = vmatprep.subr.mxu0 0.0
      %4229 = vmatpush1.msra.mxu0 0.0
      %4230 = vmatprep.subr.mxu0 0.0
      %4231 = vmatpush1.msra.mxu0 0.0
      %4232 = vmatprep.subr.mxu0 0.0
      %4233 = vmatpush1.msra.mxu0 0.0
      %4234 = vmatprep.subr.mxu0 0.0
      %4235 = vmatpush1.msra.mxu0 0.0
      %4236 = vmatprep.subr.mxu0 0.0
      %4237 = vmatpush1.msra.mxu0 0.0
      %4238 = vmatprep.subr.mxu0 0.0
      %4239 = vmatpush1.msra.mxu0 0.0
      %4240 = vmatprep.subr.mxu0 0.0
      %4241 = vmatpush1.msra.mxu0 0.0
      %4242 = vmatprep.subr.mxu0 0.0
      %4243 = vmatpush1.msra.mxu0 0.0
      %4244 = vmatprep.subr.mxu0 0.0
      %4245 = vmatpush1.msra.mxu0 0.0
      %4246 = vmatprep.subr.mxu0 0.0
      %4247 = vmatpush1.msra.mxu0 0.0
      %4248 = vmatprep.subr.mxu0 0.0
      %4249 = vmatpush1.msra.mxu0 0.0
      %4250 = vmatprep.subr.mxu0 0.0
      %4251 = vmatpush1.msra.mxu0 0.0
      %4252 = vmatprep.subr.mxu0 0.0
      %4253 = vmatpush1.msra.mxu0 0.0
      %4254 = vmatprep.subr.mxu0 0.0
      %4255 = vmatpush1.msra.mxu0 0.0
      %4256 = vmatprep.subr.mxu0 0.0
      %4257 = vmatpush1.msra.mxu0 0.0
      %4258 = vmatprep.subr.mxu0 0.0
      %4259 = vmatpush1.msra.mxu0 0.0
      %4260 = vmatprep.subr.mxu0 0.0
      %4261 = vmatpush1.msra.mxu0 0.0
      %4262 = vmatprep.subr.mxu0 0.0
      %4263 = vmatpush1.msra.mxu0 0.0
      %4264 = vmatprep.mubr.f32.mxu0 0.0
      %4265 = vmatmul.mubr.f32.gmra.mrb[0].mxu0 %v4186
      %v4266 = vpop.f32.mrb[0].mxu0
      %v4267 = vadd.f32 0.0, %v4266
      %v4268 = vpop.f32.mrb[0].mxu0
      %v4269 = vadd.f32 0.0, %v4268
      %4270 = vmatprep.mubr.f32.mxu0 0.0
      %4271 = vmatmul.mubr.f32.gmra.mrb[0].mxu0 %v4189
      %v4272 = vpop.f32.mrb[0].mxu0
      %v4273 = vadd.f32 0.0, %v4272
      %v4274 = vpop.f32.mrb[0].mxu0
      %v4275 = vadd.f32 0.0, %v4274
      %4276 = vmatprep.mubr.f32.mxu0 0.0
      %4277 = vmatmul.mubr.f32.gmra.mrb[0].mxu0 %v4192
      %v4278 = vpop.f32.mrb[0].mxu0
      %v4279 = vadd.f32 0.0, %v4278
      %v4280 = vpop.f32.mrb[0].mxu0
      %v4281 = vadd.f32 0.0, %v4280
      %4282 = vdwg.mxu0
      %4283 = vmatprep.subr.mxu0 0.0
      %4284 = vmatpush1.msra.mxu0 %v4198
      %4285 = vmatprep.subr.mxu0 0.0
      %4286 = vmatpush1.msra.mxu0 0.0
      %4287 = vmatprep.subr.mxu0 0.0
      %4288 = vmatpush1.msra.mxu0 0.0
      %4289 = vmatprep.subr.mxu0 0.0
      %4290 = vmatpush1.msra.mxu0 0.0
      %4291 = vmatprep.subr.mxu0 0.0
      %4292 = vmatpush1.msra.mxu0 0.0
      %4293 = vmatprep.subr.mxu0 0.0
      %4294 = vmatpush1.msra.mxu0 0.0
      %4295 = vmatprep.subr.mxu0 0.0
      %4296 = vmatpush1.msra.mxu0 0.0
      %4297 = vmatprep.subr.mxu0 0.0
      %4298 = vmatpush1.msra.mxu0 0.0
      %4299 = vmatprep.subr.mxu0 0.0
      %4300 = vmatpush1.msra.mxu0 0.0
      %4301 = vmatprep.subr.mxu0 0.0
      %4302 = vmatpush1.msra.mxu0 0.0
      %4303 = vmatprep.subr.mxu0 0.0
      %4304 = vmatpush1.msra.mxu0 0.0
      %4305 = vmatprep.subr.mxu0 0.0
      %4306 = vmatpush1.msra.mxu0 0.0
      %4307 = vmatprep.subr.mxu0 0.0
      %4308 = vmatpush1.msra.mxu0 0.0
      %4309 = vmatprep.subr.mxu0 0.0
      %4310 = vmatpush1.msra.mxu0 0.0
      %4311 = vmatprep.subr.mxu0 0.0
      %4312 = vmatpush1.msra.mxu0 0.0
      %4313 = vmatprep.subr.mxu0 0.0
      %4314 = vmatpush1.msra.mxu0 0.0
      %4315 = vmatprep.subr.mxu0 0.0
      %4316 = vmatpush1.msra.mxu0 0.0
      %4317 = vmatprep.subr.mxu0 0.0
      %4318 = vmatpush1.msra.mxu0 0.0
      %4319 = vmatprep.subr.mxu0 0.0
      %4320 = vmatpush1.msra.mxu0 0.0
      %4321 = vmatprep.subr.mxu0 0.0
      %4322 = vmatpush1.msra.mxu0 0.0
      %4323 = vmatprep.subr.mxu0 0.0
      %4324 = vmatpush1.msra.mxu0 0.0
      %4325 = vmatprep.subr.mxu0 0.0
      %4326 = vmatpush1.msra.mxu0 0.0
      %4327 = vmatprep.subr.mxu0 0.0
      %4328 = vmatpush1.msra.mxu0 0.0
      %4329 = vmatprep.subr.mxu0 0.0
      %4330 = vmatpush1.msra.mxu0 0.0
      %4331 = vmatprep.subr.mxu0 0.0
      %4332 = vmatpush1.msra.mxu0 0.0
      %4333 = vmatprep.subr.mxu0 0.0
      %4334 = vmatpush1.msra.mxu0 0.0
      %4335 = vmatprep.subr.mxu0 0.0
      %4336 = vmatpush1.msra.mxu0 0.0
      %4337 = vmatprep.subr.mxu0 0.0
      %4338 = vmatpush1.msra.mxu0 0.0
      %4339 = vmatprep.subr.mxu0 0.0
      %4340 = vmatpush1.msra.mxu0 0.0
      %4341 = vmatprep.subr.mxu0 0.0
      %4342 = vmatpush1.msra.mxu0 0.0
      %4343 = vmatprep.subr.mxu0 0.0
      %4344 = vmatpush1.msra.mxu0 0.0
      %4345 = vmatprep.subr.mxu0 0.0
      %4346 = vmatpush1.msra.mxu0 0.0
      %4347 = vmatprep.mubr.f32.mxu0 0.0
      %4348 = vmatmul.mubr.f32.gmra.mrb[0].mxu0 %v4186
      %v4349 = vpop.f32.mrb[0].mxu0
      %v4350 = vadd.f32 0.0, %v4349
      %v4351 = vpop.f32.mrb[0].mxu0
      %4352 = vmatprep.mubr.f32.mxu0 0.0
      %4353 = vmatmul.mubr.f32.gmra.mrb[0].mxu0 %v4189
      %v4354 = vpop.f32.mrb[0].mxu0
      %v4355 = vadd.f32 0.0, %v4354
      %v4356 = vpop.f32.mrb[0].mxu0
      %4357 = vmatprep.mubr.f32.mxu0 0.0
      %4358 = vmatmul.mubr.f32.gmra.mrb[0].mxu0 %v4192
      %v4359 = vpop.f32.mrb[0].mxu0
      %v4360 = vadd.f32 0.0, %v4359
      %v4361 = vpop.f32.mrb[0].mxu0
      %4362 = vdwg.mxu0
      %v4363 = vadd.f32 %v4160, %v4267
      %v4364 = vadd.f32 %v4161, %v4269
      %v4365 = vadd.f32 %v4162, %v4350
      %v4366 = vadd.f32 %v4163, %v4273
      %v4367 = vadd.f32 %v4164, %v4275
      %v4368 = vadd.f32 %v4165, %v4355
      %v4369 = vadd.f32 %v4166, %v4279
      %v4370 = vadd.f32 %v4167, %v4281
      %v4371 = vadd.f32 %v4168, %v4360
      %s4372 = scalar_lea.vmem %s1, 504
      %v4373 = vld [vmem:[%s4372] sm:$0xff]
      %v4374 = vld [vmem:[%s4372 + $0x8] sm:$0xff]
      %v4375 = vld [vmem:[%s4372 + $0x10] sm:$0xff]
      %4376 = vrot.lane.b32.xlu0 %v171, 62
      %v4377 = vpop.permute.xlu0 %4376
      %4378 = vrot.lane.b32.xlu0 %v182, 62
      %v4379 = vpop.permute.xlu0 %4378
      %4380 = vrot.lane.b32.xlu0 %v172, 62
      %v4381 = vpop.permute.xlu0 %4380
      %4382 = vrot.lane.b32.xlu0 %v2954, 62
      %v4383 = vpop.permute.xlu0 %4382
      %vm4384 = vcmask 506880
      %v4385 = vsel %vm4384, %v4377, %v4379
      %v4386 = vsel %vm4384, %v4379, %v4381
      %v4387 = vsel %vm4384, %v4381, %v4383
      %v4389 = vsel %vm192, %v4373, 0
      %v4392 = vsel %vm192, %v4374, 0
      %v4395 = vsel %vm192, %v4375, 0
      %v4397 = vsel %vm202, %v4385, 0
      %v4399 = vsel %vm202, %v4386, 0
      %v4401 = vsel %vm202, %v4387, 0
      %4403 = vmatprep.subr.mxu0 %v4399
      %4404 = vmatpush1.msra.mxu0 %v4397
      %4405 = vmatprep.subr.mxu0 0.0
      %4406 = vmatpush1.msra.mxu0 0.0
      %4407 = vmatprep.subr.mxu0 0.0
      %4408 = vmatpush1.msra.mxu0 0.0
      %4409 = vmatprep.subr.mxu0 0.0
      %4410 = vmatpush1.msra.mxu0 0.0
      %4411 = vmatprep.subr.mxu0 0.0
      %4412 = vmatpush1.msra.mxu0 0.0
      %4413 = vmatprep.subr.mxu0 0.0
      %4414 = vmatpush1.msra.mxu0 0.0
      %4415 = vmatprep.subr.mxu0 0.0
      %4416 = vmatpush1.msra.mxu0 0.0
      %4417 = vmatprep.subr.mxu0 0.0
      %4418 = vmatpush1.msra.mxu0 0.0
      %4419 = vmatprep.subr.mxu0 0.0
      %4420 = vmatpush1.msra.mxu0 0.0
      %4421 = vmatprep.subr.mxu0 0.0
      %4422 = vmatpush1.msra.mxu0 0.0
      %4423 = vmatprep.subr.mxu0 0.0
      %4424 = vmatpush1.msra.mxu0 0.0
      %4425 = vmatprep.subr.mxu0 0.0
      %4426 = vmatpush1.msra.mxu0 0.0
      %4427 = vmatprep.subr.mxu0 0.0
      %4428 = vmatpush1.msra.mxu0 0.0
      %4429 = vmatprep.subr.mxu0 0.0
      %4430 = vmatpush1.msra.mxu0 0.0
      %4431 = vmatprep.subr.mxu0 0.0
      %4432 = vmatpush1.msra.mxu0 0.0
      %4433 = vmatprep.subr.mxu0 0.0
      %4434 = vmatpush1.msra.mxu0 0.0
      %4435 = vmatprep.subr.mxu0 0.0
      %4436 = vmatpush1.msra.mxu0 0.0
      %4437 = vmatprep.subr.mxu0 0.0
      %4438 = vmatpush1.msra.mxu0 0.0
      %4439 = vmatprep.subr.mxu0 0.0
      %4440 = vmatpush1.msra.mxu0 0.0
      %4441 = vmatprep.subr.mxu0 0.0
      %4442 = vmatpush1.msra.mxu0 0.0
      %4443 = vmatprep.subr.mxu0 0.0
      %4444 = vmatpush1.msra.mxu0 0.0
      %4445 = vmatprep.subr.mxu0 0.0
      %4446 = vmatpush1.msra.mxu0 0.0
      %4447 = vmatprep.subr.mxu0 0.0
      %4448 = vmatpush1.msra.mxu0 0.0
      %4449 = vmatprep.subr.mxu0 0.0
      %4450 = vmatpush1.msra.mxu0 0.0
      %4451 = vmatprep.subr.mxu0 0.0
      %4452 = vmatpush1.msra.mxu0 0.0
      %4453 = vmatprep.subr.mxu0 0.0
      %4454 = vmatpush1.msra.mxu0 0.0
      %4455 = vmatprep.subr.mxu0 0.0
      %4456 = vmatpush1.msra.mxu0 0.0
      %4457 = vmatprep.subr.mxu0 0.0
      %4458 = vmatpush1.msra.mxu0 0.0
      %4459 = vmatprep.subr.mxu0 0.0
      %4460 = vmatpush1.msra.mxu0 0.0
      %4461 = vmatprep.subr.mxu0 0.0
      %4462 = vmatpush1.msra.mxu0 0.0
      %4463 = vmatprep.subr.mxu0 0.0
      %4464 = vmatpush1.msra.mxu0 0.0
      %4465 = vmatprep.subr.mxu0 0.0
      %4466 = vmatpush1.msra.mxu0 0.0
      %4467 = vmatprep.mubr.f32.mxu0 0.0
      %4468 = vmatmul.mubr.f32.gmra.mrb[0].mxu0 %v4389
      %v4469 = vpop.f32.mrb[0].mxu0
      %v4470 = vadd.f32 0.0, %v4469
      %v4471 = vpop.f32.mrb[0].mxu0
      %v4472 = vadd.f32 0.0, %v4471
      %4473 = vmatprep.mubr.f32.mxu0 0.0
      %4474 = vmatmul.mubr.f32.gmra.mrb[0].mxu0 %v4392
      %v4475 = vpop.f32.mrb[0].mxu0
      %v4476 = vadd.f32 0.0, %v4475
      %v4477 = vpop.f32.mrb[0].mxu0
      %v4478 = vadd.f32 0.0, %v4477
      %4479 = vmatprep.mubr.f32.mxu0 0.0
      %4480 = vmatmul.mubr.f32.gmra.mrb[0].mxu0 %v4395
      %v4481 = vpop.f32.mrb[0].mxu0
      %v4482 = vadd.f32 0.0, %v4481
      %v4483 = vpop.f32.mrb[0].mxu0
      %v4484 = vadd.f32 0.0, %v4483
      %4485 = vdwg.mxu0
      %4486 = vmatprep.subr.mxu0 0.0
      %4487 = vmatpush1.msra.mxu0 %v4401
      %4488 = vmatprep.subr.mxu0 0.0
      %4489 = vmatpush1.msra.mxu0 0.0
      %4490 = vmatprep.subr.mxu0 0.0
      %4491 = vmatpush1.msra.mxu0 0.0
      %4492 = vmatprep.subr.mxu0 0.0
      %4493 = vmatpush1.msra.mxu0 0.0
      %4494 = vmatprep.subr.mxu0 0.0
      %4495 = vmatpush1.msra.mxu0 0.0
      %4496 = vmatprep.subr.mxu0 0.0
      %4497 = vmatpush1.msra.mxu0 0.0
      %4498 = vmatprep.subr.mxu0 0.0
      %4499 = vmatpush1.msra.mxu0 0.0
      %4500 = vmatprep.subr.mxu0 0.0
      %4501 = vmatpush1.msra.mxu0 0.0
      %4502 = vmatprep.subr.mxu0 0.0
      %4503 = vmatpush1.msra.mxu0 0.0
      %4504 = vmatprep.subr.mxu0 0.0
      %4505 = vmatpush1.msra.mxu0 0.0
      %4506 = vmatprep.subr.mxu0 0.0
      %4507 = vmatpush1.msra.mxu0 0.0
      %4508 = vmatprep.subr.mxu0 0.0
      %4509 = vmatpush1.msra.mxu0 0.0
      %4510 = vmatprep.subr.mxu0 0.0
      %4511 = vmatpush1.msra.mxu0 0.0
      %4512 = vmatprep.subr.mxu0 0.0
      %4513 = vmatpush1.msra.mxu0 0.0
      %4514 = vmatprep.subr.mxu0 0.0
      %4515 = vmatpush1.msra.mxu0 0.0
      %4516 = vmatprep.subr.mxu0 0.0
      %4517 = vmatpush1.msra.mxu0 0.0
      %4518 = vmatprep.subr.mxu0 0.0
      %4519 = vmatpush1.msra.mxu0 0.0
      %4520 = vmatprep.subr.mxu0 0.0
      %4521 = vmatpush1.msra.mxu0 0.0
      %4522 = vmatprep.subr.mxu0 0.0
      %4523 = vmatpush1.msra.mxu0 0.0
      %4524 = vmatprep.subr.mxu0 0.0
      %4525 = vmatpush1.msra.mxu0 0.0
      %4526 = vmatprep.subr.mxu0 0.0
      %4527 = vmatpush1.msra.mxu0 0.0
      %4528 = vmatprep.subr.mxu0 0.0
      %4529 = vmatpush1.msra.mxu0 0.0
      %4530 = vmatprep.subr.mxu0 0.0
      %4531 = vmatpush1.msra.mxu0 0.0
      %4532 = vmatprep.subr.mxu0 0.0
      %4533 = vmatpush1.msra.mxu0 0.0
      %4534 = vmatprep.subr.mxu0 0.0
      %4535 = vmatpush1.msra.mxu0 0.0
      %4536 = vmatprep.subr.mxu0 0.0
      %4537 = vmatpush1.msra.mxu0 0.0
      %4538 = vmatprep.subr.mxu0 0.0
      %4539 = vmatpush1.msra.mxu0 0.0
      %4540 = vmatprep.subr.mxu0 0.0
      %4541 = vmatpush1.msra.mxu0 0.0
      %4542 = vmatprep.subr.mxu0 0.0
      %4543 = vmatpush1.msra.mxu0 0.0
      %4544 = vmatprep.subr.mxu0 0.0
      %4545 = vmatpush1.msra.mxu0 0.0
      %4546 = vmatprep.subr.mxu0 0.0
      %4547 = vmatpush1.msra.mxu0 0.0
      %4548 = vmatprep.subr.mxu0 0.0
      %4549 = vmatpush1.msra.mxu0 0.0
      %4550 = vmatprep.mubr.f32.mxu0 0.0
      %4551 = vmatmul.mubr.f32.gmra.mrb[0].mxu0 %v4389
      %v4552 = vpop.f32.mrb[0].mxu0
      %v4553 = vadd.f32 0.0, %v4552
      %v4554 = vpop.f32.mrb[0].mxu0
      %4555 = vmatprep.mubr.f32.mxu0 0.0
      %4556 = vmatmul.mubr.f32.gmra.mrb[0].mxu0 %v4392
      %v4557 = vpop.f32.mrb[0].mxu0
      %v4558 = vadd.f32 0.0, %v4557
      %v4559 = vpop.f32.mrb[0].mxu0
      %4560 = vmatprep.mubr.f32.mxu0 0.0
      %4561 = vmatmul.mubr.f32.gmra.mrb[0].mxu0 %v4395
      %v4562 = vpop.f32.mrb[0].mxu0
      %v4563 = vadd.f32 0.0, %v4562
      %v4564 = vpop.f32.mrb[0].mxu0
      %4565 = vdwg.mxu0
      %v4566 = vadd.f32 %v4363, %v4470
      %v4567 = vadd.f32 %v4364, %v4472
      %v4568 = vadd.f32 %v4365, %v4553
      %v4569 = vadd.f32 %v4366, %v4476
      %v4570 = vadd.f32 %v4367, %v4478
      %v4571 = vadd.f32 %v4368, %v4558
      %v4572 = vadd.f32 %v4369, %v4482
      %v4573 = vadd.f32 %v4370, %v4484
      %v4574 = vadd.f32 %v4371, %v4563
      %s4575 = scalar_lea.vmem %s1, 528
      %v4576 = vld [vmem:[%s4575] sm:$0xff]
      %v4577 = vld [vmem:[%s4575 + $0x8] sm:$0xff]
      %v4578 = vld [vmem:[%s4575 + $0x10] sm:$0xff]
      %4579 = vrot.lane.b32.xlu0 %v171, 61
      %v4580 = vpop.permute.xlu0 %4579
      %4581 = vrot.lane.b32.xlu0 %v182, 61
      %v4582 = vpop.permute.xlu0 %4581
      %4583 = vrot.lane.b32.xlu0 %v172, 61
      %v4584 = vpop.permute.xlu0 %4583
      %4585 = vrot.lane.b32.xlu0 %v2954, 61
      %v4586 = vpop.permute.xlu0 %4585
      %vm4587 = vcmask 498688
      %v4588 = vsel %vm4587, %v4580, %v4582
      %v4589 = vsel %vm4587, %v4582, %v4584
      %v4590 = vsel %vm4587, %v4584, %v4586
      %v4592 = vsel %vm192, %v4576, 0
      %v4595 = vsel %vm192, %v4577, 0
      %v4598 = vsel %vm192, %v4578, 0
      %v4600 = vsel %vm202, %v4588, 0
      %v4602 = vsel %vm202, %v4589, 0
      %v4604 = vsel %vm202, %v4590, 0
      %4606 = vmatprep.subr.mxu0 %v4602
      %4607 = vmatpush1.msra.mxu0 %v4600
      %4608 = vmatprep.subr.mxu0 0.0
      %4609 = vmatpush1.msra.mxu0 0.0
      %4610 = vmatprep.subr.mxu0 0.0
      %4611 = vmatpush1.msra.mxu0 0.0
      %4612 = vmatprep.subr.mxu0 0.0
      %4613 = vmatpush1.msra.mxu0 0.0
      %4614 = vmatprep.subr.mxu0 0.0
      %4615 = vmatpush1.msra.mxu0 0.0
      %4616 = vmatprep.subr.mxu0 0.0
      %4617 = vmatpush1.msra.mxu0 0.0
      %4618 = vmatprep.subr.mxu0 0.0
      %4619 = vmatpush1.msra.mxu0 0.0
      %4620 = vmatprep.subr.mxu0 0.0
      %4621 = vmatpush1.msra.mxu0 0.0
      %4622 = vmatprep.subr.mxu0 0.0
      %4623 = vmatpush1.msra.mxu0 0.0
      %4624 = vmatprep.subr.mxu0 0.0
      %4625 = vmatpush1.msra.mxu0 0.0
      %4626 = vmatprep.subr.mxu0 0.0
      %4627 = vmatpush1.msra.mxu0 0.0
      %4628 = vmatprep.subr.mxu0 0.0
      %4629 = vmatpush1.msra.mxu0 0.0
      %4630 = vmatprep.subr.mxu0 0.0
      %4631 = vmatpush1.msra.mxu0 0.0
      %4632 = vmatprep.subr.mxu0 0.0
      %4633 = vmatpush1.msra.mxu0 0.0
      %4634 = vmatprep.subr.mxu0 0.0
      %4635 = vmatpush1.msra.mxu0 0.0
      %4636 = vmatprep.subr.mxu0 0.0
      %4637 = vmatpush1.msra.mxu0 0.0
      %4638 = vmatprep.subr.mxu0 0.0
      %4639 = vmatpush1.msra.mxu0 0.0
      %4640 = vmatprep.subr.mxu0 0.0
      %4641 = vmatpush1.msra.mxu0 0.0
      %4642 = vmatprep.subr.mxu0 0.0
      %4643 = vmatpush1.msra.mxu0 0.0
      %4644 = vmatprep.subr.mxu0 0.0
      %4645 = vmatpush1.msra.mxu0 0.0
      %4646 = vmatprep.subr.mxu0 0.0
      %4647 = vmatpush1.msra.mxu0 0.0
      %4648 = vmatprep.subr.mxu0 0.0
      %4649 = vmatpush1.msra.mxu0 0.0
      %4650 = vmatprep.subr.mxu0 0.0
      %4651 = vmatpush1.msra.mxu0 0.0
      %4652 = vmatprep.subr.mxu0 0.0
      %4653 = vmatpush1.msra.mxu0 0.0
      %4654 = vmatprep.subr.mxu0 0.0
      %4655 = vmatpush1.msra.mxu0 0.0
      %4656 = vmatprep.subr.mxu0 0.0
      %4657 = vmatpush1.msra.mxu0 0.0
      %4658 = vmatprep.subr.mxu0 0.0
      %4659 = vmatpush1.msra.mxu0 0.0
      %4660 = vmatprep.subr.mxu0 0.0
      %4661 = vmatpush1.msra.mxu0 0.0
      %4662 = vmatprep.subr.mxu0 0.0
      %4663 = vmatpush1.msra.mxu0 0.0
      %4664 = vmatprep.subr.mxu0 0.0
      %4665 = vmatpush1.msra.mxu0 0.0
      %4666 = vmatprep.subr.mxu0 0.0
      %4667 = vmatpush1.msra.mxu0 0.0
      %4668 = vmatprep.subr.mxu0 0.0
      %4669 = vmatpush1.msra.mxu0 0.0
      %4670 = vmatprep.mubr.f32.mxu0 0.0
      %4671 = vmatmul.mubr.f32.gmra.mrb[0].mxu0 %v4592
      %v4672 = vpop.f32.mrb[0].mxu0
      %v4673 = vadd.f32 0.0, %v4672
      %v4674 = vpop.f32.mrb[0].mxu0
      %v4675 = vadd.f32 0.0, %v4674
      %4676 = vmatprep.mubr.f32.mxu0 0.0
      %4677 = vmatmul.mubr.f32.gmra.mrb[0].mxu0 %v4595
      %v4678 = vpop.f32.mrb[0].mxu0
      %v4679 = vadd.f32 0.0, %v4678
      %v4680 = vpop.f32.mrb[0].mxu0
      %v4681 = vadd.f32 0.0, %v4680
      %4682 = vmatprep.mubr.f32.mxu0 0.0
      %4683 = vmatmul.mubr.f32.gmra.mrb[0].mxu0 %v4598
      %v4684 = vpop.f32.mrb[0].mxu0
      %v4685 = vadd.f32 0.0, %v4684
      %v4686 = vpop.f32.mrb[0].mxu0
      %v4687 = vadd.f32 0.0, %v4686
      %4688 = vdwg.mxu0
      %4689 = vmatprep.subr.mxu0 0.0
      %4690 = vmatpush1.msra.mxu0 %v4604
      %4691 = vmatprep.subr.mxu0 0.0
      %4692 = vmatpush1.msra.mxu0 0.0
      %4693 = vmatprep.subr.mxu0 0.0
      %4694 = vmatpush1.msra.mxu0 0.0
      %4695 = vmatprep.subr.mxu0 0.0
      %4696 = vmatpush1.msra.mxu0 0.0
      %4697 = vmatprep.subr.mxu0 0.0
      %4698 = vmatpush1.msra.mxu0 0.0
      %4699 = vmatprep.subr.mxu0 0.0
      %4700 = vmatpush1.msra.mxu0 0.0
      %4701 = vmatprep.subr.mxu0 0.0
      %4702 = vmatpush1.msra.mxu0 0.0
      %4703 = vmatprep.subr.mxu0 0.0
      %4704 = vmatpush1.msra.mxu0 0.0
      %4705 = vmatprep.subr.mxu0 0.0
      %4706 = vmatpush1.msra.mxu0 0.0
      %4707 = vmatprep.subr.mxu0 0.0
      %4708 = vmatpush1.msra.mxu0 0.0
      %4709 = vmatprep.subr.mxu0 0.0
      %4710 = vmatpush1.msra.mxu0 0.0
      %4711 = vmatprep.subr.mxu0 0.0
      %4712 = vmatpush1.msra.mxu0 0.0
      %4713 = vmatprep.subr.mxu0 0.0
      %4714 = vmatpush1.msra.mxu0 0.0
      %4715 = vmatprep.subr.mxu0 0.0
      %4716 = vmatpush1.msra.mxu0 0.0
      %4717 = vmatprep.subr.mxu0 0.0
      %4718 = vmatpush1.msra.mxu0 0.0
      %4719 = vmatprep.subr.mxu0 0.0
      %4720 = vmatpush1.msra.mxu0 0.0
      %4721 = vmatprep.subr.mxu0 0.0
      %4722 = vmatpush1.msra.mxu0 0.0
      %4723 = vmatprep.subr.mxu0 0.0
      %4724 = vmatpush1.msra.mxu0 0.0
      %4725 = vmatprep.subr.mxu0 0.0
      %4726 = vmatpush1.msra.mxu0 0.0
      %4727 = vmatprep.subr.mxu0 0.0
      %4728 = vmatpush1.msra.mxu0 0.0
      %4729 = vmatprep.subr.mxu0 0.0
      %4730 = vmatpush1.msra.mxu0 0.0
      %4731 = vmatprep.subr.mxu0 0.0
      %4732 = vmatpush1.msra.mxu0 0.0
      %4733 = vmatprep.subr.mxu0 0.0
      %4734 = vmatpush1.msra.mxu0 0.0
      %4735 = vmatprep.subr.mxu0 0.0
      %4736 = vmatpush1.msra.mxu0 0.0
      %4737 = vmatprep.subr.mxu0 0.0
      %4738 = vmatpush1.msra.mxu0 0.0
      %4739 = vmatprep.subr.mxu0 0.0
      %4740 = vmatpush1.msra.mxu0 0.0
      %4741 = vmatprep.subr.mxu0 0.0
      %4742 = vmatpush1.msra.mxu0 0.0
      %4743 = vmatprep.subr.mxu0 0.0
      %4744 = vmatpush1.msra.mxu0 0.0
      %4745 = vmatprep.subr.mxu0 0.0
      %4746 = vmatpush1.msra.mxu0 0.0
      %4747 = vmatprep.subr.mxu0 0.0
      %4748 = vmatpush1.msra.mxu0 0.0
      %4749 = vmatprep.subr.mxu0 0.0
      %4750 = vmatpush1.msra.mxu0 0.0
      %4751 = vmatprep.subr.mxu0 0.0
      %4752 = vmatpush1.msra.mxu0 0.0
      %4753 = vmatprep.mubr.f32.mxu0 0.0
      %4754 = vmatmul.mubr.f32.gmra.mrb[0].mxu0 %v4592
      %v4755 = vpop.f32.mrb[0].mxu0
      %v4756 = vadd.f32 0.0, %v4755
      %v4757 = vpop.f32.mrb[0].mxu0
      %4758 = vmatprep.mubr.f32.mxu0 0.0
      %4759 = vmatmul.mubr.f32.gmra.mrb[0].mxu0 %v4595
      %v4760 = vpop.f32.mrb[0].mxu0
      %v4761 = vadd.f32 0.0, %v4760
      %v4762 = vpop.f32.mrb[0].mxu0
      %4763 = vmatprep.mubr.f32.mxu0 0.0
      %4764 = vmatmul.mubr.f32.gmra.mrb[0].mxu0 %v4598
      %v4765 = vpop.f32.mrb[0].mxu0
      %v4766 = vadd.f32 0.0, %v4765
      %v4767 = vpop.f32.mrb[0].mxu0
      %4768 = vdwg.mxu0
      %v4769 = vadd.f32 %v4566, %v4673
      %v4770 = vadd.f32 %v4567, %v4675
      %v4771 = vadd.f32 %v4568, %v4756
      %v4772 = vadd.f32 %v4569, %v4679
      %v4773 = vadd.f32 %v4570, %v4681
      %v4774 = vadd.f32 %v4571, %v4761
      %v4775 = vadd.f32 %v4572, %v4685
      %v4776 = vadd.f32 %v4573, %v4687
      %v4777 = vadd.f32 %v4574, %v4766
      %s4778 = scalar_lea.vmem %s1, 552
      %v4779 = vld [vmem:[%s4778] sm:$0xff]
      %v4780 = vld [vmem:[%s4778 + $0x8] sm:$0xff]
      %v4781 = vld [vmem:[%s4778 + $0x10] sm:$0xff]
      %4782 = vrot.lane.b32.xlu0 %v171, 60
      %v4783 = vpop.permute.xlu0 %4782
      %4784 = vrot.lane.b32.xlu0 %v182, 60
      %v4785 = vpop.permute.xlu0 %4784
      %4786 = vrot.lane.b32.xlu0 %v172, 60
      %v4787 = vpop.permute.xlu0 %4786
      %4788 = vrot.lane.b32.xlu0 %v2954, 60
      %v4789 = vpop.permute.xlu0 %4788
      %vm4790 = vcmask 490496
      %v4791 = vsel %vm4790, %v4783, %v4785
      %v4792 = vsel %vm4790, %v4785, %v4787
      %v4793 = vsel %vm4790, %v4787, %v4789
      %v4795 = vsel %vm192, %v4779, 0
      %v4798 = vsel %vm192, %v4780, 0
      %v4801 = vsel %vm192, %v4781, 0
      %v4803 = vsel %vm202, %v4791, 0
      %v4805 = vsel %vm202, %v4792, 0
      %v4807 = vsel %vm202, %v4793, 0
      %4809 = vmatprep.subr.mxu0 %v4805
      %4810 = vmatpush1.msra.mxu0 %v4803
      %4811 = vmatprep.subr.mxu0 0.0
      %4812 = vmatpush1.msra.mxu0 0.0
      %4813 = vmatprep.subr.mxu0 0.0
      %4814 = vmatpush1.msra.mxu0 0.0
      %4815 = vmatprep.subr.mxu0 0.0
      %4816 = vmatpush1.msra.mxu0 0.0
      %4817 = vmatprep.subr.mxu0 0.0
      %4818 = vmatpush1.msra.mxu0 0.0
      %4819 = vmatprep.subr.mxu0 0.0
      %4820 = vmatpush1.msra.mxu0 0.0
      %4821 = vmatprep.subr.mxu0 0.0
      %4822 = vmatpush1.msra.mxu0 0.0
      %4823 = vmatprep.subr.mxu0 0.0
      %4824 = vmatpush1.msra.mxu0 0.0
      %4825 = vmatprep.subr.mxu0 0.0
      %4826 = vmatpush1.msra.mxu0 0.0
      %4827 = vmatprep.subr.mxu0 0.0
      %4828 = vmatpush1.msra.mxu0 0.0
      %4829 = vmatprep.subr.mxu0 0.0
      %4830 = vmatpush1.msra.mxu0 0.0
      %4831 = vmatprep.subr.mxu0 0.0
      %4832 = vmatpush1.msra.mxu0 0.0
      %4833 = vmatprep.subr.mxu0 0.0
      %4834 = vmatpush1.msra.mxu0 0.0
      %4835 = vmatprep.subr.mxu0 0.0
      %4836 = vmatpush1.msra.mxu0 0.0
      %4837 = vmatprep.subr.mxu0 0.0
      %4838 = vmatpush1.msra.mxu0 0.0
      %4839 = vmatprep.subr.mxu0 0.0
      %4840 = vmatpush1.msra.mxu0 0.0
      %4841 = vmatprep.subr.mxu0 0.0
      %4842 = vmatpush1.msra.mxu0 0.0
      %4843 = vmatprep.subr.mxu0 0.0
      %4844 = vmatpush1.msra.mxu0 0.0
      %4845 = vmatprep.subr.mxu0 0.0
      %4846 = vmatpush1.msra.mxu0 0.0
      %4847 = vmatprep.subr.mxu0 0.0
      %4848 = vmatpush1.msra.mxu0 0.0
      %4849 = vmatprep.subr.mxu0 0.0
      %4850 = vmatpush1.msra.mxu0 0.0
      %4851 = vmatprep.subr.mxu0 0.0
      %4852 = vmatpush1.msra.mxu0 0.0
      %4853 = vmatprep.subr.mxu0 0.0
      %4854 = vmatpush1.msra.mxu0 0.0
      %4855 = vmatprep.subr.mxu0 0.0
      %4856 = vmatpush1.msra.mxu0 0.0
      %4857 = vmatprep.subr.mxu0 0.0
      %4858 = vmatpush1.msra.mxu0 0.0
      %4859 = vmatprep.subr.mxu0 0.0
      %4860 = vmatpush1.msra.mxu0 0.0
      %4861 = vmatprep.subr.mxu0 0.0
      %4862 = vmatpush1.msra.mxu0 0.0
      %4863 = vmatprep.subr.mxu0 0.0
      %4864 = vmatpush1.msra.mxu0 0.0
      %4865 = vmatprep.subr.mxu0 0.0
      %4866 = vmatpush1.msra.mxu0 0.0
      %4867 = vmatprep.subr.mxu0 0.0
      %4868 = vmatpush1.msra.mxu0 0.0
      %4869 = vmatprep.subr.mxu0 0.0
      %4870 = vmatpush1.msra.mxu0 0.0
      %4871 = vmatprep.subr.mxu0 0.0
      %4872 = vmatpush1.msra.mxu0 0.0
      %4873 = vmatprep.mubr.f32.mxu0 0.0
      %4874 = vmatmul.mubr.f32.gmra.mrb[0].mxu0 %v4795
      %v4875 = vpop.f32.mrb[0].mxu0
      %v4876 = vadd.f32 0.0, %v4875
      %v4877 = vpop.f32.mrb[0].mxu0
      %v4878 = vadd.f32 0.0, %v4877
      %4879 = vmatprep.mubr.f32.mxu0 0.0
      %4880 = vmatmul.mubr.f32.gmra.mrb[0].mxu0 %v4798
      %v4881 = vpop.f32.mrb[0].mxu0
      %v4882 = vadd.f32 0.0, %v4881
      %v4883 = vpop.f32.mrb[0].mxu0
      %v4884 = vadd.f32 0.0, %v4883
      %4885 = vmatprep.mubr.f32.mxu0 0.0
      %4886 = vmatmul.mubr.f32.gmra.mrb[0].mxu0 %v4801
      %v4887 = vpop.f32.mrb[0].mxu0
      %v4888 = vadd.f32 0.0, %v4887
      %v4889 = vpop.f32.mrb[0].mxu0
      %v4890 = vadd.f32 0.0, %v4889
      %4891 = vdwg.mxu0
      %4892 = vmatprep.subr.mxu0 0.0
      %4893 = vmatpush1.msra.mxu0 %v4807
      %4894 = vmatprep.subr.mxu0 0.0
      %4895 = vmatpush1.msra.mxu0 0.0
      %4896 = vmatprep.subr.mxu0 0.0
      %4897 = vmatpush1.msra.mxu0 0.0
      %4898 = vmatprep.subr.mxu0 0.0
      %4899 = vmatpush1.msra.mxu0 0.0
      %4900 = vmatprep.subr.mxu0 0.0
      %4901 = vmatpush1.msra.mxu0 0.0
      %4902 = vmatprep.subr.mxu0 0.0
      %4903 = vmatpush1.msra.mxu0 0.0
      %4904 = vmatprep.subr.mxu0 0.0
      %4905 = vmatpush1.msra.mxu0 0.0
      %4906 = vmatprep.subr.mxu0 0.0
      %4907 = vmatpush1.msra.mxu0 0.0
      %4908 = vmatprep.subr.mxu0 0.0
      %4909 = vmatpush1.msra.mxu0 0.0
      %4910 = vmatprep.subr.mxu0 0.0
      %4911 = vmatpush1.msra.mxu0 0.0
      %4912 = vmatprep.subr.mxu0 0.0
      %4913 = vmatpush1.msra.mxu0 0.0
      %4914 = vmatprep.subr.mxu0 0.0
      %4915 = vmatpush1.msra.mxu0 0.0
      %4916 = vmatprep.subr.mxu0 0.0
      %4917 = vmatpush1.msra.mxu0 0.0
      %4918 = vmatprep.subr.mxu0 0.0
      %4919 = vmatpush1.msra.mxu0 0.0
      %4920 = vmatprep.subr.mxu0 0.0
      %4921 = vmatpush1.msra.mxu0 0.0
      %4922 = vmatprep.subr.mxu0 0.0
      %4923 = vmatpush1.msra.mxu0 0.0
      %4924 = vmatprep.subr.mxu0 0.0
      %4925 = vmatpush1.msra.mxu0 0.0
      %4926 = vmatprep.subr.mxu0 0.0
      %4927 = vmatpush1.msra.mxu0 0.0
      %4928 = vmatprep.subr.mxu0 0.0
      %4929 = vmatpush1.msra.mxu0 0.0
      %4930 = vmatprep.subr.mxu0 0.0
      %4931 = vmatpush1.msra.mxu0 0.0
      %4932 = vmatprep.subr.mxu0 0.0
      %4933 = vmatpush1.msra.mxu0 0.0
      %4934 = vmatprep.subr.mxu0 0.0
      %4935 = vmatpush1.msra.mxu0 0.0
      %4936 = vmatprep.subr.mxu0 0.0
      %4937 = vmatpush1.msra.mxu0 0.0
      %4938 = vmatprep.subr.mxu0 0.0
      %4939 = vmatpush1.msra.mxu0 0.0
      %4940 = vmatprep.subr.mxu0 0.0
      %4941 = vmatpush1.msra.mxu0 0.0
      %4942 = vmatprep.subr.mxu0 0.0
      %4943 = vmatpush1.msra.mxu0 0.0
      %4944 = vmatprep.subr.mxu0 0.0
      %4945 = vmatpush1.msra.mxu0 0.0
      %4946 = vmatprep.subr.mxu0 0.0
      %4947 = vmatpush1.msra.mxu0 0.0
      %4948 = vmatprep.subr.mxu0 0.0
      %4949 = vmatpush1.msra.mxu0 0.0
      %4950 = vmatprep.subr.mxu0 0.0
      %4951 = vmatpush1.msra.mxu0 0.0
      %4952 = vmatprep.subr.mxu0 0.0
      %4953 = vmatpush1.msra.mxu0 0.0
      %4954 = vmatprep.subr.mxu0 0.0
      %4955 = vmatpush1.msra.mxu0 0.0
      %4956 = vmatprep.mubr.f32.mxu0 0.0
      %4957 = vmatmul.mubr.f32.gmra.mrb[0].mxu0 %v4795
      %v4958 = vpop.f32.mrb[0].mxu0
      %v4959 = vadd.f32 0.0, %v4958
      %v4960 = vpop.f32.mrb[0].mxu0
      %4961 = vmatprep.mubr.f32.mxu0 0.0
      %4962 = vmatmul.mubr.f32.gmra.mrb[0].mxu0 %v4798
      %v4963 = vpop.f32.mrb[0].mxu0
      %v4964 = vadd.f32 0.0, %v4963
      %v4965 = vpop.f32.mrb[0].mxu0
      %4966 = vmatprep.mubr.f32.mxu0 0.0
      %4967 = vmatmul.mubr.f32.gmra.mrb[0].mxu0 %v4801
      %v4968 = vpop.f32.mrb[0].mxu0
      %v4969 = vadd.f32 0.0, %v4968
      %v4970 = vpop.f32.mrb[0].mxu0
      %4971 = vdwg.mxu0
      %v4972 = vadd.f32 %v4769, %v4876
      %v4973 = vadd.f32 %v4770, %v4878
      %v4974 = vadd.f32 %v4771, %v4959
      %v4975 = vadd.f32 %v4772, %v4882
      %v4976 = vadd.f32 %v4773, %v4884
      %v4977 = vadd.f32 %v4774, %v4964
      %v4978 = vadd.f32 %v4775, %v4888
      %v4979 = vadd.f32 %v4776, %v4890
      %v4980 = vadd.f32 %v4777, %v4969
      %s4981 = scalar_lea.vmem %s1, 576
      %v4982 = vld [vmem:[%s4981] sm:$0xff]
      %v4983 = vld [vmem:[%s4981 + $0x8] sm:$0xff]
      %v4984 = vld [vmem:[%s4981 + $0x10] sm:$0xff]
      %4985 = vrot.lane.b32.xlu0 %v171, 59
      %v4986 = vpop.permute.xlu0 %4985
      %4987 = vrot.lane.b32.xlu0 %v182, 59
      %v4988 = vpop.permute.xlu0 %4987
      %4989 = vrot.lane.b32.xlu0 %v172, 59
      %v4990 = vpop.permute.xlu0 %4989
      %4991 = vrot.lane.b32.xlu0 %v2954, 59
      %v4992 = vpop.permute.xlu0 %4991
      %vm4993 = vcmask 482304
      %v4994 = vsel %vm4993, %v4986, %v4988
      %v4995 = vsel %vm4993, %v4988, %v4990
      %v4996 = vsel %vm4993, %v4990, %v4992
      %v4998 = vsel %vm192, %v4982, 0
      %v5001 = vsel %vm192, %v4983, 0
      %v5004 = vsel %vm192, %v4984, 0
      %v5006 = vsel %vm202, %v4994, 0
      %v5008 = vsel %vm202, %v4995, 0
      %v5010 = vsel %vm202, %v4996, 0
      %5012 = vmatprep.subr.mxu0 %v5008
      %5013 = vmatpush1.msra.mxu0 %v5006
      %5014 = vmatprep.subr.mxu0 0.0
      %5015 = vmatpush1.msra.mxu0 0.0
      %5016 = vmatprep.subr.mxu0 0.0
      %5017 = vmatpush1.msra.mxu0 0.0
      %5018 = vmatprep.subr.mxu0 0.0
      %5019 = vmatpush1.msra.mxu0 0.0
      %5020 = vmatprep.subr.mxu0 0.0
      %5021 = vmatpush1.msra.mxu0 0.0
      %5022 = vmatprep.subr.mxu0 0.0
      %5023 = vmatpush1.msra.mxu0 0.0
      %5024 = vmatprep.subr.mxu0 0.0
      %5025 = vmatpush1.msra.mxu0 0.0
      %5026 = vmatprep.subr.mxu0 0.0
      %5027 = vmatpush1.msra.mxu0 0.0
      %5028 = vmatprep.subr.mxu0 0.0
      %5029 = vmatpush1.msra.mxu0 0.0
      %5030 = vmatprep.subr.mxu0 0.0
      %5031 = vmatpush1.msra.mxu0 0.0
      %5032 = vmatprep.subr.mxu0 0.0
      %5033 = vmatpush1.msra.mxu0 0.0
      %5034 = vmatprep.subr.mxu0 0.0
      %5035 = vmatpush1.msra.mxu0 0.0
      %5036 = vmatprep.subr.mxu0 0.0
      %5037 = vmatpush1.msra.mxu0 0.0
      %5038 = vmatprep.subr.mxu0 0.0
      %5039 = vmatpush1.msra.mxu0 0.0
      %5040 = vmatprep.subr.mxu0 0.0
      %5041 = vmatpush1.msra.mxu0 0.0
      %5042 = vmatprep.subr.mxu0 0.0
      %5043 = vmatpush1.msra.mxu0 0.0
      %5044 = vmatprep.subr.mxu0 0.0
      %5045 = vmatpush1.msra.mxu0 0.0
      %5046 = vmatprep.subr.mxu0 0.0
      %5047 = vmatpush1.msra.mxu0 0.0
      %5048 = vmatprep.subr.mxu0 0.0
      %5049 = vmatpush1.msra.mxu0 0.0
      %5050 = vmatprep.subr.mxu0 0.0
      %5051 = vmatpush1.msra.mxu0 0.0
      %5052 = vmatprep.subr.mxu0 0.0
      %5053 = vmatpush1.msra.mxu0 0.0
      %5054 = vmatprep.subr.mxu0 0.0
      %5055 = vmatpush1.msra.mxu0 0.0
      %5056 = vmatprep.subr.mxu0 0.0
      %5057 = vmatpush1.msra.mxu0 0.0
      %5058 = vmatprep.subr.mxu0 0.0
      %5059 = vmatpush1.msra.mxu0 0.0
      %5060 = vmatprep.subr.mxu0 0.0
      %5061 = vmatpush1.msra.mxu0 0.0
      %5062 = vmatprep.subr.mxu0 0.0
      %5063 = vmatpush1.msra.mxu0 0.0
      %5064 = vmatprep.subr.mxu0 0.0
      %5065 = vmatpush1.msra.mxu0 0.0
      %5066 = vmatprep.subr.mxu0 0.0
      %5067 = vmatpush1.msra.mxu0 0.0
      %5068 = vmatprep.subr.mxu0 0.0
      %5069 = vmatpush1.msra.mxu0 0.0
      %5070 = vmatprep.subr.mxu0 0.0
      %5071 = vmatpush1.msra.mxu0 0.0
      %5072 = vmatprep.subr.mxu0 0.0
      %5073 = vmatpush1.msra.mxu0 0.0
      %5074 = vmatprep.subr.mxu0 0.0
      %5075 = vmatpush1.msra.mxu0 0.0
      %5076 = vmatprep.mubr.f32.mxu0 0.0
      %5077 = vmatmul.mubr.f32.gmra.mrb[0].mxu0 %v4998
      %v5078 = vpop.f32.mrb[0].mxu0
      %v5079 = vadd.f32 0.0, %v5078
      %v5080 = vpop.f32.mrb[0].mxu0
      %v5081 = vadd.f32 0.0, %v5080
      %5082 = vmatprep.mubr.f32.mxu0 0.0
      %5083 = vmatmul.mubr.f32.gmra.mrb[0].mxu0 %v5001
      %v5084 = vpop.f32.mrb[0].mxu0
      %v5085 = vadd.f32 0.0, %v5084
      %v5086 = vpop.f32.mrb[0].mxu0
      %v5087 = vadd.f32 0.0, %v5086
      %5088 = vmatprep.mubr.f32.mxu0 0.0
      %5089 = vmatmul.mubr.f32.gmra.mrb[0].mxu0 %v5004
      %v5090 = vpop.f32.mrb[0].mxu0
      %v5091 = vadd.f32 0.0, %v5090
      %v5092 = vpop.f32.mrb[0].mxu0
      %v5093 = vadd.f32 0.0, %v5092
      %5094 = vdwg.mxu0
      %5095 = vmatprep.subr.mxu0 0.0
      %5096 = vmatpush1.msra.mxu0 %v5010
      %5097 = vmatprep.subr.mxu0 0.0
      %5098 = vmatpush1.msra.mxu0 0.0
      %5099 = vmatprep.subr.mxu0 0.0
      %5100 = vmatpush1.msra.mxu0 0.0
      %5101 = vmatprep.subr.mxu0 0.0
      %5102 = vmatpush1.msra.mxu0 0.0
      %5103 = vmatprep.subr.mxu0 0.0
      %5104 = vmatpush1.msra.mxu0 0.0
      %5105 = vmatprep.subr.mxu0 0.0
      %5106 = vmatpush1.msra.mxu0 0.0
      %5107 = vmatprep.subr.mxu0 0.0
      %5108 = vmatpush1.msra.mxu0 0.0
      %5109 = vmatprep.subr.mxu0 0.0
      %5110 = vmatpush1.msra.mxu0 0.0
      %5111 = vmatprep.subr.mxu0 0.0
      %5112 = vmatpush1.msra.mxu0 0.0
      %5113 = vmatprep.subr.mxu0 0.0
      %5114 = vmatpush1.msra.mxu0 0.0
      %5115 = vmatprep.subr.mxu0 0.0
      %5116 = vmatpush1.msra.mxu0 0.0
      %5117 = vmatprep.subr.mxu0 0.0
      %5118 = vmatpush1.msra.mxu0 0.0
      %5119 = vmatprep.subr.mxu0 0.0
      %5120 = vmatpush1.msra.mxu0 0.0
      %5121 = vmatprep.subr.mxu0 0.0
      %5122 = vmatpush1.msra.mxu0 0.0
      %5123 = vmatprep.subr.mxu0 0.0
      %5124 = vmatpush1.msra.mxu0 0.0
      %5125 = vmatprep.subr.mxu0 0.0
      %5126 = vmatpush1.msra.mxu0 0.0
      %5127 = vmatprep.subr.mxu0 0.0
      %5128 = vmatpush1.msra.mxu0 0.0
      %5129 = vmatprep.subr.mxu0 0.0
      %5130 = vmatpush1.msra.mxu0 0.0
      %5131 = vmatprep.subr.mxu0 0.0
      %5132 = vmatpush1.msra.mxu0 0.0
      %5133 = vmatprep.subr.mxu0 0.0
      %5134 = vmatpush1.msra.mxu0 0.0
      %5135 = vmatprep.subr.mxu0 0.0
      %5136 = vmatpush1.msra.mxu0 0.0
      %5137 = vmatprep.subr.mxu0 0.0
      %5138 = vmatpush1.msra.mxu0 0.0
      %5139 = vmatprep.subr.mxu0 0.0
      %5140 = vmatpush1.msra.mxu0 0.0
      %5141 = vmatprep.subr.mxu0 0.0
      %5142 = vmatpush1.msra.mxu0 0.0
      %5143 = vmatprep.subr.mxu0 0.0
      %5144 = vmatpush1.msra.mxu0 0.0
      %5145 = vmatprep.subr.mxu0 0.0
      %5146 = vmatpush1.msra.mxu0 0.0
      %5147 = vmatprep.subr.mxu0 0.0
      %5148 = vmatpush1.msra.mxu0 0.0
      %5149 = vmatprep.subr.mxu0 0.0
      %5150 = vmatpush1.msra.mxu0 0.0
      %5151 = vmatprep.subr.mxu0 0.0
      %5152 = vmatpush1.msra.mxu0 0.0
      %5153 = vmatprep.subr.mxu0 0.0
      %5154 = vmatpush1.msra.mxu0 0.0
      %5155 = vmatprep.subr.mxu0 0.0
      %5156 = vmatpush1.msra.mxu0 0.0
      %5157 = vmatprep.subr.mxu0 0.0
      %5158 = vmatpush1.msra.mxu0 0.0
      %5159 = vmatprep.mubr.f32.mxu0 0.0
      %5160 = vmatmul.mubr.f32.gmra.mrb[0].mxu0 %v4998
      %v5161 = vpop.f32.mrb[0].mxu0
      %v5162 = vadd.f32 0.0, %v5161
      %v5163 = vpop.f32.mrb[0].mxu0
      %5164 = vmatprep.mubr.f32.mxu0 0.0
      %5165 = vmatmul.mubr.f32.gmra.mrb[0].mxu0 %v5001
      %v5166 = vpop.f32.mrb[0].mxu0
      %v5167 = vadd.f32 0.0, %v5166
      %v5168 = vpop.f32.mrb[0].mxu0
      %5169 = vmatprep.mubr.f32.mxu0 0.0
      %5170 = vmatmul.mubr.f32.gmra.mrb[0].mxu0 %v5004
      %v5171 = vpop.f32.mrb[0].mxu0
      %v5172 = vadd.f32 0.0, %v5171
      %v5173 = vpop.f32.mrb[0].mxu0
      %5174 = vdwg.mxu0
      %v5175 = vadd.f32 %v4972, %v5079
      %v5176 = vadd.f32 %v4973, %v5081
      %v5177 = vadd.f32 %v4974, %v5162
      %v5178 = vadd.f32 %v4975, %v5085
      %v5179 = vadd.f32 %v4976, %v5087
      %v5180 = vadd.f32 %v4977, %v5167
      %v5181 = vadd.f32 %v4978, %v5091
      %v5182 = vadd.f32 %v4979, %v5093
      %v5183 = vadd.f32 %v4980, %v5172
      %s5184 = scalar_lea.vmem %s1, 600
      %v5185 = vld [vmem:[%s5184] sm:$0xff]
      %v5186 = vld [vmem:[%s5184 + $0x8] sm:$0xff]
      %v5187 = vld [vmem:[%s5184 + $0x10] sm:$0xff]
      %5188 = vrot.lane.b32.xlu0 %v171, 58
      %v5189 = vpop.permute.xlu0 %5188
      %5190 = vrot.lane.b32.xlu0 %v182, 58
      %v5191 = vpop.permute.xlu0 %5190
      %5192 = vrot.lane.b32.xlu0 %v172, 58
      %v5193 = vpop.permute.xlu0 %5192
      %5194 = vrot.lane.b32.xlu0 %v2954, 58
      %v5195 = vpop.permute.xlu0 %5194
      %vm5196 = vcmask 474112
      %v5197 = vsel %vm5196, %v5189, %v5191
      %v5198 = vsel %vm5196, %v5191, %v5193
      %v5199 = vsel %vm5196, %v5193, %v5195
      %v5201 = vsel %vm192, %v5185, 0
      %v5204 = vsel %vm192, %v5186, 0
      %v5207 = vsel %vm192, %v5187, 0
      %v5209 = vsel %vm202, %v5197, 0
      %v5211 = vsel %vm202, %v5198, 0
      %v5213 = vsel %vm202, %v5199, 0
      %5215 = vmatprep.subr.mxu0 %v5211
      %5216 = vmatpush1.msra.mxu0 %v5209
      %5217 = vmatprep.subr.mxu0 0.0
      %5218 = vmatpush1.msra.mxu0 0.0
      %5219 = vmatprep.subr.mxu0 0.0
      %5220 = vmatpush1.msra.mxu0 0.0
      %5221 = vmatprep.subr.mxu0 0.0
      %5222 = vmatpush1.msra.mxu0 0.0
      %5223 = vmatprep.subr.mxu0 0.0
      %5224 = vmatpush1.msra.mxu0 0.0
      %5225 = vmatprep.subr.mxu0 0.0
      %5226 = vmatpush1.msra.mxu0 0.0
      %5227 = vmatprep.subr.mxu0 0.0
      %5228 = vmatpush1.msra.mxu0 0.0
      %5229 = vmatprep.subr.mxu0 0.0
      %5230 = vmatpush1.msra.mxu0 0.0
      %5231 = vmatprep.subr.mxu0 0.0
      %5232 = vmatpush1.msra.mxu0 0.0
      %5233 = vmatprep.subr.mxu0 0.0
      %5234 = vmatpush1.msra.mxu0 0.0
      %5235 = vmatprep.subr.mxu0 0.0
      %5236 = vmatpush1.msra.mxu0 0.0
      %5237 = vmatprep.subr.mxu0 0.0
      %5238 = vmatpush1.msra.mxu0 0.0
      %5239 = vmatprep.subr.mxu0 0.0
      %5240 = vmatpush1.msra.mxu0 0.0
      %5241 = vmatprep.subr.mxu0 0.0
      %5242 = vmatpush1.msra.mxu0 0.0
      %5243 = vmatprep.subr.mxu0 0.0
      %5244 = vmatpush1.msra.mxu0 0.0
      %5245 = vmatprep.subr.mxu0 0.0
      %5246 = vmatpush1.msra.mxu0 0.0
      %5247 = vmatprep.subr.mxu0 0.0
      %5248 = vmatpush1.msra.mxu0 0.0
      %5249 = vmatprep.subr.mxu0 0.0
      %5250 = vmatpush1.msra.mxu0 0.0
      %5251 = vmatprep.subr.mxu0 0.0
      %5252 = vmatpush1.msra.mxu0 0.0
      %5253 = vmatprep.subr.mxu0 0.0
      %5254 = vmatpush1.msra.mxu0 0.0
      %5255 = vmatprep.subr.mxu0 0.0
      %5256 = vmatpush1.msra.mxu0 0.0
      %5257 = vmatprep.subr.mxu0 0.0
      %5258 = vmatpush1.msra.mxu0 0.0
      %5259 = vmatprep.subr.mxu0 0.0
      %5260 = vmatpush1.msra.mxu0 0.0
      %5261 = vmatprep.subr.mxu0 0.0
      %5262 = vmatpush1.msra.mxu0 0.0
      %5263 = vmatprep.subr.mxu0 0.0
      %5264 = vmatpush1.msra.mxu0 0.0
      %5265 = vmatprep.subr.mxu0 0.0
      %5266 = vmatpush1.msra.mxu0 0.0
      %5267 = vmatprep.subr.mxu0 0.0
      %5268 = vmatpush1.msra.mxu0 0.0
      %5269 = vmatprep.subr.mxu0 0.0
      %5270 = vmatpush1.msra.mxu0 0.0
      %5271 = vmatprep.subr.mxu0 0.0
      %5272 = vmatpush1.msra.mxu0 0.0
      %5273 = vmatprep.subr.mxu0 0.0
      %5274 = vmatpush1.msra.mxu0 0.0
      %5275 = vmatprep.subr.mxu0 0.0
      %5276 = vmatpush1.msra.mxu0 0.0
      %5277 = vmatprep.subr.mxu0 0.0
      %5278 = vmatpush1.msra.mxu0 0.0
      %5279 = vmatprep.mubr.f32.mxu0 0.0
      %5280 = vmatmul.mubr.f32.gmra.mrb[0].mxu0 %v5201
      %v5281 = vpop.f32.mrb[0].mxu0
      %v5282 = vadd.f32 0.0, %v5281
      %v5283 = vpop.f32.mrb[0].mxu0
      %v5284 = vadd.f32 0.0, %v5283
      %5285 = vmatprep.mubr.f32.mxu0 0.0
      %5286 = vmatmul.mubr.f32.gmra.mrb[0].mxu0 %v5204
      %v5287 = vpop.f32.mrb[0].mxu0
      %v5288 = vadd.f32 0.0, %v5287
      %v5289 = vpop.f32.mrb[0].mxu0
      %v5290 = vadd.f32 0.0, %v5289
      %5291 = vmatprep.mubr.f32.mxu0 0.0
      %5292 = vmatmul.mubr.f32.gmra.mrb[0].mxu0 %v5207
      %v5293 = vpop.f32.mrb[0].mxu0
      %v5294 = vadd.f32 0.0, %v5293
      %v5295 = vpop.f32.mrb[0].mxu0
      %v5296 = vadd.f32 0.0, %v5295
      %5297 = vdwg.mxu0
      %5298 = vmatprep.subr.mxu0 0.0
      %5299 = vmatpush1.msra.mxu0 %v5213
      %5300 = vmatprep.subr.mxu0 0.0
      %5301 = vmatpush1.msra.mxu0 0.0
      %5302 = vmatprep.subr.mxu0 0.0
      %5303 = vmatpush1.msra.mxu0 0.0
      %5304 = vmatprep.subr.mxu0 0.0
      %5305 = vmatpush1.msra.mxu0 0.0
      %5306 = vmatprep.subr.mxu0 0.0
      %5307 = vmatpush1.msra.mxu0 0.0
      %5308 = vmatprep.subr.mxu0 0.0
      %5309 = vmatpush1.msra.mxu0 0.0
      %5310 = vmatprep.subr.mxu0 0.0
      %5311 = vmatpush1.msra.mxu0 0.0
      %5312 = vmatprep.subr.mxu0 0.0
      %5313 = vmatpush1.msra.mxu0 0.0
      %5314 = vmatprep.subr.mxu0 0.0
      %5315 = vmatpush1.msra.mxu0 0.0
      %5316 = vmatprep.subr.mxu0 0.0
      %5317 = vmatpush1.msra.mxu0 0.0
      %5318 = vmatprep.subr.mxu0 0.0
      %5319 = vmatpush1.msra.mxu0 0.0
      %5320 = vmatprep.subr.mxu0 0.0
      %5321 = vmatpush1.msra.mxu0 0.0
      %5322 = vmatprep.subr.mxu0 0.0
      %5323 = vmatpush1.msra.mxu0 0.0
      %5324 = vmatprep.subr.mxu0 0.0
      %5325 = vmatpush1.msra.mxu0 0.0
      %5326 = vmatprep.subr.mxu0 0.0
      %5327 = vmatpush1.msra.mxu0 0.0
      %5328 = vmatprep.subr.mxu0 0.0
      %5329 = vmatpush1.msra.mxu0 0.0
      %5330 = vmatprep.subr.mxu0 0.0
      %5331 = vmatpush1.msra.mxu0 0.0
      %5332 = vmatprep.subr.mxu0 0.0
      %5333 = vmatpush1.msra.mxu0 0.0
      %5334 = vmatprep.subr.mxu0 0.0
      %5335 = vmatpush1.msra.mxu0 0.0
      %5336 = vmatprep.subr.mxu0 0.0
      %5337 = vmatpush1.msra.mxu0 0.0
      %5338 = vmatprep.subr.mxu0 0.0
      %5339 = vmatpush1.msra.mxu0 0.0
      %5340 = vmatprep.subr.mxu0 0.0
      %5341 = vmatpush1.msra.mxu0 0.0
      %5342 = vmatprep.subr.mxu0 0.0
      %5343 = vmatpush1.msra.mxu0 0.0
      %5344 = vmatprep.subr.mxu0 0.0
      %5345 = vmatpush1.msra.mxu0 0.0
      %5346 = vmatprep.subr.mxu0 0.0
      %5347 = vmatpush1.msra.mxu0 0.0
      %5348 = vmatprep.subr.mxu0 0.0
      %5349 = vmatpush1.msra.mxu0 0.0
      %5350 = vmatprep.subr.mxu0 0.0
      %5351 = vmatpush1.msra.mxu0 0.0
      %5352 = vmatprep.subr.mxu0 0.0
      %5353 = vmatpush1.msra.mxu0 0.0
      %5354 = vmatprep.subr.mxu0 0.0
      %5355 = vmatpush1.msra.mxu0 0.0
      %5356 = vmatprep.subr.mxu0 0.0
      %5357 = vmatpush1.msra.mxu0 0.0
      %5358 = vmatprep.subr.mxu0 0.0
      %5359 = vmatpush1.msra.mxu0 0.0
      %5360 = vmatprep.subr.mxu0 0.0
      %5361 = vmatpush1.msra.mxu0 0.0
      %5362 = vmatprep.mubr.f32.mxu0 0.0
      %5363 = vmatmul.mubr.f32.gmra.mrb[0].mxu0 %v5201
      %v5364 = vpop.f32.mrb[0].mxu0
      %v5365 = vadd.f32 0.0, %v5364
      %v5366 = vpop.f32.mrb[0].mxu0
      %5367 = vmatprep.mubr.f32.mxu0 0.0
      %5368 = vmatmul.mubr.f32.gmra.mrb[0].mxu0 %v5204
      %v5369 = vpop.f32.mrb[0].mxu0
      %v5370 = vadd.f32 0.0, %v5369
      %v5371 = vpop.f32.mrb[0].mxu0
      %5372 = vmatprep.mubr.f32.mxu0 0.0
      %5373 = vmatmul.mubr.f32.gmra.mrb[0].mxu0 %v5207
      %v5374 = vpop.f32.mrb[0].mxu0
      %v5375 = vadd.f32 0.0, %v5374
      %v5376 = vpop.f32.mrb[0].mxu0
      %5377 = vdwg.mxu0
      %v5378 = vadd.f32 %v5175, %v5282
      %v5379 = vadd.f32 %v5176, %v5284
      %v5380 = vadd.f32 %v5177, %v5365
      %v5381 = vadd.f32 %v5178, %v5288
      %v5382 = vadd.f32 %v5179, %v5290
      %v5383 = vadd.f32 %v5180, %v5370
      %v5384 = vadd.f32 %v5181, %v5294
      %v5385 = vadd.f32 %v5182, %v5296
      %v5386 = vadd.f32 %v5183, %v5375
      %s5387 = scalar_lea.vmem %s1, 624
      %v5388 = vld [vmem:[%s5387] sm:$0xff]
      %v5389 = vld [vmem:[%s5387 + $0x8] sm:$0xff]
      %v5390 = vld [vmem:[%s5387 + $0x10] sm:$0xff]
      %5391 = vrot.lane.b32.xlu0 %v171, 57
      %v5392 = vpop.permute.xlu0 %5391
      %5393 = vrot.lane.b32.xlu0 %v182, 57
      %v5394 = vpop.permute.xlu0 %5393
      %5395 = vrot.lane.b32.xlu0 %v172, 57
      %v5396 = vpop.permute.xlu0 %5395
      %5397 = vrot.lane.b32.xlu0 %v2954, 57
      %v5398 = vpop.permute.xlu0 %5397
      %vm5399 = vcmask 465920
      %v5400 = vsel %vm5399, %v5392, %v5394
      %v5401 = vsel %vm5399, %v5394, %v5396
      %v5402 = vsel %vm5399, %v5396, %v5398
      %v5404 = vsel %vm192, %v5388, 0
      %v5407 = vsel %vm192, %v5389, 0
      %v5410 = vsel %vm192, %v5390, 0
      %v5412 = vsel %vm202, %v5400, 0
      %v5414 = vsel %vm202, %v5401, 0
      %v5416 = vsel %vm202, %v5402, 0
      %5418 = vmatprep.subr.mxu0 %v5414
      %5419 = vmatpush1.msra.mxu0 %v5412
      %5420 = vmatprep.subr.mxu0 0.0
      %5421 = vmatpush1.msra.mxu0 0.0
      %5422 = vmatprep.subr.mxu0 0.0
      %5423 = vmatpush1.msra.mxu0 0.0
      %5424 = vmatprep.subr.mxu0 0.0
      %5425 = vmatpush1.msra.mxu0 0.0
      %5426 = vmatprep.subr.mxu0 0.0
      %5427 = vmatpush1.msra.mxu0 0.0
      %5428 = vmatprep.subr.mxu0 0.0
      %5429 = vmatpush1.msra.mxu0 0.0
      %5430 = vmatprep.subr.mxu0 0.0
      %5431 = vmatpush1.msra.mxu0 0.0
      %5432 = vmatprep.subr.mxu0 0.0
      %5433 = vmatpush1.msra.mxu0 0.0
      %5434 = vmatprep.subr.mxu0 0.0
      %5435 = vmatpush1.msra.mxu0 0.0
      %5436 = vmatprep.subr.mxu0 0.0
      %5437 = vmatpush1.msra.mxu0 0.0
      %5438 = vmatprep.subr.mxu0 0.0
      %5439 = vmatpush1.msra.mxu0 0.0
      %5440 = vmatprep.subr.mxu0 0.0
      %5441 = vmatpush1.msra.mxu0 0.0
      %5442 = vmatprep.subr.mxu0 0.0
      %5443 = vmatpush1.msra.mxu0 0.0
      %5444 = vmatprep.subr.mxu0 0.0
      %5445 = vmatpush1.msra.mxu0 0.0
      %5446 = vmatprep.subr.mxu0 0.0
      %5447 = vmatpush1.msra.mxu0 0.0
      %5448 = vmatprep.subr.mxu0 0.0
      %5449 = vmatpush1.msra.mxu0 0.0
      %5450 = vmatprep.subr.mxu0 0.0
      %5451 = vmatpush1.msra.mxu0 0.0
      %5452 = vmatprep.subr.mxu0 0.0
      %5453 = vmatpush1.msra.mxu0 0.0
      %5454 = vmatprep.subr.mxu0 0.0
      %5455 = vmatpush1.msra.mxu0 0.0
      %5456 = vmatprep.subr.mxu0 0.0
      %5457 = vmatpush1.msra.mxu0 0.0
      %5458 = vmatprep.subr.mxu0 0.0
      %5459 = vmatpush1.msra.mxu0 0.0
      %5460 = vmatprep.subr.mxu0 0.0
      %5461 = vmatpush1.msra.mxu0 0.0
      %5462 = vmatprep.subr.mxu0 0.0
      %5463 = vmatpush1.msra.mxu0 0.0
      %5464 = vmatprep.subr.mxu0 0.0
      %5465 = vmatpush1.msra.mxu0 0.0
      %5466 = vmatprep.subr.mxu0 0.0
      %5467 = vmatpush1.msra.mxu0 0.0
      %5468 = vmatprep.subr.mxu0 0.0
      %5469 = vmatpush1.msra.mxu0 0.0
      %5470 = vmatprep.subr.mxu0 0.0
      %5471 = vmatpush1.msra.mxu0 0.0
      %5472 = vmatprep.subr.mxu0 0.0
      %5473 = vmatpush1.msra.mxu0 0.0
      %5474 = vmatprep.subr.mxu0 0.0
      %5475 = vmatpush1.msra.mxu0 0.0
      %5476 = vmatprep.subr.mxu0 0.0
      %5477 = vmatpush1.msra.mxu0 0.0
      %5478 = vmatprep.subr.mxu0 0.0
      %5479 = vmatpush1.msra.mxu0 0.0
      %5480 = vmatprep.subr.mxu0 0.0
      %5481 = vmatpush1.msra.mxu0 0.0
      %5482 = vmatprep.mubr.f32.mxu0 0.0
      %5483 = vmatmul.mubr.f32.gmra.mrb[0].mxu0 %v5404
      %v5484 = vpop.f32.mrb[0].mxu0
      %v5485 = vadd.f32 0.0, %v5484
      %v5486 = vpop.f32.mrb[0].mxu0
      %v5487 = vadd.f32 0.0, %v5486
      %5488 = vmatprep.mubr.f32.mxu0 0.0
      %5489 = vmatmul.mubr.f32.gmra.mrb[0].mxu0 %v5407
      %v5490 = vpop.f32.mrb[0].mxu0
      %v5491 = vadd.f32 0.0, %v5490
      %v5492 = vpop.f32.mrb[0].mxu0
      %v5493 = vadd.f32 0.0, %v5492
      %5494 = vmatprep.mubr.f32.mxu0 0.0
      %5495 = vmatmul.mubr.f32.gmra.mrb[0].mxu0 %v5410
      %v5496 = vpop.f32.mrb[0].mxu0
      %v5497 = vadd.f32 0.0, %v5496
      %v5498 = vpop.f32.mrb[0].mxu0
      %v5499 = vadd.f32 0.0, %v5498
      %5500 = vdwg.mxu0
      %5501 = vmatprep.subr.mxu0 0.0
      %5502 = vmatpush1.msra.mxu0 %v5416
      %5503 = vmatprep.subr.mxu0 0.0
      %5504 = vmatpush1.msra.mxu0 0.0
      %5505 = vmatprep.subr.mxu0 0.0
      %5506 = vmatpush1.msra.mxu0 0.0
      %5507 = vmatprep.subr.mxu0 0.0
      %5508 = vmatpush1.msra.mxu0 0.0
      %5509 = vmatprep.subr.mxu0 0.0
      %5510 = vmatpush1.msra.mxu0 0.0
      %5511 = vmatprep.subr.mxu0 0.0
      %5512 = vmatpush1.msra.mxu0 0.0
      %5513 = vmatprep.subr.mxu0 0.0
      %5514 = vmatpush1.msra.mxu0 0.0
      %5515 = vmatprep.subr.mxu0 0.0
      %5516 = vmatpush1.msra.mxu0 0.0
      %5517 = vmatprep.subr.mxu0 0.0
      %5518 = vmatpush1.msra.mxu0 0.0
      %5519 = vmatprep.subr.mxu0 0.0
      %5520 = vmatpush1.msra.mxu0 0.0
      %5521 = vmatprep.subr.mxu0 0.0
      %5522 = vmatpush1.msra.mxu0 0.0
      %5523 = vmatprep.subr.mxu0 0.0
      %5524 = vmatpush1.msra.mxu0 0.0
      %5525 = vmatprep.subr.mxu0 0.0
      %5526 = vmatpush1.msra.mxu0 0.0
      %5527 = vmatprep.subr.mxu0 0.0
      %5528 = vmatpush1.msra.mxu0 0.0
      %5529 = vmatprep.subr.mxu0 0.0
      %5530 = vmatpush1.msra.mxu0 0.0
      %5531 = vmatprep.subr.mxu0 0.0
      %5532 = vmatpush1.msra.mxu0 0.0
      %5533 = vmatprep.subr.mxu0 0.0
      %5534 = vmatpush1.msra.mxu0 0.0
      %5535 = vmatprep.subr.mxu0 0.0
      %5536 = vmatpush1.msra.mxu0 0.0
      %5537 = vmatprep.subr.mxu0 0.0
      %5538 = vmatpush1.msra.mxu0 0.0
      %5539 = vmatprep.subr.mxu0 0.0
      %5540 = vmatpush1.msra.mxu0 0.0
      %5541 = vmatprep.subr.mxu0 0.0
      %5542 = vmatpush1.msra.mxu0 0.0
      %5543 = vmatprep.subr.mxu0 0.0
      %5544 = vmatpush1.msra.mxu0 0.0
      %5545 = vmatprep.subr.mxu0 0.0
      %5546 = vmatpush1.msra.mxu0 0.0
      %5547 = vmatprep.subr.mxu0 0.0
      %5548 = vmatpush1.msra.mxu0 0.0
      %5549 = vmatprep.subr.mxu0 0.0
      %5550 = vmatpush1.msra.mxu0 0.0
      %5551 = vmatprep.subr.mxu0 0.0
      %5552 = vmatpush1.msra.mxu0 0.0
      %5553 = vmatprep.subr.mxu0 0.0
      %5554 = vmatpush1.msra.mxu0 0.0
      %5555 = vmatprep.subr.mxu0 0.0
      %5556 = vmatpush1.msra.mxu0 0.0
      %5557 = vmatprep.subr.mxu0 0.0
      %5558 = vmatpush1.msra.mxu0 0.0
      %5559 = vmatprep.subr.mxu0 0.0
      %5560 = vmatpush1.msra.mxu0 0.0
      %5561 = vmatprep.subr.mxu0 0.0
      %5562 = vmatpush1.msra.mxu0 0.0
      %5563 = vmatprep.subr.mxu0 0.0
      %5564 = vmatpush1.msra.mxu0 0.0
      %5565 = vmatprep.mubr.f32.mxu0 0.0
      %5566 = vmatmul.mubr.f32.gmra.mrb[0].mxu0 %v5404
      %v5567 = vpop.f32.mrb[0].mxu0
      %v5568 = vadd.f32 0.0, %v5567
      %v5569 = vpop.f32.mrb[0].mxu0
      %5570 = vmatprep.mubr.f32.mxu0 0.0
      %5571 = vmatmul.mubr.f32.gmra.mrb[0].mxu0 %v5407
      %v5572 = vpop.f32.mrb[0].mxu0
      %v5573 = vadd.f32 0.0, %v5572
      %v5574 = vpop.f32.mrb[0].mxu0
      %5575 = vmatprep.mubr.f32.mxu0 0.0
      %5576 = vmatmul.mubr.f32.gmra.mrb[0].mxu0 %v5410
      %v5577 = vpop.f32.mrb[0].mxu0
      %v5578 = vadd.f32 0.0, %v5577
      %v5579 = vpop.f32.mrb[0].mxu0
      %5580 = vdwg.mxu0
      %v5581 = vadd.f32 %v5378, %v5485
      %v5582 = vadd.f32 %v5379, %v5487
      %v5583 = vadd.f32 %v5380, %v5568
      %v5584 = vadd.f32 %v5381, %v5491
      %v5585 = vadd.f32 %v5382, %v5493
      %v5586 = vadd.f32 %v5383, %v5573
      %v5587 = vadd.f32 %v5384, %v5497
      %v5588 = vadd.f32 %v5385, %v5499
      %v5589 = vadd.f32 %v5386, %v5578
      %s5590 = scalar_lea.vmem %s1, 648
      %v5591 = vld [vmem:[%s5590] sm:$0xff]
      %v5592 = vld [vmem:[%s5590 + $0x8] sm:$0xff]
      %v5593 = vld [vmem:[%s5590 + $0x10] sm:$0xff]
      %5594 = vrot.lane.b32.xlu0 %v171, 56
      %v5595 = vpop.permute.xlu0 %5594
      %5596 = vrot.lane.b32.xlu0 %v182, 56
      %v5597 = vpop.permute.xlu0 %5596
      %5598 = vrot.lane.b32.xlu0 %v172, 56
      %v5599 = vpop.permute.xlu0 %5598
      %5600 = vrot.lane.b32.xlu0 %v2954, 56
      %v5601 = vpop.permute.xlu0 %5600
      %vm5602 = vcmask 457728
      %v5603 = vsel %vm5602, %v5595, %v5597
      %v5604 = vsel %vm5602, %v5597, %v5599
      %v5605 = vsel %vm5602, %v5599, %v5601
      %v5607 = vsel %vm192, %v5591, 0
      %v5610 = vsel %vm192, %v5592, 0
      %v5613 = vsel %vm192, %v5593, 0
      %v5615 = vsel %vm202, %v5603, 0
      %v5617 = vsel %vm202, %v5604, 0
      %v5619 = vsel %vm202, %v5605, 0
      %5621 = vmatprep.subr.mxu0 %v5617
      %5622 = vmatpush1.msra.mxu0 %v5615
      %5623 = vmatprep.subr.mxu0 0.0
      %5624 = vmatpush1.msra.mxu0 0.0
      %5625 = vmatprep.subr.mxu0 0.0
      %5626 = vmatpush1.msra.mxu0 0.0
      %5627 = vmatprep.subr.mxu0 0.0
      %5628 = vmatpush1.msra.mxu0 0.0
      %5629 = vmatprep.subr.mxu0 0.0
      %5630 = vmatpush1.msra.mxu0 0.0
      %5631 = vmatprep.subr.mxu0 0.0
      %5632 = vmatpush1.msra.mxu0 0.0
      %5633 = vmatprep.subr.mxu0 0.0
      %5634 = vmatpush1.msra.mxu0 0.0
      %5635 = vmatprep.subr.mxu0 0.0
      %5636 = vmatpush1.msra.mxu0 0.0
      %5637 = vmatprep.subr.mxu0 0.0
      %5638 = vmatpush1.msra.mxu0 0.0
      %5639 = vmatprep.subr.mxu0 0.0
      %5640 = vmatpush1.msra.mxu0 0.0
      %5641 = vmatprep.subr.mxu0 0.0
      %5642 = vmatpush1.msra.mxu0 0.0
      %5643 = vmatprep.subr.mxu0 0.0
      %5644 = vmatpush1.msra.mxu0 0.0
      %5645 = vmatprep.subr.mxu0 0.0
      %5646 = vmatpush1.msra.mxu0 0.0
      %5647 = vmatprep.subr.mxu0 0.0
      %5648 = vmatpush1.msra.mxu0 0.0
      %5649 = vmatprep.subr.mxu0 0.0
      %5650 = vmatpush1.msra.mxu0 0.0
      %5651 = vmatprep.subr.mxu0 0.0
      %5652 = vmatpush1.msra.mxu0 0.0
      %5653 = vmatprep.subr.mxu0 0.0
      %5654 = vmatpush1.msra.mxu0 0.0
      %5655 = vmatprep.subr.mxu0 0.0
      %5656 = vmatpush1.msra.mxu0 0.0
      %5657 = vmatprep.subr.mxu0 0.0
      %5658 = vmatpush1.msra.mxu0 0.0
      %5659 = vmatprep.subr.mxu0 0.0
      %5660 = vmatpush1.msra.mxu0 0.0
      %5661 = vmatprep.subr.mxu0 0.0
      %5662 = vmatpush1.msra.mxu0 0.0
      %5663 = vmatprep.subr.mxu0 0.0
      %5664 = vmatpush1.msra.mxu0 0.0
      %5665 = vmatprep.subr.mxu0 0.0
      %5666 = vmatpush1.msra.mxu0 0.0
      %5667 = vmatprep.subr.mxu0 0.0
      %5668 = vmatpush1.msra.mxu0 0.0
      %5669 = vmatprep.subr.mxu0 0.0
      %5670 = vmatpush1.msra.mxu0 0.0
      %5671 = vmatprep.subr.mxu0 0.0
      %5672 = vmatpush1.msra.mxu0 0.0
      %5673 = vmatprep.subr.mxu0 0.0
      %5674 = vmatpush1.msra.mxu0 0.0
      %5675 = vmatprep.subr.mxu0 0.0
      %5676 = vmatpush1.msra.mxu0 0.0
      %5677 = vmatprep.subr.mxu0 0.0
      %5678 = vmatpush1.msra.mxu0 0.0
      %5679 = vmatprep.subr.mxu0 0.0
      %5680 = vmatpush1.msra.mxu0 0.0
      %5681 = vmatprep.subr.mxu0 0.0
      %5682 = vmatpush1.msra.mxu0 0.0
      %5683 = vmatprep.subr.mxu0 0.0
      %5684 = vmatpush1.msra.mxu0 0.0
      %5685 = vmatprep.mubr.f32.mxu0 0.0
      %5686 = vmatmul.mubr.f32.gmra.mrb[0].mxu0 %v5607
      %v5687 = vpop.f32.mrb[0].mxu0
      %v5688 = vadd.f32 0.0, %v5687
      %v5689 = vpop.f32.mrb[0].mxu0
      %v5690 = vadd.f32 0.0, %v5689
      %5691 = vmatprep.mubr.f32.mxu0 0.0
      %5692 = vmatmul.mubr.f32.gmra.mrb[0].mxu0 %v5610
      %v5693 = vpop.f32.mrb[0].mxu0
      %v5694 = vadd.f32 0.0, %v5693
      %v5695 = vpop.f32.mrb[0].mxu0
      %v5696 = vadd.f32 0.0, %v5695
      %5697 = vmatprep.mubr.f32.mxu0 0.0
      %5698 = vmatmul.mubr.f32.gmra.mrb[0].mxu0 %v5613
      %v5699 = vpop.f32.mrb[0].mxu0
      %v5700 = vadd.f32 0.0, %v5699
      %v5701 = vpop.f32.mrb[0].mxu0
      %v5702 = vadd.f32 0.0, %v5701
      %5703 = vdwg.mxu0
      %5704 = vmatprep.subr.mxu0 0.0
      %5705 = vmatpush1.msra.mxu0 %v5619
      %5706 = vmatprep.subr.mxu0 0.0
      %5707 = vmatpush1.msra.mxu0 0.0
      %5708 = vmatprep.subr.mxu0 0.0
      %5709 = vmatpush1.msra.mxu0 0.0
      %5710 = vmatprep.subr.mxu0 0.0
      %5711 = vmatpush1.msra.mxu0 0.0
      %5712 = vmatprep.subr.mxu0 0.0
      %5713 = vmatpush1.msra.mxu0 0.0
      %5714 = vmatprep.subr.mxu0 0.0
      %5715 = vmatpush1.msra.mxu0 0.0
      %5716 = vmatprep.subr.mxu0 0.0
      %5717 = vmatpush1.msra.mxu0 0.0
      %5718 = vmatprep.subr.mxu0 0.0
      %5719 = vmatpush1.msra.mxu0 0.0
      %5720 = vmatprep.subr.mxu0 0.0
      %5721 = vmatpush1.msra.mxu0 0.0
      %5722 = vmatprep.subr.mxu0 0.0
      %5723 = vmatpush1.msra.mxu0 0.0
      %5724 = vmatprep.subr.mxu0 0.0
      %5725 = vmatpush1.msra.mxu0 0.0
      %5726 = vmatprep.subr.mxu0 0.0
      %5727 = vmatpush1.msra.mxu0 0.0
      %5728 = vmatprep.subr.mxu0 0.0
      %5729 = vmatpush1.msra.mxu0 0.0
      %5730 = vmatprep.subr.mxu0 0.0
      %5731 = vmatpush1.msra.mxu0 0.0
      %5732 = vmatprep.subr.mxu0 0.0
      %5733 = vmatpush1.msra.mxu0 0.0
      %5734 = vmatprep.subr.mxu0 0.0
      %5735 = vmatpush1.msra.mxu0 0.0
      %5736 = vmatprep.subr.mxu0 0.0
      %5737 = vmatpush1.msra.mxu0 0.0
      %5738 = vmatprep.subr.mxu0 0.0
      %5739 = vmatpush1.msra.mxu0 0.0
      %5740 = vmatprep.subr.mxu0 0.0
      %5741 = vmatpush1.msra.mxu0 0.0
      %5742 = vmatprep.subr.mxu0 0.0
      %5743 = vmatpush1.msra.mxu0 0.0
      %5744 = vmatprep.subr.mxu0 0.0
      %5745 = vmatpush1.msra.mxu0 0.0
      %5746 = vmatprep.subr.mxu0 0.0
      %5747 = vmatpush1.msra.mxu0 0.0
      %5748 = vmatprep.subr.mxu0 0.0
      %5749 = vmatpush1.msra.mxu0 0.0
      %5750 = vmatprep.subr.mxu0 0.0
      %5751 = vmatpush1.msra.mxu0 0.0
      %5752 = vmatprep.subr.mxu0 0.0
      %5753 = vmatpush1.msra.mxu0 0.0
      %5754 = vmatprep.subr.mxu0 0.0
      %5755 = vmatpush1.msra.mxu0 0.0
      %5756 = vmatprep.subr.mxu0 0.0
      %5757 = vmatpush1.msra.mxu0 0.0
      %5758 = vmatprep.subr.mxu0 0.0
      %5759 = vmatpush1.msra.mxu0 0.0
      %5760 = vmatprep.subr.mxu0 0.0
      %5761 = vmatpush1.msra.mxu0 0.0
      %5762 = vmatprep.subr.mxu0 0.0
      %5763 = vmatpush1.msra.mxu0 0.0
      %5764 = vmatprep.subr.mxu0 0.0
      %5765 = vmatpush1.msra.mxu0 0.0
      %5766 = vmatprep.subr.mxu0 0.0
      %5767 = vmatpush1.msra.mxu0 0.0
      %5768 = vmatprep.mubr.f32.mxu0 0.0
      %5769 = vmatmul.mubr.f32.gmra.mrb[0].mxu0 %v5607
      %v5770 = vpop.f32.mrb[0].mxu0
      %v5771 = vadd.f32 0.0, %v5770
      %v5772 = vpop.f32.mrb[0].mxu0
      %5773 = vmatprep.mubr.f32.mxu0 0.0
      %5774 = vmatmul.mubr.f32.gmra.mrb[0].mxu0 %v5610
      %v5775 = vpop.f32.mrb[0].mxu0
      %v5776 = vadd.f32 0.0, %v5775
      %v5777 = vpop.f32.mrb[0].mxu0
      %5778 = vmatprep.mubr.f32.mxu0 0.0
      %5779 = vmatmul.mubr.f32.gmra.mrb[0].mxu0 %v5613
      %v5780 = vpop.f32.mrb[0].mxu0
      %v5781 = vadd.f32 0.0, %v5780
      %v5782 = vpop.f32.mrb[0].mxu0
      %5783 = vdwg.mxu0
      %v5784 = vadd.f32 %v5581, %v5688
      %v5785 = vadd.f32 %v5582, %v5690
      %v5786 = vadd.f32 %v5583, %v5771
      %v5787 = vadd.f32 %v5584, %v5694
      %v5788 = vadd.f32 %v5585, %v5696
      %v5789 = vadd.f32 %v5586, %v5776
      %v5790 = vadd.f32 %v5587, %v5700
      %v5791 = vadd.f32 %v5588, %v5702
      %v5792 = vadd.f32 %v5589, %v5781
      %s5793 = scalar_lea.vmem %s1, 672
      %v5794 = vld [vmem:[%s5793] sm:$0xff]
      %v5795 = vld [vmem:[%s5793 + $0x8] sm:$0xff]
      %v5796 = vld [vmem:[%s5793 + $0x10] sm:$0xff]
      %5797 = vrot.lane.b32.xlu0 %v171, 40
      %v5798 = vpop.permute.xlu0 %5797
      %5799 = vrot.lane.b32.xlu0 %v182, 40
      %v5800 = vpop.permute.xlu0 %5799
      %5801 = vrot.lane.b32.xlu0 %v172, 40
      %v5802 = vpop.permute.xlu0 %5801
      %5803 = vrot.lane.b32.xlu0 %v2954, 40
      %v5804 = vpop.permute.xlu0 %5803
      %vm5805 = vcmask 326656
      %v5806 = vsel %vm5805, %v5798, %v5800
      %v5807 = vsel %vm5805, %v5800, %v5802
      %v5808 = vsel %vm5805, %v5802, %v5804
      %v5810 = vsel %vm192, %v5794, 0
      %v5813 = vsel %vm192, %v5795, 0
      %v5816 = vsel %vm192, %v5796, 0
      %v5818 = vsel %vm202, %v5806, 0
      %v5820 = vsel %vm202, %v5807, 0
      %v5822 = vsel %vm202, %v5808, 0
      %5824 = vmatprep.subr.mxu0 %v5820
      %5825 = vmatpush1.msra.mxu0 %v5818
      %5826 = vmatprep.subr.mxu0 0.0
      %5827 = vmatpush1.msra.mxu0 0.0
      %5828 = vmatprep.subr.mxu0 0.0
      %5829 = vmatpush1.msra.mxu0 0.0
      %5830 = vmatprep.subr.mxu0 0.0
      %5831 = vmatpush1.msra.mxu0 0.0
      %5832 = vmatprep.subr.mxu0 0.0
      %5833 = vmatpush1.msra.mxu0 0.0
      %5834 = vmatprep.subr.mxu0 0.0
      %5835 = vmatpush1.msra.mxu0 0.0
      %5836 = vmatprep.subr.mxu0 0.0
      %5837 = vmatpush1.msra.mxu0 0.0
      %5838 = vmatprep.subr.mxu0 0.0
      %5839 = vmatpush1.msra.mxu0 0.0
      %5840 = vmatprep.subr.mxu0 0.0
      %5841 = vmatpush1.msra.mxu0 0.0
      %5842 = vmatprep.subr.mxu0 0.0
      %5843 = vmatpush1.msra.mxu0 0.0
      %5844 = vmatprep.subr.mxu0 0.0
      %5845 = vmatpush1.msra.mxu0 0.0
      %5846 = vmatprep.subr.mxu0 0.0
      %5847 = vmatpush1.msra.mxu0 0.0
      %5848 = vmatprep.subr.mxu0 0.0
      %5849 = vmatpush1.msra.mxu0 0.0
      %5850 = vmatprep.subr.mxu0 0.0
      %5851 = vmatpush1.msra.mxu0 0.0
      %5852 = vmatprep.subr.mxu0 0.0
      %5853 = vmatpush1.msra.mxu0 0.0
      %5854 = vmatprep.subr.mxu0 0.0
      %5855 = vmatpush1.msra.mxu0 0.0
      %5856 = vmatprep.subr.mxu0 0.0
      %5857 = vmatpush1.msra.mxu0 0.0
      %5858 = vmatprep.subr.mxu0 0.0
      %5859 = vmatpush1.msra.mxu0 0.0
      %5860 = vmatprep.subr.mxu0 0.0
      %5861 = vmatpush1.msra.mxu0 0.0
      %5862 = vmatprep.subr.mxu0 0.0
      %5863 = vmatpush1.msra.mxu0 0.0
      %5864 = vmatprep.subr.mxu0 0.0
      %5865 = vmatpush1.msra.mxu0 0.0
      %5866 = vmatprep.subr.mxu0 0.0
      %5867 = vmatpush1.msra.mxu0 0.0
      %5868 = vmatprep.subr.mxu0 0.0
      %5869 = vmatpush1.msra.mxu0 0.0
      %5870 = vmatprep.subr.mxu0 0.0
      %5871 = vmatpush1.msra.mxu0 0.0
      %5872 = vmatprep.subr.mxu0 0.0
      %5873 = vmatpush1.msra.mxu0 0.0
      %5874 = vmatprep.subr.mxu0 0.0
      %5875 = vmatpush1.msra.mxu0 0.0
      %5876 = vmatprep.subr.mxu0 0.0
      %5877 = vmatpush1.msra.mxu0 0.0
      %5878 = vmatprep.subr.mxu0 0.0
      %5879 = vmatpush1.msra.mxu0 0.0
      %5880 = vmatprep.subr.mxu0 0.0
      %5881 = vmatpush1.msra.mxu0 0.0
      %5882 = vmatprep.subr.mxu0 0.0
      %5883 = vmatpush1.msra.mxu0 0.0
      %5884 = vmatprep.subr.mxu0 0.0
      %5885 = vmatpush1.msra.mxu0 0.0
      %5886 = vmatprep.subr.mxu0 0.0
      %5887 = vmatpush1.msra.mxu0 0.0
      %5888 = vmatprep.mubr.f32.mxu0 0.0
      %5889 = vmatmul.mubr.f32.gmra.mrb[0].mxu0 %v5810
      %v5890 = vpop.f32.mrb[0].mxu0
      %v5891 = vadd.f32 0.0, %v5890
      %v5892 = vpop.f32.mrb[0].mxu0
      %v5893 = vadd.f32 0.0, %v5892
      %5894 = vmatprep.mubr.f32.mxu0 0.0
      %5895 = vmatmul.mubr.f32.gmra.mrb[0].mxu0 %v5813
      %v5896 = vpop.f32.mrb[0].mxu0
      %v5897 = vadd.f32 0.0, %v5896
      %v5898 = vpop.f32.mrb[0].mxu0
      %v5899 = vadd.f32 0.0, %v5898
      %5900 = vmatprep.mubr.f32.mxu0 0.0
      %5901 = vmatmul.mubr.f32.gmra.mrb[0].mxu0 %v5816
      %v5902 = vpop.f32.mrb[0].mxu0
      %v5903 = vadd.f32 0.0, %v5902
      %v5904 = vpop.f32.mrb[0].mxu0
      %v5905 = vadd.f32 0.0, %v5904
      %5906 = vdwg.mxu0
      %5907 = vmatprep.subr.mxu0 0.0
      %5908 = vmatpush1.msra.mxu0 %v5822
      %5909 = vmatprep.subr.mxu0 0.0
      %5910 = vmatpush1.msra.mxu0 0.0
      %5911 = vmatprep.subr.mxu0 0.0
      %5912 = vmatpush1.msra.mxu0 0.0
      %5913 = vmatprep.subr.mxu0 0.0
      %5914 = vmatpush1.msra.mxu0 0.0
      %5915 = vmatprep.subr.mxu0 0.0
      %5916 = vmatpush1.msra.mxu0 0.0
      %5917 = vmatprep.subr.mxu0 0.0
      %5918 = vmatpush1.msra.mxu0 0.0
      %5919 = vmatprep.subr.mxu0 0.0
      %5920 = vmatpush1.msra.mxu0 0.0
      %5921 = vmatprep.subr.mxu0 0.0
      %5922 = vmatpush1.msra.mxu0 0.0
      %5923 = vmatprep.subr.mxu0 0.0
      %5924 = vmatpush1.msra.mxu0 0.0
      %5925 = vmatprep.subr.mxu0 0.0
      %5926 = vmatpush1.msra.mxu0 0.0
      %5927 = vmatprep.subr.mxu0 0.0
      %5928 = vmatpush1.msra.mxu0 0.0
      %5929 = vmatprep.subr.mxu0 0.0
      %5930 = vmatpush1.msra.mxu0 0.0
      %5931 = vmatprep.subr.mxu0 0.0
      %5932 = vmatpush1.msra.mxu0 0.0
      %5933 = vmatprep.subr.mxu0 0.0
      %5934 = vmatpush1.msra.mxu0 0.0
      %5935 = vmatprep.subr.mxu0 0.0
      %5936 = vmatpush1.msra.mxu0 0.0
      %5937 = vmatprep.subr.mxu0 0.0
      %5938 = vmatpush1.msra.mxu0 0.0
      %5939 = vmatprep.subr.mxu0 0.0
      %5940 = vmatpush1.msra.mxu0 0.0
      %5941 = vmatprep.subr.mxu0 0.0
      %5942 = vmatpush1.msra.mxu0 0.0
      %5943 = vmatprep.subr.mxu0 0.0
      %5944 = vmatpush1.msra.mxu0 0.0
      %5945 = vmatprep.subr.mxu0 0.0
      %5946 = vmatpush1.msra.mxu0 0.0
      %5947 = vmatprep.subr.mxu0 0.0
      %5948 = vmatpush1.msra.mxu0 0.0
      %5949 = vmatprep.subr.mxu0 0.0
      %5950 = vmatpush1.msra.mxu0 0.0
      %5951 = vmatprep.subr.mxu0 0.0
      %5952 = vmatpush1.msra.mxu0 0.0
      %5953 = vmatprep.subr.mxu0 0.0
      %5954 = vmatpush1.msra.mxu0 0.0
      %5955 = vmatprep.subr.mxu0 0.0
      %5956 = vmatpush1.msra.mxu0 0.0
      %5957 = vmatprep.subr.mxu0 0.0
      %5958 = vmatpush1.msra.mxu0 0.0
      %5959 = vmatprep.subr.mxu0 0.0
      %5960 = vmatpush1.msra.mxu0 0.0
      %5961 = vmatprep.subr.mxu0 0.0
      %5962 = vmatpush1.msra.mxu0 0.0
      %5963 = vmatprep.subr.mxu0 0.0
      %5964 = vmatpush1.msra.mxu0 0.0
      %5965 = vmatprep.subr.mxu0 0.0
      %5966 = vmatpush1.msra.mxu0 0.0
      %5967 = vmatprep.subr.mxu0 0.0
      %5968 = vmatpush1.msra.mxu0 0.0
      %5969 = vmatprep.subr.mxu0 0.0
      %5970 = vmatpush1.msra.mxu0 0.0
      %5971 = vmatprep.mubr.f32.mxu0 0.0
      %5972 = vmatmul.mubr.f32.gmra.mrb[0].mxu0 %v5810
      %v5973 = vpop.f32.mrb[0].mxu0
      %v5974 = vadd.f32 0.0, %v5973
      %v5975 = vpop.f32.mrb[0].mxu0
      %5976 = vmatprep.mubr.f32.mxu0 0.0
      %5977 = vmatmul.mubr.f32.gmra.mrb[0].mxu0 %v5813
      %v5978 = vpop.f32.mrb[0].mxu0
      %v5979 = vadd.f32 0.0, %v5978
      %v5980 = vpop.f32.mrb[0].mxu0
      %5981 = vmatprep.mubr.f32.mxu0 0.0
      %5982 = vmatmul.mubr.f32.gmra.mrb[0].mxu0 %v5816
      %v5983 = vpop.f32.mrb[0].mxu0
      %v5984 = vadd.f32 0.0, %v5983
      %v5985 = vpop.f32.mrb[0].mxu0
      %5986 = vdwg.mxu0
      %v5987 = vadd.f32 %v5784, %v5891
      %v5988 = vadd.f32 %v5785, %v5893
      %v5989 = vadd.f32 %v5786, %v5974
      %v5990 = vadd.f32 %v5787, %v5897
      %v5991 = vadd.f32 %v5788, %v5899
      %v5992 = vadd.f32 %v5789, %v5979
      %v5993 = vadd.f32 %v5790, %v5903
      %v5994 = vadd.f32 %v5791, %v5905
      %v5995 = vadd.f32 %v5792, %v5984
      %s5996 = scalar_lea.vmem %s1, 696
      %v5997 = vld [vmem:[%s5996] sm:$0xff]
      %v5998 = vld [vmem:[%s5996 + $0x8] sm:$0xff]
      %v5999 = vld [vmem:[%s5996 + $0x10] sm:$0xff]
      %6000 = vrot.lane.b32.xlu0 %v171, 39
      %v6001 = vpop.permute.xlu0 %6000
      %6002 = vrot.lane.b32.xlu0 %v182, 39
      %v6003 = vpop.permute.xlu0 %6002
      %6004 = vrot.lane.b32.xlu0 %v172, 39
      %v6005 = vpop.permute.xlu0 %6004
      %6006 = vrot.lane.b32.xlu0 %v2954, 39
      %v6007 = vpop.permute.xlu0 %6006
      %vm6008 = vcmask 318464
      %v6009 = vsel %vm6008, %v6001, %v6003
      %v6010 = vsel %vm6008, %v6003, %v6005
      %v6011 = vsel %vm6008, %v6005, %v6007
      %v6013 = vsel %vm192, %v5997, 0
      %v6016 = vsel %vm192, %v5998, 0
      %v6019 = vsel %vm192, %v5999, 0
      %v6021 = vsel %vm202, %v6009, 0
      %v6023 = vsel %vm202, %v6010, 0
      %v6025 = vsel %vm202, %v6011, 0
      %6027 = vmatprep.subr.mxu0 %v6023
      %6028 = vmatpush1.msra.mxu0 %v6021
      %6029 = vmatprep.subr.mxu0 0.0
      %6030 = vmatpush1.msra.mxu0 0.0
      %6031 = vmatprep.subr.mxu0 0.0
      %6032 = vmatpush1.msra.mxu0 0.0
      %6033 = vmatprep.subr.mxu0 0.0
      %6034 = vmatpush1.msra.mxu0 0.0
      %6035 = vmatprep.subr.mxu0 0.0
      %6036 = vmatpush1.msra.mxu0 0.0
      %6037 = vmatprep.subr.mxu0 0.0
      %6038 = vmatpush1.msra.mxu0 0.0
      %6039 = vmatprep.subr.mxu0 0.0
      %6040 = vmatpush1.msra.mxu0 0.0
      %6041 = vmatprep.subr.mxu0 0.0
      %6042 = vmatpush1.msra.mxu0 0.0
      %6043 = vmatprep.subr.mxu0 0.0
      %6044 = vmatpush1.msra.mxu0 0.0
      %6045 = vmatprep.subr.mxu0 0.0
      %6046 = vmatpush1.msra.mxu0 0.0
      %6047 = vmatprep.subr.mxu0 0.0
      %6048 = vmatpush1.msra.mxu0 0.0
      %6049 = vmatprep.subr.mxu0 0.0
      %6050 = vmatpush1.msra.mxu0 0.0
      %6051 = vmatprep.subr.mxu0 0.0
      %6052 = vmatpush1.msra.mxu0 0.0
      %6053 = vmatprep.subr.mxu0 0.0
      %6054 = vmatpush1.msra.mxu0 0.0
      %6055 = vmatprep.subr.mxu0 0.0
      %6056 = vmatpush1.msra.mxu0 0.0
      %6057 = vmatprep.subr.mxu0 0.0
      %6058 = vmatpush1.msra.mxu0 0.0
      %6059 = vmatprep.subr.mxu0 0.0
      %6060 = vmatpush1.msra.mxu0 0.0
      %6061 = vmatprep.subr.mxu0 0.0
      %6062 = vmatpush1.msra.mxu0 0.0
      %6063 = vmatprep.subr.mxu0 0.0
      %6064 = vmatpush1.msra.mxu0 0.0
      %6065 = vmatprep.subr.mxu0 0.0
      %6066 = vmatpush1.msra.mxu0 0.0
      %6067 = vmatprep.subr.mxu0 0.0
      %6068 = vmatpush1.msra.mxu0 0.0
      %6069 = vmatprep.subr.mxu0 0.0
      %6070 = vmatpush1.msra.mxu0 0.0
      %6071 = vmatprep.subr.mxu0 0.0
      %6072 = vmatpush1.msra.mxu0 0.0
      %6073 = vmatprep.subr.mxu0 0.0
      %6074 = vmatpush1.msra.mxu0 0.0
      %6075 = vmatprep.subr.mxu0 0.0
      %6076 = vmatpush1.msra.mxu0 0.0
      %6077 = vmatprep.subr.mxu0 0.0
      %6078 = vmatpush1.msra.mxu0 0.0
      %6079 = vmatprep.subr.mxu0 0.0
      %6080 = vmatpush1.msra.mxu0 0.0
      %6081 = vmatprep.subr.mxu0 0.0
      %6082 = vmatpush1.msra.mxu0 0.0
      %6083 = vmatprep.subr.mxu0 0.0
      %6084 = vmatpush1.msra.mxu0 0.0
      %6085 = vmatprep.subr.mxu0 0.0
      %6086 = vmatpush1.msra.mxu0 0.0
      %6087 = vmatprep.subr.mxu0 0.0
      %6088 = vmatpush1.msra.mxu0 0.0
      %6089 = vmatprep.subr.mxu0 0.0
      %6090 = vmatpush1.msra.mxu0 0.0
      %6091 = vmatprep.mubr.f32.mxu0 0.0
      %6092 = vmatmul.mubr.f32.gmra.mrb[0].mxu0 %v6013
      %v6093 = vpop.f32.mrb[0].mxu0
      %v6094 = vadd.f32 0.0, %v6093
      %v6095 = vpop.f32.mrb[0].mxu0
      %v6096 = vadd.f32 0.0, %v6095
      %6097 = vmatprep.mubr.f32.mxu0 0.0
      %6098 = vmatmul.mubr.f32.gmra.mrb[0].mxu0 %v6016
      %v6099 = vpop.f32.mrb[0].mxu0
      %v6100 = vadd.f32 0.0, %v6099
      %v6101 = vpop.f32.mrb[0].mxu0
      %v6102 = vadd.f32 0.0, %v6101
      %6103 = vmatprep.mubr.f32.mxu0 0.0
      %6104 = vmatmul.mubr.f32.gmra.mrb[0].mxu0 %v6019
      %v6105 = vpop.f32.mrb[0].mxu0
      %v6106 = vadd.f32 0.0, %v6105
      %v6107 = vpop.f32.mrb[0].mxu0
      %v6108 = vadd.f32 0.0, %v6107
      %6109 = vdwg.mxu0
      %6110 = vmatprep.subr.mxu0 0.0
      %6111 = vmatpush1.msra.mxu0 %v6025
      %6112 = vmatprep.subr.mxu0 0.0
      %6113 = vmatpush1.msra.mxu0 0.0
      %6114 = vmatprep.subr.mxu0 0.0
      %6115 = vmatpush1.msra.mxu0 0.0
      %6116 = vmatprep.subr.mxu0 0.0
      %6117 = vmatpush1.msra.mxu0 0.0
      %6118 = vmatprep.subr.mxu0 0.0
      %6119 = vmatpush1.msra.mxu0 0.0
      %6120 = vmatprep.subr.mxu0 0.0
      %6121 = vmatpush1.msra.mxu0 0.0
      %6122 = vmatprep.subr.mxu0 0.0
      %6123 = vmatpush1.msra.mxu0 0.0
      %6124 = vmatprep.subr.mxu0 0.0
      %6125 = vmatpush1.msra.mxu0 0.0
      %6126 = vmatprep.subr.mxu0 0.0
      %6127 = vmatpush1.msra.mxu0 0.0
      %6128 = vmatprep.subr.mxu0 0.0
      %6129 = vmatpush1.msra.mxu0 0.0
      %6130 = vmatprep.subr.mxu0 0.0
      %6131 = vmatpush1.msra.mxu0 0.0
      %6132 = vmatprep.subr.mxu0 0.0
      %6133 = vmatpush1.msra.mxu0 0.0
      %6134 = vmatprep.subr.mxu0 0.0
      %6135 = vmatpush1.msra.mxu0 0.0
      %6136 = vmatprep.subr.mxu0 0.0
      %6137 = vmatpush1.msra.mxu0 0.0
      %6138 = vmatprep.subr.mxu0 0.0
      %6139 = vmatpush1.msra.mxu0 0.0
      %6140 = vmatprep.subr.mxu0 0.0
      %6141 = vmatpush1.msra.mxu0 0.0
      %6142 = vmatprep.subr.mxu0 0.0
      %6143 = vmatpush1.msra.mxu0 0.0
      %6144 = vmatprep.subr.mxu0 0.0
      %6145 = vmatpush1.msra.mxu0 0.0
      %6146 = vmatprep.subr.mxu0 0.0
      %6147 = vmatpush1.msra.mxu0 0.0
      %6148 = vmatprep.subr.mxu0 0.0
      %6149 = vmatpush1.msra.mxu0 0.0
      %6150 = vmatprep.subr.mxu0 0.0
      %6151 = vmatpush1.msra.mxu0 0.0
      %6152 = vmatprep.subr.mxu0 0.0
      %6153 = vmatpush1.msra.mxu0 0.0
      %6154 = vmatprep.subr.mxu0 0.0
      %6155 = vmatpush1.msra.mxu0 0.0
      %6156 = vmatprep.subr.mxu0 0.0
      %6157 = vmatpush1.msra.mxu0 0.0
      %6158 = vmatprep.subr.mxu0 0.0
      %6159 = vmatpush1.msra.mxu0 0.0
      %6160 = vmatprep.subr.mxu0 0.0
      %6161 = vmatpush1.msra.mxu0 0.0
      %6162 = vmatprep.subr.mxu0 0.0
      %6163 = vmatpush1.msra.mxu0 0.0
      %6164 = vmatprep.subr.mxu0 0.0
      %6165 = vmatpush1.msra.mxu0 0.0
      %6166 = vmatprep.subr.mxu0 0.0
      %6167 = vmatpush1.msra.mxu0 0.0
      %6168 = vmatprep.subr.mxu0 0.0
      %6169 = vmatpush1.msra.mxu0 0.0
      %6170 = vmatprep.subr.mxu0 0.0
      %6171 = vmatpush1.msra.mxu0 0.0
      %6172 = vmatprep.subr.mxu0 0.0
      %6173 = vmatpush1.msra.mxu0 0.0
      %6174 = vmatprep.mubr.f32.mxu0 0.0
      %6175 = vmatmul.mubr.f32.gmra.mrb[0].mxu0 %v6013
      %v6176 = vpop.f32.mrb[0].mxu0
      %v6177 = vadd.f32 0.0, %v6176
      %v6178 = vpop.f32.mrb[0].mxu0
      %6179 = vmatprep.mubr.f32.mxu0 0.0
      %6180 = vmatmul.mubr.f32.gmra.mrb[0].mxu0 %v6016
      %v6181 = vpop.f32.mrb[0].mxu0
      %v6182 = vadd.f32 0.0, %v6181
      %v6183 = vpop.f32.mrb[0].mxu0
      %6184 = vmatprep.mubr.f32.mxu0 0.0
      %6185 = vmatmul.mubr.f32.gmra.mrb[0].mxu0 %v6019
      %v6186 = vpop.f32.mrb[0].mxu0
      %v6187 = vadd.f32 0.0, %v6186
      %v6188 = vpop.f32.mrb[0].mxu0
      %6189 = vdwg.mxu0
      %v6190 = vadd.f32 %v5987, %v6094
      %v6191 = vadd.f32 %v5988, %v6096
      %v6192 = vadd.f32 %v5989, %v6177
      %v6193 = vadd.f32 %v5990, %v6100
      %v6194 = vadd.f32 %v5991, %v6102
      %v6195 = vadd.f32 %v5992, %v6182
      %v6196 = vadd.f32 %v5993, %v6106
      %v6197 = vadd.f32 %v5994, %v6108
      %v6198 = vadd.f32 %v5995, %v6187
      %s6199 = scalar_lea.vmem %s1, 720
      %v6200 = vld [vmem:[%s6199] sm:$0xff]
      %v6201 = vld [vmem:[%s6199 + $0x8] sm:$0xff]
      %v6202 = vld [vmem:[%s6199 + $0x10] sm:$0xff]
      %6203 = vrot.lane.b32.xlu0 %v171, 38
      %v6204 = vpop.permute.xlu0 %6203
      %6205 = vrot.lane.b32.xlu0 %v182, 38
      %v6206 = vpop.permute.xlu0 %6205
      %6207 = vrot.lane.b32.xlu0 %v172, 38
      %v6208 = vpop.permute.xlu0 %6207
      %6209 = vrot.lane.b32.xlu0 %v2954, 38
      %v6210 = vpop.permute.xlu0 %6209
      %vm6211 = vcmask 310272
      %v6212 = vsel %vm6211, %v6204, %v6206
      %v6213 = vsel %vm6211, %v6206, %v6208
      %v6214 = vsel %vm6211, %v6208, %v6210
      %v6216 = vsel %vm192, %v6200, 0
      %v6219 = vsel %vm192, %v6201, 0
      %v6222 = vsel %vm192, %v6202, 0
      %v6224 = vsel %vm202, %v6212, 0
      %v6226 = vsel %vm202, %v6213, 0
      %v6228 = vsel %vm202, %v6214, 0
      %6230 = vmatprep.subr.mxu0 %v6226
      %6231 = vmatpush1.msra.mxu0 %v6224
      %6232 = vmatprep.subr.mxu0 0.0
      %6233 = vmatpush1.msra.mxu0 0.0
      %6234 = vmatprep.subr.mxu0 0.0
      %6235 = vmatpush1.msra.mxu0 0.0
      %6236 = vmatprep.subr.mxu0 0.0
      %6237 = vmatpush1.msra.mxu0 0.0
      %6238 = vmatprep.subr.mxu0 0.0
      %6239 = vmatpush1.msra.mxu0 0.0
      %6240 = vmatprep.subr.mxu0 0.0
      %6241 = vmatpush1.msra.mxu0 0.0
      %6242 = vmatprep.subr.mxu0 0.0
      %6243 = vmatpush1.msra.mxu0 0.0
      %6244 = vmatprep.subr.mxu0 0.0
      %6245 = vmatpush1.msra.mxu0 0.0
      %6246 = vmatprep.subr.mxu0 0.0
      %6247 = vmatpush1.msra.mxu0 0.0
      %6248 = vmatprep.subr.mxu0 0.0
      %6249 = vmatpush1.msra.mxu0 0.0
      %6250 = vmatprep.subr.mxu0 0.0
      %6251 = vmatpush1.msra.mxu0 0.0
      %6252 = vmatprep.subr.mxu0 0.0
      %6253 = vmatpush1.msra.mxu0 0.0
      %6254 = vmatprep.subr.mxu0 0.0
      %6255 = vmatpush1.msra.mxu0 0.0
      %6256 = vmatprep.subr.mxu0 0.0
      %6257 = vmatpush1.msra.mxu0 0.0
      %6258 = vmatprep.subr.mxu0 0.0
      %6259 = vmatpush1.msra.mxu0 0.0
      %6260 = vmatprep.subr.mxu0 0.0
      %6261 = vmatpush1.msra.mxu0 0.0
      %6262 = vmatprep.subr.mxu0 0.0
      %6263 = vmatpush1.msra.mxu0 0.0
      %6264 = vmatprep.subr.mxu0 0.0
      %6265 = vmatpush1.msra.mxu0 0.0
      %6266 = vmatprep.subr.mxu0 0.0
      %6267 = vmatpush1.msra.mxu0 0.0
      %6268 = vmatprep.subr.mxu0 0.0
      %6269 = vmatpush1.msra.mxu0 0.0
      %6270 = vmatprep.subr.mxu0 0.0
      %6271 = vmatpush1.msra.mxu0 0.0
      %6272 = vmatprep.subr.mxu0 0.0
      %6273 = vmatpush1.msra.mxu0 0.0
      %6274 = vmatprep.subr.mxu0 0.0
      %6275 = vmatpush1.msra.mxu0 0.0
      %6276 = vmatprep.subr.mxu0 0.0
      %6277 = vmatpush1.msra.mxu0 0.0
      %6278 = vmatprep.subr.mxu0 0.0
      %6279 = vmatpush1.msra.mxu0 0.0
      %6280 = vmatprep.subr.mxu0 0.0
      %6281 = vmatpush1.msra.mxu0 0.0
      %6282 = vmatprep.subr.mxu0 0.0
      %6283 = vmatpush1.msra.mxu0 0.0
      %6284 = vmatprep.subr.mxu0 0.0
      %6285 = vmatpush1.msra.mxu0 0.0
      %6286 = vmatprep.subr.mxu0 0.0
      %6287 = vmatpush1.msra.mxu0 0.0
      %6288 = vmatprep.subr.mxu0 0.0
      %6289 = vmatpush1.msra.mxu0 0.0
      %6290 = vmatprep.subr.mxu0 0.0
      %6291 = vmatpush1.msra.mxu0 0.0
      %6292 = vmatprep.subr.mxu0 0.0
      %6293 = vmatpush1.msra.mxu0 0.0
      %6294 = vmatprep.mubr.f32.mxu0 0.0
      %6295 = vmatmul.mubr.f32.gmra.mrb[0].mxu0 %v6216
      %v6296 = vpop.f32.mrb[0].mxu0
      %v6297 = vadd.f32 0.0, %v6296
      %v6298 = vpop.f32.mrb[0].mxu0
      %v6299 = vadd.f32 0.0, %v6298
      %6300 = vmatprep.mubr.f32.mxu0 0.0
      %6301 = vmatmul.mubr.f32.gmra.mrb[0].mxu0 %v6219
      %v6302 = vpop.f32.mrb[0].mxu0
      %v6303 = vadd.f32 0.0, %v6302
      %v6304 = vpop.f32.mrb[0].mxu0
      %v6305 = vadd.f32 0.0, %v6304
      %6306 = vmatprep.mubr.f32.mxu0 0.0
      %6307 = vmatmul.mubr.f32.gmra.mrb[0].mxu0 %v6222
      %v6308 = vpop.f32.mrb[0].mxu0
      %v6309 = vadd.f32 0.0, %v6308
      %v6310 = vpop.f32.mrb[0].mxu0
      %v6311 = vadd.f32 0.0, %v6310
      %6312 = vdwg.mxu0
      %6313 = vmatprep.subr.mxu0 0.0
      %6314 = vmatpush1.msra.mxu0 %v6228
      %6315 = vmatprep.subr.mxu0 0.0
      %6316 = vmatpush1.msra.mxu0 0.0
      %6317 = vmatprep.subr.mxu0 0.0
      %6318 = vmatpush1.msra.mxu0 0.0
      %6319 = vmatprep.subr.mxu0 0.0
      %6320 = vmatpush1.msra.mxu0 0.0
      %6321 = vmatprep.subr.mxu0 0.0
      %6322 = vmatpush1.msra.mxu0 0.0
      %6323 = vmatprep.subr.mxu0 0.0
      %6324 = vmatpush1.msra.mxu0 0.0
      %6325 = vmatprep.subr.mxu0 0.0
      %6326 = vmatpush1.msra.mxu0 0.0
      %6327 = vmatprep.subr.mxu0 0.0
      %6328 = vmatpush1.msra.mxu0 0.0
      %6329 = vmatprep.subr.mxu0 0.0
      %6330 = vmatpush1.msra.mxu0 0.0
      %6331 = vmatprep.subr.mxu0 0.0
      %6332 = vmatpush1.msra.mxu0 0.0
      %6333 = vmatprep.subr.mxu0 0.0
      %6334 = vmatpush1.msra.mxu0 0.0
      %6335 = vmatprep.subr.mxu0 0.0
      %6336 = vmatpush1.msra.mxu0 0.0
      %6337 = vmatprep.subr.mxu0 0.0
      %6338 = vmatpush1.msra.mxu0 0.0
      %6339 = vmatprep.subr.mxu0 0.0
      %6340 = vmatpush1.msra.mxu0 0.0
      %6341 = vmatprep.subr.mxu0 0.0
      %6342 = vmatpush1.msra.mxu0 0.0
      %6343 = vmatprep.subr.mxu0 0.0
      %6344 = vmatpush1.msra.mxu0 0.0
      %6345 = vmatprep.subr.mxu0 0.0
      %6346 = vmatpush1.msra.mxu0 0.0
      %6347 = vmatprep.subr.mxu0 0.0
      %6348 = vmatpush1.msra.mxu0 0.0
      %6349 = vmatprep.subr.mxu0 0.0
      %6350 = vmatpush1.msra.mxu0 0.0
      %6351 = vmatprep.subr.mxu0 0.0
      %6352 = vmatpush1.msra.mxu0 0.0
      %6353 = vmatprep.subr.mxu0 0.0
      %6354 = vmatpush1.msra.mxu0 0.0
      %6355 = vmatprep.subr.mxu0 0.0
      %6356 = vmatpush1.msra.mxu0 0.0
      %6357 = vmatprep.subr.mxu0 0.0
      %6358 = vmatpush1.msra.mxu0 0.0
      %6359 = vmatprep.subr.mxu0 0.0
      %6360 = vmatpush1.msra.mxu0 0.0
      %6361 = vmatprep.subr.mxu0 0.0
      %6362 = vmatpush1.msra.mxu0 0.0
      %6363 = vmatprep.subr.mxu0 0.0
      %6364 = vmatpush1.msra.mxu0 0.0
      %6365 = vmatprep.subr.mxu0 0.0
      %6366 = vmatpush1.msra.mxu0 0.0
      %6367 = vmatprep.subr.mxu0 0.0
      %6368 = vmatpush1.msra.mxu0 0.0
      %6369 = vmatprep.subr.mxu0 0.0
      %6370 = vmatpush1.msra.mxu0 0.0
      %6371 = vmatprep.subr.mxu0 0.0
      %6372 = vmatpush1.msra.mxu0 0.0
      %6373 = vmatprep.subr.mxu0 0.0
      %6374 = vmatpush1.msra.mxu0 0.0
      %6375 = vmatprep.subr.mxu0 0.0
      %6376 = vmatpush1.msra.mxu0 0.0
      %6377 = vmatprep.mubr.f32.mxu0 0.0
      %6378 = vmatmul.mubr.f32.gmra.mrb[0].mxu0 %v6216
      %v6379 = vpop.f32.mrb[0].mxu0
      %v6380 = vadd.f32 0.0, %v6379
      %v6381 = vpop.f32.mrb[0].mxu0
      %6382 = vmatprep.mubr.f32.mxu0 0.0
      %6383 = vmatmul.mubr.f32.gmra.mrb[0].mxu0 %v6219
      %v6384 = vpop.f32.mrb[0].mxu0
      %v6385 = vadd.f32 0.0, %v6384
      %v6386 = vpop.f32.mrb[0].mxu0
      %6387 = vmatprep.mubr.f32.mxu0 0.0
      %6388 = vmatmul.mubr.f32.gmra.mrb[0].mxu0 %v6222
      %v6389 = vpop.f32.mrb[0].mxu0
      %v6390 = vadd.f32 0.0, %v6389
      %v6391 = vpop.f32.mrb[0].mxu0
      %6392 = vdwg.mxu0
      %v6393 = vadd.f32 %v6190, %v6297
      %v6394 = vadd.f32 %v6191, %v6299
      %v6395 = vadd.f32 %v6192, %v6380
      %v6396 = vadd.f32 %v6193, %v6303
      %v6397 = vadd.f32 %v6194, %v6305
      %v6398 = vadd.f32 %v6195, %v6385
      %v6399 = vadd.f32 %v6196, %v6309
      %v6400 = vadd.f32 %v6197, %v6311
      %v6401 = vadd.f32 %v6198, %v6390
      %s6402 = scalar_lea.vmem %s1, 744
      %v6403 = vld [vmem:[%s6402] sm:$0xff]
      %v6404 = vld [vmem:[%s6402 + $0x8] sm:$0xff]
      %v6405 = vld [vmem:[%s6402 + $0x10] sm:$0xff]
      %6406 = vrot.lane.b32.xlu0 %v171, 37
      %v6407 = vpop.permute.xlu0 %6406
      %6408 = vrot.lane.b32.xlu0 %v182, 37
      %v6409 = vpop.permute.xlu0 %6408
      %6410 = vrot.lane.b32.xlu0 %v172, 37
      %v6411 = vpop.permute.xlu0 %6410
      %6412 = vrot.lane.b32.xlu0 %v2954, 37
      %v6413 = vpop.permute.xlu0 %6412
      %vm6414 = vcmask 302080
      %v6415 = vsel %vm6414, %v6407, %v6409
      %v6416 = vsel %vm6414, %v6409, %v6411
      %v6417 = vsel %vm6414, %v6411, %v6413
      %v6419 = vsel %vm192, %v6403, 0
      %v6422 = vsel %vm192, %v6404, 0
      %v6425 = vsel %vm192, %v6405, 0
      %v6427 = vsel %vm202, %v6415, 0
      %v6429 = vsel %vm202, %v6416, 0
      %v6431 = vsel %vm202, %v6417, 0
      %6433 = vmatprep.subr.mxu0 %v6429
      %6434 = vmatpush1.msra.mxu0 %v6427
      %6435 = vmatprep.subr.mxu0 0.0
      %6436 = vmatpush1.msra.mxu0 0.0
      %6437 = vmatprep.subr.mxu0 0.0
      %6438 = vmatpush1.msra.mxu0 0.0
      %6439 = vmatprep.subr.mxu0 0.0
      %6440 = vmatpush1.msra.mxu0 0.0
      %6441 = vmatprep.subr.mxu0 0.0
      %6442 = vmatpush1.msra.mxu0 0.0
      %6443 = vmatprep.subr.mxu0 0.0
      %6444 = vmatpush1.msra.mxu0 0.0
      %6445 = vmatprep.subr.mxu0 0.0
      %6446 = vmatpush1.msra.mxu0 0.0
      %6447 = vmatprep.subr.mxu0 0.0
      %6448 = vmatpush1.msra.mxu0 0.0
      %6449 = vmatprep.subr.mxu0 0.0
      %6450 = vmatpush1.msra.mxu0 0.0
      %6451 = vmatprep.subr.mxu0 0.0
      %6452 = vmatpush1.msra.mxu0 0.0
      %6453 = vmatprep.subr.mxu0 0.0
      %6454 = vmatpush1.msra.mxu0 0.0
      %6455 = vmatprep.subr.mxu0 0.0
      %6456 = vmatpush1.msra.mxu0 0.0
      %6457 = vmatprep.subr.mxu0 0.0
      %6458 = vmatpush1.msra.mxu0 0.0
      %6459 = vmatprep.subr.mxu0 0.0
      %6460 = vmatpush1.msra.mxu0 0.0
      %6461 = vmatprep.subr.mxu0 0.0
      %6462 = vmatpush1.msra.mxu0 0.0
      %6463 = vmatprep.subr.mxu0 0.0
      %6464 = vmatpush1.msra.mxu0 0.0
      %6465 = vmatprep.subr.mxu0 0.0
      %6466 = vmatpush1.msra.mxu0 0.0
      %6467 = vmatprep.subr.mxu0 0.0
      %6468 = vmatpush1.msra.mxu0 0.0
      %6469 = vmatprep.subr.mxu0 0.0
      %6470 = vmatpush1.msra.mxu0 0.0
      %6471 = vmatprep.subr.mxu0 0.0
      %6472 = vmatpush1.msra.mxu0 0.0
      %6473 = vmatprep.subr.mxu0 0.0
      %6474 = vmatpush1.msra.mxu0 0.0
      %6475 = vmatprep.subr.mxu0 0.0
      %6476 = vmatpush1.msra.mxu0 0.0
      %6477 = vmatprep.subr.mxu0 0.0
      %6478 = vmatpush1.msra.mxu0 0.0
      %6479 = vmatprep.subr.mxu0 0.0
      %6480 = vmatpush1.msra.mxu0 0.0
      %6481 = vmatprep.subr.mxu0 0.0
      %6482 = vmatpush1.msra.mxu0 0.0
      %6483 = vmatprep.subr.mxu0 0.0
      %6484 = vmatpush1.msra.mxu0 0.0
      %6485 = vmatprep.subr.mxu0 0.0
      %6486 = vmatpush1.msra.mxu0 0.0
      %6487 = vmatprep.subr.mxu0 0.0
      %6488 = vmatpush1.msra.mxu0 0.0
      %6489 = vmatprep.subr.mxu0 0.0
      %6490 = vmatpush1.msra.mxu0 0.0
      %6491 = vmatprep.subr.mxu0 0.0
      %6492 = vmatpush1.msra.mxu0 0.0
      %6493 = vmatprep.subr.mxu0 0.0
      %6494 = vmatpush1.msra.mxu0 0.0
      %6495 = vmatprep.subr.mxu0 0.0
      %6496 = vmatpush1.msra.mxu0 0.0
      %6497 = vmatprep.mubr.f32.mxu0 0.0
      %6498 = vmatmul.mubr.f32.gmra.mrb[0].mxu0 %v6419
      %v6499 = vpop.f32.mrb[0].mxu0
      %v6500 = vadd.f32 0.0, %v6499
      %v6501 = vpop.f32.mrb[0].mxu0
      %v6502 = vadd.f32 0.0, %v6501
      %6503 = vmatprep.mubr.f32.mxu0 0.0
      %6504 = vmatmul.mubr.f32.gmra.mrb[0].mxu0 %v6422
      %v6505 = vpop.f32.mrb[0].mxu0
      %v6506 = vadd.f32 0.0, %v6505
      %v6507 = vpop.f32.mrb[0].mxu0
      %v6508 = vadd.f32 0.0, %v6507
      %6509 = vmatprep.mubr.f32.mxu0 0.0
      %6510 = vmatmul.mubr.f32.gmra.mrb[0].mxu0 %v6425
      %v6511 = vpop.f32.mrb[0].mxu0
      %v6512 = vadd.f32 0.0, %v6511
      %v6513 = vpop.f32.mrb[0].mxu0
      %v6514 = vadd.f32 0.0, %v6513
      %6515 = vdwg.mxu0
      %6516 = vmatprep.subr.mxu0 0.0
      %6517 = vmatpush1.msra.mxu0 %v6431
      %6518 = vmatprep.subr.mxu0 0.0
      %6519 = vmatpush1.msra.mxu0 0.0
      %6520 = vmatprep.subr.mxu0 0.0
      %6521 = vmatpush1.msra.mxu0 0.0
      %6522 = vmatprep.subr.mxu0 0.0
      %6523 = vmatpush1.msra.mxu0 0.0
      %6524 = vmatprep.subr.mxu0 0.0
      %6525 = vmatpush1.msra.mxu0 0.0
      %6526 = vmatprep.subr.mxu0 0.0
      %6527 = vmatpush1.msra.mxu0 0.0
      %6528 = vmatprep.subr.mxu0 0.0
      %6529 = vmatpush1.msra.mxu0 0.0
      %6530 = vmatprep.subr.mxu0 0.0
      %6531 = vmatpush1.msra.mxu0 0.0
      %6532 = vmatprep.subr.mxu0 0.0
      %6533 = vmatpush1.msra.mxu0 0.0
      %6534 = vmatprep.subr.mxu0 0.0
      %6535 = vmatpush1.msra.mxu0 0.0
      %6536 = vmatprep.subr.mxu0 0.0
      %6537 = vmatpush1.msra.mxu0 0.0
      %6538 = vmatprep.subr.mxu0 0.0
      %6539 = vmatpush1.msra.mxu0 0.0
      %6540 = vmatprep.subr.mxu0 0.0
      %6541 = vmatpush1.msra.mxu0 0.0
      %6542 = vmatprep.subr.mxu0 0.0
      %6543 = vmatpush1.msra.mxu0 0.0
      %6544 = vmatprep.subr.mxu0 0.0
      %6545 = vmatpush1.msra.mxu0 0.0
      %6546 = vmatprep.subr.mxu0 0.0
      %6547 = vmatpush1.msra.mxu0 0.0
      %6548 = vmatprep.subr.mxu0 0.0
      %6549 = vmatpush1.msra.mxu0 0.0
      %6550 = vmatprep.subr.mxu0 0.0
      %6551 = vmatpush1.msra.mxu0 0.0
      %6552 = vmatprep.subr.mxu0 0.0
      %6553 = vmatpush1.msra.mxu0 0.0
      %6554 = vmatprep.subr.mxu0 0.0
      %6555 = vmatpush1.msra.mxu0 0.0
      %6556 = vmatprep.subr.mxu0 0.0
      %6557 = vmatpush1.msra.mxu0 0.0
      %6558 = vmatprep.subr.mxu0 0.0
      %6559 = vmatpush1.msra.mxu0 0.0
      %6560 = vmatprep.subr.mxu0 0.0
      %6561 = vmatpush1.msra.mxu0 0.0
      %6562 = vmatprep.subr.mxu0 0.0
      %6563 = vmatpush1.msra.mxu0 0.0
      %6564 = vmatprep.subr.mxu0 0.0
      %6565 = vmatpush1.msra.mxu0 0.0
      %6566 = vmatprep.subr.mxu0 0.0
      %6567 = vmatpush1.msra.mxu0 0.0
      %6568 = vmatprep.subr.mxu0 0.0
      %6569 = vmatpush1.msra.mxu0 0.0
      %6570 = vmatprep.subr.mxu0 0.0
      %6571 = vmatpush1.msra.mxu0 0.0
      %6572 = vmatprep.subr.mxu0 0.0
      %6573 = vmatpush1.msra.mxu0 0.0
      %6574 = vmatprep.subr.mxu0 0.0
      %6575 = vmatpush1.msra.mxu0 0.0
      %6576 = vmatprep.subr.mxu0 0.0
      %6577 = vmatpush1.msra.mxu0 0.0
      %6578 = vmatprep.subr.mxu0 0.0
      %6579 = vmatpush1.msra.mxu0 0.0
      %6580 = vmatprep.mubr.f32.mxu0 0.0
      %6581 = vmatmul.mubr.f32.gmra.mrb[0].mxu0 %v6419
      %v6582 = vpop.f32.mrb[0].mxu0
      %v6583 = vadd.f32 0.0, %v6582
      %v6584 = vpop.f32.mrb[0].mxu0
      %6585 = vmatprep.mubr.f32.mxu0 0.0
      %6586 = vmatmul.mubr.f32.gmra.mrb[0].mxu0 %v6422
      %v6587 = vpop.f32.mrb[0].mxu0
      %v6588 = vadd.f32 0.0, %v6587
      %v6589 = vpop.f32.mrb[0].mxu0
      %6590 = vmatprep.mubr.f32.mxu0 0.0
      %6591 = vmatmul.mubr.f32.gmra.mrb[0].mxu0 %v6425
      %v6592 = vpop.f32.mrb[0].mxu0
      %v6593 = vadd.f32 0.0, %v6592
      %v6594 = vpop.f32.mrb[0].mxu0
      %6595 = vdwg.mxu0
      %v6596 = vadd.f32 %v6393, %v6500
      %v6597 = vadd.f32 %v6394, %v6502
      %v6598 = vadd.f32 %v6395, %v6583
      %v6599 = vadd.f32 %v6396, %v6506
      %v6600 = vadd.f32 %v6397, %v6508
      %v6601 = vadd.f32 %v6398, %v6588
      %v6602 = vadd.f32 %v6399, %v6512
      %v6603 = vadd.f32 %v6400, %v6514
      %v6604 = vadd.f32 %v6401, %v6593
      %s6605 = scalar_lea.vmem %s1, 768
      %v6606 = vld [vmem:[%s6605] sm:$0xff]
      %v6607 = vld [vmem:[%s6605 + $0x8] sm:$0xff]
      %v6608 = vld [vmem:[%s6605 + $0x10] sm:$0xff]
      %6609 = vrot.lane.b32.xlu0 %v171, 36
      %v6610 = vpop.permute.xlu0 %6609
      %6611 = vrot.lane.b32.xlu0 %v182, 36
      %v6612 = vpop.permute.xlu0 %6611
      %6613 = vrot.lane.b32.xlu0 %v172, 36
      %v6614 = vpop.permute.xlu0 %6613
      %6615 = vrot.lane.b32.xlu0 %v2954, 36
      %v6616 = vpop.permute.xlu0 %6615
      %vm6617 = vcmask 293888
      %v6618 = vsel %vm6617, %v6610, %v6612
      %v6619 = vsel %vm6617, %v6612, %v6614
      %v6620 = vsel %vm6617, %v6614, %v6616
      %v6622 = vsel %vm192, %v6606, 0
      %v6625 = vsel %vm192, %v6607, 0
      %v6628 = vsel %vm192, %v6608, 0
      %v6630 = vsel %vm202, %v6618, 0
      %v6632 = vsel %vm202, %v6619, 0
      %v6634 = vsel %vm202, %v6620, 0
      %6636 = vmatprep.subr.mxu0 %v6632
      %6637 = vmatpush1.msra.mxu0 %v6630
      %6638 = vmatprep.subr.mxu0 0.0
      %6639 = vmatpush1.msra.mxu0 0.0
      %6640 = vmatprep.subr.mxu0 0.0
      %6641 = vmatpush1.msra.mxu0 0.0
      %6642 = vmatprep.subr.mxu0 0.0
      %6643 = vmatpush1.msra.mxu0 0.0
      %6644 = vmatprep.subr.mxu0 0.0
      %6645 = vmatpush1.msra.mxu0 0.0
      %6646 = vmatprep.subr.mxu0 0.0
      %6647 = vmatpush1.msra.mxu0 0.0
      %6648 = vmatprep.subr.mxu0 0.0
      %6649 = vmatpush1.msra.mxu0 0.0
      %6650 = vmatprep.subr.mxu0 0.0
      %6651 = vmatpush1.msra.mxu0 0.0
      %6652 = vmatprep.subr.mxu0 0.0
      %6653 = vmatpush1.msra.mxu0 0.0
      %6654 = vmatprep.subr.mxu0 0.0
      %6655 = vmatpush1.msra.mxu0 0.0
      %6656 = vmatprep.subr.mxu0 0.0
      %6657 = vmatpush1.msra.mxu0 0.0
      %6658 = vmatprep.subr.mxu0 0.0
      %6659 = vmatpush1.msra.mxu0 0.0
      %6660 = vmatprep.subr.mxu0 0.0
      %6661 = vmatpush1.msra.mxu0 0.0
      %6662 = vmatprep.subr.mxu0 0.0
      %6663 = vmatpush1.msra.mxu0 0.0
      %6664 = vmatprep.subr.mxu0 0.0
      %6665 = vmatpush1.msra.mxu0 0.0
      %6666 = vmatprep.subr.mxu0 0.0
      %6667 = vmatpush1.msra.mxu0 0.0
      %6668 = vmatprep.subr.mxu0 0.0
      %6669 = vmatpush1.msra.mxu0 0.0
      %6670 = vmatprep.subr.mxu0 0.0
      %6671 = vmatpush1.msra.mxu0 0.0
      %6672 = vmatprep.subr.mxu0 0.0
      %6673 = vmatpush1.msra.mxu0 0.0
      %6674 = vmatprep.subr.mxu0 0.0
      %6675 = vmatpush1.msra.mxu0 0.0
      %6676 = vmatprep.subr.mxu0 0.0
      %6677 = vmatpush1.msra.mxu0 0.0
      %6678 = vmatprep.subr.mxu0 0.0
      %6679 = vmatpush1.msra.mxu0 0.0
      %6680 = vmatprep.subr.mxu0 0.0
      %6681 = vmatpush1.msra.mxu0 0.0
      %6682 = vmatprep.subr.mxu0 0.0
      %6683 = vmatpush1.msra.mxu0 0.0
      %6684 = vmatprep.subr.mxu0 0.0
      %6685 = vmatpush1.msra.mxu0 0.0
      %6686 = vmatprep.subr.mxu0 0.0
      %6687 = vmatpush1.msra.mxu0 0.0
      %6688 = vmatprep.subr.mxu0 0.0
      %6689 = vmatpush1.msra.mxu0 0.0
      %6690 = vmatprep.subr.mxu0 0.0
      %6691 = vmatpush1.msra.mxu0 0.0
      %6692 = vmatprep.subr.mxu0 0.0
      %6693 = vmatpush1.msra.mxu0 0.0
      %6694 = vmatprep.subr.mxu0 0.0
      %6695 = vmatpush1.msra.mxu0 0.0
      %6696 = vmatprep.subr.mxu0 0.0
      %6697 = vmatpush1.msra.mxu0 0.0
      %6698 = vmatprep.subr.mxu0 0.0
      %6699 = vmatpush1.msra.mxu0 0.0
      %6700 = vmatprep.mubr.f32.mxu0 0.0
      %6701 = vmatmul.mubr.f32.gmra.mrb[0].mxu0 %v6622
      %v6702 = vpop.f32.mrb[0].mxu0
      %v6703 = vadd.f32 0.0, %v6702
      %v6704 = vpop.f32.mrb[0].mxu0
      %v6705 = vadd.f32 0.0, %v6704
      %6706 = vmatprep.mubr.f32.mxu0 0.0
      %6707 = vmatmul.mubr.f32.gmra.mrb[0].mxu0 %v6625
      %v6708 = vpop.f32.mrb[0].mxu0
      %v6709 = vadd.f32 0.0, %v6708
      %v6710 = vpop.f32.mrb[0].mxu0
      %v6711 = vadd.f32 0.0, %v6710
      %6712 = vmatprep.mubr.f32.mxu0 0.0
      %6713 = vmatmul.mubr.f32.gmra.mrb[0].mxu0 %v6628
      %v6714 = vpop.f32.mrb[0].mxu0
      %v6715 = vadd.f32 0.0, %v6714
      %v6716 = vpop.f32.mrb[0].mxu0
      %v6717 = vadd.f32 0.0, %v6716
      %6718 = vdwg.mxu0
      %6719 = vmatprep.subr.mxu0 0.0
      %6720 = vmatpush1.msra.mxu0 %v6634
      %6721 = vmatprep.subr.mxu0 0.0
      %6722 = vmatpush1.msra.mxu0 0.0
      %6723 = vmatprep.subr.mxu0 0.0
      %6724 = vmatpush1.msra.mxu0 0.0
      %6725 = vmatprep.subr.mxu0 0.0
      %6726 = vmatpush1.msra.mxu0 0.0
      %6727 = vmatprep.subr.mxu0 0.0
      %6728 = vmatpush1.msra.mxu0 0.0
      %6729 = vmatprep.subr.mxu0 0.0
      %6730 = vmatpush1.msra.mxu0 0.0
      %6731 = vmatprep.subr.mxu0 0.0
      %6732 = vmatpush1.msra.mxu0 0.0
      %6733 = vmatprep.subr.mxu0 0.0
      %6734 = vmatpush1.msra.mxu0 0.0
      %6735 = vmatprep.subr.mxu0 0.0
      %6736 = vmatpush1.msra.mxu0 0.0
      %6737 = vmatprep.subr.mxu0 0.0
      %6738 = vmatpush1.msra.mxu0 0.0
      %6739 = vmatprep.subr.mxu0 0.0
      %6740 = vmatpush1.msra.mxu0 0.0
      %6741 = vmatprep.subr.mxu0 0.0
      %6742 = vmatpush1.msra.mxu0 0.0
      %6743 = vmatprep.subr.mxu0 0.0
      %6744 = vmatpush1.msra.mxu0 0.0
      %6745 = vmatprep.subr.mxu0 0.0
      %6746 = vmatpush1.msra.mxu0 0.0
      %6747 = vmatprep.subr.mxu0 0.0
      %6748 = vmatpush1.msra.mxu0 0.0
      %6749 = vmatprep.subr.mxu0 0.0
      %6750 = vmatpush1.msra.mxu0 0.0
      %6751 = vmatprep.subr.mxu0 0.0
      %6752 = vmatpush1.msra.mxu0 0.0
      %6753 = vmatprep.subr.mxu0 0.0
      %6754 = vmatpush1.msra.mxu0 0.0
      %6755 = vmatprep.subr.mxu0 0.0
      %6756 = vmatpush1.msra.mxu0 0.0
      %6757 = vmatprep.subr.mxu0 0.0
      %6758 = vmatpush1.msra.mxu0 0.0
      %6759 = vmatprep.subr.mxu0 0.0
      %6760 = vmatpush1.msra.mxu0 0.0
      %6761 = vmatprep.subr.mxu0 0.0
      %6762 = vmatpush1.msra.mxu0 0.0
      %6763 = vmatprep.subr.mxu0 0.0
      %6764 = vmatpush1.msra.mxu0 0.0
      %6765 = vmatprep.subr.mxu0 0.0
      %6766 = vmatpush1.msra.mxu0 0.0
      %6767 = vmatprep.subr.mxu0 0.0
      %6768 = vmatpush1.msra.mxu0 0.0
      %6769 = vmatprep.subr.mxu0 0.0
      %6770 = vmatpush1.msra.mxu0 0.0
      %6771 = vmatprep.subr.mxu0 0.0
      %6772 = vmatpush1.msra.mxu0 0.0
      %6773 = vmatprep.subr.mxu0 0.0
      %6774 = vmatpush1.msra.mxu0 0.0
      %6775 = vmatprep.subr.mxu0 0.0
      %6776 = vmatpush1.msra.mxu0 0.0
      %6777 = vmatprep.subr.mxu0 0.0
      %6778 = vmatpush1.msra.mxu0 0.0
      %6779 = vmatprep.subr.mxu0 0.0
      %6780 = vmatpush1.msra.mxu0 0.0
      %6781 = vmatprep.subr.mxu0 0.0
      %6782 = vmatpush1.msra.mxu0 0.0
      %6783 = vmatprep.mubr.f32.mxu0 0.0
      %6784 = vmatmul.mubr.f32.gmra.mrb[0].mxu0 %v6622
      %v6785 = vpop.f32.mrb[0].mxu0
      %v6786 = vadd.f32 0.0, %v6785
      %v6787 = vpop.f32.mrb[0].mxu0
      %6788 = vmatprep.mubr.f32.mxu0 0.0
      %6789 = vmatmul.mubr.f32.gmra.mrb[0].mxu0 %v6625
      %v6790 = vpop.f32.mrb[0].mxu0
      %v6791 = vadd.f32 0.0, %v6790
      %v6792 = vpop.f32.mrb[0].mxu0
      %6793 = vmatprep.mubr.f32.mxu0 0.0
      %6794 = vmatmul.mubr.f32.gmra.mrb[0].mxu0 %v6628
      %v6795 = vpop.f32.mrb[0].mxu0
      %v6796 = vadd.f32 0.0, %v6795
      %v6797 = vpop.f32.mrb[0].mxu0
      %6798 = vdwg.mxu0
      %v6799 = vadd.f32 %v6596, %v6703
      %v6800 = vadd.f32 %v6597, %v6705
      %v6801 = vadd.f32 %v6598, %v6786
      %v6802 = vadd.f32 %v6599, %v6709
      %v6803 = vadd.f32 %v6600, %v6711
      %v6804 = vadd.f32 %v6601, %v6791
      %v6805 = vadd.f32 %v6602, %v6715
      %v6806 = vadd.f32 %v6603, %v6717
      %v6807 = vadd.f32 %v6604, %v6796
      %s6808 = scalar_lea.vmem %s1, 792
      %v6809 = vld [vmem:[%s6808] sm:$0xff]
      %v6810 = vld [vmem:[%s6808 + $0x8] sm:$0xff]
      %v6811 = vld [vmem:[%s6808 + $0x10] sm:$0xff]
      %6812 = vrot.lane.b32.xlu0 %v171, 35
      %v6813 = vpop.permute.xlu0 %6812
      %6814 = vrot.lane.b32.xlu0 %v182, 35
      %v6815 = vpop.permute.xlu0 %6814
      %6816 = vrot.lane.b32.xlu0 %v172, 35
      %v6817 = vpop.permute.xlu0 %6816
      %6818 = vrot.lane.b32.xlu0 %v2954, 35
      %v6819 = vpop.permute.xlu0 %6818
      %vm6820 = vcmask 285696
      %v6821 = vsel %vm6820, %v6813, %v6815
      %v6822 = vsel %vm6820, %v6815, %v6817
      %v6823 = vsel %vm6820, %v6817, %v6819
      %v6825 = vsel %vm192, %v6809, 0
      %v6828 = vsel %vm192, %v6810, 0
      %v6831 = vsel %vm192, %v6811, 0
      %v6833 = vsel %vm202, %v6821, 0
      %v6835 = vsel %vm202, %v6822, 0
      %v6837 = vsel %vm202, %v6823, 0
      %6839 = vmatprep.subr.mxu0 %v6835
      %6840 = vmatpush1.msra.mxu0 %v6833
      %6841 = vmatprep.subr.mxu0 0.0
      %6842 = vmatpush1.msra.mxu0 0.0
      %6843 = vmatprep.subr.mxu0 0.0
      %6844 = vmatpush1.msra.mxu0 0.0
      %6845 = vmatprep.subr.mxu0 0.0
      %6846 = vmatpush1.msra.mxu0 0.0
      %6847 = vmatprep.subr.mxu0 0.0
      %6848 = vmatpush1.msra.mxu0 0.0
      %6849 = vmatprep.subr.mxu0 0.0
      %6850 = vmatpush1.msra.mxu0 0.0
      %6851 = vmatprep.subr.mxu0 0.0
      %6852 = vmatpush1.msra.mxu0 0.0
      %6853 = vmatprep.subr.mxu0 0.0
      %6854 = vmatpush1.msra.mxu0 0.0
      %6855 = vmatprep.subr.mxu0 0.0
      %6856 = vmatpush1.msra.mxu0 0.0
      %6857 = vmatprep.subr.mxu0 0.0
      %6858 = vmatpush1.msra.mxu0 0.0
      %6859 = vmatprep.subr.mxu0 0.0
      %6860 = vmatpush1.msra.mxu0 0.0
      %6861 = vmatprep.subr.mxu0 0.0
      %6862 = vmatpush1.msra.mxu0 0.0
      %6863 = vmatprep.subr.mxu0 0.0
      %6864 = vmatpush1.msra.mxu0 0.0
      %6865 = vmatprep.subr.mxu0 0.0
      %6866 = vmatpush1.msra.mxu0 0.0
      %6867 = vmatprep.subr.mxu0 0.0
      %6868 = vmatpush1.msra.mxu0 0.0
      %6869 = vmatprep.subr.mxu0 0.0
      %6870 = vmatpush1.msra.mxu0 0.0
      %6871 = vmatprep.subr.mxu0 0.0
      %6872 = vmatpush1.msra.mxu0 0.0
      %6873 = vmatprep.subr.mxu0 0.0
      %6874 = vmatpush1.msra.mxu0 0.0
      %6875 = vmatprep.subr.mxu0 0.0
      %6876 = vmatpush1.msra.mxu0 0.0
      %6877 = vmatprep.subr.mxu0 0.0
      %6878 = vmatpush1.msra.mxu0 0.0
      %6879 = vmatprep.subr.mxu0 0.0
      %6880 = vmatpush1.msra.mxu0 0.0
      %6881 = vmatprep.subr.mxu0 0.0
      %6882 = vmatpush1.msra.mxu0 0.0
      %6883 = vmatprep.subr.mxu0 0.0
      %6884 = vmatpush1.msra.mxu0 0.0
      %6885 = vmatprep.subr.mxu0 0.0
      %6886 = vmatpush1.msra.mxu0 0.0
      %6887 = vmatprep.subr.mxu0 0.0
      %6888 = vmatpush1.msra.mxu0 0.0
      %6889 = vmatprep.subr.mxu0 0.0
      %6890 = vmatpush1.msra.mxu0 0.0
      %6891 = vmatprep.subr.mxu0 0.0
      %6892 = vmatpush1.msra.mxu0 0.0
      %6893 = vmatprep.subr.mxu0 0.0
      %6894 = vmatpush1.msra.mxu0 0.0
      %6895 = vmatprep.subr.mxu0 0.0
      %6896 = vmatpush1.msra.mxu0 0.0
      %6897 = vmatprep.subr.mxu0 0.0
      %6898 = vmatpush1.msra.mxu0 0.0
      %6899 = vmatprep.subr.mxu0 0.0
      %6900 = vmatpush1.msra.mxu0 0.0
      %6901 = vmatprep.subr.mxu0 0.0
      %6902 = vmatpush1.msra.mxu0 0.0
      %6903 = vmatprep.mubr.f32.mxu0 0.0
      %6904 = vmatmul.mubr.f32.gmra.mrb[0].mxu0 %v6825
      %v6905 = vpop.f32.mrb[0].mxu0
      %v6906 = vadd.f32 0.0, %v6905
      %v6907 = vpop.f32.mrb[0].mxu0
      %v6908 = vadd.f32 0.0, %v6907
      %6909 = vmatprep.mubr.f32.mxu0 0.0
      %6910 = vmatmul.mubr.f32.gmra.mrb[0].mxu0 %v6828
      %v6911 = vpop.f32.mrb[0].mxu0
      %v6912 = vadd.f32 0.0, %v6911
      %v6913 = vpop.f32.mrb[0].mxu0
      %v6914 = vadd.f32 0.0, %v6913
      %6915 = vmatprep.mubr.f32.mxu0 0.0
      %6916 = vmatmul.mubr.f32.gmra.mrb[0].mxu0 %v6831
      %v6917 = vpop.f32.mrb[0].mxu0
      %v6918 = vadd.f32 0.0, %v6917
      %v6919 = vpop.f32.mrb[0].mxu0
      %v6920 = vadd.f32 0.0, %v6919
      %6921 = vdwg.mxu0
      %6922 = vmatprep.subr.mxu0 0.0
      %6923 = vmatpush1.msra.mxu0 %v6837
      %6924 = vmatprep.subr.mxu0 0.0
      %6925 = vmatpush1.msra.mxu0 0.0
      %6926 = vmatprep.subr.mxu0 0.0
      %6927 = vmatpush1.msra.mxu0 0.0
      %6928 = vmatprep.subr.mxu0 0.0
      %6929 = vmatpush1.msra.mxu0 0.0
      %6930 = vmatprep.subr.mxu0 0.0
      %6931 = vmatpush1.msra.mxu0 0.0
      %6932 = vmatprep.subr.mxu0 0.0
      %6933 = vmatpush1.msra.mxu0 0.0
      %6934 = vmatprep.subr.mxu0 0.0
      %6935 = vmatpush1.msra.mxu0 0.0
      %6936 = vmatprep.subr.mxu0 0.0
      %6937 = vmatpush1.msra.mxu0 0.0
      %6938 = vmatprep.subr.mxu0 0.0
      %6939 = vmatpush1.msra.mxu0 0.0
      %6940 = vmatprep.subr.mxu0 0.0
      %6941 = vmatpush1.msra.mxu0 0.0
      %6942 = vmatprep.subr.mxu0 0.0
      %6943 = vmatpush1.msra.mxu0 0.0
      %6944 = vmatprep.subr.mxu0 0.0
      %6945 = vmatpush1.msra.mxu0 0.0
      %6946 = vmatprep.subr.mxu0 0.0
      %6947 = vmatpush1.msra.mxu0 0.0
      %6948 = vmatprep.subr.mxu0 0.0
      %6949 = vmatpush1.msra.mxu0 0.0
      %6950 = vmatprep.subr.mxu0 0.0
      %6951 = vmatpush1.msra.mxu0 0.0
      %6952 = vmatprep.subr.mxu0 0.0
      %6953 = vmatpush1.msra.mxu0 0.0
      %6954 = vmatprep.subr.mxu0 0.0
      %6955 = vmatpush1.msra.mxu0 0.0
      %6956 = vmatprep.subr.mxu0 0.0
      %6957 = vmatpush1.msra.mxu0 0.0
      %6958 = vmatprep.subr.mxu0 0.0
      %6959 = vmatpush1.msra.mxu0 0.0
      %6960 = vmatprep.subr.mxu0 0.0
      %6961 = vmatpush1.msra.mxu0 0.0
      %6962 = vmatprep.subr.mxu0 0.0
      %6963 = vmatpush1.msra.mxu0 0.0
      %6964 = vmatprep.subr.mxu0 0.0
      %6965 = vmatpush1.msra.mxu0 0.0
      %6966 = vmatprep.subr.mxu0 0.0
      %6967 = vmatpush1.msra.mxu0 0.0
      %6968 = vmatprep.subr.mxu0 0.0
      %6969 = vmatpush1.msra.mxu0 0.0
      %6970 = vmatprep.subr.mxu0 0.0
      %6971 = vmatpush1.msra.mxu0 0.0
      %6972 = vmatprep.subr.mxu0 0.0
      %6973 = vmatpush1.msra.mxu0 0.0
      %6974 = vmatprep.subr.mxu0 0.0
      %6975 = vmatpush1.msra.mxu0 0.0
      %6976 = vmatprep.subr.mxu0 0.0
      %6977 = vmatpush1.msra.mxu0 0.0
      %6978 = vmatprep.subr.mxu0 0.0
      %6979 = vmatpush1.msra.mxu0 0.0
      %6980 = vmatprep.subr.mxu0 0.0
      %6981 = vmatpush1.msra.mxu0 0.0
      %6982 = vmatprep.subr.mxu0 0.0
      %6983 = vmatpush1.msra.mxu0 0.0
      %6984 = vmatprep.subr.mxu0 0.0
      %6985 = vmatpush1.msra.mxu0 0.0
      %6986 = vmatprep.mubr.f32.mxu0 0.0
      %6987 = vmatmul.mubr.f32.gmra.mrb[0].mxu0 %v6825
      %v6988 = vpop.f32.mrb[0].mxu0
      %v6989 = vadd.f32 0.0, %v6988
      %v6990 = vpop.f32.mrb[0].mxu0
      %6991 = vmatprep.mubr.f32.mxu0 0.0
      %6992 = vmatmul.mubr.f32.gmra.mrb[0].mxu0 %v6828
      %v6993 = vpop.f32.mrb[0].mxu0
      %v6994 = vadd.f32 0.0, %v6993
      %v6995 = vpop.f32.mrb[0].mxu0
      %6996 = vmatprep.mubr.f32.mxu0 0.0
      %6997 = vmatmul.mubr.f32.gmra.mrb[0].mxu0 %v6831
      %v6998 = vpop.f32.mrb[0].mxu0
      %v6999 = vadd.f32 0.0, %v6998
      %v7000 = vpop.f32.mrb[0].mxu0
      %7001 = vdwg.mxu0
      %v7002 = vadd.f32 %v6799, %v6906
      %v7003 = vadd.f32 %v6800, %v6908
      %v7004 = vadd.f32 %v6801, %v6989
      %v7005 = vadd.f32 %v6802, %v6912
      %v7006 = vadd.f32 %v6803, %v6914
      %v7007 = vadd.f32 %v6804, %v6994
      %v7008 = vadd.f32 %v6805, %v6918
      %v7009 = vadd.f32 %v6806, %v6920
      %v7010 = vadd.f32 %v6807, %v6999
      %s7011 = scalar_lea.vmem %s1, 816
      %v7012 = vld [vmem:[%s7011] sm:$0xff]
      %v7013 = vld [vmem:[%s7011 + $0x8] sm:$0xff]
      %v7014 = vld [vmem:[%s7011 + $0x10] sm:$0xff]
      %7015 = vrot.lane.b32.xlu0 %v171, 34
      %v7016 = vpop.permute.xlu0 %7015
      %7017 = vrot.lane.b32.xlu0 %v182, 34
      %v7018 = vpop.permute.xlu0 %7017
      %7019 = vrot.lane.b32.xlu0 %v172, 34
      %v7020 = vpop.permute.xlu0 %7019
      %7021 = vrot.lane.b32.xlu0 %v2954, 34
      %v7022 = vpop.permute.xlu0 %7021
      %vm7023 = vcmask 277504
      %v7024 = vsel %vm7023, %v7016, %v7018
      %v7025 = vsel %vm7023, %v7018, %v7020
      %v7026 = vsel %vm7023, %v7020, %v7022
      %v7028 = vsel %vm192, %v7012, 0
      %v7031 = vsel %vm192, %v7013, 0
      %v7034 = vsel %vm192, %v7014, 0
      %v7036 = vsel %vm202, %v7024, 0
      %v7038 = vsel %vm202, %v7025, 0
      %v7040 = vsel %vm202, %v7026, 0
      %7042 = vmatprep.subr.mxu0 %v7038
      %7043 = vmatpush1.msra.mxu0 %v7036
      %7044 = vmatprep.subr.mxu0 0.0
      %7045 = vmatpush1.msra.mxu0 0.0
      %7046 = vmatprep.subr.mxu0 0.0
      %7047 = vmatpush1.msra.mxu0 0.0
      %7048 = vmatprep.subr.mxu0 0.0
      %7049 = vmatpush1.msra.mxu0 0.0
      %7050 = vmatprep.subr.mxu0 0.0
      %7051 = vmatpush1.msra.mxu0 0.0
      %7052 = vmatprep.subr.mxu0 0.0
      %7053 = vmatpush1.msra.mxu0 0.0
      %7054 = vmatprep.subr.mxu0 0.0
      %7055 = vmatpush1.msra.mxu0 0.0
      %7056 = vmatprep.subr.mxu0 0.0
      %7057 = vmatpush1.msra.mxu0 0.0
      %7058 = vmatprep.subr.mxu0 0.0
      %7059 = vmatpush1.msra.mxu0 0.0
      %7060 = vmatprep.subr.mxu0 0.0
      %7061 = vmatpush1.msra.mxu0 0.0
      %7062 = vmatprep.subr.mxu0 0.0
      %7063 = vmatpush1.msra.mxu0 0.0
      %7064 = vmatprep.subr.mxu0 0.0
      %7065 = vmatpush1.msra.mxu0 0.0
      %7066 = vmatprep.subr.mxu0 0.0
      %7067 = vmatpush1.msra.mxu0 0.0
      %7068 = vmatprep.subr.mxu0 0.0
      %7069 = vmatpush1.msra.mxu0 0.0
      %7070 = vmatprep.subr.mxu0 0.0
      %7071 = vmatpush1.msra.mxu0 0.0
      %7072 = vmatprep.subr.mxu0 0.0
      %7073 = vmatpush1.msra.mxu0 0.0
      %7074 = vmatprep.subr.mxu0 0.0
      %7075 = vmatpush1.msra.mxu0 0.0
      %7076 = vmatprep.subr.mxu0 0.0
      %7077 = vmatpush1.msra.mxu0 0.0
      %7078 = vmatprep.subr.mxu0 0.0
      %7079 = vmatpush1.msra.mxu0 0.0
      %7080 = vmatprep.subr.mxu0 0.0
      %7081 = vmatpush1.msra.mxu0 0.0
      %7082 = vmatprep.subr.mxu0 0.0
      %7083 = vmatpush1.msra.mxu0 0.0
      %7084 = vmatprep.subr.mxu0 0.0
      %7085 = vmatpush1.msra.mxu0 0.0
      %7086 = vmatprep.subr.mxu0 0.0
      %7087 = vmatpush1.msra.mxu0 0.0
      %7088 = vmatprep.subr.mxu0 0.0
      %7089 = vmatpush1.msra.mxu0 0.0
      %7090 = vmatprep.subr.mxu0 0.0
      %7091 = vmatpush1.msra.mxu0 0.0
      %7092 = vmatprep.subr.mxu0 0.0
      %7093 = vmatpush1.msra.mxu0 0.0
      %7094 = vmatprep.subr.mxu0 0.0
      %7095 = vmatpush1.msra.mxu0 0.0
      %7096 = vmatprep.subr.mxu0 0.0
      %7097 = vmatpush1.msra.mxu0 0.0
      %7098 = vmatprep.subr.mxu0 0.0
      %7099 = vmatpush1.msra.mxu0 0.0
      %7100 = vmatprep.subr.mxu0 0.0
      %7101 = vmatpush1.msra.mxu0 0.0
      %7102 = vmatprep.subr.mxu0 0.0
      %7103 = vmatpush1.msra.mxu0 0.0
      %7104 = vmatprep.subr.mxu0 0.0
      %7105 = vmatpush1.msra.mxu0 0.0
      %7106 = vmatprep.mubr.f32.mxu0 0.0
      %7107 = vmatmul.mubr.f32.gmra.mrb[0].mxu0 %v7028
      %v7108 = vpop.f32.mrb[0].mxu0
      %v7109 = vadd.f32 0.0, %v7108
      %v7110 = vpop.f32.mrb[0].mxu0
      %v7111 = vadd.f32 0.0, %v7110
      %7112 = vmatprep.mubr.f32.mxu0 0.0
      %7113 = vmatmul.mubr.f32.gmra.mrb[0].mxu0 %v7031
      %v7114 = vpop.f32.mrb[0].mxu0
      %v7115 = vadd.f32 0.0, %v7114
      %v7116 = vpop.f32.mrb[0].mxu0
      %v7117 = vadd.f32 0.0, %v7116
      %7118 = vmatprep.mubr.f32.mxu0 0.0
      %7119 = vmatmul.mubr.f32.gmra.mrb[0].mxu0 %v7034
      %v7120 = vpop.f32.mrb[0].mxu0
      %v7121 = vadd.f32 0.0, %v7120
      %v7122 = vpop.f32.mrb[0].mxu0
      %v7123 = vadd.f32 0.0, %v7122
      %7124 = vdwg.mxu0
      %7125 = vmatprep.subr.mxu0 0.0
      %7126 = vmatpush1.msra.mxu0 %v7040
      %7127 = vmatprep.subr.mxu0 0.0
      %7128 = vmatpush1.msra.mxu0 0.0
      %7129 = vmatprep.subr.mxu0 0.0
      %7130 = vmatpush1.msra.mxu0 0.0
      %7131 = vmatprep.subr.mxu0 0.0
      %7132 = vmatpush1.msra.mxu0 0.0
      %7133 = vmatprep.subr.mxu0 0.0
      %7134 = vmatpush1.msra.mxu0 0.0
      %7135 = vmatprep.subr.mxu0 0.0
      %7136 = vmatpush1.msra.mxu0 0.0
      %7137 = vmatprep.subr.mxu0 0.0
      %7138 = vmatpush1.msra.mxu0 0.0
      %7139 = vmatprep.subr.mxu0 0.0
      %7140 = vmatpush1.msra.mxu0 0.0
      %7141 = vmatprep.subr.mxu0 0.0
      %7142 = vmatpush1.msra.mxu0 0.0
      %7143 = vmatprep.subr.mxu0 0.0
      %7144 = vmatpush1.msra.mxu0 0.0
      %7145 = vmatprep.subr.mxu0 0.0
      %7146 = vmatpush1.msra.mxu0 0.0
      %7147 = vmatprep.subr.mxu0 0.0
      %7148 = vmatpush1.msra.mxu0 0.0
      %7149 = vmatprep.subr.mxu0 0.0
      %7150 = vmatpush1.msra.mxu0 0.0
      %7151 = vmatprep.subr.mxu0 0.0
      %7152 = vmatpush1.msra.mxu0 0.0
      %7153 = vmatprep.subr.mxu0 0.0
      %7154 = vmatpush1.msra.mxu0 0.0
      %7155 = vmatprep.subr.mxu0 0.0
      %7156 = vmatpush1.msra.mxu0 0.0
      %7157 = vmatprep.subr.mxu0 0.0
      %7158 = vmatpush1.msra.mxu0 0.0
      %7159 = vmatprep.subr.mxu0 0.0
      %7160 = vmatpush1.msra.mxu0 0.0
      %7161 = vmatprep.subr.mxu0 0.0
      %7162 = vmatpush1.msra.mxu0 0.0
      %7163 = vmatprep.subr.mxu0 0.0
      %7164 = vmatpush1.msra.mxu0 0.0
      %7165 = vmatprep.subr.mxu0 0.0
      %7166 = vmatpush1.msra.mxu0 0.0
      %7167 = vmatprep.subr.mxu0 0.0
      %7168 = vmatpush1.msra.mxu0 0.0
      %7169 = vmatprep.subr.mxu0 0.0
      %7170 = vmatpush1.msra.mxu0 0.0
      %7171 = vmatprep.subr.mxu0 0.0
      %7172 = vmatpush1.msra.mxu0 0.0
      %7173 = vmatprep.subr.mxu0 0.0
      %7174 = vmatpush1.msra.mxu0 0.0
      %7175 = vmatprep.subr.mxu0 0.0
      %7176 = vmatpush1.msra.mxu0 0.0
      %7177 = vmatprep.subr.mxu0 0.0
      %7178 = vmatpush1.msra.mxu0 0.0
      %7179 = vmatprep.subr.mxu0 0.0
      %7180 = vmatpush1.msra.mxu0 0.0
      %7181 = vmatprep.subr.mxu0 0.0
      %7182 = vmatpush1.msra.mxu0 0.0
      %7183 = vmatprep.subr.mxu0 0.0
      %7184 = vmatpush1.msra.mxu0 0.0
      %7185 = vmatprep.subr.mxu0 0.0
      %7186 = vmatpush1.msra.mxu0 0.0
      %7187 = vmatprep.subr.mxu0 0.0
      %7188 = vmatpush1.msra.mxu0 0.0
      %7189 = vmatprep.mubr.f32.mxu0 0.0
      %7190 = vmatmul.mubr.f32.gmra.mrb[0].mxu0 %v7028
      %v7191 = vpop.f32.mrb[0].mxu0
      %v7192 = vadd.f32 0.0, %v7191
      %v7193 = vpop.f32.mrb[0].mxu0
      %7194 = vmatprep.mubr.f32.mxu0 0.0
      %7195 = vmatmul.mubr.f32.gmra.mrb[0].mxu0 %v7031
      %v7196 = vpop.f32.mrb[0].mxu0
      %v7197 = vadd.f32 0.0, %v7196
      %v7198 = vpop.f32.mrb[0].mxu0
      %7199 = vmatprep.mubr.f32.mxu0 0.0
      %7200 = vmatmul.mubr.f32.gmra.mrb[0].mxu0 %v7034
      %v7201 = vpop.f32.mrb[0].mxu0
      %v7202 = vadd.f32 0.0, %v7201
      %v7203 = vpop.f32.mrb[0].mxu0
      %7204 = vdwg.mxu0
      %v7205 = vadd.f32 %v7002, %v7109
      %v7206 = vadd.f32 %v7003, %v7111
      %v7207 = vadd.f32 %v7004, %v7192
      %v7208 = vadd.f32 %v7005, %v7115
      %v7209 = vadd.f32 %v7006, %v7117
      %v7210 = vadd.f32 %v7007, %v7197
      %v7211 = vadd.f32 %v7008, %v7121
      %v7212 = vadd.f32 %v7009, %v7123
      %v7213 = vadd.f32 %v7010, %v7202
      %s7214 = scalar_lea.vmem %s1, 840
      %v7215 = vld [vmem:[%s7214] sm:$0xff]
      %v7216 = vld [vmem:[%s7214 + $0x8] sm:$0xff]
      %v7217 = vld [vmem:[%s7214 + $0x10] sm:$0xff]
      %7218 = vrot.lane.b32.xlu0 %v171, 18
      %v7219 = vpop.permute.xlu0 %7218
      %7220 = vrot.lane.b32.xlu0 %v182, 18
      %v7221 = vpop.permute.xlu0 %7220
      %7222 = vrot.lane.b32.xlu0 %v172, 18
      %v7223 = vpop.permute.xlu0 %7222
      %7224 = vrot.lane.b32.xlu0 %v2954, 18
      %v7225 = vpop.permute.xlu0 %7224
      %vm7226 = vcmask 146432
      %v7227 = vsel %vm7226, %v7219, %v7221
      %v7228 = vsel %vm7226, %v7221, %v7223
      %v7229 = vsel %vm7226, %v7223, %v7225
      %v7231 = vsel %vm192, %v7215, 0
      %v7234 = vsel %vm192, %v7216, 0
      %v7237 = vsel %vm192, %v7217, 0
      %v7239 = vsel %vm202, %v7227, 0
      %v7241 = vsel %vm202, %v7228, 0
      %v7243 = vsel %vm202, %v7229, 0
      %7245 = vmatprep.subr.mxu0 %v7241
      %7246 = vmatpush1.msra.mxu0 %v7239
      %7247 = vmatprep.subr.mxu0 0.0
      %7248 = vmatpush1.msra.mxu0 0.0
      %7249 = vmatprep.subr.mxu0 0.0
      %7250 = vmatpush1.msra.mxu0 0.0
      %7251 = vmatprep.subr.mxu0 0.0
      %7252 = vmatpush1.msra.mxu0 0.0
      %7253 = vmatprep.subr.mxu0 0.0
      %7254 = vmatpush1.msra.mxu0 0.0
      %7255 = vmatprep.subr.mxu0 0.0
      %7256 = vmatpush1.msra.mxu0 0.0
      %7257 = vmatprep.subr.mxu0 0.0
      %7258 = vmatpush1.msra.mxu0 0.0
      %7259 = vmatprep.subr.mxu0 0.0
      %7260 = vmatpush1.msra.mxu0 0.0
      %7261 = vmatprep.subr.mxu0 0.0
      %7262 = vmatpush1.msra.mxu0 0.0
      %7263 = vmatprep.subr.mxu0 0.0
      %7264 = vmatpush1.msra.mxu0 0.0
      %7265 = vmatprep.subr.mxu0 0.0
      %7266 = vmatpush1.msra.mxu0 0.0
      %7267 = vmatprep.subr.mxu0 0.0
      %7268 = vmatpush1.msra.mxu0 0.0
      %7269 = vmatprep.subr.mxu0 0.0
      %7270 = vmatpush1.msra.mxu0 0.0
      %7271 = vmatprep.subr.mxu0 0.0
      %7272 = vmatpush1.msra.mxu0 0.0
      %7273 = vmatprep.subr.mxu0 0.0
      %7274 = vmatpush1.msra.mxu0 0.0
      %7275 = vmatprep.subr.mxu0 0.0
      %7276 = vmatpush1.msra.mxu0 0.0
      %7277 = vmatprep.subr.mxu0 0.0
      %7278 = vmatpush1.msra.mxu0 0.0
      %7279 = vmatprep.subr.mxu0 0.0
      %7280 = vmatpush1.msra.mxu0 0.0
      %7281 = vmatprep.subr.mxu0 0.0
      %7282 = vmatpush1.msra.mxu0 0.0
      %7283 = vmatprep.subr.mxu0 0.0
      %7284 = vmatpush1.msra.mxu0 0.0
      %7285 = vmatprep.subr.mxu0 0.0
      %7286 = vmatpush1.msra.mxu0 0.0
      %7287 = vmatprep.subr.mxu0 0.0
      %7288 = vmatpush1.msra.mxu0 0.0
      %7289 = vmatprep.subr.mxu0 0.0
      %7290 = vmatpush1.msra.mxu0 0.0
      %7291 = vmatprep.subr.mxu0 0.0
      %7292 = vmatpush1.msra.mxu0 0.0
      %7293 = vmatprep.subr.mxu0 0.0
      %7294 = vmatpush1.msra.mxu0 0.0
      %7295 = vmatprep.subr.mxu0 0.0
      %7296 = vmatpush1.msra.mxu0 0.0
      %7297 = vmatprep.subr.mxu0 0.0
      %7298 = vmatpush1.msra.mxu0 0.0
      %7299 = vmatprep.subr.mxu0 0.0
      %7300 = vmatpush1.msra.mxu0 0.0
      %7301 = vmatprep.subr.mxu0 0.0
      %7302 = vmatpush1.msra.mxu0 0.0
      %7303 = vmatprep.subr.mxu0 0.0
      %7304 = vmatpush1.msra.mxu0 0.0
      %7305 = vmatprep.subr.mxu0 0.0
      %7306 = vmatpush1.msra.mxu0 0.0
      %7307 = vmatprep.subr.mxu0 0.0
      %7308 = vmatpush1.msra.mxu0 0.0
      %7309 = vmatprep.mubr.f32.mxu0 0.0
      %7310 = vmatmul.mubr.f32.gmra.mrb[0].mxu0 %v7231
      %v7311 = vpop.f32.mrb[0].mxu0
      %v7312 = vadd.f32 0.0, %v7311
      %v7313 = vpop.f32.mrb[0].mxu0
      %v7314 = vadd.f32 0.0, %v7313
      %7315 = vmatprep.mubr.f32.mxu0 0.0
      %7316 = vmatmul.mubr.f32.gmra.mrb[0].mxu0 %v7234
      %v7317 = vpop.f32.mrb[0].mxu0
      %v7318 = vadd.f32 0.0, %v7317
      %v7319 = vpop.f32.mrb[0].mxu0
      %v7320 = vadd.f32 0.0, %v7319
      %7321 = vmatprep.mubr.f32.mxu0 0.0
      %7322 = vmatmul.mubr.f32.gmra.mrb[0].mxu0 %v7237
      %v7323 = vpop.f32.mrb[0].mxu0
      %v7324 = vadd.f32 0.0, %v7323
      %v7325 = vpop.f32.mrb[0].mxu0
      %v7326 = vadd.f32 0.0, %v7325
      %7327 = vdwg.mxu0
      %7328 = vmatprep.subr.mxu0 0.0
      %7329 = vmatpush1.msra.mxu0 %v7243
      %7330 = vmatprep.subr.mxu0 0.0
      %7331 = vmatpush1.msra.mxu0 0.0
      %7332 = vmatprep.subr.mxu0 0.0
      %7333 = vmatpush1.msra.mxu0 0.0
      %7334 = vmatprep.subr.mxu0 0.0
      %7335 = vmatpush1.msra.mxu0 0.0
      %7336 = vmatprep.subr.mxu0 0.0
      %7337 = vmatpush1.msra.mxu0 0.0
      %7338 = vmatprep.subr.mxu0 0.0
      %7339 = vmatpush1.msra.mxu0 0.0
      %7340 = vmatprep.subr.mxu0 0.0
      %7341 = vmatpush1.msra.mxu0 0.0
      %7342 = vmatprep.subr.mxu0 0.0
      %7343 = vmatpush1.msra.mxu0 0.0
      %7344 = vmatprep.subr.mxu0 0.0
      %7345 = vmatpush1.msra.mxu0 0.0
      %7346 = vmatprep.subr.mxu0 0.0
      %7347 = vmatpush1.msra.mxu0 0.0
      %7348 = vmatprep.subr.mxu0 0.0
      %7349 = vmatpush1.msra.mxu0 0.0
      %7350 = vmatprep.subr.mxu0 0.0
      %7351 = vmatpush1.msra.mxu0 0.0
      %7352 = vmatprep.subr.mxu0 0.0
      %7353 = vmatpush1.msra.mxu0 0.0
      %7354 = vmatprep.subr.mxu0 0.0
      %7355 = vmatpush1.msra.mxu0 0.0
      %7356 = vmatprep.subr.mxu0 0.0
      %7357 = vmatpush1.msra.mxu0 0.0
      %7358 = vmatprep.subr.mxu0 0.0
      %7359 = vmatpush1.msra.mxu0 0.0
      %7360 = vmatprep.subr.mxu0 0.0
      %7361 = vmatpush1.msra.mxu0 0.0
      %7362 = vmatprep.subr.mxu0 0.0
      %7363 = vmatpush1.msra.mxu0 0.0
      %7364 = vmatprep.subr.mxu0 0.0
      %7365 = vmatpush1.msra.mxu0 0.0
      %7366 = vmatprep.subr.mxu0 0.0
      %7367 = vmatpush1.msra.mxu0 0.0
      %7368 = vmatprep.subr.mxu0 0.0
      %7369 = vmatpush1.msra.mxu0 0.0
      %7370 = vmatprep.subr.mxu0 0.0
      %7371 = vmatpush1.msra.mxu0 0.0
      %7372 = vmatprep.subr.mxu0 0.0
      %7373 = vmatpush1.msra.mxu0 0.0
      %7374 = vmatprep.subr.mxu0 0.0
      %7375 = vmatpush1.msra.mxu0 0.0
      %7376 = vmatprep.subr.mxu0 0.0
      %7377 = vmatpush1.msra.mxu0 0.0
      %7378 = vmatprep.subr.mxu0 0.0
      %7379 = vmatpush1.msra.mxu0 0.0
      %7380 = vmatprep.subr.mxu0 0.0
      %7381 = vmatpush1.msra.mxu0 0.0
      %7382 = vmatprep.subr.mxu0 0.0
      %7383 = vmatpush1.msra.mxu0 0.0
      %7384 = vmatprep.subr.mxu0 0.0
      %7385 = vmatpush1.msra.mxu0 0.0
      %7386 = vmatprep.subr.mxu0 0.0
      %7387 = vmatpush1.msra.mxu0 0.0
      %7388 = vmatprep.subr.mxu0 0.0
      %7389 = vmatpush1.msra.mxu0 0.0
      %7390 = vmatprep.subr.mxu0 0.0
      %7391 = vmatpush1.msra.mxu0 0.0
      %7392 = vmatprep.mubr.f32.mxu0 0.0
      %7393 = vmatmul.mubr.f32.gmra.mrb[0].mxu0 %v7231
      %v7394 = vpop.f32.mrb[0].mxu0
      %v7395 = vadd.f32 0.0, %v7394
      %v7396 = vpop.f32.mrb[0].mxu0
      %7397 = vmatprep.mubr.f32.mxu0 0.0
      %7398 = vmatmul.mubr.f32.gmra.mrb[0].mxu0 %v7234
      %v7399 = vpop.f32.mrb[0].mxu0
      %v7400 = vadd.f32 0.0, %v7399
      %v7401 = vpop.f32.mrb[0].mxu0
      %7402 = vmatprep.mubr.f32.mxu0 0.0
      %7403 = vmatmul.mubr.f32.gmra.mrb[0].mxu0 %v7237
      %v7404 = vpop.f32.mrb[0].mxu0
      %v7405 = vadd.f32 0.0, %v7404
      %v7406 = vpop.f32.mrb[0].mxu0
      %7407 = vdwg.mxu0
      %v7408 = vadd.f32 %v7205, %v7312
      %v7409 = vadd.f32 %v7206, %v7314
      %v7410 = vadd.f32 %v7207, %v7395
      %v7411 = vadd.f32 %v7208, %v7318
      %v7412 = vadd.f32 %v7209, %v7320
      %v7413 = vadd.f32 %v7210, %v7400
      %v7414 = vadd.f32 %v7211, %v7324
      %v7415 = vadd.f32 %v7212, %v7326
      %v7416 = vadd.f32 %v7213, %v7405
      %s7417 = scalar_lea.vmem %s1, 864
      %v7418 = vld [vmem:[%s7417] sm:$0xff]
      %v7419 = vld [vmem:[%s7417 + $0x8] sm:$0xff]
      %v7420 = vld [vmem:[%s7417 + $0x10] sm:$0xff]
      %7421 = vrot.lane.b32.xlu0 %v171, 17
      %v7422 = vpop.permute.xlu0 %7421
      %7423 = vrot.lane.b32.xlu0 %v182, 17
      %v7424 = vpop.permute.xlu0 %7423
      %7425 = vrot.lane.b32.xlu0 %v172, 17
      %v7426 = vpop.permute.xlu0 %7425
      %7427 = vrot.lane.b32.xlu0 %v2954, 17
      %v7428 = vpop.permute.xlu0 %7427
      %vm7429 = vcmask 138240
      %v7430 = vsel %vm7429, %v7422, %v7424
      %v7431 = vsel %vm7429, %v7424, %v7426
      %v7432 = vsel %vm7429, %v7426, %v7428
      %v7434 = vsel %vm192, %v7418, 0
      %v7437 = vsel %vm192, %v7419, 0
      %v7440 = vsel %vm192, %v7420, 0
      %v7442 = vsel %vm202, %v7430, 0
      %v7444 = vsel %vm202, %v7431, 0
      %v7446 = vsel %vm202, %v7432, 0
      %7448 = vmatprep.subr.mxu0 %v7444
      %7449 = vmatpush1.msra.mxu0 %v7442
      %7450 = vmatprep.subr.mxu0 0.0
      %7451 = vmatpush1.msra.mxu0 0.0
      %7452 = vmatprep.subr.mxu0 0.0
      %7453 = vmatpush1.msra.mxu0 0.0
      %7454 = vmatprep.subr.mxu0 0.0
      %7455 = vmatpush1.msra.mxu0 0.0
      %7456 = vmatprep.subr.mxu0 0.0
      %7457 = vmatpush1.msra.mxu0 0.0
      %7458 = vmatprep.subr.mxu0 0.0
      %7459 = vmatpush1.msra.mxu0 0.0
      %7460 = vmatprep.subr.mxu0 0.0
      %7461 = vmatpush1.msra.mxu0 0.0
      %7462 = vmatprep.subr.mxu0 0.0
      %7463 = vmatpush1.msra.mxu0 0.0
      %7464 = vmatprep.subr.mxu0 0.0
      %7465 = vmatpush1.msra.mxu0 0.0
      %7466 = vmatprep.subr.mxu0 0.0
      %7467 = vmatpush1.msra.mxu0 0.0
      %7468 = vmatprep.subr.mxu0 0.0
      %7469 = vmatpush1.msra.mxu0 0.0
      %7470 = vmatprep.subr.mxu0 0.0
      %7471 = vmatpush1.msra.mxu0 0.0
      %7472 = vmatprep.subr.mxu0 0.0
      %7473 = vmatpush1.msra.mxu0 0.0
      %7474 = vmatprep.subr.mxu0 0.0
      %7475 = vmatpush1.msra.mxu0 0.0
      %7476 = vmatprep.subr.mxu0 0.0
      %7477 = vmatpush1.msra.mxu0 0.0
      %7478 = vmatprep.subr.mxu0 0.0
      %7479 = vmatpush1.msra.mxu0 0.0
      %7480 = vmatprep.subr.mxu0 0.0
      %7481 = vmatpush1.msra.mxu0 0.0
      %7482 = vmatprep.subr.mxu0 0.0
      %7483 = vmatpush1.msra.mxu0 0.0
      %7484 = vmatprep.subr.mxu0 0.0
      %7485 = vmatpush1.msra.mxu0 0.0
      %7486 = vmatprep.subr.mxu0 0.0
      %7487 = vmatpush1.msra.mxu0 0.0
      %7488 = vmatprep.subr.mxu0 0.0
      %7489 = vmatpush1.msra.mxu0 0.0
      %7490 = vmatprep.subr.mxu0 0.0
      %7491 = vmatpush1.msra.mxu0 0.0
      %7492 = vmatprep.subr.mxu0 0.0
      %7493 = vmatpush1.msra.mxu0 0.0
      %7494 = vmatprep.subr.mxu0 0.0
      %7495 = vmatpush1.msra.mxu0 0.0
      %7496 = vmatprep.subr.mxu0 0.0
      %7497 = vmatpush1.msra.mxu0 0.0
      %7498 = vmatprep.subr.mxu0 0.0
      %7499 = vmatpush1.msra.mxu0 0.0
      %7500 = vmatprep.subr.mxu0 0.0
      %7501 = vmatpush1.msra.mxu0 0.0
      %7502 = vmatprep.subr.mxu0 0.0
      %7503 = vmatpush1.msra.mxu0 0.0
      %7504 = vmatprep.subr.mxu0 0.0
      %7505 = vmatpush1.msra.mxu0 0.0
      %7506 = vmatprep.subr.mxu0 0.0
      %7507 = vmatpush1.msra.mxu0 0.0
      %7508 = vmatprep.subr.mxu0 0.0
      %7509 = vmatpush1.msra.mxu0 0.0
      %7510 = vmatprep.subr.mxu0 0.0
      %7511 = vmatpush1.msra.mxu0 0.0
      %7512 = vmatprep.mubr.f32.mxu0 0.0
      %7513 = vmatmul.mubr.f32.gmra.mrb[0].mxu0 %v7434
      %v7514 = vpop.f32.mrb[0].mxu0
      %v7515 = vadd.f32 0.0, %v7514
      %v7516 = vpop.f32.mrb[0].mxu0
      %v7517 = vadd.f32 0.0, %v7516
      %7518 = vmatprep.mubr.f32.mxu0 0.0
      %7519 = vmatmul.mubr.f32.gmra.mrb[0].mxu0 %v7437
      %v7520 = vpop.f32.mrb[0].mxu0
      %v7521 = vadd.f32 0.0, %v7520
      %v7522 = vpop.f32.mrb[0].mxu0
      %v7523 = vadd.f32 0.0, %v7522
      %7524 = vmatprep.mubr.f32.mxu0 0.0
      %7525 = vmatmul.mubr.f32.gmra.mrb[0].mxu0 %v7440
      %v7526 = vpop.f32.mrb[0].mxu0
      %v7527 = vadd.f32 0.0, %v7526
      %v7528 = vpop.f32.mrb[0].mxu0
      %v7529 = vadd.f32 0.0, %v7528
      %7530 = vdwg.mxu0
      %7531 = vmatprep.subr.mxu0 0.0
      %7532 = vmatpush1.msra.mxu0 %v7446
      %7533 = vmatprep.subr.mxu0 0.0
      %7534 = vmatpush1.msra.mxu0 0.0
      %7535 = vmatprep.subr.mxu0 0.0
      %7536 = vmatpush1.msra.mxu0 0.0
      %7537 = vmatprep.subr.mxu0 0.0
      %7538 = vmatpush1.msra.mxu0 0.0
      %7539 = vmatprep.subr.mxu0 0.0
      %7540 = vmatpush1.msra.mxu0 0.0
      %7541 = vmatprep.subr.mxu0 0.0
      %7542 = vmatpush1.msra.mxu0 0.0
      %7543 = vmatprep.subr.mxu0 0.0
      %7544 = vmatpush1.msra.mxu0 0.0
      %7545 = vmatprep.subr.mxu0 0.0
      %7546 = vmatpush1.msra.mxu0 0.0
      %7547 = vmatprep.subr.mxu0 0.0
      %7548 = vmatpush1.msra.mxu0 0.0
      %7549 = vmatprep.subr.mxu0 0.0
      %7550 = vmatpush1.msra.mxu0 0.0
      %7551 = vmatprep.subr.mxu0 0.0
      %7552 = vmatpush1.msra.mxu0 0.0
      %7553 = vmatprep.subr.mxu0 0.0
      %7554 = vmatpush1.msra.mxu0 0.0
      %7555 = vmatprep.subr.mxu0 0.0
      %7556 = vmatpush1.msra.mxu0 0.0
      %7557 = vmatprep.subr.mxu0 0.0
      %7558 = vmatpush1.msra.mxu0 0.0
      %7559 = vmatprep.subr.mxu0 0.0
      %7560 = vmatpush1.msra.mxu0 0.0
      %7561 = vmatprep.subr.mxu0 0.0
      %7562 = vmatpush1.msra.mxu0 0.0
      %7563 = vmatprep.subr.mxu0 0.0
      %7564 = vmatpush1.msra.mxu0 0.0
      %7565 = vmatprep.subr.mxu0 0.0
      %7566 = vmatpush1.msra.mxu0 0.0
      %7567 = vmatprep.subr.mxu0 0.0
      %7568 = vmatpush1.msra.mxu0 0.0
      %7569 = vmatprep.subr.mxu0 0.0
      %7570 = vmatpush1.msra.mxu0 0.0
      %7571 = vmatprep.subr.mxu0 0.0
      %7572 = vmatpush1.msra.mxu0 0.0
      %7573 = vmatprep.subr.mxu0 0.0
      %7574 = vmatpush1.msra.mxu0 0.0
      %7575 = vmatprep.subr.mxu0 0.0
      %7576 = vmatpush1.msra.mxu0 0.0
      %7577 = vmatprep.subr.mxu0 0.0
      %7578 = vmatpush1.msra.mxu0 0.0
      %7579 = vmatprep.subr.mxu0 0.0
      %7580 = vmatpush1.msra.mxu0 0.0
      %7581 = vmatprep.subr.mxu0 0.0
      %7582 = vmatpush1.msra.mxu0 0.0
      %7583 = vmatprep.subr.mxu0 0.0
      %7584 = vmatpush1.msra.mxu0 0.0
      %7585 = vmatprep.subr.mxu0 0.0
      %7586 = vmatpush1.msra.mxu0 0.0
      %7587 = vmatprep.subr.mxu0 0.0
      %7588 = vmatpush1.msra.mxu0 0.0
      %7589 = vmatprep.subr.mxu0 0.0
      %7590 = vmatpush1.msra.mxu0 0.0
      %7591 = vmatprep.subr.mxu0 0.0
      %7592 = vmatpush1.msra.mxu0 0.0
      %7593 = vmatprep.subr.mxu0 0.0
      %7594 = vmatpush1.msra.mxu0 0.0
      %7595 = vmatprep.mubr.f32.mxu0 0.0
      %7596 = vmatmul.mubr.f32.gmra.mrb[0].mxu0 %v7434
      %v7597 = vpop.f32.mrb[0].mxu0
      %v7598 = vadd.f32 0.0, %v7597
      %v7599 = vpop.f32.mrb[0].mxu0
      %7600 = vmatprep.mubr.f32.mxu0 0.0
      %7601 = vmatmul.mubr.f32.gmra.mrb[0].mxu0 %v7437
      %v7602 = vpop.f32.mrb[0].mxu0
      %v7603 = vadd.f32 0.0, %v7602
      %v7604 = vpop.f32.mrb[0].mxu0
      %7605 = vmatprep.mubr.f32.mxu0 0.0
      %7606 = vmatmul.mubr.f32.gmra.mrb[0].mxu0 %v7440
      %v7607 = vpop.f32.mrb[0].mxu0
      %v7608 = vadd.f32 0.0, %v7607
      %v7609 = vpop.f32.mrb[0].mxu0
      %7610 = vdwg.mxu0
      %v7611 = vadd.f32 %v7408, %v7515
      %v7612 = vadd.f32 %v7409, %v7517
      %v7613 = vadd.f32 %v7410, %v7598
      %v7614 = vadd.f32 %v7411, %v7521
      %v7615 = vadd.f32 %v7412, %v7523
      %v7616 = vadd.f32 %v7413, %v7603
      %v7617 = vadd.f32 %v7414, %v7527
      %v7618 = vadd.f32 %v7415, %v7529
      %v7619 = vadd.f32 %v7416, %v7608
      %s7620 = scalar_lea.vmem %s1, 888
      %v7621 = vld [vmem:[%s7620] sm:$0xff]
      %v7622 = vld [vmem:[%s7620 + $0x8] sm:$0xff]
      %v7623 = vld [vmem:[%s7620 + $0x10] sm:$0xff]
      %7624 = vrot.lane.b32.xlu0 %v171, 16
      %v7625 = vpop.permute.xlu0 %7624
      %7626 = vrot.lane.b32.xlu0 %v182, 16
      %v7627 = vpop.permute.xlu0 %7626
      %7628 = vrot.lane.b32.xlu0 %v172, 16
      %v7629 = vpop.permute.xlu0 %7628
      %7630 = vrot.lane.b32.xlu0 %v2954, 16
      %v7631 = vpop.permute.xlu0 %7630
      %vm7632 = vcmask 130048
      %v7633 = vsel %vm7632, %v7625, %v7627
      %v7634 = vsel %vm7632, %v7627, %v7629
      %v7635 = vsel %vm7632, %v7629, %v7631
      %v7637 = vsel %vm192, %v7621, 0
      %v7640 = vsel %vm192, %v7622, 0
      %v7643 = vsel %vm192, %v7623, 0
      %v7645 = vsel %vm202, %v7633, 0
      %v7647 = vsel %vm202, %v7634, 0
      %v7649 = vsel %vm202, %v7635, 0
      %7651 = vmatprep.subr.mxu0 %v7647
      %7652 = vmatpush1.msra.mxu0 %v7645
      %7653 = vmatprep.subr.mxu0 0.0
      %7654 = vmatpush1.msra.mxu0 0.0
      %7655 = vmatprep.subr.mxu0 0.0
      %7656 = vmatpush1.msra.mxu0 0.0
      %7657 = vmatprep.subr.mxu0 0.0
      %7658 = vmatpush1.msra.mxu0 0.0
      %7659 = vmatprep.subr.mxu0 0.0
      %7660 = vmatpush1.msra.mxu0 0.0
      %7661 = vmatprep.subr.mxu0 0.0
      %7662 = vmatpush1.msra.mxu0 0.0
      %7663 = vmatprep.subr.mxu0 0.0
      %7664 = vmatpush1.msra.mxu0 0.0
      %7665 = vmatprep.subr.mxu0 0.0
      %7666 = vmatpush1.msra.mxu0 0.0
      %7667 = vmatprep.subr.mxu0 0.0
      %7668 = vmatpush1.msra.mxu0 0.0
      %7669 = vmatprep.subr.mxu0 0.0
      %7670 = vmatpush1.msra.mxu0 0.0
      %7671 = vmatprep.subr.mxu0 0.0
      %7672 = vmatpush1.msra.mxu0 0.0
      %7673 = vmatprep.subr.mxu0 0.0
      %7674 = vmatpush1.msra.mxu0 0.0
      %7675 = vmatprep.subr.mxu0 0.0
      %7676 = vmatpush1.msra.mxu0 0.0
      %7677 = vmatprep.subr.mxu0 0.0
      %7678 = vmatpush1.msra.mxu0 0.0
      %7679 = vmatprep.subr.mxu0 0.0
      %7680 = vmatpush1.msra.mxu0 0.0
      %7681 = vmatprep.subr.mxu0 0.0
      %7682 = vmatpush1.msra.mxu0 0.0
      %7683 = vmatprep.subr.mxu0 0.0
      %7684 = vmatpush1.msra.mxu0 0.0
      %7685 = vmatprep.subr.mxu0 0.0
      %7686 = vmatpush1.msra.mxu0 0.0
      %7687 = vmatprep.subr.mxu0 0.0
      %7688 = vmatpush1.msra.mxu0 0.0
      %7689 = vmatprep.subr.mxu0 0.0
      %7690 = vmatpush1.msra.mxu0 0.0
      %7691 = vmatprep.subr.mxu0 0.0
      %7692 = vmatpush1.msra.mxu0 0.0
      %7693 = vmatprep.subr.mxu0 0.0
      %7694 = vmatpush1.msra.mxu0 0.0
      %7695 = vmatprep.subr.mxu0 0.0
      %7696 = vmatpush1.msra.mxu0 0.0
      %7697 = vmatprep.subr.mxu0 0.0
      %7698 = vmatpush1.msra.mxu0 0.0
      %7699 = vmatprep.subr.mxu0 0.0
      %7700 = vmatpush1.msra.mxu0 0.0
      %7701 = vmatprep.subr.mxu0 0.0
      %7702 = vmatpush1.msra.mxu0 0.0
      %7703 = vmatprep.subr.mxu0 0.0
      %7704 = vmatpush1.msra.mxu0 0.0
      %7705 = vmatprep.subr.mxu0 0.0
      %7706 = vmatpush1.msra.mxu0 0.0
      %7707 = vmatprep.subr.mxu0 0.0
      %7708 = vmatpush1.msra.mxu0 0.0
      %7709 = vmatprep.subr.mxu0 0.0
      %7710 = vmatpush1.msra.mxu0 0.0
      %7711 = vmatprep.subr.mxu0 0.0
      %7712 = vmatpush1.msra.mxu0 0.0
      %7713 = vmatprep.subr.mxu0 0.0
      %7714 = vmatpush1.msra.mxu0 0.0
      %7715 = vmatprep.mubr.f32.mxu0 0.0
      %7716 = vmatmul.mubr.f32.gmra.mrb[0].mxu0 %v7637
      %v7717 = vpop.f32.mrb[0].mxu0
      %v7718 = vadd.f32 0.0, %v7717
      %v7719 = vpop.f32.mrb[0].mxu0
      %v7720 = vadd.f32 0.0, %v7719
      %7721 = vmatprep.mubr.f32.mxu0 0.0
      %7722 = vmatmul.mubr.f32.gmra.mrb[0].mxu0 %v7640
      %v7723 = vpop.f32.mrb[0].mxu0
      %v7724 = vadd.f32 0.0, %v7723
      %v7725 = vpop.f32.mrb[0].mxu0
      %v7726 = vadd.f32 0.0, %v7725
      %7727 = vmatprep.mubr.f32.mxu0 0.0
      %7728 = vmatmul.mubr.f32.gmra.mrb[0].mxu0 %v7643
      %v7729 = vpop.f32.mrb[0].mxu0
      %v7730 = vadd.f32 0.0, %v7729
      %v7731 = vpop.f32.mrb[0].mxu0
      %v7732 = vadd.f32 0.0, %v7731
      %7733 = vdwg.mxu0
      %7734 = vmatprep.subr.mxu0 0.0
      %7735 = vmatpush1.msra.mxu0 %v7649
      %7736 = vmatprep.subr.mxu0 0.0
      %7737 = vmatpush1.msra.mxu0 0.0
      %7738 = vmatprep.subr.mxu0 0.0
      %7739 = vmatpush1.msra.mxu0 0.0
      %7740 = vmatprep.subr.mxu0 0.0
      %7741 = vmatpush1.msra.mxu0 0.0
      %7742 = vmatprep.subr.mxu0 0.0
      %7743 = vmatpush1.msra.mxu0 0.0
      %7744 = vmatprep.subr.mxu0 0.0
      %7745 = vmatpush1.msra.mxu0 0.0
      %7746 = vmatprep.subr.mxu0 0.0
      %7747 = vmatpush1.msra.mxu0 0.0
      %7748 = vmatprep.subr.mxu0 0.0
      %7749 = vmatpush1.msra.mxu0 0.0
      %7750 = vmatprep.subr.mxu0 0.0
      %7751 = vmatpush1.msra.mxu0 0.0
      %7752 = vmatprep.subr.mxu0 0.0
      %7753 = vmatpush1.msra.mxu0 0.0
      %7754 = vmatprep.subr.mxu0 0.0
      %7755 = vmatpush1.msra.mxu0 0.0
      %7756 = vmatprep.subr.mxu0 0.0
      %7757 = vmatpush1.msra.mxu0 0.0
      %7758 = vmatprep.subr.mxu0 0.0
      %7759 = vmatpush1.msra.mxu0 0.0
      %7760 = vmatprep.subr.mxu0 0.0
      %7761 = vmatpush1.msra.mxu0 0.0
      %7762 = vmatprep.subr.mxu0 0.0
      %7763 = vmatpush1.msra.mxu0 0.0
      %7764 = vmatprep.subr.mxu0 0.0
      %7765 = vmatpush1.msra.mxu0 0.0
      %7766 = vmatprep.subr.mxu0 0.0
      %7767 = vmatpush1.msra.mxu0 0.0
      %7768 = vmatprep.subr.mxu0 0.0
      %7769 = vmatpush1.msra.mxu0 0.0
      %7770 = vmatprep.subr.mxu0 0.0
      %7771 = vmatpush1.msra.mxu0 0.0
      %7772 = vmatprep.subr.mxu0 0.0
      %7773 = vmatpush1.msra.mxu0 0.0
      %7774 = vmatprep.subr.mxu0 0.0
      %7775 = vmatpush1.msra.mxu0 0.0
      %7776 = vmatprep.subr.mxu0 0.0
      %7777 = vmatpush1.msra.mxu0 0.0
      %7778 = vmatprep.subr.mxu0 0.0
      %7779 = vmatpush1.msra.mxu0 0.0
      %7780 = vmatprep.subr.mxu0 0.0
      %7781 = vmatpush1.msra.mxu0 0.0
      %7782 = vmatprep.subr.mxu0 0.0
      %7783 = vmatpush1.msra.mxu0 0.0
      %7784 = vmatprep.subr.mxu0 0.0
      %7785 = vmatpush1.msra.mxu0 0.0
      %7786 = vmatprep.subr.mxu0 0.0
      %7787 = vmatpush1.msra.mxu0 0.0
      %7788 = vmatprep.subr.mxu0 0.0
      %7789 = vmatpush1.msra.mxu0 0.0
      %7790 = vmatprep.subr.mxu0 0.0
      %7791 = vmatpush1.msra.mxu0 0.0
      %7792 = vmatprep.subr.mxu0 0.0
      %7793 = vmatpush1.msra.mxu0 0.0
      %7794 = vmatprep.subr.mxu0 0.0
      %7795 = vmatpush1.msra.mxu0 0.0
      %7796 = vmatprep.subr.mxu0 0.0
      %7797 = vmatpush1.msra.mxu0 0.0
      %7798 = vmatprep.mubr.f32.mxu0 0.0
      %7799 = vmatmul.mubr.f32.gmra.mrb[0].mxu0 %v7637
      %v7800 = vpop.f32.mrb[0].mxu0
      %v7801 = vadd.f32 0.0, %v7800
      %v7802 = vpop.f32.mrb[0].mxu0
      %7803 = vmatprep.mubr.f32.mxu0 0.0
      %7804 = vmatmul.mubr.f32.gmra.mrb[0].mxu0 %v7640
      %v7805 = vpop.f32.mrb[0].mxu0
      %v7806 = vadd.f32 0.0, %v7805
      %v7807 = vpop.f32.mrb[0].mxu0
      %7808 = vmatprep.mubr.f32.mxu0 0.0
      %7809 = vmatmul.mubr.f32.gmra.mrb[0].mxu0 %v7643
      %v7810 = vpop.f32.mrb[0].mxu0
      %v7811 = vadd.f32 0.0, %v7810
      %v7812 = vpop.f32.mrb[0].mxu0
      %7813 = vdwg.mxu0
      %v7814 = vadd.f32 %v7611, %v7718
      %v7815 = vadd.f32 %v7612, %v7720
      %v7816 = vadd.f32 %v7613, %v7801
      %v7817 = vadd.f32 %v7614, %v7724
      %v7818 = vadd.f32 %v7615, %v7726
      %v7819 = vadd.f32 %v7616, %v7806
      %v7820 = vadd.f32 %v7617, %v7730
      %v7821 = vadd.f32 %v7618, %v7732
      %v7822 = vadd.f32 %v7619, %v7811
      %s7823 = scalar_lea.vmem %s1, 912
      %v7824 = vld [vmem:[%s7823] sm:$0xff]
      %v7825 = vld [vmem:[%s7823 + $0x8] sm:$0xff]
      %v7826 = vld [vmem:[%s7823 + $0x10] sm:$0xff]
      %7827 = vrot.lane.b32.xlu0 %v171, 15
      %v7828 = vpop.permute.xlu0 %7827
      %7829 = vrot.lane.b32.xlu0 %v182, 15
      %v7830 = vpop.permute.xlu0 %7829
      %7831 = vrot.lane.b32.xlu0 %v172, 15
      %v7832 = vpop.permute.xlu0 %7831
      %7833 = vrot.lane.b32.xlu0 %v2954, 15
      %v7834 = vpop.permute.xlu0 %7833
      %vm7835 = vcmask 121856
      %v7836 = vsel %vm7835, %v7828, %v7830
      %v7837 = vsel %vm7835, %v7830, %v7832
      %v7838 = vsel %vm7835, %v7832, %v7834
      %v7840 = vsel %vm192, %v7824, 0
      %v7843 = vsel %vm192, %v7825, 0
      %v7846 = vsel %vm192, %v7826, 0
      %v7848 = vsel %vm202, %v7836, 0
      %v7850 = vsel %vm202, %v7837, 0
      %v7852 = vsel %vm202, %v7838, 0
      %7854 = vmatprep.subr.mxu0 %v7850
      %7855 = vmatpush1.msra.mxu0 %v7848
      %7856 = vmatprep.subr.mxu0 0.0
      %7857 = vmatpush1.msra.mxu0 0.0
      %7858 = vmatprep.subr.mxu0 0.0
      %7859 = vmatpush1.msra.mxu0 0.0
      %7860 = vmatprep.subr.mxu0 0.0
      %7861 = vmatpush1.msra.mxu0 0.0
      %7862 = vmatprep.subr.mxu0 0.0
      %7863 = vmatpush1.msra.mxu0 0.0
      %7864 = vmatprep.subr.mxu0 0.0
      %7865 = vmatpush1.msra.mxu0 0.0
      %7866 = vmatprep.subr.mxu0 0.0
      %7867 = vmatpush1.msra.mxu0 0.0
      %7868 = vmatprep.subr.mxu0 0.0
      %7869 = vmatpush1.msra.mxu0 0.0
      %7870 = vmatprep.subr.mxu0 0.0
      %7871 = vmatpush1.msra.mxu0 0.0
      %7872 = vmatprep.subr.mxu0 0.0
      %7873 = vmatpush1.msra.mxu0 0.0
      %7874 = vmatprep.subr.mxu0 0.0
      %7875 = vmatpush1.msra.mxu0 0.0
      %7876 = vmatprep.subr.mxu0 0.0
      %7877 = vmatpush1.msra.mxu0 0.0
      %7878 = vmatprep.subr.mxu0 0.0
      %7879 = vmatpush1.msra.mxu0 0.0
      %7880 = vmatprep.subr.mxu0 0.0
      %7881 = vmatpush1.msra.mxu0 0.0
      %7882 = vmatprep.subr.mxu0 0.0
      %7883 = vmatpush1.msra.mxu0 0.0
      %7884 = vmatprep.subr.mxu0 0.0
      %7885 = vmatpush1.msra.mxu0 0.0
      %7886 = vmatprep.subr.mxu0 0.0
      %7887 = vmatpush1.msra.mxu0 0.0
      %7888 = vmatprep.subr.mxu0 0.0
      %7889 = vmatpush1.msra.mxu0 0.0
      %7890 = vmatprep.subr.mxu0 0.0
      %7891 = vmatpush1.msra.mxu0 0.0
      %7892 = vmatprep.subr.mxu0 0.0
      %7893 = vmatpush1.msra.mxu0 0.0
      %7894 = vmatprep.subr.mxu0 0.0
      %7895 = vmatpush1.msra.mxu0 0.0
      %7896 = vmatprep.subr.mxu0 0.0
      %7897 = vmatpush1.msra.mxu0 0.0
      %7898 = vmatprep.subr.mxu0 0.0
      %7899 = vmatpush1.msra.mxu0 0.0
      %7900 = vmatprep.subr.mxu0 0.0
      %7901 = vmatpush1.msra.mxu0 0.0
      %7902 = vmatprep.subr.mxu0 0.0
      %7903 = vmatpush1.msra.mxu0 0.0
      %7904 = vmatprep.subr.mxu0 0.0
      %7905 = vmatpush1.msra.mxu0 0.0
      %7906 = vmatprep.subr.mxu0 0.0
      %7907 = vmatpush1.msra.mxu0 0.0
      %7908 = vmatprep.subr.mxu0 0.0
      %7909 = vmatpush1.msra.mxu0 0.0
      %7910 = vmatprep.subr.mxu0 0.0
      %7911 = vmatpush1.msra.mxu0 0.0
      %7912 = vmatprep.subr.mxu0 0.0
      %7913 = vmatpush1.msra.mxu0 0.0
      %7914 = vmatprep.subr.mxu0 0.0
      %7915 = vmatpush1.msra.mxu0 0.0
      %7916 = vmatprep.subr.mxu0 0.0
      %7917 = vmatpush1.msra.mxu0 0.0
      %7918 = vmatprep.mubr.f32.mxu0 0.0
      %7919 = vmatmul.mubr.f32.gmra.mrb[0].mxu0 %v7840
      %v7920 = vpop.f32.mrb[0].mxu0
      %v7921 = vadd.f32 0.0, %v7920
      %v7922 = vpop.f32.mrb[0].mxu0
      %v7923 = vadd.f32 0.0, %v7922
      %7924 = vmatprep.mubr.f32.mxu0 0.0
      %7925 = vmatmul.mubr.f32.gmra.mrb[0].mxu0 %v7843
      %v7926 = vpop.f32.mrb[0].mxu0
      %v7927 = vadd.f32 0.0, %v7926
      %v7928 = vpop.f32.mrb[0].mxu0
      %v7929 = vadd.f32 0.0, %v7928
      %7930 = vmatprep.mubr.f32.mxu0 0.0
      %7931 = vmatmul.mubr.f32.gmra.mrb[0].mxu0 %v7846
      %v7932 = vpop.f32.mrb[0].mxu0
      %v7933 = vadd.f32 0.0, %v7932
      %v7934 = vpop.f32.mrb[0].mxu0
      %v7935 = vadd.f32 0.0, %v7934
      %7936 = vdwg.mxu0
      %7937 = vmatprep.subr.mxu0 0.0
      %7938 = vmatpush1.msra.mxu0 %v7852
      %7939 = vmatprep.subr.mxu0 0.0
      %7940 = vmatpush1.msra.mxu0 0.0
      %7941 = vmatprep.subr.mxu0 0.0
      %7942 = vmatpush1.msra.mxu0 0.0
      %7943 = vmatprep.subr.mxu0 0.0
      %7944 = vmatpush1.msra.mxu0 0.0
      %7945 = vmatprep.subr.mxu0 0.0
      %7946 = vmatpush1.msra.mxu0 0.0
      %7947 = vmatprep.subr.mxu0 0.0
      %7948 = vmatpush1.msra.mxu0 0.0
      %7949 = vmatprep.subr.mxu0 0.0
      %7950 = vmatpush1.msra.mxu0 0.0
      %7951 = vmatprep.subr.mxu0 0.0
      %7952 = vmatpush1.msra.mxu0 0.0
      %7953 = vmatprep.subr.mxu0 0.0
      %7954 = vmatpush1.msra.mxu0 0.0
      %7955 = vmatprep.subr.mxu0 0.0
      %7956 = vmatpush1.msra.mxu0 0.0
      %7957 = vmatprep.subr.mxu0 0.0
      %7958 = vmatpush1.msra.mxu0 0.0
      %7959 = vmatprep.subr.mxu0 0.0
      %7960 = vmatpush1.msra.mxu0 0.0
      %7961 = vmatprep.subr.mxu0 0.0
      %7962 = vmatpush1.msra.mxu0 0.0
      %7963 = vmatprep.subr.mxu0 0.0
      %7964 = vmatpush1.msra.mxu0 0.0
      %7965 = vmatprep.subr.mxu0 0.0
      %7966 = vmatpush1.msra.mxu0 0.0
      %7967 = vmatprep.subr.mxu0 0.0
      %7968 = vmatpush1.msra.mxu0 0.0
      %7969 = vmatprep.subr.mxu0 0.0
      %7970 = vmatpush1.msra.mxu0 0.0
      %7971 = vmatprep.subr.mxu0 0.0
      %7972 = vmatpush1.msra.mxu0 0.0
      %7973 = vmatprep.subr.mxu0 0.0
      %7974 = vmatpush1.msra.mxu0 0.0
      %7975 = vmatprep.subr.mxu0 0.0
      %7976 = vmatpush1.msra.mxu0 0.0
      %7977 = vmatprep.subr.mxu0 0.0
      %7978 = vmatpush1.msra.mxu0 0.0
      %7979 = vmatprep.subr.mxu0 0.0
      %7980 = vmatpush1.msra.mxu0 0.0
      %7981 = vmatprep.subr.mxu0 0.0
      %7982 = vmatpush1.msra.mxu0 0.0
      %7983 = vmatprep.subr.mxu0 0.0
      %7984 = vmatpush1.msra.mxu0 0.0
      %7985 = vmatprep.subr.mxu0 0.0
      %7986 = vmatpush1.msra.mxu0 0.0
      %7987 = vmatprep.subr.mxu0 0.0
      %7988 = vmatpush1.msra.mxu0 0.0
      %7989 = vmatprep.subr.mxu0 0.0
      %7990 = vmatpush1.msra.mxu0 0.0
      %7991 = vmatprep.subr.mxu0 0.0
      %7992 = vmatpush1.msra.mxu0 0.0
      %7993 = vmatprep.subr.mxu0 0.0
      %7994 = vmatpush1.msra.mxu0 0.0
      %7995 = vmatprep.subr.mxu0 0.0
      %7996 = vmatpush1.msra.mxu0 0.0
      %7997 = vmatprep.subr.mxu0 0.0
      %7998 = vmatpush1.msra.mxu0 0.0
      %7999 = vmatprep.subr.mxu0 0.0
      %8000 = vmatpush1.msra.mxu0 0.0
      %8001 = vmatprep.mubr.f32.mxu0 0.0
      %8002 = vmatmul.mubr.f32.gmra.mrb[0].mxu0 %v7840
      %v8003 = vpop.f32.mrb[0].mxu0
      %v8004 = vadd.f32 0.0, %v8003
      %v8005 = vpop.f32.mrb[0].mxu0
      %8006 = vmatprep.mubr.f32.mxu0 0.0
      %8007 = vmatmul.mubr.f32.gmra.mrb[0].mxu0 %v7843
      %v8008 = vpop.f32.mrb[0].mxu0
      %v8009 = vadd.f32 0.0, %v8008
      %v8010 = vpop.f32.mrb[0].mxu0
      %8011 = vmatprep.mubr.f32.mxu0 0.0
      %8012 = vmatmul.mubr.f32.gmra.mrb[0].mxu0 %v7846
      %v8013 = vpop.f32.mrb[0].mxu0
      %v8014 = vadd.f32 0.0, %v8013
      %v8015 = vpop.f32.mrb[0].mxu0
      %8016 = vdwg.mxu0
      %v8017 = vadd.f32 %v7814, %v7921
      %v8018 = vadd.f32 %v7815, %v7923
      %v8019 = vadd.f32 %v7816, %v8004
      %v8020 = vadd.f32 %v7817, %v7927
      %v8021 = vadd.f32 %v7818, %v7929
      %v8022 = vadd.f32 %v7819, %v8009
      %v8023 = vadd.f32 %v7820, %v7933
      %v8024 = vadd.f32 %v7821, %v7935
      %v8025 = vadd.f32 %v7822, %v8014
      %s8026 = scalar_lea.vmem %s1, 936
      %v8027 = vld [vmem:[%s8026] sm:$0xff]
      %v8028 = vld [vmem:[%s8026 + $0x8] sm:$0xff]
      %v8029 = vld [vmem:[%s8026 + $0x10] sm:$0xff]
      %8030 = vrot.lane.b32.xlu0 %v171, 14
      %v8031 = vpop.permute.xlu0 %8030
      %8032 = vrot.lane.b32.xlu0 %v182, 14
      %v8033 = vpop.permute.xlu0 %8032
      %8034 = vrot.lane.b32.xlu0 %v172, 14
      %v8035 = vpop.permute.xlu0 %8034
      %8036 = vrot.lane.b32.xlu0 %v2954, 14
      %v8037 = vpop.permute.xlu0 %8036
      %vm8038 = vcmask 113664
      %v8039 = vsel %vm8038, %v8031, %v8033
      %v8040 = vsel %vm8038, %v8033, %v8035
      %v8041 = vsel %vm8038, %v8035, %v8037
      %v8043 = vsel %vm192, %v8027, 0
      %v8046 = vsel %vm192, %v8028, 0
      %v8049 = vsel %vm192, %v8029, 0
      %v8051 = vsel %vm202, %v8039, 0
      %v8053 = vsel %vm202, %v8040, 0
      %v8055 = vsel %vm202, %v8041, 0
      %8057 = vmatprep.subr.mxu0 %v8053
      %8058 = vmatpush1.msra.mxu0 %v8051
      %8059 = vmatprep.subr.mxu0 0.0
      %8060 = vmatpush1.msra.mxu0 0.0
      %8061 = vmatprep.subr.mxu0 0.0
      %8062 = vmatpush1.msra.mxu0 0.0
      %8063 = vmatprep.subr.mxu0 0.0
      %8064 = vmatpush1.msra.mxu0 0.0
      %8065 = vmatprep.subr.mxu0 0.0
      %8066 = vmatpush1.msra.mxu0 0.0
      %8067 = vmatprep.subr.mxu0 0.0
      %8068 = vmatpush1.msra.mxu0 0.0
      %8069 = vmatprep.subr.mxu0 0.0
      %8070 = vmatpush1.msra.mxu0 0.0
      %8071 = vmatprep.subr.mxu0 0.0
      %8072 = vmatpush1.msra.mxu0 0.0
      %8073 = vmatprep.subr.mxu0 0.0
      %8074 = vmatpush1.msra.mxu0 0.0
      %8075 = vmatprep.subr.mxu0 0.0
      %8076 = vmatpush1.msra.mxu0 0.0
      %8077 = vmatprep.subr.mxu0 0.0
      %8078 = vmatpush1.msra.mxu0 0.0
      %8079 = vmatprep.subr.mxu0 0.0
      %8080 = vmatpush1.msra.mxu0 0.0
      %8081 = vmatprep.subr.mxu0 0.0
      %8082 = vmatpush1.msra.mxu0 0.0
      %8083 = vmatprep.subr.mxu0 0.0
      %8084 = vmatpush1.msra.mxu0 0.0
      %8085 = vmatprep.subr.mxu0 0.0
      %8086 = vmatpush1.msra.mxu0 0.0
      %8087 = vmatprep.subr.mxu0 0.0
      %8088 = vmatpush1.msra.mxu0 0.0
      %8089 = vmatprep.subr.mxu0 0.0
      %8090 = vmatpush1.msra.mxu0 0.0
      %8091 = vmatprep.subr.mxu0 0.0
      %8092 = vmatpush1.msra.mxu0 0.0
      %8093 = vmatprep.subr.mxu0 0.0
      %8094 = vmatpush1.msra.mxu0 0.0
      %8095 = vmatprep.subr.mxu0 0.0
      %8096 = vmatpush1.msra.mxu0 0.0
      %8097 = vmatprep.subr.mxu0 0.0
      %8098 = vmatpush1.msra.mxu0 0.0
      %8099 = vmatprep.subr.mxu0 0.0
      %8100 = vmatpush1.msra.mxu0 0.0
      %8101 = vmatprep.subr.mxu0 0.0
      %8102 = vmatpush1.msra.mxu0 0.0
      %8103 = vmatprep.subr.mxu0 0.0
      %8104 = vmatpush1.msra.mxu0 0.0
      %8105 = vmatprep.subr.mxu0 0.0
      %8106 = vmatpush1.msra.mxu0 0.0
      %8107 = vmatprep.subr.mxu0 0.0
      %8108 = vmatpush1.msra.mxu0 0.0
      %8109 = vmatprep.subr.mxu0 0.0
      %8110 = vmatpush1.msra.mxu0 0.0
      %8111 = vmatprep.subr.mxu0 0.0
      %8112 = vmatpush1.msra.mxu0 0.0
      %8113 = vmatprep.subr.mxu0 0.0
      %8114 = vmatpush1.msra.mxu0 0.0
      %8115 = vmatprep.subr.mxu0 0.0
      %8116 = vmatpush1.msra.mxu0 0.0
      %8117 = vmatprep.subr.mxu0 0.0
      %8118 = vmatpush1.msra.mxu0 0.0
      %8119 = vmatprep.subr.mxu0 0.0
      %8120 = vmatpush1.msra.mxu0 0.0
      %8121 = vmatprep.mubr.f32.mxu0 0.0
      %8122 = vmatmul.mubr.f32.gmra.mrb[0].mxu0 %v8043
      %v8123 = vpop.f32.mrb[0].mxu0
      %v8124 = vadd.f32 0.0, %v8123
      %v8125 = vpop.f32.mrb[0].mxu0
      %v8126 = vadd.f32 0.0, %v8125
      %8127 = vmatprep.mubr.f32.mxu0 0.0
      %8128 = vmatmul.mubr.f32.gmra.mrb[0].mxu0 %v8046
      %v8129 = vpop.f32.mrb[0].mxu0
      %v8130 = vadd.f32 0.0, %v8129
      %v8131 = vpop.f32.mrb[0].mxu0
      %v8132 = vadd.f32 0.0, %v8131
      %8133 = vmatprep.mubr.f32.mxu0 0.0
      %8134 = vmatmul.mubr.f32.gmra.mrb[0].mxu0 %v8049
      %v8135 = vpop.f32.mrb[0].mxu0
      %v8136 = vadd.f32 0.0, %v8135
      %v8137 = vpop.f32.mrb[0].mxu0
      %v8138 = vadd.f32 0.0, %v8137
      %8139 = vdwg.mxu0
      %8140 = vmatprep.subr.mxu0 0.0
      %8141 = vmatpush1.msra.mxu0 %v8055
      %8142 = vmatprep.subr.mxu0 0.0
      %8143 = vmatpush1.msra.mxu0 0.0
      %8144 = vmatprep.subr.mxu0 0.0
      %8145 = vmatpush1.msra.mxu0 0.0
      %8146 = vmatprep.subr.mxu0 0.0
      %8147 = vmatpush1.msra.mxu0 0.0
      %8148 = vmatprep.subr.mxu0 0.0
      %8149 = vmatpush1.msra.mxu0 0.0
      %8150 = vmatprep.subr.mxu0 0.0
      %8151 = vmatpush1.msra.mxu0 0.0
      %8152 = vmatprep.subr.mxu0 0.0
      %8153 = vmatpush1.msra.mxu0 0.0
      %8154 = vmatprep.subr.mxu0 0.0
      %8155 = vmatpush1.msra.mxu0 0.0
      %8156 = vmatprep.subr.mxu0 0.0
      %8157 = vmatpush1.msra.mxu0 0.0
      %8158 = vmatprep.subr.mxu0 0.0
      %8159 = vmatpush1.msra.mxu0 0.0
      %8160 = vmatprep.subr.mxu0 0.0
      %8161 = vmatpush1.msra.mxu0 0.0
      %8162 = vmatprep.subr.mxu0 0.0
      %8163 = vmatpush1.msra.mxu0 0.0
      %8164 = vmatprep.subr.mxu0 0.0
      %8165 = vmatpush1.msra.mxu0 0.0
      %8166 = vmatprep.subr.mxu0 0.0
      %8167 = vmatpush1.msra.mxu0 0.0
      %8168 = vmatprep.subr.mxu0 0.0
      %8169 = vmatpush1.msra.mxu0 0.0
      %8170 = vmatprep.subr.mxu0 0.0
      %8171 = vmatpush1.msra.mxu0 0.0
      %8172 = vmatprep.subr.mxu0 0.0
      %8173 = vmatpush1.msra.mxu0 0.0
      %8174 = vmatprep.subr.mxu0 0.0
      %8175 = vmatpush1.msra.mxu0 0.0
      %8176 = vmatprep.subr.mxu0 0.0
      %8177 = vmatpush1.msra.mxu0 0.0
      %8178 = vmatprep.subr.mxu0 0.0
      %8179 = vmatpush1.msra.mxu0 0.0
      %8180 = vmatprep.subr.mxu0 0.0
      %8181 = vmatpush1.msra.mxu0 0.0
      %8182 = vmatprep.subr.mxu0 0.0
      %8183 = vmatpush1.msra.mxu0 0.0
      %8184 = vmatprep.subr.mxu0 0.0
      %8185 = vmatpush1.msra.mxu0 0.0
      %8186 = vmatprep.subr.mxu0 0.0
      %8187 = vmatpush1.msra.mxu0 0.0
      %8188 = vmatprep.subr.mxu0 0.0
      %8189 = vmatpush1.msra.mxu0 0.0
      %8190 = vmatprep.subr.mxu0 0.0
      %8191 = vmatpush1.msra.mxu0 0.0
      %8192 = vmatprep.subr.mxu0 0.0
      %8193 = vmatpush1.msra.mxu0 0.0
      %8194 = vmatprep.subr.mxu0 0.0
      %8195 = vmatpush1.msra.mxu0 0.0
      %8196 = vmatprep.subr.mxu0 0.0
      %8197 = vmatpush1.msra.mxu0 0.0
      %8198 = vmatprep.subr.mxu0 0.0
      %8199 = vmatpush1.msra.mxu0 0.0
      %8200 = vmatprep.subr.mxu0 0.0
      %8201 = vmatpush1.msra.mxu0 0.0
      %8202 = vmatprep.subr.mxu0 0.0
      %8203 = vmatpush1.msra.mxu0 0.0
      %8204 = vmatprep.mubr.f32.mxu0 0.0
      %8205 = vmatmul.mubr.f32.gmra.mrb[0].mxu0 %v8043
      %v8206 = vpop.f32.mrb[0].mxu0
      %v8207 = vadd.f32 0.0, %v8206
      %v8208 = vpop.f32.mrb[0].mxu0
      %8209 = vmatprep.mubr.f32.mxu0 0.0
      %8210 = vmatmul.mubr.f32.gmra.mrb[0].mxu0 %v8046
      %v8211 = vpop.f32.mrb[0].mxu0
      %v8212 = vadd.f32 0.0, %v8211
      %v8213 = vpop.f32.mrb[0].mxu0
      %8214 = vmatprep.mubr.f32.mxu0 0.0
      %8215 = vmatmul.mubr.f32.gmra.mrb[0].mxu0 %v8049
      %v8216 = vpop.f32.mrb[0].mxu0
      %v8217 = vadd.f32 0.0, %v8216
      %v8218 = vpop.f32.mrb[0].mxu0
      %8219 = vdwg.mxu0
      %v8220 = vadd.f32 %v8017, %v8124
      %v8221 = vadd.f32 %v8018, %v8126
      %v8222 = vadd.f32 %v8019, %v8207
      %v8223 = vadd.f32 %v8020, %v8130
      %v8224 = vadd.f32 %v8021, %v8132
      %v8225 = vadd.f32 %v8022, %v8212
      %v8226 = vadd.f32 %v8023, %v8136
      %v8227 = vadd.f32 %v8024, %v8138
      %v8228 = vadd.f32 %v8025, %v8217
      %s8229 = scalar_lea.vmem %s1, 960
      %v8230 = vld [vmem:[%s8229] sm:$0xff]
      %v8231 = vld [vmem:[%s8229 + $0x8] sm:$0xff]
      %v8232 = vld [vmem:[%s8229 + $0x10] sm:$0xff]
      %8233 = vrot.lane.b32.xlu0 %v171, 13
      %v8234 = vpop.permute.xlu0 %8233
      %8235 = vrot.lane.b32.xlu0 %v182, 13
      %v8236 = vpop.permute.xlu0 %8235
      %8237 = vrot.lane.b32.xlu0 %v172, 13
      %v8238 = vpop.permute.xlu0 %8237
      %8239 = vrot.lane.b32.xlu0 %v2954, 13
      %v8240 = vpop.permute.xlu0 %8239
      %vm8241 = vcmask 105472
      %v8242 = vsel %vm8241, %v8234, %v8236
      %v8243 = vsel %vm8241, %v8236, %v8238
      %v8244 = vsel %vm8241, %v8238, %v8240
      %v8246 = vsel %vm192, %v8230, 0
      %v8249 = vsel %vm192, %v8231, 0
      %v8252 = vsel %vm192, %v8232, 0
      %v8254 = vsel %vm202, %v8242, 0
      %v8256 = vsel %vm202, %v8243, 0
      %v8258 = vsel %vm202, %v8244, 0
      %8260 = vmatprep.subr.mxu0 %v8256
      %8261 = vmatpush1.msra.mxu0 %v8254
      %8262 = vmatprep.subr.mxu0 0.0
      %8263 = vmatpush1.msra.mxu0 0.0
      %8264 = vmatprep.subr.mxu0 0.0
      %8265 = vmatpush1.msra.mxu0 0.0
      %8266 = vmatprep.subr.mxu0 0.0
      %8267 = vmatpush1.msra.mxu0 0.0
      %8268 = vmatprep.subr.mxu0 0.0
      %8269 = vmatpush1.msra.mxu0 0.0
      %8270 = vmatprep.subr.mxu0 0.0
      %8271 = vmatpush1.msra.mxu0 0.0
      %8272 = vmatprep.subr.mxu0 0.0
      %8273 = vmatpush1.msra.mxu0 0.0
      %8274 = vmatprep.subr.mxu0 0.0
      %8275 = vmatpush1.msra.mxu0 0.0
      %8276 = vmatprep.subr.mxu0 0.0
      %8277 = vmatpush1.msra.mxu0 0.0
      %8278 = vmatprep.subr.mxu0 0.0
      %8279 = vmatpush1.msra.mxu0 0.0
      %8280 = vmatprep.subr.mxu0 0.0
      %8281 = vmatpush1.msra.mxu0 0.0
      %8282 = vmatprep.subr.mxu0 0.0
      %8283 = vmatpush1.msra.mxu0 0.0
      %8284 = vmatprep.subr.mxu0 0.0
      %8285 = vmatpush1.msra.mxu0 0.0
      %8286 = vmatprep.subr.mxu0 0.0
      %8287 = vmatpush1.msra.mxu0 0.0
      %8288 = vmatprep.subr.mxu0 0.0
      %8289 = vmatpush1.msra.mxu0 0.0
      %8290 = vmatprep.subr.mxu0 0.0
      %8291 = vmatpush1.msra.mxu0 0.0
      %8292 = vmatprep.subr.mxu0 0.0
      %8293 = vmatpush1.msra.mxu0 0.0
      %8294 = vmatprep.subr.mxu0 0.0
      %8295 = vmatpush1.msra.mxu0 0.0
      %8296 = vmatprep.subr.mxu0 0.0
      %8297 = vmatpush1.msra.mxu0 0.0
      %8298 = vmatprep.subr.mxu0 0.0
      %8299 = vmatpush1.msra.mxu0 0.0
      %8300 = vmatprep.subr.mxu0 0.0
      %8301 = vmatpush1.msra.mxu0 0.0
      %8302 = vmatprep.subr.mxu0 0.0
      %8303 = vmatpush1.msra.mxu0 0.0
      %8304 = vmatprep.subr.mxu0 0.0
      %8305 = vmatpush1.msra.mxu0 0.0
      %8306 = vmatprep.subr.mxu0 0.0
      %8307 = vmatpush1.msra.mxu0 0.0
      %8308 = vmatprep.subr.mxu0 0.0
      %8309 = vmatpush1.msra.mxu0 0.0
      %8310 = vmatprep.subr.mxu0 0.0
      %8311 = vmatpush1.msra.mxu0 0.0
      %8312 = vmatprep.subr.mxu0 0.0
      %8313 = vmatpush1.msra.mxu0 0.0
      %8314 = vmatprep.subr.mxu0 0.0
      %8315 = vmatpush1.msra.mxu0 0.0
      %8316 = vmatprep.subr.mxu0 0.0
      %8317 = vmatpush1.msra.mxu0 0.0
      %8318 = vmatprep.subr.mxu0 0.0
      %8319 = vmatpush1.msra.mxu0 0.0
      %8320 = vmatprep.subr.mxu0 0.0
      %8321 = vmatpush1.msra.mxu0 0.0
      %8322 = vmatprep.subr.mxu0 0.0
      %8323 = vmatpush1.msra.mxu0 0.0
      %8324 = vmatprep.mubr.f32.mxu0 0.0
      %8325 = vmatmul.mubr.f32.gmra.mrb[0].mxu0 %v8246
      %v8326 = vpop.f32.mrb[0].mxu0
      %v8327 = vadd.f32 0.0, %v8326
      %v8328 = vpop.f32.mrb[0].mxu0
      %v8329 = vadd.f32 0.0, %v8328
      %8330 = vmatprep.mubr.f32.mxu0 0.0
      %8331 = vmatmul.mubr.f32.gmra.mrb[0].mxu0 %v8249
      %v8332 = vpop.f32.mrb[0].mxu0
      %v8333 = vadd.f32 0.0, %v8332
      %v8334 = vpop.f32.mrb[0].mxu0
      %v8335 = vadd.f32 0.0, %v8334
      %8336 = vmatprep.mubr.f32.mxu0 0.0
      %8337 = vmatmul.mubr.f32.gmra.mrb[0].mxu0 %v8252
      %v8338 = vpop.f32.mrb[0].mxu0
      %v8339 = vadd.f32 0.0, %v8338
      %v8340 = vpop.f32.mrb[0].mxu0
      %v8341 = vadd.f32 0.0, %v8340
      %8342 = vdwg.mxu0
      %8343 = vmatprep.subr.mxu0 0.0
      %8344 = vmatpush1.msra.mxu0 %v8258
      %8345 = vmatprep.subr.mxu0 0.0
      %8346 = vmatpush1.msra.mxu0 0.0
      %8347 = vmatprep.subr.mxu0 0.0
      %8348 = vmatpush1.msra.mxu0 0.0
      %8349 = vmatprep.subr.mxu0 0.0
      %8350 = vmatpush1.msra.mxu0 0.0
      %8351 = vmatprep.subr.mxu0 0.0
      %8352 = vmatpush1.msra.mxu0 0.0
      %8353 = vmatprep.subr.mxu0 0.0
      %8354 = vmatpush1.msra.mxu0 0.0
      %8355 = vmatprep.subr.mxu0 0.0
      %8356 = vmatpush1.msra.mxu0 0.0
      %8357 = vmatprep.subr.mxu0 0.0
      %8358 = vmatpush1.msra.mxu0 0.0
      %8359 = vmatprep.subr.mxu0 0.0
      %8360 = vmatpush1.msra.mxu0 0.0
      %8361 = vmatprep.subr.mxu0 0.0
      %8362 = vmatpush1.msra.mxu0 0.0
      %8363 = vmatprep.subr.mxu0 0.0
      %8364 = vmatpush1.msra.mxu0 0.0
      %8365 = vmatprep.subr.mxu0 0.0
      %8366 = vmatpush1.msra.mxu0 0.0
      %8367 = vmatprep.subr.mxu0 0.0
      %8368 = vmatpush1.msra.mxu0 0.0
      %8369 = vmatprep.subr.mxu0 0.0
      %8370 = vmatpush1.msra.mxu0 0.0
      %8371 = vmatprep.subr.mxu0 0.0
      %8372 = vmatpush1.msra.mxu0 0.0
      %8373 = vmatprep.subr.mxu0 0.0
      %8374 = vmatpush1.msra.mxu0 0.0
      %8375 = vmatprep.subr.mxu0 0.0
      %8376 = vmatpush1.msra.mxu0 0.0
      %8377 = vmatprep.subr.mxu0 0.0
      %8378 = vmatpush1.msra.mxu0 0.0
      %8379 = vmatprep.subr.mxu0 0.0
      %8380 = vmatpush1.msra.mxu0 0.0
      %8381 = vmatprep.subr.mxu0 0.0
      %8382 = vmatpush1.msra.mxu0 0.0
      %8383 = vmatprep.subr.mxu0 0.0
      %8384 = vmatpush1.msra.mxu0 0.0
      %8385 = vmatprep.subr.mxu0 0.0
      %8386 = vmatpush1.msra.mxu0 0.0
      %8387 = vmatprep.subr.mxu0 0.0
      %8388 = vmatpush1.msra.mxu0 0.0
      %8389 = vmatprep.subr.mxu0 0.0
      %8390 = vmatpush1.msra.mxu0 0.0
      %8391 = vmatprep.subr.mxu0 0.0
      %8392 = vmatpush1.msra.mxu0 0.0
      %8393 = vmatprep.subr.mxu0 0.0
      %8394 = vmatpush1.msra.mxu0 0.0
      %8395 = vmatprep.subr.mxu0 0.0
      %8396 = vmatpush1.msra.mxu0 0.0
      %8397 = vmatprep.subr.mxu0 0.0
      %8398 = vmatpush1.msra.mxu0 0.0
      %8399 = vmatprep.subr.mxu0 0.0
      %8400 = vmatpush1.msra.mxu0 0.0
      %8401 = vmatprep.subr.mxu0 0.0
      %8402 = vmatpush1.msra.mxu0 0.0
      %8403 = vmatprep.subr.mxu0 0.0
      %8404 = vmatpush1.msra.mxu0 0.0
      %8405 = vmatprep.subr.mxu0 0.0
      %8406 = vmatpush1.msra.mxu0 0.0
      %8407 = vmatprep.mubr.f32.mxu0 0.0
      %8408 = vmatmul.mubr.f32.gmra.mrb[0].mxu0 %v8246
      %v8409 = vpop.f32.mrb[0].mxu0
      %v8410 = vadd.f32 0.0, %v8409
      %v8411 = vpop.f32.mrb[0].mxu0
      %8412 = vmatprep.mubr.f32.mxu0 0.0
      %8413 = vmatmul.mubr.f32.gmra.mrb[0].mxu0 %v8249
      %v8414 = vpop.f32.mrb[0].mxu0
      %v8415 = vadd.f32 0.0, %v8414
      %v8416 = vpop.f32.mrb[0].mxu0
      %8417 = vmatprep.mubr.f32.mxu0 0.0
      %8418 = vmatmul.mubr.f32.gmra.mrb[0].mxu0 %v8252
      %v8419 = vpop.f32.mrb[0].mxu0
      %v8420 = vadd.f32 0.0, %v8419
      %v8421 = vpop.f32.mrb[0].mxu0
      %8422 = vdwg.mxu0
      %v8423 = vadd.f32 %v8220, %v8327
      %v8424 = vadd.f32 %v8221, %v8329
      %v8425 = vadd.f32 %v8222, %v8410
      %v8426 = vadd.f32 %v8223, %v8333
      %v8427 = vadd.f32 %v8224, %v8335
      %v8428 = vadd.f32 %v8225, %v8415
      %v8429 = vadd.f32 %v8226, %v8339
      %v8430 = vadd.f32 %v8227, %v8341
      %v8431 = vadd.f32 %v8228, %v8420
      %s8432 = scalar_lea.vmem %s1, 984
      %v8433 = vld [vmem:[%s8432] sm:$0xff]
      %v8434 = vld [vmem:[%s8432 + $0x8] sm:$0xff]
      %v8435 = vld [vmem:[%s8432 + $0x10] sm:$0xff]
      %8436 = vrot.lane.b32.xlu0 %v171, 12
      %v8437 = vpop.permute.xlu0 %8436
      %8438 = vrot.lane.b32.xlu0 %v182, 12
      %v8439 = vpop.permute.xlu0 %8438
      %8440 = vrot.lane.b32.xlu0 %v172, 12
      %v8441 = vpop.permute.xlu0 %8440
      %8442 = vrot.lane.b32.xlu0 %v2954, 12
      %v8443 = vpop.permute.xlu0 %8442
      %vm8444 = vcmask 97280
      %v8445 = vsel %vm8444, %v8437, %v8439
      %v8446 = vsel %vm8444, %v8439, %v8441
      %v8447 = vsel %vm8444, %v8441, %v8443
      %v8449 = vsel %vm192, %v8433, 0
      %v8452 = vsel %vm192, %v8434, 0
      %v8455 = vsel %vm192, %v8435, 0
      %v8457 = vsel %vm202, %v8445, 0
      %v8459 = vsel %vm202, %v8446, 0
      %v8461 = vsel %vm202, %v8447, 0
      %8463 = vmatprep.subr.mxu0 %v8459
      %8464 = vmatpush1.msra.mxu0 %v8457
      %8465 = vmatprep.subr.mxu0 0.0
      %8466 = vmatpush1.msra.mxu0 0.0
      %8467 = vmatprep.subr.mxu0 0.0
      %8468 = vmatpush1.msra.mxu0 0.0
      %8469 = vmatprep.subr.mxu0 0.0
      %8470 = vmatpush1.msra.mxu0 0.0
      %8471 = vmatprep.subr.mxu0 0.0
      %8472 = vmatpush1.msra.mxu0 0.0
      %8473 = vmatprep.subr.mxu0 0.0
      %8474 = vmatpush1.msra.mxu0 0.0
      %8475 = vmatprep.subr.mxu0 0.0
      %8476 = vmatpush1.msra.mxu0 0.0
      %8477 = vmatprep.subr.mxu0 0.0
      %8478 = vmatpush1.msra.mxu0 0.0
      %8479 = vmatprep.subr.mxu0 0.0
      %8480 = vmatpush1.msra.mxu0 0.0
      %8481 = vmatprep.subr.mxu0 0.0
      %8482 = vmatpush1.msra.mxu0 0.0
      %8483 = vmatprep.subr.mxu0 0.0
      %8484 = vmatpush1.msra.mxu0 0.0
      %8485 = vmatprep.subr.mxu0 0.0
      %8486 = vmatpush1.msra.mxu0 0.0
      %8487 = vmatprep.subr.mxu0 0.0
      %8488 = vmatpush1.msra.mxu0 0.0
      %8489 = vmatprep.subr.mxu0 0.0
      %8490 = vmatpush1.msra.mxu0 0.0
      %8491 = vmatprep.subr.mxu0 0.0
      %8492 = vmatpush1.msra.mxu0 0.0
      %8493 = vmatprep.subr.mxu0 0.0
      %8494 = vmatpush1.msra.mxu0 0.0
      %8495 = vmatprep.subr.mxu0 0.0
      %8496 = vmatpush1.msra.mxu0 0.0
      %8497 = vmatprep.subr.mxu0 0.0
      %8498 = vmatpush1.msra.mxu0 0.0
      %8499 = vmatprep.subr.mxu0 0.0
      %8500 = vmatpush1.msra.mxu0 0.0
      %8501 = vmatprep.subr.mxu0 0.0
      %8502 = vmatpush1.msra.mxu0 0.0
      %8503 = vmatprep.subr.mxu0 0.0
      %8504 = vmatpush1.msra.mxu0 0.0
      %8505 = vmatprep.subr.mxu0 0.0
      %8506 = vmatpush1.msra.mxu0 0.0
      %8507 = vmatprep.subr.mxu0 0.0
      %8508 = vmatpush1.msra.mxu0 0.0
      %8509 = vmatprep.subr.mxu0 0.0
      %8510 = vmatpush1.msra.mxu0 0.0
      %8511 = vmatprep.subr.mxu0 0.0
      %8512 = vmatpush1.msra.mxu0 0.0
      %8513 = vmatprep.subr.mxu0 0.0
      %8514 = vmatpush1.msra.mxu0 0.0
      %8515 = vmatprep.subr.mxu0 0.0
      %8516 = vmatpush1.msra.mxu0 0.0
      %8517 = vmatprep.subr.mxu0 0.0
      %8518 = vmatpush1.msra.mxu0 0.0
      %8519 = vmatprep.subr.mxu0 0.0
      %8520 = vmatpush1.msra.mxu0 0.0
      %8521 = vmatprep.subr.mxu0 0.0
      %8522 = vmatpush1.msra.mxu0 0.0
      %8523 = vmatprep.subr.mxu0 0.0
      %8524 = vmatpush1.msra.mxu0 0.0
      %8525 = vmatprep.subr.mxu0 0.0
      %8526 = vmatpush1.msra.mxu0 0.0
      %8527 = vmatprep.mubr.f32.mxu0 0.0
      %8528 = vmatmul.mubr.f32.gmra.mrb[0].mxu0 %v8449
      %v8529 = vpop.f32.mrb[0].mxu0
      %v8530 = vadd.f32 0.0, %v8529
      %v8531 = vpop.f32.mrb[0].mxu0
      %v8532 = vadd.f32 0.0, %v8531
      %8533 = vmatprep.mubr.f32.mxu0 0.0
      %8534 = vmatmul.mubr.f32.gmra.mrb[0].mxu0 %v8452
      %v8535 = vpop.f32.mrb[0].mxu0
      %v8536 = vadd.f32 0.0, %v8535
      %v8537 = vpop.f32.mrb[0].mxu0
      %v8538 = vadd.f32 0.0, %v8537
      %8539 = vmatprep.mubr.f32.mxu0 0.0
      %8540 = vmatmul.mubr.f32.gmra.mrb[0].mxu0 %v8455
      %v8541 = vpop.f32.mrb[0].mxu0
      %v8542 = vadd.f32 0.0, %v8541
      %v8543 = vpop.f32.mrb[0].mxu0
      %v8544 = vadd.f32 0.0, %v8543
      %8545 = vdwg.mxu0
      %8546 = vmatprep.subr.mxu0 0.0
      %8547 = vmatpush1.msra.mxu0 %v8461
      %8548 = vmatprep.subr.mxu0 0.0
      %8549 = vmatpush1.msra.mxu0 0.0
      %8550 = vmatprep.subr.mxu0 0.0
      %8551 = vmatpush1.msra.mxu0 0.0
      %8552 = vmatprep.subr.mxu0 0.0
      %8553 = vmatpush1.msra.mxu0 0.0
      %8554 = vmatprep.subr.mxu0 0.0
      %8555 = vmatpush1.msra.mxu0 0.0
      %8556 = vmatprep.subr.mxu0 0.0
      %8557 = vmatpush1.msra.mxu0 0.0
      %8558 = vmatprep.subr.mxu0 0.0
      %8559 = vmatpush1.msra.mxu0 0.0
      %8560 = vmatprep.subr.mxu0 0.0
      %8561 = vmatpush1.msra.mxu0 0.0
      %8562 = vmatprep.subr.mxu0 0.0
      %8563 = vmatpush1.msra.mxu0 0.0
      %8564 = vmatprep.subr.mxu0 0.0
      %8565 = vmatpush1.msra.mxu0 0.0
      %8566 = vmatprep.subr.mxu0 0.0
      %8567 = vmatpush1.msra.mxu0 0.0
      %8568 = vmatprep.subr.mxu0 0.0
      %8569 = vmatpush1.msra.mxu0 0.0
      %8570 = vmatprep.subr.mxu0 0.0
      %8571 = vmatpush1.msra.mxu0 0.0
      %8572 = vmatprep.subr.mxu0 0.0
      %8573 = vmatpush1.msra.mxu0 0.0
      %8574 = vmatprep.subr.mxu0 0.0
      %8575 = vmatpush1.msra.mxu0 0.0
      %8576 = vmatprep.subr.mxu0 0.0
      %8577 = vmatpush1.msra.mxu0 0.0
      %8578 = vmatprep.subr.mxu0 0.0
      %8579 = vmatpush1.msra.mxu0 0.0
      %8580 = vmatprep.subr.mxu0 0.0
      %8581 = vmatpush1.msra.mxu0 0.0
      %8582 = vmatprep.subr.mxu0 0.0
      %8583 = vmatpush1.msra.mxu0 0.0
      %8584 = vmatprep.subr.mxu0 0.0
      %8585 = vmatpush1.msra.mxu0 0.0
      %8586 = vmatprep.subr.mxu0 0.0
      %8587 = vmatpush1.msra.mxu0 0.0
      %8588 = vmatprep.subr.mxu0 0.0
      %8589 = vmatpush1.msra.mxu0 0.0
      %8590 = vmatprep.subr.mxu0 0.0
      %8591 = vmatpush1.msra.mxu0 0.0
      %8592 = vmatprep.subr.mxu0 0.0
      %8593 = vmatpush1.msra.mxu0 0.0
      %8594 = vmatprep.subr.mxu0 0.0
      %8595 = vmatpush1.msra.mxu0 0.0
      %8596 = vmatprep.subr.mxu0 0.0
      %8597 = vmatpush1.msra.mxu0 0.0
      %8598 = vmatprep.subr.mxu0 0.0
      %8599 = vmatpush1.msra.mxu0 0.0
      %8600 = vmatprep.subr.mxu0 0.0
      %8601 = vmatpush1.msra.mxu0 0.0
      %8602 = vmatprep.subr.mxu0 0.0
      %8603 = vmatpush1.msra.mxu0 0.0
      %8604 = vmatprep.subr.mxu0 0.0
      %8605 = vmatpush1.msra.mxu0 0.0
      %8606 = vmatprep.subr.mxu0 0.0
      %8607 = vmatpush1.msra.mxu0 0.0
      %8608 = vmatprep.subr.mxu0 0.0
      %8609 = vmatpush1.msra.mxu0 0.0
      %8610 = vmatprep.mubr.f32.mxu0 0.0
      %8611 = vmatmul.mubr.f32.gmra.mrb[0].mxu0 %v8449
      %v8612 = vpop.f32.mrb[0].mxu0
      %v8613 = vadd.f32 0.0, %v8612
      %v8614 = vpop.f32.mrb[0].mxu0
      %8615 = vmatprep.mubr.f32.mxu0 0.0
      %8616 = vmatmul.mubr.f32.gmra.mrb[0].mxu0 %v8452
      %v8617 = vpop.f32.mrb[0].mxu0
      %v8618 = vadd.f32 0.0, %v8617
      %v8619 = vpop.f32.mrb[0].mxu0
      %8620 = vmatprep.mubr.f32.mxu0 0.0
      %8621 = vmatmul.mubr.f32.gmra.mrb[0].mxu0 %v8455
      %v8622 = vpop.f32.mrb[0].mxu0
      %v8623 = vadd.f32 0.0, %v8622
      %v8624 = vpop.f32.mrb[0].mxu0
      %8625 = vdwg.mxu0
      %v8626 = vadd.f32 %v8423, %v8530
      %v8627 = vadd.f32 %v8424, %v8532
      %v8628 = vadd.f32 %v8425, %v8613
      %v8629 = vadd.f32 %v8426, %v8536
      %v8630 = vadd.f32 %v8427, %v8538
      %v8631 = vadd.f32 %v8428, %v8618
      %v8632 = vadd.f32 %v8429, %v8542
      %v8633 = vadd.f32 %v8430, %v8544
      %v8634 = vadd.f32 %v8431, %v8623
      %s8635 = scalar_lea.vmem %s1, 1008
      %v8636 = vld [vmem:[%s8635] sm:$0xff]
      %v8637 = vld [vmem:[%s8635 + $0x8] sm:$0xff]
      %v8638 = vld [vmem:[%s8635 + $0x10] sm:$0xff]
      %8639 = vrot.lane.b32.xlu0 %v2954, 124
      %v8640 = vpop.permute.xlu0 %8639
      %v8641 = vsel %vm960, %v959, %v8640
      %v8643 = vsel %vm192, %v8636, 0
      %v8646 = vsel %vm192, %v8637, 0
      %v8649 = vsel %vm192, %v8638, 0
      %v8651 = vsel %vm202, %v8641, 0
      %v8653 = vsel %vm202, %v8640, 0
      %8655 = vmatprep.subr.mxu0 %v8651
      %8656 = vmatpush1.msra.mxu0 %v974
      %8657 = vmatprep.subr.mxu0 0.0
      %8658 = vmatpush1.msra.mxu0 0.0
      %8659 = vmatprep.subr.mxu0 0.0
      %8660 = vmatpush1.msra.mxu0 0.0
      %8661 = vmatprep.subr.mxu0 0.0
      %8662 = vmatpush1.msra.mxu0 0.0
      %8663 = vmatprep.subr.mxu0 0.0
      %8664 = vmatpush1.msra.mxu0 0.0
      %8665 = vmatprep.subr.mxu0 0.0
      %8666 = vmatpush1.msra.mxu0 0.0
      %8667 = vmatprep.subr.mxu0 0.0
      %8668 = vmatpush1.msra.mxu0 0.0
      %8669 = vmatprep.subr.mxu0 0.0
      %8670 = vmatpush1.msra.mxu0 0.0
      %8671 = vmatprep.subr.mxu0 0.0
      %8672 = vmatpush1.msra.mxu0 0.0
      %8673 = vmatprep.subr.mxu0 0.0
      %8674 = vmatpush1.msra.mxu0 0.0
      %8675 = vmatprep.subr.mxu0 0.0
      %8676 = vmatpush1.msra.mxu0 0.0
      %8677 = vmatprep.subr.mxu0 0.0
      %8678 = vmatpush1.msra.mxu0 0.0
      %8679 = vmatprep.subr.mxu0 0.0
      %8680 = vmatpush1.msra.mxu0 0.0
      %8681 = vmatprep.subr.mxu0 0.0
      %8682 = vmatpush1.msra.mxu0 0.0
      %8683 = vmatprep.subr.mxu0 0.0
      %8684 = vmatpush1.msra.mxu0 0.0
      %8685 = vmatprep.subr.mxu0 0.0
      %8686 = vmatpush1.msra.mxu0 0.0
      %8687 = vmatprep.subr.mxu0 0.0
      %8688 = vmatpush1.msra.mxu0 0.0
      %8689 = vmatprep.subr.mxu0 0.0
      %8690 = vmatpush1.msra.mxu0 0.0
      %8691 = vmatprep.subr.mxu0 0.0
      %8692 = vmatpush1.msra.mxu0 0.0
      %8693 = vmatprep.subr.mxu0 0.0
      %8694 = vmatpush1.msra.mxu0 0.0
      %8695 = vmatprep.subr.mxu0 0.0
      %8696 = vmatpush1.msra.mxu0 0.0
      %8697 = vmatprep.subr.mxu0 0.0
      %8698 = vmatpush1.msra.mxu0 0.0
      %8699 = vmatprep.subr.mxu0 0.0
      %8700 = vmatpush1.msra.mxu0 0.0
      %8701 = vmatprep.subr.mxu0 0.0
      %8702 = vmatpush1.msra.mxu0 0.0
      %8703 = vmatprep.subr.mxu0 0.0
      %8704 = vmatpush1.msra.mxu0 0.0
      %8705 = vmatprep.subr.mxu0 0.0
      %8706 = vmatpush1.msra.mxu0 0.0
      %8707 = vmatprep.subr.mxu0 0.0
      %8708 = vmatpush1.msra.mxu0 0.0
      %8709 = vmatprep.subr.mxu0 0.0
      %8710 = vmatpush1.msra.mxu0 0.0
      %8711 = vmatprep.subr.mxu0 0.0
      %8712 = vmatpush1.msra.mxu0 0.0
      %8713 = vmatprep.subr.mxu0 0.0
      %8714 = vmatpush1.msra.mxu0 0.0
      %8715 = vmatprep.subr.mxu0 0.0
      %8716 = vmatpush1.msra.mxu0 0.0
      %8717 = vmatprep.subr.mxu0 0.0
      %8718 = vmatpush1.msra.mxu0 0.0
      %8719 = vmatprep.mubr.f32.mxu0 0.0
      %8720 = vmatmul.mubr.f32.gmra.mrb[0].mxu0 %v8643
      %v8721 = vpop.f32.mrb[0].mxu0
      %v8722 = vadd.f32 0.0, %v8721
      %v8723 = vpop.f32.mrb[0].mxu0
      %v8724 = vadd.f32 0.0, %v8723
      %8725 = vmatprep.mubr.f32.mxu0 0.0
      %8726 = vmatmul.mubr.f32.gmra.mrb[0].mxu0 %v8646
      %v8727 = vpop.f32.mrb[0].mxu0
      %v8728 = vadd.f32 0.0, %v8727
      %v8729 = vpop.f32.mrb[0].mxu0
      %v8730 = vadd.f32 0.0, %v8729
      %8731 = vmatprep.mubr.f32.mxu0 0.0
      %8732 = vmatmul.mubr.f32.gmra.mrb[0].mxu0 %v8649
      %v8733 = vpop.f32.mrb[0].mxu0
      %v8734 = vadd.f32 0.0, %v8733
      %v8735 = vpop.f32.mrb[0].mxu0
      %v8736 = vadd.f32 0.0, %v8735
      %8737 = vdwg.mxu0
      %8738 = vmatprep.subr.mxu0 0.0
      %8739 = vmatpush1.msra.mxu0 %v8653
      %8740 = vmatprep.subr.mxu0 0.0
      %8741 = vmatpush1.msra.mxu0 0.0
      %8742 = vmatprep.subr.mxu0 0.0
      %8743 = vmatpush1.msra.mxu0 0.0
      %8744 = vmatprep.subr.mxu0 0.0
      %8745 = vmatpush1.msra.mxu0 0.0
      %8746 = vmatprep.subr.mxu0 0.0
      %8747 = vmatpush1.msra.mxu0 0.0
      %8748 = vmatprep.subr.mxu0 0.0
      %8749 = vmatpush1.msra.mxu0 0.0
      %8750 = vmatprep.subr.mxu0 0.0
      %8751 = vmatpush1.msra.mxu0 0.0
      %8752 = vmatprep.subr.mxu0 0.0
      %8753 = vmatpush1.msra.mxu0 0.0
      %8754 = vmatprep.subr.mxu0 0.0
      %8755 = vmatpush1.msra.mxu0 0.0
      %8756 = vmatprep.subr.mxu0 0.0
      %8757 = vmatpush1.msra.mxu0 0.0
      %8758 = vmatprep.subr.mxu0 0.0
      %8759 = vmatpush1.msra.mxu0 0.0
      %8760 = vmatprep.subr.mxu0 0.0
      %8761 = vmatpush1.msra.mxu0 0.0
      %8762 = vmatprep.subr.mxu0 0.0
      %8763 = vmatpush1.msra.mxu0 0.0
      %8764 = vmatprep.subr.mxu0 0.0
      %8765 = vmatpush1.msra.mxu0 0.0
      %8766 = vmatprep.subr.mxu0 0.0
      %8767 = vmatpush1.msra.mxu0 0.0
      %8768 = vmatprep.subr.mxu0 0.0
      %8769 = vmatpush1.msra.mxu0 0.0
      %8770 = vmatprep.subr.mxu0 0.0
      %8771 = vmatpush1.msra.mxu0 0.0
      %8772 = vmatprep.subr.mxu0 0.0
      %8773 = vmatpush1.msra.mxu0 0.0
      %8774 = vmatprep.subr.mxu0 0.0
      %8775 = vmatpush1.msra.mxu0 0.0
      %8776 = vmatprep.subr.mxu0 0.0
      %8777 = vmatpush1.msra.mxu0 0.0
      %8778 = vmatprep.subr.mxu0 0.0
      %8779 = vmatpush1.msra.mxu0 0.0
      %8780 = vmatprep.subr.mxu0 0.0
      %8781 = vmatpush1.msra.mxu0 0.0
      %8782 = vmatprep.subr.mxu0 0.0
      %8783 = vmatpush1.msra.mxu0 0.0
      %8784 = vmatprep.subr.mxu0 0.0
      %8785 = vmatpush1.msra.mxu0 0.0
      %8786 = vmatprep.subr.mxu0 0.0
      %8787 = vmatpush1.msra.mxu0 0.0
      %8788 = vmatprep.subr.mxu0 0.0
      %8789 = vmatpush1.msra.mxu0 0.0
      %8790 = vmatprep.subr.mxu0 0.0
      %8791 = vmatpush1.msra.mxu0 0.0
      %8792 = vmatprep.subr.mxu0 0.0
      %8793 = vmatpush1.msra.mxu0 0.0
      %8794 = vmatprep.subr.mxu0 0.0
      %8795 = vmatpush1.msra.mxu0 0.0
      %8796 = vmatprep.subr.mxu0 0.0
      %8797 = vmatpush1.msra.mxu0 0.0
      %8798 = vmatprep.subr.mxu0 0.0
      %8799 = vmatpush1.msra.mxu0 0.0
      %8800 = vmatprep.subr.mxu0 0.0
      %8801 = vmatpush1.msra.mxu0 0.0
      %8802 = vmatprep.mubr.f32.mxu0 0.0
      %8803 = vmatmul.mubr.f32.gmra.mrb[0].mxu0 %v8643
      %v8804 = vpop.f32.mrb[0].mxu0
      %v8805 = vadd.f32 0.0, %v8804
      %v8806 = vpop.f32.mrb[0].mxu0
      %8807 = vmatprep.mubr.f32.mxu0 0.0
      %8808 = vmatmul.mubr.f32.gmra.mrb[0].mxu0 %v8646
      %v8809 = vpop.f32.mrb[0].mxu0
      %v8810 = vadd.f32 0.0, %v8809
      %v8811 = vpop.f32.mrb[0].mxu0
      %8812 = vmatprep.mubr.f32.mxu0 0.0
      %8813 = vmatmul.mubr.f32.gmra.mrb[0].mxu0 %v8649
      %v8814 = vpop.f32.mrb[0].mxu0
      %v8815 = vadd.f32 0.0, %v8814
      %v8816 = vpop.f32.mrb[0].mxu0
      %8817 = vdwg.mxu0
      %v8818 = vadd.f32 %v8626, %v8722
      %v8819 = vadd.f32 %v8627, %v8724
      %v8820 = vadd.f32 %v8628, %v8805
      %v8821 = vadd.f32 %v8629, %v8728
      %v8822 = vadd.f32 %v8630, %v8730
      %v8823 = vadd.f32 %v8631, %v8810
      %v8824 = vadd.f32 %v8632, %v8734
      %v8825 = vadd.f32 %v8633, %v8736
      %v8826 = vadd.f32 %v8634, %v8815
      %s8827 = scalar_lea.vmem %s1, 1032
      %v8828 = vld [vmem:[%s8827] sm:$0xff]
      %v8829 = vld [vmem:[%s8827 + $0x8] sm:$0xff]
      %v8830 = vld [vmem:[%s8827 + $0x10] sm:$0xff]
      %8831 = vrot.lane.b32.xlu0 %v2954, 123
      %v8832 = vpop.permute.xlu0 %8831
      %v8833 = vsel %vm1160, %v1159, %v8832
      %v8835 = vsel %vm192, %v8828, 0
      %v8838 = vsel %vm192, %v8829, 0
      %v8841 = vsel %vm192, %v8830, 0
      %v8843 = vsel %vm202, %v8833, 0
      %v8845 = vsel %vm202, %v8832, 0
      %8847 = vmatprep.subr.mxu0 %v8843
      %8848 = vmatpush1.msra.mxu0 %v1174
      %8849 = vmatprep.subr.mxu0 0.0
      %8850 = vmatpush1.msra.mxu0 0.0
      %8851 = vmatprep.subr.mxu0 0.0
      %8852 = vmatpush1.msra.mxu0 0.0
      %8853 = vmatprep.subr.mxu0 0.0
      %8854 = vmatpush1.msra.mxu0 0.0
      %8855 = vmatprep.subr.mxu0 0.0
      %8856 = vmatpush1.msra.mxu0 0.0
      %8857 = vmatprep.subr.mxu0 0.0
      %8858 = vmatpush1.msra.mxu0 0.0
      %8859 = vmatprep.subr.mxu0 0.0
      %8860 = vmatpush1.msra.mxu0 0.0
      %8861 = vmatprep.subr.mxu0 0.0
      %8862 = vmatpush1.msra.mxu0 0.0
      %8863 = vmatprep.subr.mxu0 0.0
      %8864 = vmatpush1.msra.mxu0 0.0
      %8865 = vmatprep.subr.mxu0 0.0
      %8866 = vmatpush1.msra.mxu0 0.0
      %8867 = vmatprep.subr.mxu0 0.0
      %8868 = vmatpush1.msra.mxu0 0.0
      %8869 = vmatprep.subr.mxu0 0.0
      %8870 = vmatpush1.msra.mxu0 0.0
      %8871 = vmatprep.subr.mxu0 0.0
      %8872 = vmatpush1.msra.mxu0 0.0
      %8873 = vmatprep.subr.mxu0 0.0
      %8874 = vmatpush1.msra.mxu0 0.0
      %8875 = vmatprep.subr.mxu0 0.0
      %8876 = vmatpush1.msra.mxu0 0.0
      %8877 = vmatprep.subr.mxu0 0.0
      %8878 = vmatpush1.msra.mxu0 0.0
      %8879 = vmatprep.subr.mxu0 0.0
      %8880 = vmatpush1.msra.mxu0 0.0
      %8881 = vmatprep.subr.mxu0 0.0
      %8882 = vmatpush1.msra.mxu0 0.0
      %8883 = vmatprep.subr.mxu0 0.0
      %8884 = vmatpush1.msra.mxu0 0.0
      %8885 = vmatprep.subr.mxu0 0.0
      %8886 = vmatpush1.msra.mxu0 0.0
      %8887 = vmatprep.subr.mxu0 0.0
      %8888 = vmatpush1.msra.mxu0 0.0
      %8889 = vmatprep.subr.mxu0 0.0
      %8890 = vmatpush1.msra.mxu0 0.0
      %8891 = vmatprep.subr.mxu0 0.0
      %8892 = vmatpush1.msra.mxu0 0.0
      %8893 = vmatprep.subr.mxu0 0.0
      %8894 = vmatpush1.msra.mxu0 0.0
      %8895 = vmatprep.subr.mxu0 0.0
      %8896 = vmatpush1.msra.mxu0 0.0
      %8897 = vmatprep.subr.mxu0 0.0
      %8898 = vmatpush1.msra.mxu0 0.0
      %8899 = vmatprep.subr.mxu0 0.0
      %8900 = vmatpush1.msra.mxu0 0.0
      %8901 = vmatprep.subr.mxu0 0.0
      %8902 = vmatpush1.msra.mxu0 0.0
      %8903 = vmatprep.subr.mxu0 0.0
      %8904 = vmatpush1.msra.mxu0 0.0
      %8905 = vmatprep.subr.mxu0 0.0
      %8906 = vmatpush1.msra.mxu0 0.0
      %8907 = vmatprep.subr.mxu0 0.0
      %8908 = vmatpush1.msra.mxu0 0.0
      %8909 = vmatprep.subr.mxu0 0.0
      %8910 = vmatpush1.msra.mxu0 0.0
      %8911 = vmatprep.mubr.f32.mxu0 0.0
      %8912 = vmatmul.mubr.f32.gmra.mrb[0].mxu0 %v8835
      %v8913 = vpop.f32.mrb[0].mxu0
      %v8914 = vadd.f32 0.0, %v8913
      %v8915 = vpop.f32.mrb[0].mxu0
      %v8916 = vadd.f32 0.0, %v8915
      %8917 = vmatprep.mubr.f32.mxu0 0.0
      %8918 = vmatmul.mubr.f32.gmra.mrb[0].mxu0 %v8838
      %v8919 = vpop.f32.mrb[0].mxu0
      %v8920 = vadd.f32 0.0, %v8919
      %v8921 = vpop.f32.mrb[0].mxu0
      %v8922 = vadd.f32 0.0, %v8921
      %8923 = vmatprep.mubr.f32.mxu0 0.0
      %8924 = vmatmul.mubr.f32.gmra.mrb[0].mxu0 %v8841
      %v8925 = vpop.f32.mrb[0].mxu0
      %v8926 = vadd.f32 0.0, %v8925
      %v8927 = vpop.f32.mrb[0].mxu0
      %v8928 = vadd.f32 0.0, %v8927
      %8929 = vdwg.mxu0
      %8930 = vmatprep.subr.mxu0 0.0
      %8931 = vmatpush1.msra.mxu0 %v8845
      %8932 = vmatprep.subr.mxu0 0.0
      %8933 = vmatpush1.msra.mxu0 0.0
      %8934 = vmatprep.subr.mxu0 0.0
      %8935 = vmatpush1.msra.mxu0 0.0
      %8936 = vmatprep.subr.mxu0 0.0
      %8937 = vmatpush1.msra.mxu0 0.0
      %8938 = vmatprep.subr.mxu0 0.0
      %8939 = vmatpush1.msra.mxu0 0.0
      %8940 = vmatprep.subr.mxu0 0.0
      %8941 = vmatpush1.msra.mxu0 0.0
      %8942 = vmatprep.subr.mxu0 0.0
      %8943 = vmatpush1.msra.mxu0 0.0
      %8944 = vmatprep.subr.mxu0 0.0
      %8945 = vmatpush1.msra.mxu0 0.0
      %8946 = vmatprep.subr.mxu0 0.0
      %8947 = vmatpush1.msra.mxu0 0.0
      %8948 = vmatprep.subr.mxu0 0.0
      %8949 = vmatpush1.msra.mxu0 0.0
      %8950 = vmatprep.subr.mxu0 0.0
      %8951 = vmatpush1.msra.mxu0 0.0
      %8952 = vmatprep.subr.mxu0 0.0
      %8953 = vmatpush1.msra.mxu0 0.0
      %8954 = vmatprep.subr.mxu0 0.0
      %8955 = vmatpush1.msra.mxu0 0.0
      %8956 = vmatprep.subr.mxu0 0.0
      %8957 = vmatpush1.msra.mxu0 0.0
      %8958 = vmatprep.subr.mxu0 0.0
      %8959 = vmatpush1.msra.mxu0 0.0
      %8960 = vmatprep.subr.mxu0 0.0
      %8961 = vmatpush1.msra.mxu0 0.0
      %8962 = vmatprep.subr.mxu0 0.0
      %8963 = vmatpush1.msra.mxu0 0.0
      %8964 = vmatprep.subr.mxu0 0.0
      %8965 = vmatpush1.msra.mxu0 0.0
      %8966 = vmatprep.subr.mxu0 0.0
      %8967 = vmatpush1.msra.mxu0 0.0
      %8968 = vmatprep.subr.mxu0 0.0
      %8969 = vmatpush1.msra.mxu0 0.0
      %8970 = vmatprep.subr.mxu0 0.0
      %8971 = vmatpush1.msra.mxu0 0.0
      %8972 = vmatprep.subr.mxu0 0.0
      %8973 = vmatpush1.msra.mxu0 0.0
      %8974 = vmatprep.subr.mxu0 0.0
      %8975 = vmatpush1.msra.mxu0 0.0
      %8976 = vmatprep.subr.mxu0 0.0
      %8977 = vmatpush1.msra.mxu0 0.0
      %8978 = vmatprep.subr.mxu0 0.0
      %8979 = vmatpush1.msra.mxu0 0.0
      %8980 = vmatprep.subr.mxu0 0.0
      %8981 = vmatpush1.msra.mxu0 0.0
      %8982 = vmatprep.subr.mxu0 0.0
      %8983 = vmatpush1.msra.mxu0 0.0
      %8984 = vmatprep.subr.mxu0 0.0
      %8985 = vmatpush1.msra.mxu0 0.0
      %8986 = vmatprep.subr.mxu0 0.0
      %8987 = vmatpush1.msra.mxu0 0.0
      %8988 = vmatprep.subr.mxu0 0.0
      %8989 = vmatpush1.msra.mxu0 0.0
      %8990 = vmatprep.subr.mxu0 0.0
      %8991 = vmatpush1.msra.mxu0 0.0
      %8992 = vmatprep.subr.mxu0 0.0
      %8993 = vmatpush1.msra.mxu0 0.0
      %8994 = vmatprep.mubr.f32.mxu0 0.0
      %8995 = vmatmul.mubr.f32.gmra.mrb[0].mxu0 %v8835
      %v8996 = vpop.f32.mrb[0].mxu0
      %v8997 = vadd.f32 0.0, %v8996
      %v8998 = vpop.f32.mrb[0].mxu0
      %8999 = vmatprep.mubr.f32.mxu0 0.0
      %9000 = vmatmul.mubr.f32.gmra.mrb[0].mxu0 %v8838
      %v9001 = vpop.f32.mrb[0].mxu0
      %v9002 = vadd.f32 0.0, %v9001
      %v9003 = vpop.f32.mrb[0].mxu0
      %9004 = vmatprep.mubr.f32.mxu0 0.0
      %9005 = vmatmul.mubr.f32.gmra.mrb[0].mxu0 %v8841
      %v9006 = vpop.f32.mrb[0].mxu0
      %v9007 = vadd.f32 0.0, %v9006
      %v9008 = vpop.f32.mrb[0].mxu0
      %9009 = vdwg.mxu0
      %v9010 = vadd.f32 %v8818, %v8914
      %v9011 = vadd.f32 %v8819, %v8916
      %v9012 = vadd.f32 %v8820, %v8997
      %v9013 = vadd.f32 %v8821, %v8920
      %v9014 = vadd.f32 %v8822, %v8922
      %v9015 = vadd.f32 %v8823, %v9002
      %v9016 = vadd.f32 %v8824, %v8926
      %v9017 = vadd.f32 %v8825, %v8928
      %v9018 = vadd.f32 %v8826, %v9007
      %s9019 = scalar_lea.vmem %s1, 1056
      %v9020 = vld [vmem:[%s9019] sm:$0xff]
      %v9021 = vld [vmem:[%s9019 + $0x8] sm:$0xff]
      %v9022 = vld [vmem:[%s9019 + $0x10] sm:$0xff]
      %9023 = vrot.lane.b32.xlu0 %v2954, 122
      %v9024 = vpop.permute.xlu0 %9023
      %v9025 = vsel %vm1360, %v1359, %v9024
      %v9027 = vsel %vm192, %v9020, 0
      %v9030 = vsel %vm192, %v9021, 0
      %v9033 = vsel %vm192, %v9022, 0
      %v9035 = vsel %vm202, %v9025, 0
      %v9037 = vsel %vm202, %v9024, 0
      %9039 = vmatprep.subr.mxu0 %v9035
      %9040 = vmatpush1.msra.mxu0 %v1374
      %9041 = vmatprep.subr.mxu0 0.0
      %9042 = vmatpush1.msra.mxu0 0.0
      %9043 = vmatprep.subr.mxu0 0.0
      %9044 = vmatpush1.msra.mxu0 0.0
      %9045 = vmatprep.subr.mxu0 0.0
      %9046 = vmatpush1.msra.mxu0 0.0
      %9047 = vmatprep.subr.mxu0 0.0
      %9048 = vmatpush1.msra.mxu0 0.0
      %9049 = vmatprep.subr.mxu0 0.0
      %9050 = vmatpush1.msra.mxu0 0.0
      %9051 = vmatprep.subr.mxu0 0.0
      %9052 = vmatpush1.msra.mxu0 0.0
      %9053 = vmatprep.subr.mxu0 0.0
      %9054 = vmatpush1.msra.mxu0 0.0
      %9055 = vmatprep.subr.mxu0 0.0
      %9056 = vmatpush1.msra.mxu0 0.0
      %9057 = vmatprep.subr.mxu0 0.0
      %9058 = vmatpush1.msra.mxu0 0.0
      %9059 = vmatprep.subr.mxu0 0.0
      %9060 = vmatpush1.msra.mxu0 0.0
      %9061 = vmatprep.subr.mxu0 0.0
      %9062 = vmatpush1.msra.mxu0 0.0
      %9063 = vmatprep.subr.mxu0 0.0
      %9064 = vmatpush1.msra.mxu0 0.0
      %9065 = vmatprep.subr.mxu0 0.0
      %9066 = vmatpush1.msra.mxu0 0.0
      %9067 = vmatprep.subr.mxu0 0.0
      %9068 = vmatpush1.msra.mxu0 0.0
      %9069 = vmatprep.subr.mxu0 0.0
      %9070 = vmatpush1.msra.mxu0 0.0
      %9071 = vmatprep.subr.mxu0 0.0
      %9072 = vmatpush1.msra.mxu0 0.0
      %9073 = vmatprep.subr.mxu0 0.0
      %9074 = vmatpush1.msra.mxu0 0.0
      %9075 = vmatprep.subr.mxu0 0.0
      %9076 = vmatpush1.msra.mxu0 0.0
      %9077 = vmatprep.subr.mxu0 0.0
      %9078 = vmatpush1.msra.mxu0 0.0
      %9079 = vmatprep.subr.mxu0 0.0
      %9080 = vmatpush1.msra.mxu0 0.0
      %9081 = vmatprep.subr.mxu0 0.0
      %9082 = vmatpush1.msra.mxu0 0.0
      %9083 = vmatprep.subr.mxu0 0.0
      %9084 = vmatpush1.msra.mxu0 0.0
      %9085 = vmatprep.subr.mxu0 0.0
      %9086 = vmatpush1.msra.mxu0 0.0
      %9087 = vmatprep.subr.mxu0 0.0
      %9088 = vmatpush1.msra.mxu0 0.0
      %9089 = vmatprep.subr.mxu0 0.0
      %9090 = vmatpush1.msra.mxu0 0.0
      %9091 = vmatprep.subr.mxu0 0.0
      %9092 = vmatpush1.msra.mxu0 0.0
      %9093 = vmatprep.subr.mxu0 0.0
      %9094 = vmatpush1.msra.mxu0 0.0
      %9095 = vmatprep.subr.mxu0 0.0
      %9096 = vmatpush1.msra.mxu0 0.0
      %9097 = vmatprep.subr.mxu0 0.0
      %9098 = vmatpush1.msra.mxu0 0.0
      %9099 = vmatprep.subr.mxu0 0.0
      %9100 = vmatpush1.msra.mxu0 0.0
      %9101 = vmatprep.subr.mxu0 0.0
      %9102 = vmatpush1.msra.mxu0 0.0
      %9103 = vmatprep.mubr.f32.mxu0 0.0
      %9104 = vmatmul.mubr.f32.gmra.mrb[0].mxu0 %v9027
      %v9105 = vpop.f32.mrb[0].mxu0
      %v9106 = vadd.f32 0.0, %v9105
      %v9107 = vpop.f32.mrb[0].mxu0
      %v9108 = vadd.f32 0.0, %v9107
      %9109 = vmatprep.mubr.f32.mxu0 0.0
      %9110 = vmatmul.mubr.f32.gmra.mrb[0].mxu0 %v9030
      %v9111 = vpop.f32.mrb[0].mxu0
      %v9112 = vadd.f32 0.0, %v9111
      %v9113 = vpop.f32.mrb[0].mxu0
      %v9114 = vadd.f32 0.0, %v9113
      %9115 = vmatprep.mubr.f32.mxu0 0.0
      %9116 = vmatmul.mubr.f32.gmra.mrb[0].mxu0 %v9033
      %v9117 = vpop.f32.mrb[0].mxu0
      %v9118 = vadd.f32 0.0, %v9117
      %v9119 = vpop.f32.mrb[0].mxu0
      %v9120 = vadd.f32 0.0, %v9119
      %9121 = vdwg.mxu0
      %9122 = vmatprep.subr.mxu0 0.0
      %9123 = vmatpush1.msra.mxu0 %v9037
      %9124 = vmatprep.subr.mxu0 0.0
      %9125 = vmatpush1.msra.mxu0 0.0
      %9126 = vmatprep.subr.mxu0 0.0
      %9127 = vmatpush1.msra.mxu0 0.0
      %9128 = vmatprep.subr.mxu0 0.0
      %9129 = vmatpush1.msra.mxu0 0.0
      %9130 = vmatprep.subr.mxu0 0.0
      %9131 = vmatpush1.msra.mxu0 0.0
      %9132 = vmatprep.subr.mxu0 0.0
      %9133 = vmatpush1.msra.mxu0 0.0
      %9134 = vmatprep.subr.mxu0 0.0
      %9135 = vmatpush1.msra.mxu0 0.0
      %9136 = vmatprep.subr.mxu0 0.0
      %9137 = vmatpush1.msra.mxu0 0.0
      %9138 = vmatprep.subr.mxu0 0.0
      %9139 = vmatpush1.msra.mxu0 0.0
      %9140 = vmatprep.subr.mxu0 0.0
      %9141 = vmatpush1.msra.mxu0 0.0
      %9142 = vmatprep.subr.mxu0 0.0
      %9143 = vmatpush1.msra.mxu0 0.0
      %9144 = vmatprep.subr.mxu0 0.0
      %9145 = vmatpush1.msra.mxu0 0.0
      %9146 = vmatprep.subr.mxu0 0.0
      %9147 = vmatpush1.msra.mxu0 0.0
      %9148 = vmatprep.subr.mxu0 0.0
      %9149 = vmatpush1.msra.mxu0 0.0
      %9150 = vmatprep.subr.mxu0 0.0
      %9151 = vmatpush1.msra.mxu0 0.0
      %9152 = vmatprep.subr.mxu0 0.0
      %9153 = vmatpush1.msra.mxu0 0.0
      %9154 = vmatprep.subr.mxu0 0.0
      %9155 = vmatpush1.msra.mxu0 0.0
      %9156 = vmatprep.subr.mxu0 0.0
      %9157 = vmatpush1.msra.mxu0 0.0
      %9158 = vmatprep.subr.mxu0 0.0
      %9159 = vmatpush1.msra.mxu0 0.0
      %9160 = vmatprep.subr.mxu0 0.0
      %9161 = vmatpush1.msra.mxu0 0.0
      %9162 = vmatprep.subr.mxu0 0.0
      %9163 = vmatpush1.msra.mxu0 0.0
      %9164 = vmatprep.subr.mxu0 0.0
      %9165 = vmatpush1.msra.mxu0 0.0
      %9166 = vmatprep.subr.mxu0 0.0
      %9167 = vmatpush1.msra.mxu0 0.0
      %9168 = vmatprep.subr.mxu0 0.0
      %9169 = vmatpush1.msra.mxu0 0.0
      %9170 = vmatprep.subr.mxu0 0.0
      %9171 = vmatpush1.msra.mxu0 0.0
      %9172 = vmatprep.subr.mxu0 0.0
      %9173 = vmatpush1.msra.mxu0 0.0
      %9174 = vmatprep.subr.mxu0 0.0
      %9175 = vmatpush1.msra.mxu0 0.0
      %9176 = vmatprep.subr.mxu0 0.0
      %9177 = vmatpush1.msra.mxu0 0.0
      %9178 = vmatprep.subr.mxu0 0.0
      %9179 = vmatpush1.msra.mxu0 0.0
      %9180 = vmatprep.subr.mxu0 0.0
      %9181 = vmatpush1.msra.mxu0 0.0
      %9182 = vmatprep.subr.mxu0 0.0
      %9183 = vmatpush1.msra.mxu0 0.0
      %9184 = vmatprep.subr.mxu0 0.0
      %9185 = vmatpush1.msra.mxu0 0.0
      %9186 = vmatprep.mubr.f32.mxu0 0.0
      %9187 = vmatmul.mubr.f32.gmra.mrb[0].mxu0 %v9027
      %v9188 = vpop.f32.mrb[0].mxu0
      %v9189 = vadd.f32 0.0, %v9188
      %v9190 = vpop.f32.mrb[0].mxu0
      %9191 = vmatprep.mubr.f32.mxu0 0.0
      %9192 = vmatmul.mubr.f32.gmra.mrb[0].mxu0 %v9030
      %v9193 = vpop.f32.mrb[0].mxu0
      %v9194 = vadd.f32 0.0, %v9193
      %v9195 = vpop.f32.mrb[0].mxu0
      %9196 = vmatprep.mubr.f32.mxu0 0.0
      %9197 = vmatmul.mubr.f32.gmra.mrb[0].mxu0 %v9033
      %v9198 = vpop.f32.mrb[0].mxu0
      %v9199 = vadd.f32 0.0, %v9198
      %v9200 = vpop.f32.mrb[0].mxu0
      %9201 = vdwg.mxu0
      %v9202 = vadd.f32 %v9010, %v9106
      %v9203 = vadd.f32 %v9011, %v9108
      %v9204 = vadd.f32 %v9012, %v9189
      %v9205 = vadd.f32 %v9013, %v9112
      %v9206 = vadd.f32 %v9014, %v9114
      %v9207 = vadd.f32 %v9015, %v9194
      %v9208 = vadd.f32 %v9016, %v9118
      %v9209 = vadd.f32 %v9017, %v9120
      %v9210 = vadd.f32 %v9018, %v9199
      %s9211 = scalar_lea.vmem %s1, 1080
      %v9212 = vld [vmem:[%s9211] sm:$0xff]
      %v9213 = vld [vmem:[%s9211 + $0x8] sm:$0xff]
      %v9214 = vld [vmem:[%s9211 + $0x10] sm:$0xff]
      %9215 = vrot.lane.b32.xlu0 %v182, 121
      %v9216 = vpop.permute.xlu0 %9215
      %9217 = vrot.lane.b32.xlu0 %v172, 121
      %v9218 = vpop.permute.xlu0 %9217
      %9219 = vrot.lane.b32.xlu0 %v2954, 121
      %v9220 = vpop.permute.xlu0 %9219
      %vm9221 = vcmask 990208
      %v9222 = vsel %vm9221, %v9216, %v9218
      %v9223 = vsel %vm9221, %v9218, %v9220
      %v9225 = vsel %vm192, %v9212, 0
      %v9228 = vsel %vm192, %v9213, 0
      %v9231 = vsel %vm192, %v9214, 0
      %v9233 = vsel %vm202, %v9222, 0
      %v9235 = vsel %vm202, %v9223, 0
      %v9237 = vsel %vm202, %v9220, 0
      %9239 = vmatprep.subr.mxu0 %v9235
      %9240 = vmatpush1.msra.mxu0 %v9233
      %9241 = vmatprep.subr.mxu0 0.0
      %9242 = vmatpush1.msra.mxu0 0.0
      %9243 = vmatprep.subr.mxu0 0.0
      %9244 = vmatpush1.msra.mxu0 0.0
      %9245 = vmatprep.subr.mxu0 0.0
      %9246 = vmatpush1.msra.mxu0 0.0
      %9247 = vmatprep.subr.mxu0 0.0
      %9248 = vmatpush1.msra.mxu0 0.0
      %9249 = vmatprep.subr.mxu0 0.0
      %9250 = vmatpush1.msra.mxu0 0.0
      %9251 = vmatprep.subr.mxu0 0.0
      %9252 = vmatpush1.msra.mxu0 0.0
      %9253 = vmatprep.subr.mxu0 0.0
      %9254 = vmatpush1.msra.mxu0 0.0
      %9255 = vmatprep.subr.mxu0 0.0
      %9256 = vmatpush1.msra.mxu0 0.0
      %9257 = vmatprep.subr.mxu0 0.0
      %9258 = vmatpush1.msra.mxu0 0.0
      %9259 = vmatprep.subr.mxu0 0.0
      %9260 = vmatpush1.msra.mxu0 0.0
      %9261 = vmatprep.subr.mxu0 0.0
      %9262 = vmatpush1.msra.mxu0 0.0
      %9263 = vmatprep.subr.mxu0 0.0
      %9264 = vmatpush1.msra.mxu0 0.0
      %9265 = vmatprep.subr.mxu0 0.0
      %9266 = vmatpush1.msra.mxu0 0.0
      %9267 = vmatprep.subr.mxu0 0.0
      %9268 = vmatpush1.msra.mxu0 0.0
      %9269 = vmatprep.subr.mxu0 0.0
      %9270 = vmatpush1.msra.mxu0 0.0
      %9271 = vmatprep.subr.mxu0 0.0
      %9272 = vmatpush1.msra.mxu0 0.0
      %9273 = vmatprep.subr.mxu0 0.0
      %9274 = vmatpush1.msra.mxu0 0.0
      %9275 = vmatprep.subr.mxu0 0.0
      %9276 = vmatpush1.msra.mxu0 0.0
      %9277 = vmatprep.subr.mxu0 0.0
      %9278 = vmatpush1.msra.mxu0 0.0
      %9279 = vmatprep.subr.mxu0 0.0
      %9280 = vmatpush1.msra.mxu0 0.0
      %9281 = vmatprep.subr.mxu0 0.0
      %9282 = vmatpush1.msra.mxu0 0.0
      %9283 = vmatprep.subr.mxu0 0.0
      %9284 = vmatpush1.msra.mxu0 0.0
      %9285 = vmatprep.subr.mxu0 0.0
      %9286 = vmatpush1.msra.mxu0 0.0
      %9287 = vmatprep.subr.mxu0 0.0
      %9288 = vmatpush1.msra.mxu0 0.0
      %9289 = vmatprep.subr.mxu0 0.0
      %9290 = vmatpush1.msra.mxu0 0.0
      %9291 = vmatprep.subr.mxu0 0.0
      %9292 = vmatpush1.msra.mxu0 0.0
      %9293 = vmatprep.subr.mxu0 0.0
      %9294 = vmatpush1.msra.mxu0 0.0
      %9295 = vmatprep.subr.mxu0 0.0
      %9296 = vmatpush1.msra.mxu0 0.0
      %9297 = vmatprep.subr.mxu0 0.0
      %9298 = vmatpush1.msra.mxu0 0.0
      %9299 = vmatprep.subr.mxu0 0.0
      %9300 = vmatpush1.msra.mxu0 0.0
      %9301 = vmatprep.subr.mxu0 0.0
      %9302 = vmatpush1.msra.mxu0 0.0
      %9303 = vmatprep.mubr.f32.mxu0 0.0
      %9304 = vmatmul.mubr.f32.gmra.mrb[0].mxu0 %v9225
      %v9305 = vpop.f32.mrb[0].mxu0
      %v9306 = vadd.f32 0.0, %v9305
      %v9307 = vpop.f32.mrb[0].mxu0
      %v9308 = vadd.f32 0.0, %v9307
      %9309 = vmatprep.mubr.f32.mxu0 0.0
      %9310 = vmatmul.mubr.f32.gmra.mrb[0].mxu0 %v9228
      %v9311 = vpop.f32.mrb[0].mxu0
      %v9312 = vadd.f32 0.0, %v9311
      %v9313 = vpop.f32.mrb[0].mxu0
      %v9314 = vadd.f32 0.0, %v9313
      %9315 = vmatprep.mubr.f32.mxu0 0.0
      %9316 = vmatmul.mubr.f32.gmra.mrb[0].mxu0 %v9231
      %v9317 = vpop.f32.mrb[0].mxu0
      %v9318 = vadd.f32 0.0, %v9317
      %v9319 = vpop.f32.mrb[0].mxu0
      %v9320 = vadd.f32 0.0, %v9319
      %9321 = vdwg.mxu0
      %9322 = vmatprep.subr.mxu0 0.0
      %9323 = vmatpush1.msra.mxu0 %v9237
      %9324 = vmatprep.subr.mxu0 0.0
      %9325 = vmatpush1.msra.mxu0 0.0
      %9326 = vmatprep.subr.mxu0 0.0
      %9327 = vmatpush1.msra.mxu0 0.0
      %9328 = vmatprep.subr.mxu0 0.0
      %9329 = vmatpush1.msra.mxu0 0.0
      %9330 = vmatprep.subr.mxu0 0.0
      %9331 = vmatpush1.msra.mxu0 0.0
      %9332 = vmatprep.subr.mxu0 0.0
      %9333 = vmatpush1.msra.mxu0 0.0
      %9334 = vmatprep.subr.mxu0 0.0
      %9335 = vmatpush1.msra.mxu0 0.0
      %9336 = vmatprep.subr.mxu0 0.0
      %9337 = vmatpush1.msra.mxu0 0.0
      %9338 = vmatprep.subr.mxu0 0.0
      %9339 = vmatpush1.msra.mxu0 0.0
      %9340 = vmatprep.subr.mxu0 0.0
      %9341 = vmatpush1.msra.mxu0 0.0
      %9342 = vmatprep.subr.mxu0 0.0
      %9343 = vmatpush1.msra.mxu0 0.0
      %9344 = vmatprep.subr.mxu0 0.0
      %9345 = vmatpush1.msra.mxu0 0.0
      %9346 = vmatprep.subr.mxu0 0.0
      %9347 = vmatpush1.msra.mxu0 0.0
      %9348 = vmatprep.subr.mxu0 0.0
      %9349 = vmatpush1.msra.mxu0 0.0
      %9350 = vmatprep.subr.mxu0 0.0
      %9351 = vmatpush1.msra.mxu0 0.0
      %9352 = vmatprep.subr.mxu0 0.0
      %9353 = vmatpush1.msra.mxu0 0.0
      %9354 = vmatprep.subr.mxu0 0.0
      %9355 = vmatpush1.msra.mxu0 0.0
      %9356 = vmatprep.subr.mxu0 0.0
      %9357 = vmatpush1.msra.mxu0 0.0
      %9358 = vmatprep.subr.mxu0 0.0
      %9359 = vmatpush1.msra.mxu0 0.0
      %9360 = vmatprep.subr.mxu0 0.0
      %9361 = vmatpush1.msra.mxu0 0.0
      %9362 = vmatprep.subr.mxu0 0.0
      %9363 = vmatpush1.msra.mxu0 0.0
      %9364 = vmatprep.subr.mxu0 0.0
      %9365 = vmatpush1.msra.mxu0 0.0
      %9366 = vmatprep.subr.mxu0 0.0
      %9367 = vmatpush1.msra.mxu0 0.0
      %9368 = vmatprep.subr.mxu0 0.0
      %9369 = vmatpush1.msra.mxu0 0.0
      %9370 = vmatprep.subr.mxu0 0.0
      %9371 = vmatpush1.msra.mxu0 0.0
      %9372 = vmatprep.subr.mxu0 0.0
      %9373 = vmatpush1.msra.mxu0 0.0
      %9374 = vmatprep.subr.mxu0 0.0
      %9375 = vmatpush1.msra.mxu0 0.0
      %9376 = vmatprep.subr.mxu0 0.0
      %9377 = vmatpush1.msra.mxu0 0.0
      %9378 = vmatprep.subr.mxu0 0.0
      %9379 = vmatpush1.msra.mxu0 0.0
      %9380 = vmatprep.subr.mxu0 0.0
      %9381 = vmatpush1.msra.mxu0 0.0
      %9382 = vmatprep.subr.mxu0 0.0
      %9383 = vmatpush1.msra.mxu0 0.0
      %9384 = vmatprep.subr.mxu0 0.0
      %9385 = vmatpush1.msra.mxu0 0.0
      %9386 = vmatprep.mubr.f32.mxu0 0.0
      %9387 = vmatmul.mubr.f32.gmra.mrb[0].mxu0 %v9225
      %v9388 = vpop.f32.mrb[0].mxu0
      %v9389 = vadd.f32 0.0, %v9388
      %v9390 = vpop.f32.mrb[0].mxu0
      %9391 = vmatprep.mubr.f32.mxu0 0.0
      %9392 = vmatmul.mubr.f32.gmra.mrb[0].mxu0 %v9228
      %v9393 = vpop.f32.mrb[0].mxu0
      %v9394 = vadd.f32 0.0, %v9393
      %v9395 = vpop.f32.mrb[0].mxu0
      %9396 = vmatprep.mubr.f32.mxu0 0.0
      %9397 = vmatmul.mubr.f32.gmra.mrb[0].mxu0 %v9231
      %v9398 = vpop.f32.mrb[0].mxu0
      %v9399 = vadd.f32 0.0, %v9398
      %v9400 = vpop.f32.mrb[0].mxu0
      %9401 = vdwg.mxu0
      %v9402 = vadd.f32 %v9202, %v9306
      %v9403 = vadd.f32 %v9203, %v9308
      %v9404 = vadd.f32 %v9204, %v9389
      %v9405 = vadd.f32 %v9205, %v9312
      %v9406 = vadd.f32 %v9206, %v9314
      %v9407 = vadd.f32 %v9207, %v9394
      %v9408 = vadd.f32 %v9208, %v9318
      %v9409 = vadd.f32 %v9209, %v9320
      %v9410 = vadd.f32 %v9210, %v9399
      %s9411 = scalar_lea.vmem %s1, 1104
      %v9412 = vld [vmem:[%s9411] sm:$0xff]
      %v9413 = vld [vmem:[%s9411 + $0x8] sm:$0xff]
      %v9414 = vld [vmem:[%s9411 + $0x10] sm:$0xff]
      %9415 = vrot.lane.b32.xlu0 %v182, 120
      %v9416 = vpop.permute.xlu0 %9415
      %9417 = vrot.lane.b32.xlu0 %v172, 120
      %v9418 = vpop.permute.xlu0 %9417
      %9419 = vrot.lane.b32.xlu0 %v2954, 120
      %v9420 = vpop.permute.xlu0 %9419
      %vm9421 = vcmask 982016
      %v9422 = vsel %vm9421, %v9416, %v9418
      %v9423 = vsel %vm9421, %v9418, %v9420
      %v9425 = vsel %vm192, %v9412, 0
      %v9428 = vsel %vm192, %v9413, 0
      %v9431 = vsel %vm192, %v9414, 0
      %v9433 = vsel %vm202, %v9422, 0
      %v9435 = vsel %vm202, %v9423, 0
      %v9437 = vsel %vm202, %v9420, 0
      %9439 = vmatprep.subr.mxu0 %v9435
      %9440 = vmatpush1.msra.mxu0 %v9433
      %9441 = vmatprep.subr.mxu0 0.0
      %9442 = vmatpush1.msra.mxu0 0.0
      %9443 = vmatprep.subr.mxu0 0.0
      %9444 = vmatpush1.msra.mxu0 0.0
      %9445 = vmatprep.subr.mxu0 0.0
      %9446 = vmatpush1.msra.mxu0 0.0
      %9447 = vmatprep.subr.mxu0 0.0
      %9448 = vmatpush1.msra.mxu0 0.0
      %9449 = vmatprep.subr.mxu0 0.0
      %9450 = vmatpush1.msra.mxu0 0.0
      %9451 = vmatprep.subr.mxu0 0.0
      %9452 = vmatpush1.msra.mxu0 0.0
      %9453 = vmatprep.subr.mxu0 0.0
      %9454 = vmatpush1.msra.mxu0 0.0
      %9455 = vmatprep.subr.mxu0 0.0
      %9456 = vmatpush1.msra.mxu0 0.0
      %9457 = vmatprep.subr.mxu0 0.0
      %9458 = vmatpush1.msra.mxu0 0.0
      %9459 = vmatprep.subr.mxu0 0.0
      %9460 = vmatpush1.msra.mxu0 0.0
      %9461 = vmatprep.subr.mxu0 0.0
      %9462 = vmatpush1.msra.mxu0 0.0
      %9463 = vmatprep.subr.mxu0 0.0
      %9464 = vmatpush1.msra.mxu0 0.0
      %9465 = vmatprep.subr.mxu0 0.0
      %9466 = vmatpush1.msra.mxu0 0.0
      %9467 = vmatprep.subr.mxu0 0.0
      %9468 = vmatpush1.msra.mxu0 0.0
      %9469 = vmatprep.subr.mxu0 0.0
      %9470 = vmatpush1.msra.mxu0 0.0
      %9471 = vmatprep.subr.mxu0 0.0
      %9472 = vmatpush1.msra.mxu0 0.0
      %9473 = vmatprep.subr.mxu0 0.0
      %9474 = vmatpush1.msra.mxu0 0.0
      %9475 = vmatprep.subr.mxu0 0.0
      %9476 = vmatpush1.msra.mxu0 0.0
      %9477 = vmatprep.subr.mxu0 0.0
      %9478 = vmatpush1.msra.mxu0 0.0
      %9479 = vmatprep.subr.mxu0 0.0
      %9480 = vmatpush1.msra.mxu0 0.0
      %9481 = vmatprep.subr.mxu0 0.0
      %9482 = vmatpush1.msra.mxu0 0.0
      %9483 = vmatprep.subr.mxu0 0.0
      %9484 = vmatpush1.msra.mxu0 0.0
      %9485 = vmatprep.subr.mxu0 0.0
      %9486 = vmatpush1.msra.mxu0 0.0
      %9487 = vmatprep.subr.mxu0 0.0
      %9488 = vmatpush1.msra.mxu0 0.0
      %9489 = vmatprep.subr.mxu0 0.0
      %9490 = vmatpush1.msra.mxu0 0.0
      %9491 = vmatprep.subr.mxu0 0.0
      %9492 = vmatpush1.msra.mxu0 0.0
      %9493 = vmatprep.subr.mxu0 0.0
      %9494 = vmatpush1.msra.mxu0 0.0
      %9495 = vmatprep.subr.mxu0 0.0
      %9496 = vmatpush1.msra.mxu0 0.0
      %9497 = vmatprep.subr.mxu0 0.0
      %9498 = vmatpush1.msra.mxu0 0.0
      %9499 = vmatprep.subr.mxu0 0.0
      %9500 = vmatpush1.msra.mxu0 0.0
      %9501 = vmatprep.subr.mxu0 0.0
      %9502 = vmatpush1.msra.mxu0 0.0
      %9503 = vmatprep.mubr.f32.mxu0 0.0
      %9504 = vmatmul.mubr.f32.gmra.mrb[0].mxu0 %v9425
      %v9505 = vpop.f32.mrb[0].mxu0
      %v9506 = vadd.f32 0.0, %v9505
      %v9507 = vpop.f32.mrb[0].mxu0
      %v9508 = vadd.f32 0.0, %v9507
      %9509 = vmatprep.mubr.f32.mxu0 0.0
      %9510 = vmatmul.mubr.f32.gmra.mrb[0].mxu0 %v9428
      %v9511 = vpop.f32.mrb[0].mxu0
      %v9512 = vadd.f32 0.0, %v9511
      %v9513 = vpop.f32.mrb[0].mxu0
      %v9514 = vadd.f32 0.0, %v9513
      %9515 = vmatprep.mubr.f32.mxu0 0.0
      %9516 = vmatmul.mubr.f32.gmra.mrb[0].mxu0 %v9431
      %v9517 = vpop.f32.mrb[0].mxu0
      %v9518 = vadd.f32 0.0, %v9517
      %v9519 = vpop.f32.mrb[0].mxu0
      %v9520 = vadd.f32 0.0, %v9519
      %9521 = vdwg.mxu0
      %9522 = vmatprep.subr.mxu0 0.0
      %9523 = vmatpush1.msra.mxu0 %v9437
      %9524 = vmatprep.subr.mxu0 0.0
      %9525 = vmatpush1.msra.mxu0 0.0
      %9526 = vmatprep.subr.mxu0 0.0
      %9527 = vmatpush1.msra.mxu0 0.0
      %9528 = vmatprep.subr.mxu0 0.0
      %9529 = vmatpush1.msra.mxu0 0.0
      %9530 = vmatprep.subr.mxu0 0.0
      %9531 = vmatpush1.msra.mxu0 0.0
      %9532 = vmatprep.subr.mxu0 0.0
      %9533 = vmatpush1.msra.mxu0 0.0
      %9534 = vmatprep.subr.mxu0 0.0
      %9535 = vmatpush1.msra.mxu0 0.0
      %9536 = vmatprep.subr.mxu0 0.0
      %9537 = vmatpush1.msra.mxu0 0.0
      %9538 = vmatprep.subr.mxu0 0.0
      %9539 = vmatpush1.msra.mxu0 0.0
      %9540 = vmatprep.subr.mxu0 0.0
      %9541 = vmatpush1.msra.mxu0 0.0
      %9542 = vmatprep.subr.mxu0 0.0
      %9543 = vmatpush1.msra.mxu0 0.0
      %9544 = vmatprep.subr.mxu0 0.0
      %9545 = vmatpush1.msra.mxu0 0.0
      %9546 = vmatprep.subr.mxu0 0.0
      %9547 = vmatpush1.msra.mxu0 0.0
      %9548 = vmatprep.subr.mxu0 0.0
      %9549 = vmatpush1.msra.mxu0 0.0
      %9550 = vmatprep.subr.mxu0 0.0
      %9551 = vmatpush1.msra.mxu0 0.0
      %9552 = vmatprep.subr.mxu0 0.0
      %9553 = vmatpush1.msra.mxu0 0.0
      %9554 = vmatprep.subr.mxu0 0.0
      %9555 = vmatpush1.msra.mxu0 0.0
      %9556 = vmatprep.subr.mxu0 0.0
      %9557 = vmatpush1.msra.mxu0 0.0
      %9558 = vmatprep.subr.mxu0 0.0
      %9559 = vmatpush1.msra.mxu0 0.0
      %9560 = vmatprep.subr.mxu0 0.0
      %9561 = vmatpush1.msra.mxu0 0.0
      %9562 = vmatprep.subr.mxu0 0.0
      %9563 = vmatpush1.msra.mxu0 0.0
      %9564 = vmatprep.subr.mxu0 0.0
      %9565 = vmatpush1.msra.mxu0 0.0
      %9566 = vmatprep.subr.mxu0 0.0
      %9567 = vmatpush1.msra.mxu0 0.0
      %9568 = vmatprep.subr.mxu0 0.0
      %9569 = vmatpush1.msra.mxu0 0.0
      %9570 = vmatprep.subr.mxu0 0.0
      %9571 = vmatpush1.msra.mxu0 0.0
      %9572 = vmatprep.subr.mxu0 0.0
      %9573 = vmatpush1.msra.mxu0 0.0
      %9574 = vmatprep.subr.mxu0 0.0
      %9575 = vmatpush1.msra.mxu0 0.0
      %9576 = vmatprep.subr.mxu0 0.0
      %9577 = vmatpush1.msra.mxu0 0.0
      %9578 = vmatprep.subr.mxu0 0.0
      %9579 = vmatpush1.msra.mxu0 0.0
      %9580 = vmatprep.subr.mxu0 0.0
      %9581 = vmatpush1.msra.mxu0 0.0
      %9582 = vmatprep.subr.mxu0 0.0
      %9583 = vmatpush1.msra.mxu0 0.0
      %9584 = vmatprep.subr.mxu0 0.0
      %9585 = vmatpush1.msra.mxu0 0.0
      %9586 = vmatprep.mubr.f32.mxu0 0.0
      %9587 = vmatmul.mubr.f32.gmra.mrb[0].mxu0 %v9425
      %v9588 = vpop.f32.mrb[0].mxu0
      %v9589 = vadd.f32 0.0, %v9588
      %v9590 = vpop.f32.mrb[0].mxu0
      %9591 = vmatprep.mubr.f32.mxu0 0.0
      %9592 = vmatmul.mubr.f32.gmra.mrb[0].mxu0 %v9428
      %v9593 = vpop.f32.mrb[0].mxu0
      %v9594 = vadd.f32 0.0, %v9593
      %v9595 = vpop.f32.mrb[0].mxu0
      %9596 = vmatprep.mubr.f32.mxu0 0.0
      %9597 = vmatmul.mubr.f32.gmra.mrb[0].mxu0 %v9431
      %v9598 = vpop.f32.mrb[0].mxu0
      %v9599 = vadd.f32 0.0, %v9598
      %v9600 = vpop.f32.mrb[0].mxu0
      %9601 = vdwg.mxu0
      %v9602 = vadd.f32 %v9402, %v9506
      %v9603 = vadd.f32 %v9403, %v9508
      %v9604 = vadd.f32 %v9404, %v9589
      %v9605 = vadd.f32 %v9405, %v9512
      %v9606 = vadd.f32 %v9406, %v9514
      %v9607 = vadd.f32 %v9407, %v9594
      %v9608 = vadd.f32 %v9408, %v9518
      %v9609 = vadd.f32 %v9409, %v9520
      %v9610 = vadd.f32 %v9410, %v9599
      %s9611 = scalar_lea.vmem %s1, 1128
      %v9612 = vld [vmem:[%s9611] sm:$0xff]
      %v9613 = vld [vmem:[%s9611 + $0x8] sm:$0xff]
      %v9614 = vld [vmem:[%s9611 + $0x10] sm:$0xff]
      %9615 = vrot.lane.b32.xlu0 %v182, 119
      %v9616 = vpop.permute.xlu0 %9615
      %9617 = vrot.lane.b32.xlu0 %v172, 119
      %v9618 = vpop.permute.xlu0 %9617
      %9619 = vrot.lane.b32.xlu0 %v2954, 119
      %v9620 = vpop.permute.xlu0 %9619
      %vm9621 = vcmask 973824
      %v9622 = vsel %vm9621, %v9616, %v9618
      %v9623 = vsel %vm9621, %v9618, %v9620
      %v9625 = vsel %vm192, %v9612, 0
      %v9628 = vsel %vm192, %v9613, 0
      %v9631 = vsel %vm192, %v9614, 0
      %v9633 = vsel %vm202, %v9622, 0
      %v9635 = vsel %vm202, %v9623, 0
      %v9637 = vsel %vm202, %v9620, 0
      %9639 = vmatprep.subr.mxu0 %v9635
      %9640 = vmatpush1.msra.mxu0 %v9633
      %9641 = vmatprep.subr.mxu0 0.0
      %9642 = vmatpush1.msra.mxu0 0.0
      %9643 = vmatprep.subr.mxu0 0.0
      %9644 = vmatpush1.msra.mxu0 0.0
      %9645 = vmatprep.subr.mxu0 0.0
      %9646 = vmatpush1.msra.mxu0 0.0
      %9647 = vmatprep.subr.mxu0 0.0
      %9648 = vmatpush1.msra.mxu0 0.0
      %9649 = vmatprep.subr.mxu0 0.0
      %9650 = vmatpush1.msra.mxu0 0.0
      %9651 = vmatprep.subr.mxu0 0.0
      %9652 = vmatpush1.msra.mxu0 0.0
      %9653 = vmatprep.subr.mxu0 0.0
      %9654 = vmatpush1.msra.mxu0 0.0
      %9655 = vmatprep.subr.mxu0 0.0
      %9656 = vmatpush1.msra.mxu0 0.0
      %9657 = vmatprep.subr.mxu0 0.0
      %9658 = vmatpush1.msra.mxu0 0.0
      %9659 = vmatprep.subr.mxu0 0.0
      %9660 = vmatpush1.msra.mxu0 0.0
      %9661 = vmatprep.subr.mxu0 0.0
      %9662 = vmatpush1.msra.mxu0 0.0
      %9663 = vmatprep.subr.mxu0 0.0
      %9664 = vmatpush1.msra.mxu0 0.0
      %9665 = vmatprep.subr.mxu0 0.0
      %9666 = vmatpush1.msra.mxu0 0.0
      %9667 = vmatprep.subr.mxu0 0.0
      %9668 = vmatpush1.msra.mxu0 0.0
      %9669 = vmatprep.subr.mxu0 0.0
      %9670 = vmatpush1.msra.mxu0 0.0
      %9671 = vmatprep.subr.mxu0 0.0
      %9672 = vmatpush1.msra.mxu0 0.0
      %9673 = vmatprep.subr.mxu0 0.0
      %9674 = vmatpush1.msra.mxu0 0.0
      %9675 = vmatprep.subr.mxu0 0.0
      %9676 = vmatpush1.msra.mxu0 0.0
      %9677 = vmatprep.subr.mxu0 0.0
      %9678 = vmatpush1.msra.mxu0 0.0
      %9679 = vmatprep.subr.mxu0 0.0
      %9680 = vmatpush1.msra.mxu0 0.0
      %9681 = vmatprep.subr.mxu0 0.0
      %9682 = vmatpush1.msra.mxu0 0.0
      %9683 = vmatprep.subr.mxu0 0.0
      %9684 = vmatpush1.msra.mxu0 0.0
      %9685 = vmatprep.subr.mxu0 0.0
      %9686 = vmatpush1.msra.mxu0 0.0
      %9687 = vmatprep.subr.mxu0 0.0
      %9688 = vmatpush1.msra.mxu0 0.0
      %9689 = vmatprep.subr.mxu0 0.0
      %9690 = vmatpush1.msra.mxu0 0.0
      %9691 = vmatprep.subr.mxu0 0.0
      %9692 = vmatpush1.msra.mxu0 0.0
      %9693 = vmatprep.subr.mxu0 0.0
      %9694 = vmatpush1.msra.mxu0 0.0
      %9695 = vmatprep.subr.mxu0 0.0
      %9696 = vmatpush1.msra.mxu0 0.0
      %9697 = vmatprep.subr.mxu0 0.0
      %9698 = vmatpush1.msra.mxu0 0.0
      %9699 = vmatprep.subr.mxu0 0.0
      %9700 = vmatpush1.msra.mxu0 0.0
      %9701 = vmatprep.subr.mxu0 0.0
      %9702 = vmatpush1.msra.mxu0 0.0
      %9703 = vmatprep.mubr.f32.mxu0 0.0
      %9704 = vmatmul.mubr.f32.gmra.mrb[0].mxu0 %v9625
      %v9705 = vpop.f32.mrb[0].mxu0
      %v9706 = vadd.f32 0.0, %v9705
      %v9707 = vpop.f32.mrb[0].mxu0
      %v9708 = vadd.f32 0.0, %v9707
      %9709 = vmatprep.mubr.f32.mxu0 0.0
      %9710 = vmatmul.mubr.f32.gmra.mrb[0].mxu0 %v9628
      %v9711 = vpop.f32.mrb[0].mxu0
      %v9712 = vadd.f32 0.0, %v9711
      %v9713 = vpop.f32.mrb[0].mxu0
      %v9714 = vadd.f32 0.0, %v9713
      %9715 = vmatprep.mubr.f32.mxu0 0.0
      %9716 = vmatmul.mubr.f32.gmra.mrb[0].mxu0 %v9631
      %v9717 = vpop.f32.mrb[0].mxu0
      %v9718 = vadd.f32 0.0, %v9717
      %v9719 = vpop.f32.mrb[0].mxu0
      %v9720 = vadd.f32 0.0, %v9719
      %9721 = vdwg.mxu0
      %9722 = vmatprep.subr.mxu0 0.0
      %9723 = vmatpush1.msra.mxu0 %v9637
      %9724 = vmatprep.subr.mxu0 0.0
      %9725 = vmatpush1.msra.mxu0 0.0
      %9726 = vmatprep.subr.mxu0 0.0
      %9727 = vmatpush1.msra.mxu0 0.0
      %9728 = vmatprep.subr.mxu0 0.0
      %9729 = vmatpush1.msra.mxu0 0.0
      %9730 = vmatprep.subr.mxu0 0.0
      %9731 = vmatpush1.msra.mxu0 0.0
      %9732 = vmatprep.subr.mxu0 0.0
      %9733 = vmatpush1.msra.mxu0 0.0
      %9734 = vmatprep.subr.mxu0 0.0
      %9735 = vmatpush1.msra.mxu0 0.0
      %9736 = vmatprep.subr.mxu0 0.0
      %9737 = vmatpush1.msra.mxu0 0.0
      %9738 = vmatprep.subr.mxu0 0.0
      %9739 = vmatpush1.msra.mxu0 0.0
      %9740 = vmatprep.subr.mxu0 0.0
      %9741 = vmatpush1.msra.mxu0 0.0
      %9742 = vmatprep.subr.mxu0 0.0
      %9743 = vmatpush1.msra.mxu0 0.0
      %9744 = vmatprep.subr.mxu0 0.0
      %9745 = vmatpush1.msra.mxu0 0.0
      %9746 = vmatprep.subr.mxu0 0.0
      %9747 = vmatpush1.msra.mxu0 0.0
      %9748 = vmatprep.subr.mxu0 0.0
      %9749 = vmatpush1.msra.mxu0 0.0
      %9750 = vmatprep.subr.mxu0 0.0
      %9751 = vmatpush1.msra.mxu0 0.0
      %9752 = vmatprep.subr.mxu0 0.0
      %9753 = vmatpush1.msra.mxu0 0.0
      %9754 = vmatprep.subr.mxu0 0.0
      %9755 = vmatpush1.msra.mxu0 0.0
      %9756 = vmatprep.subr.mxu0 0.0
      %9757 = vmatpush1.msra.mxu0 0.0
      %9758 = vmatprep.subr.mxu0 0.0
      %9759 = vmatpush1.msra.mxu0 0.0
      %9760 = vmatprep.subr.mxu0 0.0
      %9761 = vmatpush1.msra.mxu0 0.0
      %9762 = vmatprep.subr.mxu0 0.0
      %9763 = vmatpush1.msra.mxu0 0.0
      %9764 = vmatprep.subr.mxu0 0.0
      %9765 = vmatpush1.msra.mxu0 0.0
      %9766 = vmatprep.subr.mxu0 0.0
      %9767 = vmatpush1.msra.mxu0 0.0
      %9768 = vmatprep.subr.mxu0 0.0
      %9769 = vmatpush1.msra.mxu0 0.0
      %9770 = vmatprep.subr.mxu0 0.0
      %9771 = vmatpush1.msra.mxu0 0.0
      %9772 = vmatprep.subr.mxu0 0.0
      %9773 = vmatpush1.msra.mxu0 0.0
      %9774 = vmatprep.subr.mxu0 0.0
      %9775 = vmatpush1.msra.mxu0 0.0
      %9776 = vmatprep.subr.mxu0 0.0
      %9777 = vmatpush1.msra.mxu0 0.0
      %9778 = vmatprep.subr.mxu0 0.0
      %9779 = vmatpush1.msra.mxu0 0.0
      %9780 = vmatprep.subr.mxu0 0.0
      %9781 = vmatpush1.msra.mxu0 0.0
      %9782 = vmatprep.subr.mxu0 0.0
      %9783 = vmatpush1.msra.mxu0 0.0
      %9784 = vmatprep.subr.mxu0 0.0
      %9785 = vmatpush1.msra.mxu0 0.0
      %9786 = vmatprep.mubr.f32.mxu0 0.0
      %9787 = vmatmul.mubr.f32.gmra.mrb[0].mxu0 %v9625
      %v9788 = vpop.f32.mrb[0].mxu0
      %v9789 = vadd.f32 0.0, %v9788
      %v9790 = vpop.f32.mrb[0].mxu0
      %9791 = vmatprep.mubr.f32.mxu0 0.0
      %9792 = vmatmul.mubr.f32.gmra.mrb[0].mxu0 %v9628
      %v9793 = vpop.f32.mrb[0].mxu0
      %v9794 = vadd.f32 0.0, %v9793
      %v9795 = vpop.f32.mrb[0].mxu0
      %9796 = vmatprep.mubr.f32.mxu0 0.0
      %9797 = vmatmul.mubr.f32.gmra.mrb[0].mxu0 %v9631
      %v9798 = vpop.f32.mrb[0].mxu0
      %v9799 = vadd.f32 0.0, %v9798
      %v9800 = vpop.f32.mrb[0].mxu0
      %9801 = vdwg.mxu0
      %v9802 = vadd.f32 %v9602, %v9706
      %v9803 = vadd.f32 %v9603, %v9708
      %v9804 = vadd.f32 %v9604, %v9789
      %v9805 = vadd.f32 %v9605, %v9712
      %v9806 = vadd.f32 %v9606, %v9714
      %v9807 = vadd.f32 %v9607, %v9794
      %v9808 = vadd.f32 %v9608, %v9718
      %v9809 = vadd.f32 %v9609, %v9720
      %v9810 = vadd.f32 %v9610, %v9799
      %s9811 = scalar_lea.vmem %s1, 1152
      %v9812 = vld [vmem:[%s9811] sm:$0xff]
      %v9813 = vld [vmem:[%s9811 + $0x8] sm:$0xff]
      %v9814 = vld [vmem:[%s9811 + $0x10] sm:$0xff]
      %9815 = vrot.lane.b32.xlu0 %v182, 118
      %v9816 = vpop.permute.xlu0 %9815
      %9817 = vrot.lane.b32.xlu0 %v172, 118
      %v9818 = vpop.permute.xlu0 %9817
      %9819 = vrot.lane.b32.xlu0 %v2954, 118
      %v9820 = vpop.permute.xlu0 %9819
      %vm9821 = vcmask 965632
      %v9822 = vsel %vm9821, %v9816, %v9818
      %v9823 = vsel %vm9821, %v9818, %v9820
      %v9825 = vsel %vm192, %v9812, 0
      %v9828 = vsel %vm192, %v9813, 0
      %v9831 = vsel %vm192, %v9814, 0
      %v9833 = vsel %vm202, %v9822, 0
      %v9835 = vsel %vm202, %v9823, 0
      %v9837 = vsel %vm202, %v9820, 0
      %9839 = vmatprep.subr.mxu0 %v9835
      %9840 = vmatpush1.msra.mxu0 %v9833
      %9841 = vmatprep.subr.mxu0 0.0
      %9842 = vmatpush1.msra.mxu0 0.0
      %9843 = vmatprep.subr.mxu0 0.0
      %9844 = vmatpush1.msra.mxu0 0.0
      %9845 = vmatprep.subr.mxu0 0.0
      %9846 = vmatpush1.msra.mxu0 0.0
      %9847 = vmatprep.subr.mxu0 0.0
      %9848 = vmatpush1.msra.mxu0 0.0
      %9849 = vmatprep.subr.mxu0 0.0
      %9850 = vmatpush1.msra.mxu0 0.0
      %9851 = vmatprep.subr.mxu0 0.0
      %9852 = vmatpush1.msra.mxu0 0.0
      %9853 = vmatprep.subr.mxu0 0.0
      %9854 = vmatpush1.msra.mxu0 0.0
      %9855 = vmatprep.subr.mxu0 0.0
      %9856 = vmatpush1.msra.mxu0 0.0
      %9857 = vmatprep.subr.mxu0 0.0
      %9858 = vmatpush1.msra.mxu0 0.0
      %9859 = vmatprep.subr.mxu0 0.0
      %9860 = vmatpush1.msra.mxu0 0.0
      %9861 = vmatprep.subr.mxu0 0.0
      %9862 = vmatpush1.msra.mxu0 0.0
      %9863 = vmatprep.subr.mxu0 0.0
      %9864 = vmatpush1.msra.mxu0 0.0
      %9865 = vmatprep.subr.mxu0 0.0
      %9866 = vmatpush1.msra.mxu0 0.0
      %9867 = vmatprep.subr.mxu0 0.0
      %9868 = vmatpush1.msra.mxu0 0.0
      %9869 = vmatprep.subr.mxu0 0.0
      %9870 = vmatpush1.msra.mxu0 0.0
      %9871 = vmatprep.subr.mxu0 0.0
      %9872 = vmatpush1.msra.mxu0 0.0
      %9873 = vmatprep.subr.mxu0 0.0
      %9874 = vmatpush1.msra.mxu0 0.0
      %9875 = vmatprep.subr.mxu0 0.0
      %9876 = vmatpush1.msra.mxu0 0.0
      %9877 = vmatprep.subr.mxu0 0.0
      %9878 = vmatpush1.msra.mxu0 0.0
      %9879 = vmatprep.subr.mxu0 0.0
      %9880 = vmatpush1.msra.mxu0 0.0
      %9881 = vmatprep.subr.mxu0 0.0
      %9882 = vmatpush1.msra.mxu0 0.0
      %9883 = vmatprep.subr.mxu0 0.0
      %9884 = vmatpush1.msra.mxu0 0.0
      %9885 = vmatprep.subr.mxu0 0.0
      %9886 = vmatpush1.msra.mxu0 0.0
      %9887 = vmatprep.subr.mxu0 0.0
      %9888 = vmatpush1.msra.mxu0 0.0
      %9889 = vmatprep.subr.mxu0 0.0
      %9890 = vmatpush1.msra.mxu0 0.0
      %9891 = vmatprep.subr.mxu0 0.0
      %9892 = vmatpush1.msra.mxu0 0.0
      %9893 = vmatprep.subr.mxu0 0.0
      %9894 = vmatpush1.msra.mxu0 0.0
      %9895 = vmatprep.subr.mxu0 0.0
      %9896 = vmatpush1.msra.mxu0 0.0
      %9897 = vmatprep.subr.mxu0 0.0
      %9898 = vmatpush1.msra.mxu0 0.0
      %9899 = vmatprep.subr.mxu0 0.0
      %9900 = vmatpush1.msra.mxu0 0.0
      %9901 = vmatprep.subr.mxu0 0.0
      %9902 = vmatpush1.msra.mxu0 0.0
      %9903 = vmatprep.mubr.f32.mxu0 0.0
      %9904 = vmatmul.mubr.f32.gmra.mrb[0].mxu0 %v9825
      %v9905 = vpop.f32.mrb[0].mxu0
      %v9906 = vadd.f32 0.0, %v9905
      %v9907 = vpop.f32.mrb[0].mxu0
      %v9908 = vadd.f32 0.0, %v9907
      %9909 = vmatprep.mubr.f32.mxu0 0.0
      %9910 = vmatmul.mubr.f32.gmra.mrb[0].mxu0 %v9828
      %v9911 = vpop.f32.mrb[0].mxu0
      %v9912 = vadd.f32 0.0, %v9911
      %v9913 = vpop.f32.mrb[0].mxu0
      %v9914 = vadd.f32 0.0, %v9913
      %9915 = vmatprep.mubr.f32.mxu0 0.0
      %9916 = vmatmul.mubr.f32.gmra.mrb[0].mxu0 %v9831
      %v9917 = vpop.f32.mrb[0].mxu0
      %v9918 = vadd.f32 0.0, %v9917
      %v9919 = vpop.f32.mrb[0].mxu0
      %v9920 = vadd.f32 0.0, %v9919
      %9921 = vdwg.mxu0
      %9922 = vmatprep.subr.mxu0 0.0
      %9923 = vmatpush1.msra.mxu0 %v9837
      %9924 = vmatprep.subr.mxu0 0.0
      %9925 = vmatpush1.msra.mxu0 0.0
      %9926 = vmatprep.subr.mxu0 0.0
      %9927 = vmatpush1.msra.mxu0 0.0
      %9928 = vmatprep.subr.mxu0 0.0
      %9929 = vmatpush1.msra.mxu0 0.0
      %9930 = vmatprep.subr.mxu0 0.0
      %9931 = vmatpush1.msra.mxu0 0.0
      %9932 = vmatprep.subr.mxu0 0.0
      %9933 = vmatpush1.msra.mxu0 0.0
      %9934 = vmatprep.subr.mxu0 0.0
      %9935 = vmatpush1.msra.mxu0 0.0
      %9936 = vmatprep.subr.mxu0 0.0
      %9937 = vmatpush1.msra.mxu0 0.0
      %9938 = vmatprep.subr.mxu0 0.0
      %9939 = vmatpush1.msra.mxu0 0.0
      %9940 = vmatprep.subr.mxu0 0.0
      %9941 = vmatpush1.msra.mxu0 0.0
      %9942 = vmatprep.subr.mxu0 0.0
      %9943 = vmatpush1.msra.mxu0 0.0
      %9944 = vmatprep.subr.mxu0 0.0
      %9945 = vmatpush1.msra.mxu0 0.0
      %9946 = vmatprep.subr.mxu0 0.0
      %9947 = vmatpush1.msra.mxu0 0.0
      %9948 = vmatprep.subr.mxu0 0.0
      %9949 = vmatpush1.msra.mxu0 0.0
      %9950 = vmatprep.subr.mxu0 0.0
      %9951 = vmatpush1.msra.mxu0 0.0
      %9952 = vmatprep.subr.mxu0 0.0
      %9953 = vmatpush1.msra.mxu0 0.0
      %9954 = vmatprep.subr.mxu0 0.0
      %9955 = vmatpush1.msra.mxu0 0.0
      %9956 = vmatprep.subr.mxu0 0.0
      %9957 = vmatpush1.msra.mxu0 0.0
      %9958 = vmatprep.subr.mxu0 0.0
      %9959 = vmatpush1.msra.mxu0 0.0
      %9960 = vmatprep.subr.mxu0 0.0
      %9961 = vmatpush1.msra.mxu0 0.0
      %9962 = vmatprep.subr.mxu0 0.0
      %9963 = vmatpush1.msra.mxu0 0.0
      %9964 = vmatprep.subr.mxu0 0.0
      %9965 = vmatpush1.msra.mxu0 0.0
      %9966 = vmatprep.subr.mxu0 0.0
      %9967 = vmatpush1.msra.mxu0 0.0
      %9968 = vmatprep.subr.mxu0 0.0
      %9969 = vmatpush1.msra.mxu0 0.0
      %9970 = vmatprep.subr.mxu0 0.0
      %9971 = vmatpush1.msra.mxu0 0.0
      %9972 = vmatprep.subr.mxu0 0.0
      %9973 = vmatpush1.msra.mxu0 0.0
      %9974 = vmatprep.subr.mxu0 0.0
      %9975 = vmatpush1.msra.mxu0 0.0
      %9976 = vmatprep.subr.mxu0 0.0
      %9977 = vmatpush1.msra.mxu0 0.0
      %9978 = vmatprep.subr.mxu0 0.0
      %9979 = vmatpush1.msra.mxu0 0.0
      %9980 = vmatprep.subr.mxu0 0.0
      %9981 = vmatpush1.msra.mxu0 0.0
      %9982 = vmatprep.subr.mxu0 0.0
      %9983 = vmatpush1.msra.mxu0 0.0
      %9984 = vmatprep.subr.mxu0 0.0
      %9985 = vmatpush1.msra.mxu0 0.0
      %9986 = vmatprep.mubr.f32.mxu0 0.0
      %9987 = vmatmul.mubr.f32.gmra.mrb[0].mxu0 %v9825
      %v9988 = vpop.f32.mrb[0].mxu0
      %v9989 = vadd.f32 0.0, %v9988
      %v9990 = vpop.f32.mrb[0].mxu0
      %9991 = vmatprep.mubr.f32.mxu0 0.0
      %9992 = vmatmul.mubr.f32.gmra.mrb[0].mxu0 %v9828
      %v9993 = vpop.f32.mrb[0].mxu0
      %v9994 = vadd.f32 0.0, %v9993
      %v9995 = vpop.f32.mrb[0].mxu0
      %9996 = vmatprep.mubr.f32.mxu0 0.0
      %9997 = vmatmul.mubr.f32.gmra.mrb[0].mxu0 %v9831
      %v9998 = vpop.f32.mrb[0].mxu0
      %v9999 = vadd.f32 0.0, %v9998
      %v10000 = vpop.f32.mrb[0].mxu0
      %10001 = vdwg.mxu0
      %v10002 = vadd.f32 %v9802, %v9906
      %v10003 = vadd.f32 %v9803, %v9908
      %v10004 = vadd.f32 %v9804, %v9989
      %v10005 = vadd.f32 %v9805, %v9912
      %v10006 = vadd.f32 %v9806, %v9914
      %v10007 = vadd.f32 %v9807, %v9994
      %v10008 = vadd.f32 %v9808, %v9918
      %v10009 = vadd.f32 %v9809, %v9920
      %v10010 = vadd.f32 %v9810, %v9999
      %v10011 = vld [vmem:[%s2] sm:$0xff]
      %v10012 = vld [vmem:[%s2 + $0x8] sm:$0xff]
      %v10013 = vld [vmem:[%s2 + $0x10] sm:$0xff]
      %10015 = vset.pattern.permute.xlu0 0
      %10016 = vperm.xlu0 %10015, %v10011
      %v10017 = vpop.permute.xlu0 %10016
      %10020 = vset.pattern.permute.xlu0 0
      %10021 = vperm.xlu0 %10020, %v10012
      %v10022 = vpop.permute.xlu0 %10021
      %10025 = vset.pattern.permute.xlu0 0
      %10026 = vperm.xlu0 %10025, %v10013
      %v10027 = vpop.permute.xlu0 %10026
      %v10029 = vadd.f32 %v10002, %v10017
      %v10030 = vadd.f32 %v10003, %v10017
      %v10031 = vadd.f32 %v10004, %v10017
      %v10032 = vadd.f32 %v10005, %v10022
      %v10033 = vadd.f32 %v10006, %v10022
      %v10034 = vadd.f32 %v10007, %v10022
      %v10035 = vadd.f32 %v10008, %v10027
      %v10036 = vadd.f32 %v10009, %v10027
      %v10037 = vadd.f32 %v10010, %v10027
      %v10038 = vmax.f32 %v10029, 0.0
      %v10039 = vmax.f32 %v10030, 0.0
      %v10040 = vmax.f32 %v10031, 0.0
      %v10041 = vmax.f32 %v10032, 0.0
      %v10042 = vmax.f32 %v10033, 0.0
      %v10043 = vmax.f32 %v10034, 0.0
      %v10044 = vmax.f32 %v10035, 0.0
      %v10045 = vmax.f32 %v10036, 0.0
      %v10046 = vmax.f32 %v10037, 0.0
      %v10047 = vadd.f32 %v10038, %v10041
      %v10048 = vadd.f32 %v10039, %v10042
      %v10049 = vadd.f32 %v10040, %v10043
      %v10050 = vadd.f32 %v10047, %v10044
      %v10051 = vadd.f32 %v10048, %v10045
      %v10052 = vadd.f32 %v10049, %v10046
      %10053 = vst [vmem:[%s170] sm:$0xff] %v10050
      %10054 = vst [vmem:[%s170 + $0x8] sm:$0xff] %v10051
      %vm10055 = vcmask 785408
      %10056 = vst.msk [vmem:[%s170 + $0x10] sm:$0xff] %vm10055, %v10052
      %p10057 = scmp.lt.s32.totalorder %s14, 1
      %s10058 = scalar_select %p10057, %s14, 1
      %s10059 = smul.addr %s10058, 3
      %s10060 = smul.addr %s10059, 8
      %s10061 = scalar_lea.vmem %s3, %s10060
      // Predicated region
      $region33: #{multi_scale_feature_extractor.1} parent=31 // pred_check
        %p10062 = pneg %p100
      $region34: #{multi_scale_feature_extractor.1} parent=31 // pred_check_branch
        %10064 = sbr.rel (%p10062) target = $region36
      $region35: #{multi_scale_feature_extractor.1} parent=31 // pred_region
        _
      $region36: #{multi_scale_feature_extractor.1} parent=31 // pred_fallthru
        _
    $region32: #{multi_scale_feature_extractor.1} parent=5 // pred_fallthru
      _
    %p10065 = scmp.le.s32.totalorder 2, %s9
    // Predicated region
    $region37: #{multi_scale_feature_extractor.1} parent=5 // pred_check
      %p10066 = pneg %p10065
    $region38: #{multi_scale_feature_extractor.1} parent=5 // pred_check_branch
      %10068 = sbr.rel (%p10066) target = $region40
    $region39: #{multi_scale_feature_extractor.1} parent=5 // pred_region
      %s10069 = ssub.s32 %s9, 2
      // Predicated region
      $region41: #{multi_scale_feature_extractor.1} parent=39 // pred_check
        %p10070 = pneg %p106
      $region42: #{multi_scale_feature_extractor.1} parent=39 // pred_check_branch
        %10072 = sbr.rel (%p10070) target = $region44
      $region43: #{multi_scale_feature_extractor.1} parent=39 // pred_region
        %p10073 = scmp.lt.s32.totalorder %s15, 1
        %s10074 = scalar_select %p10073, %s15, 1
        %s10075 = smul.addr %s10074, 3
        %s10076 = smul.addr %s10075, 8
        %s10077 = scalar_lea.vmem %s3, %s10076
      $region44: #{multi_scale_feature_extractor.1} parent=39 // pred_fallthru
        _
    $region40: #{multi_scale_feature_extractor.1} parent=5 // pred_fallthru
      _
  $region6: #{multi_scale_feature_extractor.1} parent=0 // loop_footer
    %s13 = sadd.s32 1, %s9
  $region7: #{multi_scale_feature_extractor.1} parent=0 // loop_footer_branch
    %8 = sbr.rel target = $region3
  $region8: #{multi_scale_feature_extractor.1} parent=0 // loop_exit
    _

</llo_original>
